<compile_context>
chip_gen: v6e
topology: v6e:2x2x1
jax: 0.10.0
libtpu: 0.0.40
codegen_flags: <defaults>
</compile_context>

<pallas_src>
import functools

import jax
import jax.numpy as jnp
from jax.experimental import pallas as pl
from jax.experimental.pallas import tpu as pltpu


# ----------------------------- shape helpers (from the PyTorch file) --------
def size_conv(size, kernel, stride=1, padding=0):
    return int((size - kernel + 2 * padding) / stride + 1)


def size_max_pool(size, kernel, stride=None, padding=0):
    if stride is None:
        stride = kernel
    return int((size - kernel + 2 * padding) / stride + 1)


def calc_feat_linear_cifar(size):
    feat = size_conv(size, 3, 1, 1)
    feat = size_max_pool(feat, 2, 2)
    feat = size_conv(feat, 3, 1, 1)
    return size_max_pool(feat, 2, 2)


# ----------------------------- fused forward kernel --------------------------
def _conv_bn_relu_pool(xp_ref, patches_ref, z_ref, w_ref, b_ref, g_ref, bt_ref,
                       *, n, h, w, cin, cout, eps):
    """3x3 'same' conv as ONE concatenated-tap GEMM, + train-mode BatchNorm,
    ReLU and 2x2 stride-2 maxpool.  All operands stay in VMEM."""
    m = n * h * w
    # Pack the 9 shifted views into a (M, 9*Cin) patch matrix -> single MXU dot
    # (K = 9*Cin) instead of 9 shallow dots + 8 full-width VPU accumulations.
    for t in range(9):
        dh, dw = divmod(t, 3)
        patches_ref[:, t * cin:(t + 1) * cin] = (
            xp_ref[:, dh:dh + h, dw:dw + w, :].reshape(m, cin))
    acc = jnp.dot(patches_ref[...], w_ref[...],
                  preferred_element_type=jnp.float32) + b_ref[...]      # (M, Cout)

    # BatchNorm2d (train mode: per-batch stats, biased variance), fused here so
    # the stats never leave the kernel.  Two-pass variance avoids cancellation.
    mean = jnp.sum(acc, axis=0, keepdims=True) * (1.0 / m)
    xc = acc - mean
    var = jnp.sum(xc * xc, axis=0, keepdims=True) * (1.0 / m)
    scale = g_ref[...] * jax.lax.rsqrt(var + eps)
    z = jnp.maximum(xc * scale + bt_ref[...], 0.0)                       # BN + ReLU

    # 2x2/2 maxpool: width pairs via sublane-strided ref reads, height pairs
    # via a leading-dim split + index.
    z_ref[...] = z.reshape(n, h, w, cout)
    hp, wp = h // 2, w // 2
    ze = z_ref[:, :, pl.ds(0, wp, 2), :]
    zo = z_ref[:, :, pl.ds(1, wp, 2), :]
    zc = jnp.maximum(ze, zo).reshape(n, hp, 2, wp, cout)
    return jnp.maximum(zc[:, :, 0], zc[:, :, 1])                         # (n, hp, wp, cout)


def _shadow_net_kernel(x_ref,
                       w1_ref, b1_ref, g1_ref, bt1_ref,
                       w2_ref, b2_ref, g2_ref, bt2_ref,
                       fc1w_ref, fc1b_ref, fc2w_ref, fc2b_ref,
                       out_ref,
                       xp1_ref, patches1_ref, z1_ref,
                       xp2_ref, patches2_ref, z2_ref, flat_ref,
                       *, n, h, w, cin, c1, c2, eps):
    # ---------------- block 1: conv3x3(pad=1) -> BN -> ReLU -> maxpool ------
    xp1_ref[...] = jnp.zeros_like(xp1_ref)           # zero border ('same' pad)
    xp1_ref[:, 1:1 + h, 1:1 + w, :] = x_ref[...]
    p1 = _conv_bn_relu_pool(xp1_ref, patches1_ref, z1_ref,
                            w1_ref, b1_ref, g1_ref, bt1_ref,
                            n=n, h=h, w=w, cin=cin, cout=c1, eps=eps)

    # ---------------- block 2 ------------------------------------------------
    h2, w2 = h // 2, w // 2
    xp2_ref[...] = jnp.zeros_like(xp2_ref)
    xp2_ref[:, 1:1 + h2, 1:1 + w2, :] = p1
    p2 = _conv_bn_relu_pool(xp2_ref, patches2_ref, z2_ref,
                            w2_ref, b2_ref, g2_ref, bt2_ref,
                            n=n, h=h2, w=w2, cin=c1, cout=c2, eps=eps)

    # ---------------- classifier: flatten -> fc1 -> ReLU -> fc2 -------------
    # The NCHW flatten permutation is folded into fc1's rows at init; here we
    # just pack (h, w, c) contiguously into the (N, 256) flat buffer.
    fh, fw = h // 4, w // 4
    p2r = p2.reshape(n, fh * fw, c2)
    for i in range(fh * fw):
        flat_ref[:, i * c2:(i + 1) * c2] = p2r[:, i, :]
    hid = jnp.maximum(
        jnp.dot(flat_ref[...], fc1w_ref[...],
                preferred_element_type=jnp.float32) + fc1b_ref[...], 0.0)
    out = jnp.dot(hid, fc2w_ref[...],
                  preferred_element_type=jnp.float32) + fc2b_ref[...]
    out_ref[...] = out.astype(out_ref.dtype)


def shadow_net_forward(x_nchw, params):
    n, cin, h, w = x_nchw.shape
    x = jnp.transpose(x_nchw, (0, 2, 3, 1))       # NCHW -> NHWC (input only, ~8 KiB)
    c1 = params["b1"].shape[-1]
    c2 = params["b2"].shape[-1]
    hd = params["fc1_b"].shape[-1]
    ncls = params["fc2_b"].shape[-1]
    h2, w2 = h // 2, w // 2
    fh, fw = h // 4, w // 4

    def full(shape):
        return pl.BlockSpec(shape, lambda i: (0,) * len(shape))

    kernel = functools.partial(_shadow_net_kernel, n=n, h=h, w=w, cin=cin,
                               c1=c1, c2=c2, eps=1e-5)
    return pl.pallas_call(
        kernel,
        out_shape=jax.ShapeDtypeStruct((n, ncls), jnp.float32),
        grid=(1,),
        in_specs=[
            full((n, h, w, cin)),
            full((9 * cin, c1)), full((1, c1)), full((1, c1)), full((1, c1)),
            full((9 * c1, c2)), full((1, c2)), full((1, c2)), full((1, c2)),
            full((fh * fw * c2, hd)), full((1, hd)),
            full((hd, ncls)), full((1, ncls)),
        ],
        out_specs=full((n, ncls)),
        scratch_shapes=[
            pltpu.VMEM((n, h + 2, w + 2, cin), jnp.float32),    # padded input
            pltpu.VMEM((n * h * w, 9 * cin), jnp.float32),      # conv1 patches
            pltpu.VMEM((n, h, w, c1), jnp.float32),             # conv1 BN+ReLU out
            pltpu.VMEM((n, h2 + 2, w2 + 2, c1), jnp.float32),   # padded pool1
            pltpu.VMEM((n * h2 * w2, 9 * c1), jnp.float32),     # conv2 patches
            pltpu.VMEM((n, h2, w2, c2), jnp.float32),           # conv2 BN+ReLU out
            pltpu.VMEM((n, fh * fw * c2), jnp.float32),         # flattened features
        ],
        compiler_params=pltpu.CompilerParams(
            dimension_semantics=("arbitrary",)),
    )(x, params["w1"], params["b1"], params["g1"], params["bt1"],
      params["w2"], params["b2"], params["g2"], params["bt2"],
      params["fc1_w"], params["fc1_b"], params["fc2_w"], params["fc2_b"])


# ----------------------------- deterministic params --------------------------
def init_params(key, input_dim, hidden, size, out_classes):
    h0, h1, h2 = hidden
    ks = jax.random.split(key, 8)

    def conv_gemm_weights(kw, kb, cin, cout):
        # torch Conv2d weight (cout, cin, 3, 3) -> concatenated-tap GEMM matrix
        # with rows ordered (kh, kw, cin) = tap-major / channel-minor, matching
        # the in-kernel patch layout.
        wt = 0.1 * jax.random.normal(kw, (cout, cin, 3, 3), jnp.float32)
        bias = 0.1 * jax.random.normal(kb, (cout,), jnp.float32)
        w_gemm = jnp.transpose(wt, (2, 3, 1, 0)).reshape(9 * cin, cout)
        return w_gemm, bias.reshape(1, cout)

    w1, b1 = conv_gemm_weights(ks[0], ks[1], input_dim, h0)
    w2, b2 = conv_gemm_weights(ks[2], ks[3], h0, h1)

    feat_hw = calc_feat_linear_cifar(size)            # spatial side after convs
    feat = feat_hw * feat_hw * h1                     # torch fc1 in-features

    fc1_w = 0.1 * jax.random.normal(ks[4], (feat, h2), jnp.float32)
    fc1_b = 0.1 * jax.random.normal(ks[5], (h2,), jnp.float32)
    # Fold nn.Flatten's (C, H, W) row ordering into fc1's rows so the kernel
    # can flatten its NHWC pooled activation directly (zero runtime cost):
    # torch row index c*HW + hh*W + ww  ->  our index hh*W*C + ww*C + c.
    w_chw = fc1_w.reshape(h1, feat_hw, feat_hw, h2)               # (C, H, W, h2)
    fc1_w_eff = jnp.transpose(w_chw, (1, 2, 0, 3)).reshape(feat, h2)

    fc2_w = 0.1 * jax.random.normal(ks[6], (h2, out_classes), jnp.float32)
    fc2_b = 0.1 * jax.random.normal(ks[7], (out_classes,), jnp.float32)

    return {
        "w1": w1, "b1": b1,
        "g1": jnp.ones((1, h0), jnp.float32),          # BN1 weight (gamma)
        "bt1": jnp.zeros((1, h0), jnp.float32),        # BN1 bias (beta)
        "w2": w2, "b2": b2,
        "g2": jnp.ones((1, h1), jnp.float32),
        "bt2": jnp.zeros((1, h1), jnp.float32),
        "fc1_w": fc1_w_eff, "fc1_b": fc1_b.reshape(1, h2),
        "fc2_w": fc2_w, "fc2_b": fc2_b.reshape(1, out_classes),
    }


# ----------------------------- driver -----------------------------------------
if __name__ == "__main__":
    input_dim, hidden, size, out_classes = 4, (8, 16, 32), 16, 10
    batch = 2

    key = jax.random.PRNGKey(0)
    kx, kp = jax.random.split(key)
    x = jax.random.normal(kx, (batch, input_dim, size, size), jnp.float32)
    params = init_params(kp, input_dim, hidden, size, out_classes)

    out = jax.jit(shadow_net_forward)(x, params)
    out = jax.block_until_ready(out)
    assert out.shape == (batch, out_classes), out.shape
    print("KERNEL_OK")
</pallas_src>

<mosaic_0001>
module attributes {stable_mosaic.version = 11 : i64} {
  func.func @_shadow_net_kernel(%arg0: i32, %arg1: memref<2x16x16x4xf32, #tpu.memory_space<vmem>>, %arg2: memref<36x8xf32, #tpu.memory_space<vmem>>, %arg3: memref<1x8xf32, #tpu.memory_space<vmem>>, %arg4: memref<1x8xf32, #tpu.memory_space<vmem>>, %arg5: memref<1x8xf32, #tpu.memory_space<vmem>>, %arg6: memref<72x16xf32, #tpu.memory_space<vmem>>, %arg7: memref<1x16xf32, #tpu.memory_space<vmem>>, %arg8: memref<1x16xf32, #tpu.memory_space<vmem>>, %arg9: memref<1x16xf32, #tpu.memory_space<vmem>>, %arg10: memref<256x32xf32, #tpu.memory_space<vmem>>, %arg11: memref<1x32xf32, #tpu.memory_space<vmem>>, %arg12: memref<32x10xf32, #tpu.memory_space<vmem>>, %arg13: memref<1x10xf32, #tpu.memory_space<vmem>>, %arg14: memref<2x10xf32, #tpu.memory_space<vmem>>, %arg15: memref<2x18x18x4xf32, #tpu.memory_space<vmem>>, %arg16: memref<512x36xf32, #tpu.memory_space<vmem>>, %arg17: memref<2x16x16x8xf32, #tpu.memory_space<vmem>>, %arg18: memref<2x10x10x8xf32, #tpu.memory_space<vmem>>, %arg19: memref<128x72xf32, #tpu.memory_space<vmem>>, %arg20: memref<2x8x8x16xf32, #tpu.memory_space<vmem>>, %arg21: memref<2x256xf32, #tpu.memory_space<vmem>>) attributes {dimension_semantics = [#tpu.dimension_semantics<arbitrary>], iteration_bounds = array<i64: 1>, scalar_prefetch = 0 : i64, scratch_operands = 7 : i64, tpu.core_type = #tpu.core_type<tc>, window_params = [{pipeline_mode = #tpu.pipeline_mode<synchronous>, transform_indices = @transform_0, window_bounds = array<i64: 2, 16, 16, 4>}, {pipeline_mode = #tpu.pipeline_mode<synchronous>, transform_indices = @transform_1, window_bounds = array<i64: 36, 8>}, {pipeline_mode = #tpu.pipeline_mode<synchronous>, transform_indices = @transform_2, window_bounds = array<i64: 1, 8>}, {pipeline_mode = #tpu.pipeline_mode<synchronous>, transform_indices = @transform_3, window_bounds = array<i64: 1, 8>}, {pipeline_mode = #tpu.pipeline_mode<synchronous>, transform_indices = @transform_4, window_bounds = array<i64: 1, 8>}, {pipeline_mode = #tpu.pipeline_mode<synchronous>, transform_indices = @transform_5, window_bounds = array<i64: 72, 16>}, {pipeline_mode = #tpu.pipeline_mode<synchronous>, transform_indices = @transform_6, window_bounds = array<i64: 1, 16>}, {pipeline_mode = #tpu.pipeline_mode<synchronous>, transform_indices = @transform_7, window_bounds = array<i64: 1, 16>}, {pipeline_mode = #tpu.pipeline_mode<synchronous>, transform_indices = @transform_8, window_bounds = array<i64: 1, 16>}, {pipeline_mode = #tpu.pipeline_mode<synchronous>, transform_indices = @transform_9, window_bounds = array<i64: 256, 32>}, {pipeline_mode = #tpu.pipeline_mode<synchronous>, transform_indices = @transform_10, window_bounds = array<i64: 1, 32>}, {pipeline_mode = #tpu.pipeline_mode<synchronous>, transform_indices = @transform_11, window_bounds = array<i64: 32, 10>}, {pipeline_mode = #tpu.pipeline_mode<synchronous>, transform_indices = @transform_12, window_bounds = array<i64: 1, 10>}, {pipeline_mode = #tpu.pipeline_mode<synchronous>, transform_indices = @transform_13, window_bounds = array<i64: 2, 10>}]} {
    %cst = arith.constant 0.000000e+00 : f32
    %0 = vector.broadcast %cst : f32 to vector<2x18x18x4xf32>
    %c0 = arith.constant 0 : index
    %c0_0 = arith.constant 0 : index
    %c0_1 = arith.constant 0 : index
    %c0_2 = arith.constant 0 : index
    %1 = vector.load %arg15[%c0, %c0_0, %c0_1, %c0_2] : memref<2x18x18x4xf32, #tpu.memory_space<vmem>>, vector<2x18x18x4xf32>
    tpu.vector_store %arg15[%c0, %c0_0, %c0_1, %c0_2], %0 {strides = array<i32>} : memref<2x18x18x4xf32, #tpu.memory_space<vmem>>, vector<2x18x18x4xf32>,
    %c0_3 = arith.constant 0 : index
    %c0_4 = arith.constant 0 : index
    %c0_5 = arith.constant 0 : index
    %c0_6 = arith.constant 0 : index
    %2 = vector.load %arg1[%c0_3, %c0_4, %c0_5, %c0_6] : memref<2x16x16x4xf32, #tpu.memory_space<vmem>>, vector<2x16x16x4xf32>
    %c0_7 = arith.constant 0 : index
    %c1 = arith.constant 1 : index
    %c1_8 = arith.constant 1 : index
    %c0_9 = arith.constant 0 : index
    %3 = vector.load %arg15[%c0_7, %c1, %c1_8, %c0_9] : memref<2x18x18x4xf32, #tpu.memory_space<vmem>>, vector<2x16x16x4xf32>
    tpu.vector_store %arg15[%c0_7, %c1, %c1_8, %c0_9], %2 {strides = array<i32>} : memref<2x18x18x4xf32, #tpu.memory_space<vmem>>, vector<2x16x16x4xf32>,
    %c0_10 = arith.constant 0 : index
    %c0_11 = arith.constant 0 : index
    %c0_12 = arith.constant 0 : index
    %c0_13 = arith.constant 0 : index
    %4 = vector.load %arg15[%c0_10, %c0_11, %c0_12, %c0_13] : memref<2x18x18x4xf32, #tpu.memory_space<vmem>>, vector<2x16x16x4xf32>
    %5 = vector.shape_cast %4 : vector<2x16x16x4xf32> to vector<512x4xf32>
    %c0_14 = arith.constant 0 : index
    %c0_15 = arith.constant 0 : index
    %6 = vector.load %arg16[%c0_14, %c0_15] : memref<512x36xf32, #tpu.memory_space<vmem>>, vector<512x4xf32>
    tpu.vector_store %arg16[%c0_14, %c0_15], %5 {strides = array<i32>} : memref<512x36xf32, #tpu.memory_space<vmem>>, vector<512x4xf32>,
    %c0_16 = arith.constant 0 : index
    %c0_17 = arith.constant 0 : index
    %c1_18 = arith.constant 1 : index
    %c0_19 = arith.constant 0 : index
    %7 = vector.load %arg15[%c0_16, %c0_17, %c1_18, %c0_19] : memref<2x18x18x4xf32, #tpu.memory_space<vmem>>, vector<2x16x16x4xf32>
    %8 = vector.shape_cast %7 : vector<2x16x16x4xf32> to vector<512x4xf32>
    %c0_20 = arith.constant 0 : index
    %c4 = arith.constant 4 : index
    %9 = vector.load %arg16[%c0_20, %c4] : memref<512x36xf32, #tpu.memory_space<vmem>>, vector<512x4xf32>
    tpu.vector_store %arg16[%c0_20, %c4], %8 {strides = array<i32>} : memref<512x36xf32, #tpu.memory_space<vmem>>, vector<512x4xf32>,
    %c0_21 = arith.constant 0 : index
    %c0_22 = arith.constant 0 : index
    %c2 = arith.constant 2 : index
    %c0_23 = arith.constant 0 : index
    %10 = vector.load %arg15[%c0_21, %c0_22, %c2, %c0_23] : memref<2x18x18x4xf32, #tpu.memory_space<vmem>>, vector<2x16x16x4xf32>
    %11 = vector.shape_cast %10 : vector<2x16x16x4xf32> to vector<512x4xf32>
    %c0_24 = arith.constant 0 : index
    %c8 = arith.constant 8 : index
    %12 = vector.load %arg16[%c0_24, %c8] : memref<512x36xf32, #tpu.memory_space<vmem>>, vector<512x4xf32>
    tpu.vector_store %arg16[%c0_24, %c8], %11 {strides = array<i32>} : memref<512x36xf32, #tpu.memory_space<vmem>>, vector<512x4xf32>,
    %c0_25 = arith.constant 0 : index
    %c1_26 = arith.constant 1 : index
    %c0_27 = arith.constant 0 : index
    %c0_28 = arith.constant 0 : index
    %13 = vector.load %arg15[%c0_25, %c1_26, %c0_27, %c0_28] : memref<2x18x18x4xf32, #tpu.memory_space<vmem>>, vector<2x16x16x4xf32>
    %14 = vector.shape_cast %13 : vector<2x16x16x4xf32> to vector<512x4xf32>
    %c0_29 = arith.constant 0 : index
    %c12 = arith.constant 12 : index
    %15 = vector.load %arg16[%c0_29, %c12] : memref<512x36xf32, #tpu.memory_space<vmem>>, vector<512x4xf32>
    tpu.vector_store %arg16[%c0_29, %c12], %14 {strides = array<i32>} : memref<512x36xf32, #tpu.memory_space<vmem>>, vector<512x4xf32>,
    %c0_30 = arith.constant 0 : index
    %c1_31 = arith.constant 1 : index
    %c1_32 = arith.constant 1 : index
    %c0_33 = arith.constant 0 : index
    %16 = vector.load %arg15[%c0_30, %c1_31, %c1_32, %c0_33] : memref<2x18x18x4xf32, #tpu.memory_space<vmem>>, vector<2x16x16x4xf32>
    %17 = vector.shape_cast %16 : vector<2x16x16x4xf32> to vector<512x4xf32>
    %c0_34 = arith.constant 0 : index
    %c16 = arith.constant 16 : index
    %18 = vector.load %arg16[%c0_34, %c16] : memref<512x36xf32, #tpu.memory_space<vmem>>, vector<512x4xf32>
    tpu.vector_store %arg16[%c0_34, %c16], %17 {strides = array<i32>} : memref<512x36xf32, #tpu.memory_space<vmem>>, vector<512x4xf32>,
    %c0_35 = arith.constant 0 : index
    %c1_36 = arith.constant 1 : index
    %c2_37 = arith.constant 2 : index
    %c0_38 = arith.constant 0 : index
    %19 = vector.load %arg15[%c0_35, %c1_36, %c2_37, %c0_38] : memref<2x18x18x4xf32, #tpu.memory_space<vmem>>, vector<2x16x16x4xf32>
    %20 = vector.shape_cast %19 : vector<2x16x16x4xf32> to vector<512x4xf32>
    %c0_39 = arith.constant 0 : index
    %c20 = arith.constant 20 : index
    %21 = vector.load %arg16[%c0_39, %c20] : memref<512x36xf32, #tpu.memory_space<vmem>>, vector<512x4xf32>
    tpu.vector_store %arg16[%c0_39, %c20], %20 {strides = array<i32>} : memref<512x36xf32, #tpu.memory_space<vmem>>, vector<512x4xf32>,
    %c0_40 = arith.constant 0 : index
    %c2_41 = arith.constant 2 : index
    %c0_42 = arith.constant 0 : index
    %c0_43 = arith.constant 0 : index
    %22 = vector.load %arg15[%c0_40, %c2_41, %c0_42, %c0_43] : memref<2x18x18x4xf32, #tpu.memory_space<vmem>>, vector<2x16x16x4xf32>
    %23 = vector.shape_cast %22 : vector<2x16x16x4xf32> to vector<512x4xf32>
    %c0_44 = arith.constant 0 : index
    %c24 = arith.constant 24 : index
    %24 = vector.load %arg16[%c0_44, %c24] : memref<512x36xf32, #tpu.memory_space<vmem>>, vector<512x4xf32>
    tpu.vector_store %arg16[%c0_44, %c24], %23 {strides = array<i32>} : memref<512x36xf32, #tpu.memory_space<vmem>>, vector<512x4xf32>,
    %c0_45 = arith.constant 0 : index
    %c2_46 = arith.constant 2 : index
    %c1_47 = arith.constant 1 : index
    %c0_48 = arith.constant 0 : index
    %25 = vector.load %arg15[%c0_45, %c2_46, %c1_47, %c0_48] : memref<2x18x18x4xf32, #tpu.memory_space<vmem>>, vector<2x16x16x4xf32>
    %26 = vector.shape_cast %25 : vector<2x16x16x4xf32> to vector<512x4xf32>
    %c0_49 = arith.constant 0 : index
    %c28 = arith.constant 28 : index
    %27 = vector.load %arg16[%c0_49, %c28] : memref<512x36xf32, #tpu.memory_space<vmem>>, vector<512x4xf32>
    tpu.vector_store %arg16[%c0_49, %c28], %26 {strides = array<i32>} : memref<512x36xf32, #tpu.memory_space<vmem>>, vector<512x4xf32>,
    %c0_50 = arith.constant 0 : index
    %c2_51 = arith.constant 2 : index
    %c2_52 = arith.constant 2 : index
    %c0_53 = arith.constant 0 : index
    %28 = vector.load %arg15[%c0_50, %c2_51, %c2_52, %c0_53] : memref<2x18x18x4xf32, #tpu.memory_space<vmem>>, vector<2x16x16x4xf32>
    %29 = vector.shape_cast %28 : vector<2x16x16x4xf32> to vector<512x4xf32>
    %c0_54 = arith.constant 0 : index
    %c32 = arith.constant 32 : index
    %30 = vector.load %arg16[%c0_54, %c32] : memref<512x36xf32, #tpu.memory_space<vmem>>, vector<512x4xf32>
    tpu.vector_store %arg16[%c0_54, %c32], %29 {strides = array<i32>} : memref<512x36xf32, #tpu.memory_space<vmem>>, vector<512x4xf32>,
    %c0_55 = arith.constant 0 : index
    %c0_56 = arith.constant 0 : index
    %31 = vector.load %arg16[%c0_55, %c0_56] : memref<512x36xf32, #tpu.memory_space<vmem>>, vector<512x36xf32>
    %c0_57 = arith.constant 0 : index
    %c0_58 = arith.constant 0 : index
    %32 = vector.load %arg2[%c0_57, %c0_58] : memref<36x8xf32, #tpu.memory_space<vmem>>, vector<36x8xf32>
    %cst_59 = arith.constant dense<0.000000e+00> : vector<512x8xf32>
    %33 = tpu.matmul %31, %32, %cst_59 {dimension_numbers = #tpu.dot_dimension_numbers<[1], [0], [0], [1], [0, 0, 1, 1], [], []>} : vector<512x36xf32>, vector<36x8xf32>, vector<512x8xf32> -> vector<512x8xf32>
    %c0_60 = arith.constant 0 : index
    %c0_61 = arith.constant 0 : index
    %34 = vector.load %arg3[%c0_60, %c0_61] : memref<1x8xf32, #tpu.memory_space<vmem>>, vector<1x8xf32>
    %35 = vector.broadcast %34 : vector<1x8xf32> to vector<512x8xf32>
    %36 = arith.addf %33, %35 : vector<512x8xf32>
    %cst_62 = arith.constant dense<0.000000e+00> : vector<8xf32>
    %37 = vector.multi_reduction <add>, %36, %cst_62 [0] : vector<512x8xf32> to vector<8xf32>
    %38 = vector.shape_cast %37 : vector<8xf32> to vector<1x8xf32>
    %cst_63 = arith.constant 0.001953125 : f32
    %39 = vector.broadcast %cst_63 : f32 to vector<1x8xf32>
    %40 = arith.mulf %38, %39 : vector<1x8xf32>
    %41 = vector.broadcast %40 : vector<1x8xf32> to vector<512x8xf32>
    %42 = arith.subf %36, %41 : vector<512x8xf32>
    %43 = arith.mulf %42, %42 : vector<512x8xf32>
    %cst_64 = arith.constant dense<0.000000e+00> : vector<8xf32>
    %44 = vector.multi_reduction <add>, %43, %cst_64 [0] : vector<512x8xf32> to vector<8xf32>
    %45 = vector.shape_cast %44 : vector<8xf32> to vector<1x8xf32>
    %cst_65 = arith.constant 0.001953125 : f32
    %46 = vector.broadcast %cst_65 : f32 to vector<1x8xf32>
    %47 = arith.mulf %45, %46 : vector<1x8xf32>
    %c0_66 = arith.constant 0 : index
    %c0_67 = arith.constant 0 : index
    %48 = vector.load %arg4[%c0_66, %c0_67] : memref<1x8xf32, #tpu.memory_space<vmem>>, vector<1x8xf32>
    %cst_68 = arith.constant 9.99999974E-6 : f32
    %49 = vector.broadcast %cst_68 : f32 to vector<1x8xf32>
    %50 = arith.addf %47, %49 : vector<1x8xf32>
    %51 = math.rsqrt %50 : vector<1x8xf32>
    %52 = arith.mulf %48, %51 : vector<1x8xf32>
    %53 = vector.broadcast %52 : vector<1x8xf32> to vector<512x8xf32>
    %54 = arith.mulf %42, %53 : vector<512x8xf32>
    %c0_69 = arith.constant 0 : index
    %c0_70 = arith.constant 0 : index
    %55 = vector.load %arg5[%c0_69, %c0_70] : memref<1x8xf32, #tpu.memory_space<vmem>>, vector<1x8xf32>
    %56 = vector.broadcast %55 : vector<1x8xf32> to vector<512x8xf32>
    %57 = arith.addf %54, %56 : vector<512x8xf32>
    %cst_71 = arith.constant 0.000000e+00 : f32
    %58 = vector.broadcast %cst_71 : f32 to vector<512x8xf32>
    %59 = arith.maximumf %57, %58 : vector<512x8xf32>
    %60 = vector.shape_cast %59 : vector<512x8xf32> to vector<2x16x16x8xf32>
    %c0_72 = arith.constant 0 : index
    %c0_73 = arith.constant 0 : index
    %c0_74 = arith.constant 0 : index
    %c0_75 = arith.constant 0 : index
    %61 = vector.load %arg17[%c0_72, %c0_73, %c0_74, %c0_75] : memref<2x16x16x8xf32, #tpu.memory_space<vmem>>, vector<2x16x16x8xf32>
    tpu.vector_store %arg17[%c0_72, %c0_73, %c0_74, %c0_75], %60 {strides = array<i32>} : memref<2x16x16x8xf32, #tpu.memory_space<vmem>>, vector<2x16x16x8xf32>,
    %c0_76 = arith.constant 0 : index
    %c0_77 = arith.constant 0 : index
    %c0_78 = arith.constant 0 : index
    %c0_79 = arith.constant 0 : index
    %62 = tpu.strided_load %arg17[%c0_76, %c0_77, %c0_78, %c0_79] {strides = array<i32: 1, 1, 2, 1>} : memref<2x16x16x8xf32, #tpu.memory_space<vmem>>, vector<2x16x8x8xf32>
    %c0_80 = arith.constant 0 : index
    %c0_81 = arith.constant 0 : index
    %c1_82 = arith.constant 1 : index
    %c0_83 = arith.constant 0 : index
    %63 = tpu.strided_load %arg17[%c0_80, %c0_81, %c1_82, %c0_83] {strides = array<i32: 1, 1, 2, 1>} : memref<2x16x16x8xf32, #tpu.memory_space<vmem>>, vector<2x16x8x8xf32>
    %64 = arith.maximumf %62, %63 : vector<2x16x8x8xf32>
    %65 = vector.shape_cast %64 : vector<2x16x8x8xf32> to vector<2x8x2x8x8xf32>
    %66 = vector.extract_strided_slice %65 {offsets = [0, 0, 0, 0, 0], sizes = [2, 8, 1, 8, 8], strides = [1, 1, 1, 1, 1]} : vector<2x8x2x8x8xf32> to vector<2x8x1x8x8xf32>
    %67 = vector.shape_cast %66 : vector<2x8x1x8x8xf32> to vector<2x8x8x8xf32>
    %68 = vector.extract_strided_slice %65 {offsets = [0, 0, 1, 0, 0], sizes = [2, 8, 1, 8, 8], strides = [1, 1, 1, 1, 1]} : vector<2x8x2x8x8xf32> to vector<2x8x1x8x8xf32>
    %69 = vector.shape_cast %68 : vector<2x8x1x8x8xf32> to vector<2x8x8x8xf32>
    %70 = arith.maximumf %67, %69 : vector<2x8x8x8xf32>
    %cst_84 = arith.constant 0.000000e+00 : f32
    %71 = vector.broadcast %cst_84 : f32 to vector<2x10x10x8xf32>
    %c0_85 = arith.constant 0 : index
    %c0_86 = arith.constant 0 : index
    %c0_87 = arith.constant 0 : index
    %c0_88 = arith.constant 0 : index
    %72 = vector.load %arg18[%c0_85, %c0_86, %c0_87, %c0_88] : memref<2x10x10x8xf32, #tpu.memory_space<vmem>>, vector<2x10x10x8xf32>
    tpu.vector_store %arg18[%c0_85, %c0_86, %c0_87, %c0_88], %71 {strides = array<i32>} : memref<2x10x10x8xf32, #tpu.memory_space<vmem>>, vector<2x10x10x8xf32>,
    %c0_89 = arith.constant 0 : index
    %c1_90 = arith.constant 1 : index
    %c1_91 = arith.constant 1 : index
    %c0_92 = arith.constant 0 : index
    %73 = vector.load %arg18[%c0_89, %c1_90, %c1_91, %c0_92] : memref<2x10x10x8xf32, #tpu.memory_space<vmem>>, vector<2x8x8x8xf32>
    tpu.vector_store %arg18[%c0_89, %c1_90, %c1_91, %c0_92], %70 {strides = array<i32>} : memref<2x10x10x8xf32, #tpu.memory_space<vmem>>, vector<2x8x8x8xf32>,
    %c0_93 = arith.constant 0 : index
    %c0_94 = arith.constant 0 : index
    %c0_95 = arith.constant 0 : index
    %c0_96 = arith.constant 0 : index
    %74 = vector.load %arg18[%c0_93, %c0_94, %c0_95, %c0_96] : memref<2x10x10x8xf32, #tpu.memory_space<vmem>>, vector<2x8x8x8xf32>
    %75 = vector.shape_cast %74 : vector<2x8x8x8xf32> to vector<128x8xf32>
    %c0_97 = arith.constant 0 : index
    %c0_98 = arith.constant 0 : index
    %76 = vector.load %arg19[%c0_97, %c0_98] : memref<128x72xf32, #tpu.memory_space<vmem>>, vector<128x8xf32>
    tpu.vector_store %arg19[%c0_97, %c0_98], %75 {strides = array<i32>} : memref<128x72xf32, #tpu.memory_space<vmem>>, vector<128x8xf32>,
    %c0_99 = arith.constant 0 : index
    %c0_100 = arith.constant 0 : index
    %c1_101 = arith.constant 1 : index
    %c0_102 = arith.constant 0 : index
    %77 = vector.load %arg18[%c0_99, %c0_100, %c1_101, %c0_102] : memref<2x10x10x8xf32, #tpu.memory_space<vmem>>, vector<2x8x8x8xf32>
    %78 = vector.shape_cast %77 : vector<2x8x8x8xf32> to vector<128x8xf32>
    %c0_103 = arith.constant 0 : index
    %c8_104 = arith.constant 8 : index
    %79 = vector.load %arg19[%c0_103, %c8_104] : memref<128x72xf32, #tpu.memory_space<vmem>>, vector<128x8xf32>
    tpu.vector_store %arg19[%c0_103, %c8_104], %78 {strides = array<i32>} : memref<128x72xf32, #tpu.memory_space<vmem>>, vector<128x8xf32>,
    %c0_105 = arith.constant 0 : index
    %c0_106 = arith.constant 0 : index
    %c2_107 = arith.constant 2 : index
    %c0_108 = arith.constant 0 : index
    %80 = vector.load %arg18[%c0_105, %c0_106, %c2_107, %c0_108] : memref<2x10x10x8xf32, #tpu.memory_space<vmem>>, vector<2x8x8x8xf32>
    %81 = vector.shape_cast %80 : vector<2x8x8x8xf32> to vector<128x8xf32>
    %c0_109 = arith.constant 0 : index
    %c16_110 = arith.constant 16 : index
    %82 = vector.load %arg19[%c0_109, %c16_110] : memref<128x72xf32, #tpu.memory_space<vmem>>, vector<128x8xf32>
    tpu.vector_store %arg19[%c0_109, %c16_110], %81 {strides = array<i32>} : memref<128x72xf32, #tpu.memory_space<vmem>>, vector<128x8xf32>,
    %c0_111 = arith.constant 0 : index
    %c1_112 = arith.constant 1 : index
    %c0_113 = arith.constant 0 : index
    %c0_114 = arith.constant 0 : index
    %83 = vector.load %arg18[%c0_111, %c1_112, %c0_113, %c0_114] : memref<2x10x10x8xf32, #tpu.memory_space<vmem>>, vector<2x8x8x8xf32>
    %84 = vector.shape_cast %83 : vector<2x8x8x8xf32> to vector<128x8xf32>
    %c0_115 = arith.constant 0 : index
    %c24_116 = arith.constant 24 : index
    %85 = vector.load %arg19[%c0_115, %c24_116] : memref<128x72xf32, #tpu.memory_space<vmem>>, vector<128x8xf32>
    tpu.vector_store %arg19[%c0_115, %c24_116], %84 {strides = array<i32>} : memref<128x72xf32, #tpu.memory_space<vmem>>, vector<128x8xf32>,
    %c0_117 = arith.constant 0 : index
    %c1_118 = arith.constant 1 : index
    %c1_119 = arith.constant 1 : index
    %c0_120 = arith.constant 0 : index
    %86 = vector.load %arg18[%c0_117, %c1_118, %c1_119, %c0_120] : memref<2x10x10x8xf32, #tpu.memory_space<vmem>>, vector<2x8x8x8xf32>
    %87 = vector.shape_cast %86 : vector<2x8x8x8xf32> to vector<128x8xf32>
    %c0_121 = arith.constant 0 : index
    %c32_122 = arith.constant 32 : index
    %88 = vector.load %arg19[%c0_121, %c32_122] : memref<128x72xf32, #tpu.memory_space<vmem>>, vector<128x8xf32>
    tpu.vector_store %arg19[%c0_121, %c32_122], %87 {strides = array<i32>} : memref<128x72xf32, #tpu.memory_space<vmem>>, vector<128x8xf32>,
    %c0_123 = arith.constant 0 : index
    %c1_124 = arith.constant 1 : index
    %c2_125 = arith.constant 2 : index
    %c0_126 = arith.constant 0 : index
    %89 = vector.load %arg18[%c0_123, %c1_124, %c2_125, %c0_126] : memref<2x10x10x8xf32, #tpu.memory_space<vmem>>, vector<2x8x8x8xf32>
    %90 = vector.shape_cast %89 : vector<2x8x8x8xf32> to vector<128x8xf32>
    %c0_127 = arith.constant 0 : index
    %c40 = arith.constant 40 : index
    %91 = vector.load %arg19[%c0_127, %c40] : memref<128x72xf32, #tpu.memory_space<vmem>>, vector<128x8xf32>
    tpu.vector_store %arg19[%c0_127, %c40], %90 {strides = array<i32>} : memref<128x72xf32, #tpu.memory_space<vmem>>, vector<128x8xf32>,
    %c0_128 = arith.constant 0 : index
    %c2_129 = arith.constant 2 : index
    %c0_130 = arith.constant 0 : index
    %c0_131 = arith.constant 0 : index
    %92 = vector.load %arg18[%c0_128, %c2_129, %c0_130, %c0_131] : memref<2x10x10x8xf32, #tpu.memory_space<vmem>>, vector<2x8x8x8xf32>
    %93 = vector.shape_cast %92 : vector<2x8x8x8xf32> to vector<128x8xf32>
    %c0_132 = arith.constant 0 : index
    %c48 = arith.constant 48 : index
    %94 = vector.load %arg19[%c0_132, %c48] : memref<128x72xf32, #tpu.memory_space<vmem>>, vector<128x8xf32>
    tpu.vector_store %arg19[%c0_132, %c48], %93 {strides = array<i32>} : memref<128x72xf32, #tpu.memory_space<vmem>>, vector<128x8xf32>,
    %c0_133 = arith.constant 0 : index
    %c2_134 = arith.constant 2 : index
    %c1_135 = arith.constant 1 : index
    %c0_136 = arith.constant 0 : index
    %95 = vector.load %arg18[%c0_133, %c2_134, %c1_135, %c0_136] : memref<2x10x10x8xf32, #tpu.memory_space<vmem>>, vector<2x8x8x8xf32>
    %96 = vector.shape_cast %95 : vector<2x8x8x8xf32> to vector<128x8xf32>
    %c0_137 = arith.constant 0 : index
    %c56 = arith.constant 56 : index
    %97 = vector.load %arg19[%c0_137, %c56] : memref<128x72xf32, #tpu.memory_space<vmem>>, vector<128x8xf32>
    tpu.vector_store %arg19[%c0_137, %c56], %96 {strides = array<i32>} : memref<128x72xf32, #tpu.memory_space<vmem>>, vector<128x8xf32>,
    %c0_138 = arith.constant 0 : index
    %c2_139 = arith.constant 2 : index
    %c2_140 = arith.constant 2 : index
    %c0_141 = arith.constant 0 : index
    %98 = vector.load %arg18[%c0_138, %c2_139, %c2_140, %c0_141] : memref<2x10x10x8xf32, #tpu.memory_space<vmem>>, vector<2x8x8x8xf32>
    %99 = vector.shape_cast %98 : vector<2x8x8x8xf32> to vector<128x8xf32>
    %c0_142 = arith.constant 0 : index
    %c64 = arith.constant 64 : index
    %100 = vector.load %arg19[%c0_142, %c64] : memref<128x72xf32, #tpu.memory_space<vmem>>, vector<128x8xf32>
    tpu.vector_store %arg19[%c0_142, %c64], %99 {strides = array<i32>} : memref<128x72xf32, #tpu.memory_space<vmem>>, vector<128x8xf32>,
    %c0_143 = arith.constant 0 : index
    %c0_144 = arith.constant 0 : index
    %101 = vector.load %arg19[%c0_143, %c0_144] : memref<128x72xf32, #tpu.memory_space<vmem>>, vector<128x72xf32>
    %c0_145 = arith.constant 0 : index
    %c0_146 = arith.constant 0 : index
    %102 = vector.load %arg6[%c0_145, %c0_146] : memref<72x16xf32, #tpu.memory_space<vmem>>, vector<72x16xf32>
    %cst_147 = arith.constant dense<0.000000e+00> : vector<128x16xf32>
    %103 = tpu.matmul %101, %102, %cst_147 {dimension_numbers = #tpu.dot_dimension_numbers<[1], [0], [0], [1], [0, 0, 1, 1], [], []>} : vector<128x72xf32>, vector<72x16xf32>, vector<128x16xf32> -> vector<128x16xf32>
    %c0_148 = arith.constant 0 : index
    %c0_149 = arith.constant 0 : index
    %104 = vector.load %arg7[%c0_148, %c0_149] : memref<1x16xf32, #tpu.memory_space<vmem>>, vector<1x16xf32>
    %105 = vector.broadcast %104 : vector<1x16xf32> to vector<128x16xf32>
    %106 = arith.addf %103, %105 : vector<128x16xf32>
    %cst_150 = arith.constant dense<0.000000e+00> : vector<16xf32>
    %107 = vector.multi_reduction <add>, %106, %cst_150 [0] : vector<128x16xf32> to vector<16xf32>
    %108 = vector.shape_cast %107 : vector<16xf32> to vector<1x16xf32>
    %cst_151 = arith.constant 7.812500e-03 : f32
    %109 = vector.broadcast %cst_151 : f32 to vector<1x16xf32>
    %110 = arith.mulf %108, %109 : vector<1x16xf32>
    %111 = vector.broadcast %110 : vector<1x16xf32> to vector<128x16xf32>
    %112 = arith.subf %106, %111 : vector<128x16xf32>
    %113 = arith.mulf %112, %112 : vector<128x16xf32>
    %cst_152 = arith.constant dense<0.000000e+00> : vector<16xf32>
    %114 = vector.multi_reduction <add>, %113, %cst_152 [0] : vector<128x16xf32> to vector<16xf32>
    %115 = vector.shape_cast %114 : vector<16xf32> to vector<1x16xf32>
    %cst_153 = arith.constant 7.812500e-03 : f32
    %116 = vector.broadcast %cst_153 : f32 to vector<1x16xf32>
    %117 = arith.mulf %115, %116 : vector<1x16xf32>
    %c0_154 = arith.constant 0 : index
    %c0_155 = arith.constant 0 : index
    %118 = vector.load %arg8[%c0_154, %c0_155] : memref<1x16xf32, #tpu.memory_space<vmem>>, vector<1x16xf32>
    %cst_156 = arith.constant 9.99999974E-6 : f32
    %119 = vector.broadcast %cst_156 : f32 to vector<1x16xf32>
    %120 = arith.addf %117, %119 : vector<1x16xf32>
    %121 = math.rsqrt %120 : vector<1x16xf32>
    %122 = arith.mulf %118, %121 : vector<1x16xf32>
    %123 = vector.broadcast %122 : vector<1x16xf32> to vector<128x16xf32>
    %124 = arith.mulf %112, %123 : vector<128x16xf32>
    %c0_157 = arith.constant 0 : index
    %c0_158 = arith.constant 0 : index
    %125 = vector.load %arg9[%c0_157, %c0_158] : memref<1x16xf32, #tpu.memory_space<vmem>>, vector<1x16xf32>
    %126 = vector.broadcast %125 : vector<1x16xf32> to vector<128x16xf32>
    %127 = arith.addf %124, %126 : vector<128x16xf32>
    %cst_159 = arith.constant 0.000000e+00 : f32
    %128 = vector.broadcast %cst_159 : f32 to vector<128x16xf32>
    %129 = arith.maximumf %127, %128 : vector<128x16xf32>
    %130 = vector.shape_cast %129 : vector<128x16xf32> to vector<2x8x8x16xf32>
    %c0_160 = arith.constant 0 : index
    %c0_161 = arith.constant 0 : index
    %c0_162 = arith.constant 0 : index
    %c0_163 = arith.constant 0 : index
    %131 = vector.load %arg20[%c0_160, %c0_161, %c0_162, %c0_163] : memref<2x8x8x16xf32, #tpu.memory_space<vmem>>, vector<2x8x8x16xf32>
    tpu.vector_store %arg20[%c0_160, %c0_161, %c0_162, %c0_163], %130 {strides = array<i32>} : memref<2x8x8x16xf32, #tpu.memory_space<vmem>>, vector<2x8x8x16xf32>,
    %c0_164 = arith.constant 0 : index
    %c0_165 = arith.constant 0 : index
    %c0_166 = arith.constant 0 : index
    %c0_167 = arith.constant 0 : index
    %132 = tpu.strided_load %arg20[%c0_164, %c0_165, %c0_166, %c0_167] {strides = array<i32: 1, 1, 2, 1>} : memref<2x8x8x16xf32, #tpu.memory_space<vmem>>, vector<2x8x4x16xf32>
    %c0_168 = arith.constant 0 : index
    %c0_169 = arith.constant 0 : index
    %c1_170 = arith.constant 1 : index
    %c0_171 = arith.constant 0 : index
    %133 = tpu.strided_load %arg20[%c0_168, %c0_169, %c1_170, %c0_171] {strides = array<i32: 1, 1, 2, 1>} : memref<2x8x8x16xf32, #tpu.memory_space<vmem>>, vector<2x8x4x16xf32>
    %134 = arith.maximumf %132, %133 : vector<2x8x4x16xf32>
    %135 = vector.shape_cast %134 : vector<2x8x4x16xf32> to vector<2x4x2x4x16xf32>
    %136 = vector.extract_strided_slice %135 {offsets = [0, 0, 0, 0, 0], sizes = [2, 4, 1, 4, 16], strides = [1, 1, 1, 1, 1]} : vector<2x4x2x4x16xf32> to vector<2x4x1x4x16xf32>
    %137 = vector.shape_cast %136 : vector<2x4x1x4x16xf32> to vector<2x4x4x16xf32>
    %138 = vector.extract_strided_slice %135 {offsets = [0, 0, 1, 0, 0], sizes = [2, 4, 1, 4, 16], strides = [1, 1, 1, 1, 1]} : vector<2x4x2x4x16xf32> to vector<2x4x1x4x16xf32>
    %139 = vector.shape_cast %138 : vector<2x4x1x4x16xf32> to vector<2x4x4x16xf32>
    %140 = arith.maximumf %137, %139 : vector<2x4x4x16xf32>
    %141 = vector.shape_cast %140 : vector<2x4x4x16xf32> to vector<2x16x16xf32>
    %142 = vector.extract_strided_slice %141 {offsets = [0, 0, 0], sizes = [2, 1, 16], strides = [1, 1, 1]} : vector<2x16x16xf32> to vector<2x1x16xf32>
    %143 = vector.shape_cast %142 : vector<2x1x16xf32> to vector<2x16xf32>
    %c0_172 = arith.constant 0 : index
    %c0_173 = arith.constant 0 : index
    %144 = vector.load %arg21[%c0_172, %c0_173] : memref<2x256xf32, #tpu.memory_space<vmem>>, vector<2x16xf32>
    tpu.vector_store %arg21[%c0_172, %c0_173], %143 {strides = array<i32>} : memref<2x256xf32, #tpu.memory_space<vmem>>, vector<2x16xf32>,
    %145 = vector.extract_strided_slice %141 {offsets = [0, 1, 0], sizes = [2, 1, 16], strides = [1, 1, 1]} : vector<2x16x16xf32> to vector<2x1x16xf32>
    %146 = vector.shape_cast %145 : vector<2x1x16xf32> to vector<2x16xf32>
    %c0_174 = arith.constant 0 : index
    %c16_175 = arith.constant 16 : index
    %147 = vector.load %arg21[%c0_174, %c16_175] : memref<2x256xf32, #tpu.memory_space<vmem>>, vector<2x16xf32>
    tpu.vector_store %arg21[%c0_174, %c16_175], %146 {strides = array<i32>} : memref<2x256xf32, #tpu.memory_space<vmem>>, vector<2x16xf32>,
    %148 = vector.extract_strided_slice %141 {offsets = [0, 2, 0], sizes = [2, 1, 16], strides = [1, 1, 1]} : vector<2x16x16xf32> to vector<2x1x16xf32>
    %149 = vector.shape_cast %148 : vector<2x1x16xf32> to vector<2x16xf32>
    %c0_176 = arith.constant 0 : index
    %c32_177 = arith.constant 32 : index
    %150 = vector.load %arg21[%c0_176, %c32_177] : memref<2x256xf32, #tpu.memory_space<vmem>>, vector<2x16xf32>
    tpu.vector_store %arg21[%c0_176, %c32_177], %149 {strides = array<i32>} : memref<2x256xf32, #tpu.memory_space<vmem>>, vector<2x16xf32>,
    %151 = vector.extract_strided_slice %141 {offsets = [0, 3, 0], sizes = [2, 1, 16], strides = [1, 1, 1]} : vector<2x16x16xf32> to vector<2x1x16xf32>
    %152 = vector.shape_cast %151 : vector<2x1x16xf32> to vector<2x16xf32>
    %c0_178 = arith.constant 0 : index
    %c48_179 = arith.constant 48 : index
    %153 = vector.load %arg21[%c0_178, %c48_179] : memref<2x256xf32, #tpu.memory_space<vmem>>, vector<2x16xf32>
    tpu.vector_store %arg21[%c0_178, %c48_179], %152 {strides = array<i32>} : memref<2x256xf32, #tpu.memory_space<vmem>>, vector<2x16xf32>,
    %154 = vector.extract_strided_slice %141 {offsets = [0, 4, 0], sizes = [2, 1, 16], strides = [1, 1, 1]} : vector<2x16x16xf32> to vector<2x1x16xf32>
    %155 = vector.shape_cast %154 : vector<2x1x16xf32> to vector<2x16xf32>
    %c0_180 = arith.constant 0 : index
    %c64_181 = arith.constant 64 : index
    %156 = vector.load %arg21[%c0_180, %c64_181] : memref<2x256xf32, #tpu.memory_space<vmem>>, vector<2x16xf32>
    tpu.vector_store %arg21[%c0_180, %c64_181], %155 {strides = array<i32>} : memref<2x256xf32, #tpu.memory_space<vmem>>, vector<2x16xf32>,
    %157 = vector.extract_strided_slice %141 {offsets = [0, 5, 0], sizes = [2, 1, 16], strides = [1, 1, 1]} : vector<2x16x16xf32> to vector<2x1x16xf32>
    %158 = vector.shape_cast %157 : vector<2x1x16xf32> to vector<2x16xf32>
    %c0_182 = arith.constant 0 : index
    %c80 = arith.constant 80 : index
    %159 = vector.load %arg21[%c0_182, %c80] : memref<2x256xf32, #tpu.memory_space<vmem>>, vector<2x16xf32>
    tpu.vector_store %arg21[%c0_182, %c80], %158 {strides = array<i32>} : memref<2x256xf32, #tpu.memory_space<vmem>>, vector<2x16xf32>,
    %160 = vector.extract_strided_slice %141 {offsets = [0, 6, 0], sizes = [2, 1, 16], strides = [1, 1, 1]} : vector<2x16x16xf32> to vector<2x1x16xf32>
    %161 = vector.shape_cast %160 : vector<2x1x16xf32> to vector<2x16xf32>
    %c0_183 = arith.constant 0 : index
    %c96 = arith.constant 96 : index
    %162 = vector.load %arg21[%c0_183, %c96] : memref<2x256xf32, #tpu.memory_space<vmem>>, vector<2x16xf32>
    tpu.vector_store %arg21[%c0_183, %c96], %161 {strides = array<i32>} : memref<2x256xf32, #tpu.memory_space<vmem>>, vector<2x16xf32>,
    %163 = vector.extract_strided_slice %141 {offsets = [0, 7, 0], sizes = [2, 1, 16], strides = [1, 1, 1]} : vector<2x16x16xf32> to vector<2x1x16xf32>
    %164 = vector.shape_cast %163 : vector<2x1x16xf32> to vector<2x16xf32>
    %c0_184 = arith.constant 0 : index
    %c112 = arith.constant 112 : index
    %165 = vector.load %arg21[%c0_184, %c112] : memref<2x256xf32, #tpu.memory_space<vmem>>, vector<2x16xf32>
    tpu.vector_store %arg21[%c0_184, %c112], %164 {strides = array<i32>} : memref<2x256xf32, #tpu.memory_space<vmem>>, vector<2x16xf32>,
    %166 = vector.extract_strided_slice %141 {offsets = [0, 8, 0], sizes = [2, 1, 16], strides = [1, 1, 1]} : vector<2x16x16xf32> to vector<2x1x16xf32>
    %167 = vector.shape_cast %166 : vector<2x1x16xf32> to vector<2x16xf32>
    %c0_185 = arith.constant 0 : index
    %c128 = arith.constant 128 : index
    %168 = vector.load %arg21[%c0_185, %c128] : memref<2x256xf32, #tpu.memory_space<vmem>>, vector<2x16xf32>
    tpu.vector_store %arg21[%c0_185, %c128], %167 {strides = array<i32>} : memref<2x256xf32, #tpu.memory_space<vmem>>, vector<2x16xf32>,
    %169 = vector.extract_strided_slice %141 {offsets = [0, 9, 0], sizes = [2, 1, 16], strides = [1, 1, 1]} : vector<2x16x16xf32> to vector<2x1x16xf32>
    %170 = vector.shape_cast %169 : vector<2x1x16xf32> to vector<2x16xf32>
    %c0_186 = arith.constant 0 : index
    %c144 = arith.constant 144 : index
    %171 = vector.load %arg21[%c0_186, %c144] : memref<2x256xf32, #tpu.memory_space<vmem>>, vector<2x16xf32>
    tpu.vector_store %arg21[%c0_186, %c144], %170 {strides = array<i32>} : memref<2x256xf32, #tpu.memory_space<vmem>>, vector<2x16xf32>,
    %172 = vector.extract_strided_slice %141 {offsets = [0, 10, 0], sizes = [2, 1, 16], strides = [1, 1, 1]} : vector<2x16x16xf32> to vector<2x1x16xf32>
    %173 = vector.shape_cast %172 : vector<2x1x16xf32> to vector<2x16xf32>
    %c0_187 = arith.constant 0 : index
    %c160 = arith.constant 160 : index
    %174 = vector.load %arg21[%c0_187, %c160] : memref<2x256xf32, #tpu.memory_space<vmem>>, vector<2x16xf32>
    tpu.vector_store %arg21[%c0_187, %c160], %173 {strides = array<i32>} : memref<2x256xf32, #tpu.memory_space<vmem>>, vector<2x16xf32>,
    %175 = vector.extract_strided_slice %141 {offsets = [0, 11, 0], sizes = [2, 1, 16], strides = [1, 1, 1]} : vector<2x16x16xf32> to vector<2x1x16xf32>
    %176 = vector.shape_cast %175 : vector<2x1x16xf32> to vector<2x16xf32>
    %c0_188 = arith.constant 0 : index
    %c176 = arith.constant 176 : index
    %177 = vector.load %arg21[%c0_188, %c176] : memref<2x256xf32, #tpu.memory_space<vmem>>, vector<2x16xf32>
    tpu.vector_store %arg21[%c0_188, %c176], %176 {strides = array<i32>} : memref<2x256xf32, #tpu.memory_space<vmem>>, vector<2x16xf32>,
    %178 = vector.extract_strided_slice %141 {offsets = [0, 12, 0], sizes = [2, 1, 16], strides = [1, 1, 1]} : vector<2x16x16xf32> to vector<2x1x16xf32>
    %179 = vector.shape_cast %178 : vector<2x1x16xf32> to vector<2x16xf32>
    %c0_189 = arith.constant 0 : index
    %c192 = arith.constant 192 : index
    %180 = vector.load %arg21[%c0_189, %c192] : memref<2x256xf32, #tpu.memory_space<vmem>>, vector<2x16xf32>
    tpu.vector_store %arg21[%c0_189, %c192], %179 {strides = array<i32>} : memref<2x256xf32, #tpu.memory_space<vmem>>, vector<2x16xf32>,
    %181 = vector.extract_strided_slice %141 {offsets = [0, 13, 0], sizes = [2, 1, 16], strides = [1, 1, 1]} : vector<2x16x16xf32> to vector<2x1x16xf32>
    %182 = vector.shape_cast %181 : vector<2x1x16xf32> to vector<2x16xf32>
    %c0_190 = arith.constant 0 : index
    %c208 = arith.constant 208 : index
    %183 = vector.load %arg21[%c0_190, %c208] : memref<2x256xf32, #tpu.memory_space<vmem>>, vector<2x16xf32>
    tpu.vector_store %arg21[%c0_190, %c208], %182 {strides = array<i32>} : memref<2x256xf32, #tpu.memory_space<vmem>>, vector<2x16xf32>,
    %184 = vector.extract_strided_slice %141 {offsets = [0, 14, 0], sizes = [2, 1, 16], strides = [1, 1, 1]} : vector<2x16x16xf32> to vector<2x1x16xf32>
    %185 = vector.shape_cast %184 : vector<2x1x16xf32> to vector<2x16xf32>
    %c0_191 = arith.constant 0 : index
    %c224 = arith.constant 224 : index
    %186 = vector.load %arg21[%c0_191, %c224] : memref<2x256xf32, #tpu.memory_space<vmem>>, vector<2x16xf32>
    tpu.vector_store %arg21[%c0_191, %c224], %185 {strides = array<i32>} : memref<2x256xf32, #tpu.memory_space<vmem>>, vector<2x16xf32>,
    %187 = vector.extract_strided_slice %141 {offsets = [0, 15, 0], sizes = [2, 1, 16], strides = [1, 1, 1]} : vector<2x16x16xf32> to vector<2x1x16xf32>
    %188 = vector.shape_cast %187 : vector<2x1x16xf32> to vector<2x16xf32>
    %c0_192 = arith.constant 0 : index
    %c240 = arith.constant 240 : index
    %189 = vector.load %arg21[%c0_192, %c240] : memref<2x256xf32, #tpu.memory_space<vmem>>, vector<2x16xf32>
    tpu.vector_store %arg21[%c0_192, %c240], %188 {strides = array<i32>} : memref<2x256xf32, #tpu.memory_space<vmem>>, vector<2x16xf32>,
    %c0_193 = arith.constant 0 : index
    %c0_194 = arith.constant 0 : index
    %190 = vector.load %arg21[%c0_193, %c0_194] : memref<2x256xf32, #tpu.memory_space<vmem>>, vector<2x256xf32>
    %c0_195 = arith.constant 0 : index
    %c0_196 = arith.constant 0 : index
    %191 = vector.load %arg10[%c0_195, %c0_196] : memref<256x32xf32, #tpu.memory_space<vmem>>, vector<256x32xf32>
    %cst_197 = arith.constant dense<0.000000e+00> : vector<2x32xf32>
    %192 = tpu.matmul %190, %191, %cst_197 {dimension_numbers = #tpu.dot_dimension_numbers<[1], [0], [0], [1], [0, 0, 1, 1], [], []>} : vector<2x256xf32>, vector<256x32xf32>, vector<2x32xf32> -> vector<2x32xf32>
    %c0_198 = arith.constant 0 : index
    %c0_199 = arith.constant 0 : index
    %193 = vector.load %arg11[%c0_198, %c0_199] : memref<1x32xf32, #tpu.memory_space<vmem>>, vector<1x32xf32>
    %194 = vector.broadcast %193 : vector<1x32xf32> to vector<2x32xf32>
    %195 = arith.addf %192, %194 : vector<2x32xf32>
    %cst_200 = arith.constant 0.000000e+00 : f32
    %196 = vector.broadcast %cst_200 : f32 to vector<2x32xf32>
    %197 = arith.maximumf %195, %196 : vector<2x32xf32>
    %c0_201 = arith.constant 0 : index
    %c0_202 = arith.constant 0 : index
    %198 = vector.load %arg12[%c0_201, %c0_202] : memref<32x10xf32, #tpu.memory_space<vmem>>, vector<32x10xf32>
    %cst_203 = arith.constant dense<0.000000e+00> : vector<2x10xf32>
    %199 = tpu.matmul %197, %198, %cst_203 {dimension_numbers = #tpu.dot_dimension_numbers<[1], [0], [0], [1], [0, 0, 1, 1], [], []>} : vector<2x32xf32>, vector<32x10xf32>, vector<2x10xf32> -> vector<2x10xf32>
    %c0_204 = arith.constant 0 : index
    %c0_205 = arith.constant 0 : index
    %200 = vector.load %arg13[%c0_204, %c0_205] : memref<1x10xf32, #tpu.memory_space<vmem>>, vector<1x10xf32>
    %201 = vector.broadcast %200 : vector<1x10xf32> to vector<2x10xf32>
    %202 = arith.addf %199, %201 : vector<2x10xf32>
    %c0_206 = arith.constant 0 : index
    %c0_207 = arith.constant 0 : index
    %203 = vector.load %arg14[%c0_206, %c0_207] : memref<2x10xf32, #tpu.memory_space<vmem>>, vector<2x10xf32>
    tpu.vector_store %arg14[%c0_206, %c0_207], %202 {strides = array<i32>} : memref<2x10xf32, #tpu.memory_space<vmem>>, vector<2x10xf32>,
    return
  }
  func.func @transform_0(%arg0: i32) -> (i32, i32, i32, i32) {
    %c0_i32 = arith.constant 0 : i32
    %c0_i32_0 = arith.constant 0 : i32
    %c0_i32_1 = arith.constant 0 : i32
    %c0_i32_2 = arith.constant 0 : i32
    %c0_i32_3 = arith.constant 0 : i32
    return %c0_i32, %c0_i32_0, %c0_i32_1, %c0_i32_2 : i32, i32, i32, i32
  }
  func.func @transform_1(%arg0: i32) -> (i32, i32) {
    %c0_i32 = arith.constant 0 : i32
    %c0_i32_0 = arith.constant 0 : i32
    %c0_i32_1 = arith.constant 0 : i32
    return %c0_i32, %c0_i32_0 : i32, i32
  }
  func.func @transform_2(%arg0: i32) -> (i32, i32) {
    %c0_i32 = arith.constant 0 : i32
    %c0_i32_0 = arith.constant 0 : i32
    %c0_i32_1 = arith.constant 0 : i32
    return %c0_i32, %c0_i32_0 : i32, i32
  }
  func.func @transform_3(%arg0: i32) -> (i32, i32) {
    %c0_i32 = arith.constant 0 : i32
    %c0_i32_0 = arith.constant 0 : i32
    %c0_i32_1 = arith.constant 0 : i32
    return %c0_i32, %c0_i32_0 : i32, i32
  }
  func.func @transform_4(%arg0: i32) -> (i32, i32) {
    %c0_i32 = arith.constant 0 : i32
    %c0_i32_0 = arith.constant 0 : i32
    %c0_i32_1 = arith.constant 0 : i32
    return %c0_i32, %c0_i32_0 : i32, i32
  }
  func.func @transform_5(%arg0: i32) -> (i32, i32) {
    %c0_i32 = arith.constant 0 : i32
    %c0_i32_0 = arith.constant 0 : i32
    %c0_i32_1 = arith.constant 0 : i32
    return %c0_i32, %c0_i32_0 : i32, i32
  }
  func.func @transform_6(%arg0: i32) -> (i32, i32) {
    %c0_i32 = arith.constant 0 : i32
    %c0_i32_0 = arith.constant 0 : i32
    %c0_i32_1 = arith.constant 0 : i32
    return %c0_i32, %c0_i32_0 : i32, i32
  }
  func.func @transform_7(%arg0: i32) -> (i32, i32) {
    %c0_i32 = arith.constant 0 : i32
    %c0_i32_0 = arith.constant 0 : i32
    %c0_i32_1 = arith.constant 0 : i32
    return %c0_i32, %c0_i32_0 : i32, i32
  }
  func.func @transform_8(%arg0: i32) -> (i32, i32) {
    %c0_i32 = arith.constant 0 : i32
    %c0_i32_0 = arith.constant 0 : i32
    %c0_i32_1 = arith.constant 0 : i32
    return %c0_i32, %c0_i32_0 : i32, i32
  }
  func.func @transform_9(%arg0: i32) -> (i32, i32) {
    %c0_i32 = arith.constant 0 : i32
    %c0_i32_0 = arith.constant 0 : i32
    %c0_i32_1 = arith.constant 0 : i32
    return %c0_i32, %c0_i32_0 : i32, i32
  }
  func.func @transform_10(%arg0: i32) -> (i32, i32) {
    %c0_i32 = arith.constant 0 : i32
    %c0_i32_0 = arith.constant 0 : i32
    %c0_i32_1 = arith.constant 0 : i32
    return %c0_i32, %c0_i32_0 : i32, i32
  }
  func.func @transform_11(%arg0: i32) -> (i32, i32) {
    %c0_i32 = arith.constant 0 : i32
    %c0_i32_0 = arith.constant 0 : i32
    %c0_i32_1 = arith.constant 0 : i32
    return %c0_i32, %c0_i32_0 : i32, i32
  }
  func.func @transform_12(%arg0: i32) -> (i32, i32) {
    %c0_i32 = arith.constant 0 : i32
    %c0_i32_0 = arith.constant 0 : i32
    %c0_i32_1 = arith.constant 0 : i32
    return %c0_i32, %c0_i32_0 : i32, i32
  }
  func.func @transform_13(%arg0: i32) -> (i32, i32) {
    %c0_i32 = arith.constant 0 : i32
    %c0_i32_0 = arith.constant 0 : i32
    %c0_i32_1 = arith.constant 0 : i32
    return %c0_i32, %c0_i32_0 : i32, i32
  }
}

</mosaic_0001>

<llo_original>
// kernel: shadow_net_forward.1
$region0: #{shadow_net_forward.1}
  #allocation0 [shape = 'u32[]', space=smem, size = 0x4, offset = 0x4, fixed_abs, tag = 'smem constant byte address 0x4 - core index']
  #allocation1 [shape = 'u32[144,128]{1,0:T(1,128)}', space=vmem, size = 0x12000, scoped, tag = 'internal scratch']
  #allocation2 [shape = 'f32[2,18,18,4]{3,2,1,0:T(8,128)}', space=vmem, size = 0x6c000, scoped, tag = 'scratch operand']
  #allocation3 [shape = 'f32[512,36]{1,0:T(8,128)}', space=vmem, size = 0x40000, scoped, tag = 'scratch operand']
  #allocation4 [shape = 'f32[2,16,16,8]{3,2,1,0:T(8,128)}', space=vmem, size = 0x40000, scoped, tag = 'scratch operand']
  #allocation5 [shape = 'f32[2,10,10,8]{3,2,1,0:T(8,128)}', space=vmem, size = 0x28000, scoped, tag = 'scratch operand']
  #allocation6 [shape = 'f32[128,72]{1,0:T(8,128)}', space=vmem, size = 0x10000, scoped, tag = 'scratch operand']
  #allocation7 [shape = 'f32[2,8,8,16]{3,2,1,0:T(8,128)}', space=vmem, size = 0x10000, scoped, tag = 'scratch operand']
  #allocation8 [shape = 'f32[2,256]{1,0:T(2,128)}', space=vmem, size = 0x800, scoped, tag = 'scratch operand']
  %s0 = inlined_call_operand.vmem [shape: f32[2,16,16,4], index: 0, kind: input, shape index: {}]
  %s1 = inlined_call_operand.vmem [shape: f32[36,8], index: 1, kind: input, shape index: {}]
  %s2 = inlined_call_operand.vmem [shape: f32[1,8], index: 2, kind: input, shape index: {}]
  %s3 = inlined_call_operand.vmem [shape: f32[1,8], index: 3, kind: input, shape index: {}]
  %s4 = inlined_call_operand.vmem [shape: f32[1,8], index: 4, kind: input, shape index: {}]
  %s5 = inlined_call_operand.vmem [shape: f32[72,16], index: 5, kind: input, shape index: {}]
  %s6 = inlined_call_operand.vmem [shape: f32[1,16], index: 6, kind: input, shape index: {}]
  %s7 = inlined_call_operand.vmem [shape: f32[1,16], index: 7, kind: input, shape index: {}]
  %s8 = inlined_call_operand.vmem [shape: f32[1,16], index: 8, kind: input, shape index: {}]
  %s9 = inlined_call_operand.vmem [shape: f32[256,32], index: 9, kind: input, shape index: {}]
  %s10 = inlined_call_operand.vmem [shape: f32[1,32], index: 10, kind: input, shape index: {}]
  %s11 = inlined_call_operand.vmem [shape: f32[32,10], index: 11, kind: input, shape index: {}]
  %s12 = inlined_call_operand.vmem [shape: f32[1,10], index: 12, kind: input, shape index: {}]
  %s13 = inlined_call_operand.hbm [shape: f32[2,10], index: 13, kind: output, shape index: {}]
  %s14 = sld [smem:[#allocation0]]
  $region62: #{shadow_net_forward.1} parent=0
    _
  %s16 = ssub.s32 1, %s14
  %s17 = scalar_select 0, %s16, %s14
  $region1: #{shadow_net_forward.1} parent=0
    #allocation9 [shape = 'u8[1024]{0}', space=vmem, size = 0x400, scoped, tag = 'output window, operand 0, single buffered']
    #allocation10 [shape = 's32[1]{0}', space=sflag, size = 0x4, scoped, tag = 'scoped memory for shadow_net_forward.1']
    %18 = vsyncpa [#allocation10], 0
    // Predicated region
    $region2: #{shadow_net_forward.1} parent=1 // pred_check
      _
    $region3: #{shadow_net_forward.1} parent=1 // pred_check_branch
      %20 = sbr.rel (0) target = $region5
    $region4: #{shadow_net_forward.1} parent=1 // pred_region
      _
    $region5: #{shadow_net_forward.1} parent=1 // pred_fallthru
      _
    // Predicated region
    $region6: #{shadow_net_forward.1} parent=1 // pred_check
      _
    $region7: #{shadow_net_forward.1} parent=1 // pred_check_branch
      %22 = sbr.rel (0) target = $region9
    $region8: #{shadow_net_forward.1} parent=1 // pred_region
      _
    $region9: #{shadow_net_forward.1} parent=1 // pred_fallthru
      _
    // Predicated region
    $region10: #{shadow_net_forward.1} parent=1 // pred_check
      _
    $region11: #{shadow_net_forward.1} parent=1 // pred_check_branch
      %24 = sbr.rel (0) target = $region13
    $region12: #{shadow_net_forward.1} parent=1 // pred_region
      _
    $region13: #{shadow_net_forward.1} parent=1 // pred_fallthru
      _
    // Predicated region
    $region14: #{shadow_net_forward.1} parent=1 // pred_check
      _
    $region15: #{shadow_net_forward.1} parent=1 // pred_check_branch
      %26 = sbr.rel (0) target = $region17
    $region16: #{shadow_net_forward.1} parent=1 // pred_region
      _
    $region17: #{shadow_net_forward.1} parent=1 // pred_fallthru
      _
    // Predicated region
    $region18: #{shadow_net_forward.1} parent=1 // pred_check
      _
    $region19: #{shadow_net_forward.1} parent=1 // pred_check_branch
      %28 = sbr.rel (0) target = $region21
    $region20: #{shadow_net_forward.1} parent=1 // pred_region
      _
    $region21: #{shadow_net_forward.1} parent=1 // pred_fallthru
      _
    // Predicated region
    $region22: #{shadow_net_forward.1} parent=1 // pred_check
      _
    $region23: #{shadow_net_forward.1} parent=1 // pred_check_branch
      %30 = sbr.rel (0) target = $region25
    $region24: #{shadow_net_forward.1} parent=1 // pred_region
      _
    $region25: #{shadow_net_forward.1} parent=1 // pred_fallthru
      _
    // Predicated region
    $region26: #{shadow_net_forward.1} parent=1 // pred_check
      _
    $region27: #{shadow_net_forward.1} parent=1 // pred_check_branch
      %32 = sbr.rel (0) target = $region29
    $region28: #{shadow_net_forward.1} parent=1 // pred_region
      _
    $region29: #{shadow_net_forward.1} parent=1 // pred_fallthru
      _
    // Predicated region
    $region30: #{shadow_net_forward.1} parent=1 // pred_check
      _
    $region31: #{shadow_net_forward.1} parent=1 // pred_check_branch
      %34 = sbr.rel (0) target = $region33
    $region32: #{shadow_net_forward.1} parent=1 // pred_region
      _
    $region33: #{shadow_net_forward.1} parent=1 // pred_fallthru
      _
    // Predicated region
    $region34: #{shadow_net_forward.1} parent=1 // pred_check
      _
    $region35: #{shadow_net_forward.1} parent=1 // pred_check_branch
      %36 = sbr.rel (0) target = $region37
    $region36: #{shadow_net_forward.1} parent=1 // pred_region
      _
    $region37: #{shadow_net_forward.1} parent=1 // pred_fallthru
      _
    // Predicated region
    $region38: #{shadow_net_forward.1} parent=1 // pred_check
      _
    $region39: #{shadow_net_forward.1} parent=1 // pred_check_branch
      %38 = sbr.rel (0) target = $region41
    $region40: #{shadow_net_forward.1} parent=1 // pred_region
      _
    $region41: #{shadow_net_forward.1} parent=1 // pred_fallthru
      _
    // Predicated region
    $region42: #{shadow_net_forward.1} parent=1 // pred_check
      _
    $region43: #{shadow_net_forward.1} parent=1 // pred_check_branch
      %40 = sbr.rel (0) target = $region45
    $region44: #{shadow_net_forward.1} parent=1 // pred_region
      _
    $region45: #{shadow_net_forward.1} parent=1 // pred_fallthru
      _
    // Predicated region
    $region46: #{shadow_net_forward.1} parent=1 // pred_check
      _
    $region47: #{shadow_net_forward.1} parent=1 // pred_check_branch
      %42 = sbr.rel (0) target = $region49
    $region48: #{shadow_net_forward.1} parent=1 // pred_region
      _
    $region49: #{shadow_net_forward.1} parent=1 // pred_fallthru
      _
    // Predicated region
    $region50: #{shadow_net_forward.1} parent=1 // pred_check
      _
    $region51: #{shadow_net_forward.1} parent=1 // pred_check_branch
      %44 = sbr.rel (0) target = $region53
    $region52: #{shadow_net_forward.1} parent=1 // pred_region
      _
    $region53: #{shadow_net_forward.1} parent=1 // pred_fallthru
      _
    %vm45 = vcmask 31744
    %46 = vst.msk [vmem:[#allocation2] sm:$0xff] %vm45, 0.0
    %47 = vst.msk [vmem:[#allocation2 + $0x8] sm:$0xff] %vm45, 0.0
    %vm48 = vcmask 25600
    %49 = vst.msk [vmem:[#allocation2 + $0x10] sm:$0x3] %vm48, 0.0
    %50 = vst.msk [vmem:[#allocation2 + $0x18] sm:$0xff] %vm45, 0.0
    %51 = vst.msk [vmem:[#allocation2 + $0x20] sm:$0xff] %vm45, 0.0
    %52 = vst.msk [vmem:[#allocation2 + $0x28] sm:$0x3] %vm48, 0.0
    %53 = vst.msk [vmem:[#allocation2 + $0x30] sm:$0xff] %vm45, 0.0
    %54 = vst.msk [vmem:[#allocation2 + $0x38] sm:$0xff] %vm45, 0.0
    %55 = vst.msk [vmem:[#allocation2 + $0x40] sm:$0x3] %vm48, 0.0
    %56 = vst.msk [vmem:[#allocation2 + $0x48] sm:$0xff] %vm45, 0.0
    %57 = vst.msk [vmem:[#allocation2 + $0x50] sm:$0xff] %vm45, 0.0
    %58 = vst.msk [vmem:[#allocation2 + $0x58] sm:$0x3] %vm48, 0.0
    %59 = vst.msk [vmem:[#allocation2 + $0x60] sm:$0xff] %vm45, 0.0
    %60 = vst.msk [vmem:[#allocation2 + $0x68] sm:$0xff] %vm45, 0.0
    %61 = vst.msk [vmem:[#allocation2 + $0x70] sm:$0x3] %vm48, 0.0
    %62 = vst.msk [vmem:[#allocation2 + $0x78] sm:$0xff] %vm45, 0.0
    %63 = vst.msk [vmem:[#allocation2 + $0x80] sm:$0xff] %vm45, 0.0
    %64 = vst.msk [vmem:[#allocation2 + $0x88] sm:$0x3] %vm48, 0.0
    %65 = vst.msk [vmem:[#allocation2 + $0x90] sm:$0xff] %vm45, 0.0
    %66 = vst.msk [vmem:[#allocation2 + $0x98] sm:$0xff] %vm45, 0.0
    %67 = vst.msk [vmem:[#allocation2 + $0xa0] sm:$0x3] %vm48, 0.0
    %68 = vst.msk [vmem:[#allocation2 + $0xa8] sm:$0xff] %vm45, 0.0
    %69 = vst.msk [vmem:[#allocation2 + $0xb0] sm:$0xff] %vm45, 0.0
    %70 = vst.msk [vmem:[#allocation2 + $0xb8] sm:$0x3] %vm48, 0.0
    %71 = vst.msk [vmem:[#allocation2 + $0xc0] sm:$0xff] %vm45, 0.0
    %72 = vst.msk [vmem:[#allocation2 + $0xc8] sm:$0xff] %vm45, 0.0
    %73 = vst.msk [vmem:[#allocation2 + $0xd0] sm:$0x3] %vm48, 0.0
    %74 = vst.msk [vmem:[#allocation2 + $0xd8] sm:$0xff] %vm45, 0.0
    %75 = vst.msk [vmem:[#allocation2 + $0xe0] sm:$0xff] %vm45, 0.0
    %76 = vst.msk [vmem:[#allocation2 + $0xe8] sm:$0x3] %vm48, 0.0
    %77 = vst.msk [vmem:[#allocation2 + $0xf0] sm:$0xff] %vm45, 0.0
    %78 = vst.msk [vmem:[#allocation2 + $0xf8] sm:$0xff] %vm45, 0.0
    %79 = vst.msk [vmem:[#allocation2 + $0x100] sm:$0x3] %vm48, 0.0
    %80 = vst.msk [vmem:[#allocation2 + $0x108] sm:$0xff] %vm45, 0.0
    %81 = vst.msk [vmem:[#allocation2 + $0x110] sm:$0xff] %vm45, 0.0
    %82 = vst.msk [vmem:[#allocation2 + $0x118] sm:$0x3] %vm48, 0.0
    %83 = vst.msk [vmem:[#allocation2 + $0x120] sm:$0xff] %vm45, 0.0
    %84 = vst.msk [vmem:[#allocation2 + $0x128] sm:$0xff] %vm45, 0.0
    %85 = vst.msk [vmem:[#allocation2 + $0x130] sm:$0x3] %vm48, 0.0
    %86 = vst.msk [vmem:[#allocation2 + $0x138] sm:$0xff] %vm45, 0.0
    %87 = vst.msk [vmem:[#allocation2 + $0x140] sm:$0xff] %vm45, 0.0
    %88 = vst.msk [vmem:[#allocation2 + $0x148] sm:$0x3] %vm48, 0.0
    %89 = vst.msk [vmem:[#allocation2 + $0x150] sm:$0xff] %vm45, 0.0
    %90 = vst.msk [vmem:[#allocation2 + $0x158] sm:$0xff] %vm45, 0.0
    %91 = vst.msk [vmem:[#allocation2 + $0x160] sm:$0x3] %vm48, 0.0
    %92 = vst.msk [vmem:[#allocation2 + $0x168] sm:$0xff] %vm45, 0.0
    %93 = vst.msk [vmem:[#allocation2 + $0x170] sm:$0xff] %vm45, 0.0
    %94 = vst.msk [vmem:[#allocation2 + $0x178] sm:$0x3] %vm48, 0.0
    %95 = vst.msk [vmem:[#allocation2 + $0x180] sm:$0xff] %vm45, 0.0
    %96 = vst.msk [vmem:[#allocation2 + $0x188] sm:$0xff] %vm45, 0.0
    %97 = vst.msk [vmem:[#allocation2 + $0x190] sm:$0x3] %vm48, 0.0
    %98 = vst.msk [vmem:[#allocation2 + $0x198] sm:$0xff] %vm45, 0.0
    %99 = vst.msk [vmem:[#allocation2 + $0x1a0] sm:$0xff] %vm45, 0.0
    %100 = vst.msk [vmem:[#allocation2 + $0x1a8] sm:$0x3] %vm48, 0.0
    %101 = vst.msk [vmem:[#allocation2 + $0x1b0] sm:$0xff] %vm45, 0.0
    %102 = vst.msk [vmem:[#allocation2 + $0x1b8] sm:$0xff] %vm45, 0.0
    %103 = vst.msk [vmem:[#allocation2 + $0x1c0] sm:$0x3] %vm48, 0.0
    %104 = vst.msk [vmem:[#allocation2 + $0x1c8] sm:$0xff] %vm45, 0.0
    %105 = vst.msk [vmem:[#allocation2 + $0x1d0] sm:$0xff] %vm45, 0.0
    %106 = vst.msk [vmem:[#allocation2 + $0x1d8] sm:$0x3] %vm48, 0.0
    %107 = vst.msk [vmem:[#allocation2 + $0x1e0] sm:$0xff] %vm45, 0.0
    %108 = vst.msk [vmem:[#allocation2 + $0x1e8] sm:$0xff] %vm45, 0.0
    %109 = vst.msk [vmem:[#allocation2 + $0x1f0] sm:$0x3] %vm48, 0.0
    %110 = vst.msk [vmem:[#allocation2 + $0x1f8] sm:$0xff] %vm45, 0.0
    %111 = vst.msk [vmem:[#allocation2 + $0x200] sm:$0xff] %vm45, 0.0
    %112 = vst.msk [vmem:[#allocation2 + $0x208] sm:$0x3] %vm48, 0.0
    %113 = vst.msk [vmem:[#allocation2 + $0x210] sm:$0xff] %vm45, 0.0
    %114 = vst.msk [vmem:[#allocation2 + $0x218] sm:$0xff] %vm45, 0.0
    %115 = vst.msk [vmem:[#allocation2 + $0x220] sm:$0x3] %vm48, 0.0
    %116 = vst.msk [vmem:[#allocation2 + $0x228] sm:$0xff] %vm45, 0.0
    %117 = vst.msk [vmem:[#allocation2 + $0x230] sm:$0xff] %vm45, 0.0
    %118 = vst.msk [vmem:[#allocation2 + $0x238] sm:$0x3] %vm48, 0.0
    %119 = vst.msk [vmem:[#allocation2 + $0x240] sm:$0xff] %vm45, 0.0
    %120 = vst.msk [vmem:[#allocation2 + $0x248] sm:$0xff] %vm45, 0.0
    %121 = vst.msk [vmem:[#allocation2 + $0x250] sm:$0x3] %vm48, 0.0
    %122 = vst.msk [vmem:[#allocation2 + $0x258] sm:$0xff] %vm45, 0.0
    %123 = vst.msk [vmem:[#allocation2 + $0x260] sm:$0xff] %vm45, 0.0
    %124 = vst.msk [vmem:[#allocation2 + $0x268] sm:$0x3] %vm48, 0.0
    %125 = vst.msk [vmem:[#allocation2 + $0x270] sm:$0xff] %vm45, 0.0
    %126 = vst.msk [vmem:[#allocation2 + $0x278] sm:$0xff] %vm45, 0.0
    %127 = vst.msk [vmem:[#allocation2 + $0x280] sm:$0x3] %vm48, 0.0
    %128 = vst.msk [vmem:[#allocation2 + $0x288] sm:$0xff] %vm45, 0.0
    %129 = vst.msk [vmem:[#allocation2 + $0x290] sm:$0xff] %vm45, 0.0
    %130 = vst.msk [vmem:[#allocation2 + $0x298] sm:$0x3] %vm48, 0.0
    %131 = vst.msk [vmem:[#allocation2 + $0x2a0] sm:$0xff] %vm45, 0.0
    %132 = vst.msk [vmem:[#allocation2 + $0x2a8] sm:$0xff] %vm45, 0.0
    %133 = vst.msk [vmem:[#allocation2 + $0x2b0] sm:$0x3] %vm48, 0.0
    %134 = vst.msk [vmem:[#allocation2 + $0x2b8] sm:$0xff] %vm45, 0.0
    %135 = vst.msk [vmem:[#allocation2 + $0x2c0] sm:$0xff] %vm45, 0.0
    %136 = vst.msk [vmem:[#allocation2 + $0x2c8] sm:$0x3] %vm48, 0.0
    %137 = vst.msk [vmem:[#allocation2 + $0x2d0] sm:$0xff] %vm45, 0.0
    %138 = vst.msk [vmem:[#allocation2 + $0x2d8] sm:$0xff] %vm45, 0.0
    %139 = vst.msk [vmem:[#allocation2 + $0x2e0] sm:$0x3] %vm48, 0.0
    %140 = vst.msk [vmem:[#allocation2 + $0x2e8] sm:$0xff] %vm45, 0.0
    %141 = vst.msk [vmem:[#allocation2 + $0x2f0] sm:$0xff] %vm45, 0.0
    %142 = vst.msk [vmem:[#allocation2 + $0x2f8] sm:$0x3] %vm48, 0.0
    %143 = vst.msk [vmem:[#allocation2 + $0x300] sm:$0xff] %vm45, 0.0
    %144 = vst.msk [vmem:[#allocation2 + $0x308] sm:$0xff] %vm45, 0.0
    %145 = vst.msk [vmem:[#allocation2 + $0x310] sm:$0x3] %vm48, 0.0
    %146 = vst.msk [vmem:[#allocation2 + $0x318] sm:$0xff] %vm45, 0.0
    %147 = vst.msk [vmem:[#allocation2 + $0x320] sm:$0xff] %vm45, 0.0
    %148 = vst.msk [vmem:[#allocation2 + $0x328] sm:$0x3] %vm48, 0.0
    %149 = vst.msk [vmem:[#allocation2 + $0x330] sm:$0xff] %vm45, 0.0
    %150 = vst.msk [vmem:[#allocation2 + $0x338] sm:$0xff] %vm45, 0.0
    %151 = vst.msk [vmem:[#allocation2 + $0x340] sm:$0x3] %vm48, 0.0
    %152 = vst.msk [vmem:[#allocation2 + $0x348] sm:$0xff] %vm45, 0.0
    %153 = vst.msk [vmem:[#allocation2 + $0x350] sm:$0xff] %vm45, 0.0
    %154 = vst.msk [vmem:[#allocation2 + $0x358] sm:$0x3] %vm48, 0.0
    %v155 = vld [vmem:[%s0] sm:$0xff]
    %v156 = vld [vmem:[%s0 + $0x8] sm:$0xff]
    %v157 = vld [vmem:[%s0 + $0x10] sm:$0xff]
    %v158 = vld [vmem:[%s0 + $0x18] sm:$0xff]
    %v159 = vld [vmem:[%s0 + $0x20] sm:$0xff]
    %v160 = vld [vmem:[%s0 + $0x28] sm:$0xff]
    %v161 = vld [vmem:[%s0 + $0x30] sm:$0xff]
    %v162 = vld [vmem:[%s0 + $0x38] sm:$0xff]
    %v163 = vld [vmem:[%s0 + $0x40] sm:$0xff]
    %v164 = vld [vmem:[%s0 + $0x48] sm:$0xff]
    %v165 = vld [vmem:[%s0 + $0x50] sm:$0xff]
    %v166 = vld [vmem:[%s0 + $0x58] sm:$0xff]
    %v167 = vld [vmem:[%s0 + $0x60] sm:$0xff]
    %v168 = vld [vmem:[%s0 + $0x68] sm:$0xff]
    %v169 = vld [vmem:[%s0 + $0x70] sm:$0xff]
    %v170 = vld [vmem:[%s0 + $0x78] sm:$0xff]
    %v171 = vld [vmem:[%s0 + $0x80] sm:$0xff]
    %v172 = vld [vmem:[%s0 + $0x88] sm:$0xff]
    %v173 = vld [vmem:[%s0 + $0x90] sm:$0xff]
    %v174 = vld [vmem:[%s0 + $0x98] sm:$0xff]
    %v175 = vld [vmem:[%s0 + $0xa0] sm:$0xff]
    %v176 = vld [vmem:[%s0 + $0xa8] sm:$0xff]
    %v177 = vld [vmem:[%s0 + $0xb0] sm:$0xff]
    %v178 = vld [vmem:[%s0 + $0xb8] sm:$0xff]
    %v179 = vld [vmem:[%s0 + $0xc0] sm:$0xff]
    %v180 = vld [vmem:[%s0 + $0xc8] sm:$0xff]
    %v181 = vld [vmem:[%s0 + $0xd0] sm:$0xff]
    %v182 = vld [vmem:[%s0 + $0xd8] sm:$0xff]
    %v183 = vld [vmem:[%s0 + $0xe0] sm:$0xff]
    %v184 = vld [vmem:[%s0 + $0xe8] sm:$0xff]
    %v185 = vld [vmem:[%s0 + $0xf0] sm:$0xff]
    %v186 = vld [vmem:[%s0 + $0xf8] sm:$0xff]
    %v187 = vld [vmem:[%s0 + $0x100] sm:$0xff]
    %v188 = vld [vmem:[%s0 + $0x108] sm:$0xff]
    %v189 = vld [vmem:[%s0 + $0x110] sm:$0xff]
    %v190 = vld [vmem:[%s0 + $0x118] sm:$0xff]
    %v191 = vld [vmem:[%s0 + $0x120] sm:$0xff]
    %v192 = vld [vmem:[%s0 + $0x128] sm:$0xff]
    %v193 = vld [vmem:[%s0 + $0x130] sm:$0xff]
    %v194 = vld [vmem:[%s0 + $0x138] sm:$0xff]
    %v195 = vld [vmem:[%s0 + $0x140] sm:$0xff]
    %v196 = vld [vmem:[%s0 + $0x148] sm:$0xff]
    %v197 = vld [vmem:[%s0 + $0x150] sm:$0xff]
    %v198 = vld [vmem:[%s0 + $0x158] sm:$0xff]
    %v199 = vld [vmem:[%s0 + $0x160] sm:$0xff]
    %v200 = vld [vmem:[%s0 + $0x168] sm:$0xff]
    %v201 = vld [vmem:[%s0 + $0x170] sm:$0xff]
    %v202 = vld [vmem:[%s0 + $0x178] sm:$0xff]
    %v203 = vld [vmem:[%s0 + $0x180] sm:$0xff]
    %v204 = vld [vmem:[%s0 + $0x188] sm:$0xff]
    %v205 = vld [vmem:[%s0 + $0x190] sm:$0xff]
    %v206 = vld [vmem:[%s0 + $0x198] sm:$0xff]
    %v207 = vld [vmem:[%s0 + $0x1a0] sm:$0xff]
    %v208 = vld [vmem:[%s0 + $0x1a8] sm:$0xff]
    %v209 = vld [vmem:[%s0 + $0x1b0] sm:$0xff]
    %v210 = vld [vmem:[%s0 + $0x1b8] sm:$0xff]
    %v211 = vld [vmem:[%s0 + $0x1c0] sm:$0xff]
    %v212 = vld [vmem:[%s0 + $0x1c8] sm:$0xff]
    %v213 = vld [vmem:[%s0 + $0x1d0] sm:$0xff]
    %v214 = vld [vmem:[%s0 + $0x1d8] sm:$0xff]
    %v215 = vld [vmem:[%s0 + $0x1e0] sm:$0xff]
    %v216 = vld [vmem:[%s0 + $0x1e8] sm:$0xff]
    %v217 = vld [vmem:[%s0 + $0x1f0] sm:$0xff]
    %v218 = vld [vmem:[%s0 + $0x1f8] sm:$0xff]
    %s219 = scalar_lea.vmem [#allocation2], 24
    %220 = vst.msk [vmem:[%s219 + $0x1] sm:$0xff] %vm45, %v155
    %221 = vst.msk [vmem:[%s219 + $0x9] sm:$0xff] %vm45, %v156
    %222 = vst.msk [vmem:[%s219 + $0x19] sm:$0xff] %vm45, %v157
    %223 = vst.msk [vmem:[%s219 + $0x21] sm:$0xff] %vm45, %v158
    %224 = vst.msk [vmem:[%s219 + $0x31] sm:$0xff] %vm45, %v159
    %225 = vst.msk [vmem:[%s219 + $0x39] sm:$0xff] %vm45, %v160
    %226 = vst.msk [vmem:[%s219 + $0x49] sm:$0xff] %vm45, %v161
    %227 = vst.msk [vmem:[%s219 + $0x51] sm:$0xff] %vm45, %v162
    %228 = vst.msk [vmem:[%s219 + $0x61] sm:$0xff] %vm45, %v163
    %229 = vst.msk [vmem:[%s219 + $0x69] sm:$0xff] %vm45, %v164
    %230 = vst.msk [vmem:[%s219 + $0x79] sm:$0xff] %vm45, %v165
    %231 = vst.msk [vmem:[%s219 + $0x81] sm:$0xff] %vm45, %v166
    %232 = vst.msk [vmem:[%s219 + $0x91] sm:$0xff] %vm45, %v167
    %233 = vst.msk [vmem:[%s219 + $0x99] sm:$0xff] %vm45, %v168
    %234 = vst.msk [vmem:[%s219 + $0xa9] sm:$0xff] %vm45, %v169
    %235 = vst.msk [vmem:[%s219 + $0xb1] sm:$0xff] %vm45, %v170
    %236 = vst.msk [vmem:[%s219 + $0xc1] sm:$0xff] %vm45, %v171
    %237 = vst.msk [vmem:[%s219 + $0xc9] sm:$0xff] %vm45, %v172
    %238 = vst.msk [vmem:[%s219 + $0xd9] sm:$0xff] %vm45, %v173
    %239 = vst.msk [vmem:[%s219 + $0xe1] sm:$0xff] %vm45, %v174
    %240 = vst.msk [vmem:[%s219 + $0xf1] sm:$0xff] %vm45, %v175
    %241 = vst.msk [vmem:[%s219 + $0xf9] sm:$0xff] %vm45, %v176
    %242 = vst.msk [vmem:[%s219 + $0x109] sm:$0xff] %vm45, %v177
    %243 = vst.msk [vmem:[%s219 + $0x111] sm:$0xff] %vm45, %v178
    %244 = vst.msk [vmem:[%s219 + $0x121] sm:$0xff] %vm45, %v179
    %245 = vst.msk [vmem:[%s219 + $0x129] sm:$0xff] %vm45, %v180
    %246 = vst.msk [vmem:[%s219 + $0x139] sm:$0xff] %vm45, %v181
    %247 = vst.msk [vmem:[%s219 + $0x141] sm:$0xff] %vm45, %v182
    %248 = vst.msk [vmem:[%s219 + $0x151] sm:$0xff] %vm45, %v183
    %249 = vst.msk [vmem:[%s219 + $0x159] sm:$0xff] %vm45, %v184
    %250 = vst.msk [vmem:[%s219 + $0x169] sm:$0xff] %vm45, %v185
    %251 = vst.msk [vmem:[%s219 + $0x171] sm:$0xff] %vm45, %v186
    %252 = vst.msk [vmem:[%s219 + $0x1b1] sm:$0xff] %vm45, %v187
    %253 = vst.msk [vmem:[%s219 + $0x1b9] sm:$0xff] %vm45, %v188
    %254 = vst.msk [vmem:[%s219 + $0x1c9] sm:$0xff] %vm45, %v189
    %255 = vst.msk [vmem:[%s219 + $0x1d1] sm:$0xff] %vm45, %v190
    %256 = vst.msk [vmem:[%s219 + $0x1e1] sm:$0xff] %vm45, %v191
    %257 = vst.msk [vmem:[%s219 + $0x1e9] sm:$0xff] %vm45, %v192
    %258 = vst.msk [vmem:[%s219 + $0x1f9] sm:$0xff] %vm45, %v193
    %259 = vst.msk [vmem:[%s219 + $0x201] sm:$0xff] %vm45, %v194
    %260 = vst.msk [vmem:[%s219 + $0x211] sm:$0xff] %vm45, %v195
    %261 = vst.msk [vmem:[%s219 + $0x219] sm:$0xff] %vm45, %v196
    %262 = vst.msk [vmem:[%s219 + $0x229] sm:$0xff] %vm45, %v197
    %263 = vst.msk [vmem:[%s219 + $0x231] sm:$0xff] %vm45, %v198
    %264 = vst.msk [vmem:[%s219 + $0x241] sm:$0xff] %vm45, %v199
    %265 = vst.msk [vmem:[%s219 + $0x249] sm:$0xff] %vm45, %v200
    %266 = vst.msk [vmem:[%s219 + $0x259] sm:$0xff] %vm45, %v201
    %267 = vst.msk [vmem:[%s219 + $0x261] sm:$0xff] %vm45, %v202
    %268 = vst.msk [vmem:[%s219 + $0x271] sm:$0xff] %vm45, %v203
    %269 = vst.msk [vmem:[%s219 + $0x279] sm:$0xff] %vm45, %v204
    %270 = vst.msk [vmem:[%s219 + $0x289] sm:$0xff] %vm45, %v205
    %271 = vst.msk [vmem:[%s219 + $0x291] sm:$0xff] %vm45, %v206
    %272 = vst.msk [vmem:[%s219 + $0x2a1] sm:$0xff] %vm45, %v207
    %273 = vst.msk [vmem:[%s219 + $0x2a9] sm:$0xff] %vm45, %v208
    %274 = vst.msk [vmem:[%s219 + $0x2b9] sm:$0xff] %vm45, %v209
    %275 = vst.msk [vmem:[%s219 + $0x2c1] sm:$0xff] %vm45, %v210
    %276 = vst.msk [vmem:[%s219 + $0x2d1] sm:$0xff] %vm45, %v211
    %277 = vst.msk [vmem:[%s219 + $0x2d9] sm:$0xff] %vm45, %v212
    %278 = vst.msk [vmem:[%s219 + $0x2e9] sm:$0xff] %vm45, %v213
    %279 = vst.msk [vmem:[%s219 + $0x2f1] sm:$0xff] %vm45, %v214
    %280 = vst.msk [vmem:[%s219 + $0x301] sm:$0xff] %vm45, %v215
    %281 = vst.msk [vmem:[%s219 + $0x309] sm:$0xff] %vm45, %v216
    %282 = vst.msk [vmem:[%s219 + $0x319] sm:$0xff] %vm45, %v217
    %283 = vst.msk [vmem:[%s219 + $0x321] sm:$0xff] %vm45, %v218
    %v284 = vld [vmem:[#allocation2] sm:$0xff]
    %v285 = vld [vmem:[#allocation2 + $0x8] sm:$0xff]
    %v286 = vld [vmem:[#allocation2 + $0x18] sm:$0xff]
    %v287 = vld [vmem:[#allocation2 + $0x20] sm:$0xff]
    %v288 = vld [vmem:[#allocation2 + $0x30] sm:$0xff]
    %v289 = vld [vmem:[#allocation2 + $0x38] sm:$0xff]
    %v290 = vld [vmem:[#allocation2 + $0x48] sm:$0xff]
    %v291 = vld [vmem:[#allocation2 + $0x50] sm:$0xff]
    %v292 = vld [vmem:[#allocation2 + $0x60] sm:$0xff]
    %v293 = vld [vmem:[#allocation2 + $0x68] sm:$0xff]
    %v294 = vld [vmem:[#allocation2 + $0x78] sm:$0xff]
    %v295 = vld [vmem:[#allocation2 + $0x80] sm:$0xff]
    %v296 = vld [vmem:[#allocation2 + $0x90] sm:$0xff]
    %v297 = vld [vmem:[#allocation2 + $0x98] sm:$0xff]
    %v298 = vld [vmem:[#allocation2 + $0xa8] sm:$0xff]
    %v299 = vld [vmem:[#allocation2 + $0xb0] sm:$0xff]
    %v300 = vld [vmem:[#allocation2 + $0xc0] sm:$0xff]
    %v301 = vld [vmem:[#allocation2 + $0xc8] sm:$0xff]
    %v302 = vld [vmem:[#allocation2 + $0xd8] sm:$0xff]
    %v303 = vld [vmem:[#allocation2 + $0xe0] sm:$0xff]
    %v304 = vld [vmem:[#allocation2 + $0xf0] sm:$0xff]
    %v305 = vld [vmem:[#allocation2 + $0xf8] sm:$0xff]
    %v306 = vld [vmem:[#allocation2 + $0x108] sm:$0xff]
    %v307 = vld [vmem:[#allocation2 + $0x110] sm:$0xff]
    %v308 = vld [vmem:[#allocation2 + $0x120] sm:$0xff]
    %v309 = vld [vmem:[#allocation2 + $0x128] sm:$0xff]
    %v310 = vld [vmem:[#allocation2 + $0x138] sm:$0xff]
    %v311 = vld [vmem:[#allocation2 + $0x140] sm:$0xff]
    %v312 = vld [vmem:[#allocation2 + $0x150] sm:$0xff]
    %v313 = vld [vmem:[#allocation2 + $0x158] sm:$0xff]
    %v314 = vld [vmem:[#allocation2 + $0x168] sm:$0xff]
    %v315 = vld [vmem:[#allocation2 + $0x170] sm:$0xff]
    %v316 = vld [vmem:[#allocation2 + $0x1b0] sm:$0xff]
    %v317 = vld [vmem:[#allocation2 + $0x1b8] sm:$0xff]
    %v318 = vld [vmem:[#allocation2 + $0x1c8] sm:$0xff]
    %v319 = vld [vmem:[#allocation2 + $0x1d0] sm:$0xff]
    %v320 = vld [vmem:[#allocation2 + $0x1e0] sm:$0xff]
    %v321 = vld [vmem:[#allocation2 + $0x1e8] sm:$0xff]
    %v322 = vld [vmem:[#allocation2 + $0x1f8] sm:$0xff]
    %v323 = vld [vmem:[#allocation2 + $0x200] sm:$0xff]
    %v324 = vld [vmem:[#allocation2 + $0x210] sm:$0xff]
    %v325 = vld [vmem:[#allocation2 + $0x218] sm:$0xff]
    %v326 = vld [vmem:[#allocation2 + $0x228] sm:$0xff]
    %v327 = vld [vmem:[#allocation2 + $0x230] sm:$0xff]
    %v328 = vld [vmem:[#allocation2 + $0x240] sm:$0xff]
    %v329 = vld [vmem:[#allocation2 + $0x248] sm:$0xff]
    %v330 = vld [vmem:[#allocation2 + $0x258] sm:$0xff]
    %v331 = vld [vmem:[#allocation2 + $0x260] sm:$0xff]
    %v332 = vld [vmem:[#allocation2 + $0x270] sm:$0xff]
    %v333 = vld [vmem:[#allocation2 + $0x278] sm:$0xff]
    %v334 = vld [vmem:[#allocation2 + $0x288] sm:$0xff]
    %v335 = vld [vmem:[#allocation2 + $0x290] sm:$0xff]
    %v336 = vld [vmem:[#allocation2 + $0x2a0] sm:$0xff]
    %v337 = vld [vmem:[#allocation2 + $0x2a8] sm:$0xff]
    %v338 = vld [vmem:[#allocation2 + $0x2b8] sm:$0xff]
    %v339 = vld [vmem:[#allocation2 + $0x2c0] sm:$0xff]
    %v340 = vld [vmem:[#allocation2 + $0x2d0] sm:$0xff]
    %v341 = vld [vmem:[#allocation2 + $0x2d8] sm:$0xff]
    %v342 = vld [vmem:[#allocation2 + $0x2e8] sm:$0xff]
    %v343 = vld [vmem:[#allocation2 + $0x2f0] sm:$0xff]
    %v344 = vld [vmem:[#allocation2 + $0x300] sm:$0xff]
    %v345 = vld [vmem:[#allocation2 + $0x308] sm:$0xff]
    %v346 = vld [vmem:[#allocation2 + $0x318] sm:$0xff]
    %v347 = vld [vmem:[#allocation2 + $0x320] sm:$0xff]
    %348 = vst.msk [vmem:[#allocation3] sm:$0xff] %vm45, %v284
    %349 = vst.msk [vmem:[#allocation3 + $0x8] sm:$0xff] %vm45, %v285
    %350 = vst.msk [vmem:[#allocation3 + $0x10] sm:$0xff] %vm45, %v286
    %351 = vst.msk [vmem:[#allocation3 + $0x18] sm:$0xff] %vm45, %v287
    %352 = vst.msk [vmem:[#allocation3 + $0x20] sm:$0xff] %vm45, %v288
    %353 = vst.msk [vmem:[#allocation3 + $0x28] sm:$0xff] %vm45, %v289
    %354 = vst.msk [vmem:[#allocation3 + $0x30] sm:$0xff] %vm45, %v290
    %355 = vst.msk [vmem:[#allocation3 + $0x38] sm:$0xff] %vm45, %v291
    %356 = vst.msk [vmem:[#allocation3 + $0x40] sm:$0xff] %vm45, %v292
    %357 = vst.msk [vmem:[#allocation3 + $0x48] sm:$0xff] %vm45, %v293
    %358 = vst.msk [vmem:[#allocation3 + $0x50] sm:$0xff] %vm45, %v294
    %359 = vst.msk [vmem:[#allocation3 + $0x58] sm:$0xff] %vm45, %v295
    %360 = vst.msk [vmem:[#allocation3 + $0x60] sm:$0xff] %vm45, %v296
    %361 = vst.msk [vmem:[#allocation3 + $0x68] sm:$0xff] %vm45, %v297
    %362 = vst.msk [vmem:[#allocation3 + $0x70] sm:$0xff] %vm45, %v298
    %363 = vst.msk [vmem:[#allocation3 + $0x78] sm:$0xff] %vm45, %v299
    %364 = vst.msk [vmem:[#allocation3 + $0x80] sm:$0xff] %vm45, %v300
    %365 = vst.msk [vmem:[#allocation3 + $0x88] sm:$0xff] %vm45, %v301
    %366 = vst.msk [vmem:[#allocation3 + $0x90] sm:$0xff] %vm45, %v302
    %367 = vst.msk [vmem:[#allocation3 + $0x98] sm:$0xff] %vm45, %v303
    %368 = vst.msk [vmem:[#allocation3 + $0xa0] sm:$0xff] %vm45, %v304
    %369 = vst.msk [vmem:[#allocation3 + $0xa8] sm:$0xff] %vm45, %v305
    %370 = vst.msk [vmem:[#allocation3 + $0xb0] sm:$0xff] %vm45, %v306
    %371 = vst.msk [vmem:[#allocation3 + $0xb8] sm:$0xff] %vm45, %v307
    %372 = vst.msk [vmem:[#allocation3 + $0xc0] sm:$0xff] %vm45, %v308
    %373 = vst.msk [vmem:[#allocation3 + $0xc8] sm:$0xff] %vm45, %v309
    %374 = vst.msk [vmem:[#allocation3 + $0xd0] sm:$0xff] %vm45, %v310
    %375 = vst.msk [vmem:[#allocation3 + $0xd8] sm:$0xff] %vm45, %v311
    %376 = vst.msk [vmem:[#allocation3 + $0xe0] sm:$0xff] %vm45, %v312
    %377 = vst.msk [vmem:[#allocation3 + $0xe8] sm:$0xff] %vm45, %v313
    %378 = vst.msk [vmem:[#allocation3 + $0xf0] sm:$0xff] %vm45, %v314
    %379 = vst.msk [vmem:[#allocation3 + $0xf8] sm:$0xff] %vm45, %v315
    %380 = vst.msk [vmem:[#allocation3 + $0x100] sm:$0xff] %vm45, %v316
    %381 = vst.msk [vmem:[#allocation3 + $0x108] sm:$0xff] %vm45, %v317
    %382 = vst.msk [vmem:[#allocation3 + $0x110] sm:$0xff] %vm45, %v318
    %383 = vst.msk [vmem:[#allocation3 + $0x118] sm:$0xff] %vm45, %v319
    %384 = vst.msk [vmem:[#allocation3 + $0x120] sm:$0xff] %vm45, %v320
    %385 = vst.msk [vmem:[#allocation3 + $0x128] sm:$0xff] %vm45, %v321
    %386 = vst.msk [vmem:[#allocation3 + $0x130] sm:$0xff] %vm45, %v322
    %387 = vst.msk [vmem:[#allocation3 + $0x138] sm:$0xff] %vm45, %v323
    %388 = vst.msk [vmem:[#allocation3 + $0x140] sm:$0xff] %vm45, %v324
    %389 = vst.msk [vmem:[#allocation3 + $0x148] sm:$0xff] %vm45, %v325
    %390 = vst.msk [vmem:[#allocation3 + $0x150] sm:$0xff] %vm45, %v326
    %391 = vst.msk [vmem:[#allocation3 + $0x158] sm:$0xff] %vm45, %v327
    %392 = vst.msk [vmem:[#allocation3 + $0x160] sm:$0xff] %vm45, %v328
    %393 = vst.msk [vmem:[#allocation3 + $0x168] sm:$0xff] %vm45, %v329
    %394 = vst.msk [vmem:[#allocation3 + $0x170] sm:$0xff] %vm45, %v330
    %395 = vst.msk [vmem:[#allocation3 + $0x178] sm:$0xff] %vm45, %v331
    %396 = vst.msk [vmem:[#allocation3 + $0x180] sm:$0xff] %vm45, %v332
    %397 = vst.msk [vmem:[#allocation3 + $0x188] sm:$0xff] %vm45, %v333
    %398 = vst.msk [vmem:[#allocation3 + $0x190] sm:$0xff] %vm45, %v334
    %399 = vst.msk [vmem:[#allocation3 + $0x198] sm:$0xff] %vm45, %v335
    %400 = vst.msk [vmem:[#allocation3 + $0x1a0] sm:$0xff] %vm45, %v336
    %401 = vst.msk [vmem:[#allocation3 + $0x1a8] sm:$0xff] %vm45, %v337
    %402 = vst.msk [vmem:[#allocation3 + $0x1b0] sm:$0xff] %vm45, %v338
    %403 = vst.msk [vmem:[#allocation3 + $0x1b8] sm:$0xff] %vm45, %v339
    %404 = vst.msk [vmem:[#allocation3 + $0x1c0] sm:$0xff] %vm45, %v340
    %405 = vst.msk [vmem:[#allocation3 + $0x1c8] sm:$0xff] %vm45, %v341
    %406 = vst.msk [vmem:[#allocation3 + $0x1d0] sm:$0xff] %vm45, %v342
    %407 = vst.msk [vmem:[#allocation3 + $0x1d8] sm:$0xff] %vm45, %v343
    %408 = vst.msk [vmem:[#allocation3 + $0x1e0] sm:$0xff] %vm45, %v344
    %409 = vst.msk [vmem:[#allocation3 + $0x1e8] sm:$0xff] %vm45, %v345
    %410 = vst.msk [vmem:[#allocation3 + $0x1f0] sm:$0xff] %vm45, %v346
    %411 = vst.msk [vmem:[#allocation3 + $0x1f8] sm:$0xff] %vm45, %v347
    %v412 = vld [vmem:[#allocation2 + $0x1] sm:$0xff]
    %v413 = vld [vmem:[#allocation2 + $0x9] sm:$0xff]
    %v414 = vld [vmem:[#allocation2 + $0x19] sm:$0xff]
    %v415 = vld [vmem:[#allocation2 + $0x21] sm:$0xff]
    %v416 = vld [vmem:[#allocation2 + $0x31] sm:$0xff]
    %v417 = vld [vmem:[#allocation2 + $0x39] sm:$0xff]
    %v418 = vld [vmem:[#allocation2 + $0x49] sm:$0xff]
    %v419 = vld [vmem:[#allocation2 + $0x51] sm:$0xff]
    %v420 = vld [vmem:[#allocation2 + $0x61] sm:$0xff]
    %v421 = vld [vmem:[#allocation2 + $0x69] sm:$0xff]
    %v422 = vld [vmem:[#allocation2 + $0x79] sm:$0xff]
    %v423 = vld [vmem:[#allocation2 + $0x81] sm:$0xff]
    %v424 = vld [vmem:[#allocation2 + $0x91] sm:$0xff]
    %v425 = vld [vmem:[#allocation2 + $0x99] sm:$0xff]
    %v426 = vld [vmem:[#allocation2 + $0xa9] sm:$0xff]
    %v427 = vld [vmem:[#allocation2 + $0xb1] sm:$0xff]
    %v428 = vld [vmem:[#allocation2 + $0xc1] sm:$0xff]
    %v429 = vld [vmem:[#allocation2 + $0xc9] sm:$0xff]
    %v430 = vld [vmem:[#allocation2 + $0xd9] sm:$0xff]
    %v431 = vld [vmem:[#allocation2 + $0xe1] sm:$0xff]
    %v432 = vld [vmem:[#allocation2 + $0xf1] sm:$0xff]
    %v433 = vld [vmem:[#allocation2 + $0xf9] sm:$0xff]
    %v434 = vld [vmem:[#allocation2 + $0x109] sm:$0xff]
    %v435 = vld [vmem:[#allocation2 + $0x111] sm:$0xff]
    %v436 = vld [vmem:[#allocation2 + $0x121] sm:$0xff]
    %v437 = vld [vmem:[#allocation2 + $0x129] sm:$0xff]
    %v438 = vld [vmem:[#allocation2 + $0x139] sm:$0xff]
    %v439 = vld [vmem:[#allocation2 + $0x141] sm:$0xff]
    %v440 = vld [vmem:[#allocation2 + $0x151] sm:$0xff]
    %v441 = vld [vmem:[#allocation2 + $0x159] sm:$0xff]
    %v442 = vld [vmem:[#allocation2 + $0x169] sm:$0xff]
    %v443 = vld [vmem:[#allocation2 + $0x171] sm:$0xff]
    %v444 = vld [vmem:[#allocation2 + $0x1b1] sm:$0xff]
    %v445 = vld [vmem:[#allocation2 + $0x1b9] sm:$0xff]
    %v446 = vld [vmem:[#allocation2 + $0x1c9] sm:$0xff]
    %v447 = vld [vmem:[#allocation2 + $0x1d1] sm:$0xff]
    %v448 = vld [vmem:[#allocation2 + $0x1e1] sm:$0xff]
    %v449 = vld [vmem:[#allocation2 + $0x1e9] sm:$0xff]
    %v450 = vld [vmem:[#allocation2 + $0x1f9] sm:$0xff]
    %v451 = vld [vmem:[#allocation2 + $0x201] sm:$0xff]
    %v452 = vld [vmem:[#allocation2 + $0x211] sm:$0xff]
    %v453 = vld [vmem:[#allocation2 + $0x219] sm:$0xff]
    %v454 = vld [vmem:[#allocation2 + $0x229] sm:$0xff]
    %v455 = vld [vmem:[#allocation2 + $0x231] sm:$0xff]
    %v456 = vld [vmem:[#allocation2 + $0x241] sm:$0xff]
    %v457 = vld [vmem:[#allocation2 + $0x249] sm:$0xff]
    %v458 = vld [vmem:[#allocation2 + $0x259] sm:$0xff]
    %v459 = vld [vmem:[#allocation2 + $0x261] sm:$0xff]
    %v460 = vld [vmem:[#allocation2 + $0x271] sm:$0xff]
    %v461 = vld [vmem:[#allocation2 + $0x279] sm:$0xff]
    %v462 = vld [vmem:[#allocation2 + $0x289] sm:$0xff]
    %v463 = vld [vmem:[#allocation2 + $0x291] sm:$0xff]
    %v464 = vld [vmem:[#allocation2 + $0x2a1] sm:$0xff]
    %v465 = vld [vmem:[#allocation2 + $0x2a9] sm:$0xff]
    %v466 = vld [vmem:[#allocation2 + $0x2b9] sm:$0xff]
    %v467 = vld [vmem:[#allocation2 + $0x2c1] sm:$0xff]
    %v468 = vld [vmem:[#allocation2 + $0x2d1] sm:$0xff]
    %v469 = vld [vmem:[#allocation2 + $0x2d9] sm:$0xff]
    %v470 = vld [vmem:[#allocation2 + $0x2e9] sm:$0xff]
    %v471 = vld [vmem:[#allocation2 + $0x2f1] sm:$0xff]
    %v472 = vld [vmem:[#allocation2 + $0x301] sm:$0xff]
    %v473 = vld [vmem:[#allocation2 + $0x309] sm:$0xff]
    %v474 = vld [vmem:[#allocation2 + $0x319] sm:$0xff]
    %v475 = vld [vmem:[#allocation2 + $0x321] sm:$0xff]
    %540 = vrot.lane.b32.xlu0 %v412, 4
    %v541 = vpop.permute.xlu0 %540
    %542 = vrot.lane.b32.xlu0 %v413, 4
    %v543 = vpop.permute.xlu0 %542
    %544 = vrot.lane.b32.xlu0 %v414, 4
    %v545 = vpop.permute.xlu0 %544
    %546 = vrot.lane.b32.xlu0 %v415, 4
    %v547 = vpop.permute.xlu0 %546
    %548 = vrot.lane.b32.xlu0 %v416, 4
    %v549 = vpop.permute.xlu0 %548
    %550 = vrot.lane.b32.xlu0 %v417, 4
    %v551 = vpop.permute.xlu0 %550
    %552 = vrot.lane.b32.xlu0 %v418, 4
    %v553 = vpop.permute.xlu0 %552
    %554 = vrot.lane.b32.xlu0 %v419, 4
    %v555 = vpop.permute.xlu0 %554
    %556 = vrot.lane.b32.xlu0 %v420, 4
    %v557 = vpop.permute.xlu0 %556
    %558 = vrot.lane.b32.xlu0 %v421, 4
    %v559 = vpop.permute.xlu0 %558
    %560 = vrot.lane.b32.xlu0 %v422, 4
    %v561 = vpop.permute.xlu0 %560
    %562 = vrot.lane.b32.xlu0 %v423, 4
    %v563 = vpop.permute.xlu0 %562
    %564 = vrot.lane.b32.xlu0 %v424, 4
    %v565 = vpop.permute.xlu0 %564
    %566 = vrot.lane.b32.xlu0 %v425, 4
    %v567 = vpop.permute.xlu0 %566
    %568 = vrot.lane.b32.xlu0 %v426, 4
    %v569 = vpop.permute.xlu0 %568
    %570 = vrot.lane.b32.xlu0 %v427, 4
    %v571 = vpop.permute.xlu0 %570
    %572 = vrot.lane.b32.xlu0 %v428, 4
    %v573 = vpop.permute.xlu0 %572
    %574 = vrot.lane.b32.xlu0 %v429, 4
    %v575 = vpop.permute.xlu0 %574
    %576 = vrot.lane.b32.xlu0 %v430, 4
    %v577 = vpop.permute.xlu0 %576
    %578 = vrot.lane.b32.xlu0 %v431, 4
    %v579 = vpop.permute.xlu0 %578
    %580 = vrot.lane.b32.xlu0 %v432, 4
    %v581 = vpop.permute.xlu0 %580
    %582 = vrot.lane.b32.xlu0 %v433, 4
    %v583 = vpop.permute.xlu0 %582
    %584 = vrot.lane.b32.xlu0 %v434, 4
    %v585 = vpop.permute.xlu0 %584
    %586 = vrot.lane.b32.xlu0 %v435, 4
    %v587 = vpop.permute.xlu0 %586
    %588 = vrot.lane.b32.xlu0 %v436, 4
    %v589 = vpop.permute.xlu0 %588
    %590 = vrot.lane.b32.xlu0 %v437, 4
    %v591 = vpop.permute.xlu0 %590
    %592 = vrot.lane.b32.xlu0 %v438, 4
    %v593 = vpop.permute.xlu0 %592
    %594 = vrot.lane.b32.xlu0 %v439, 4
    %v595 = vpop.permute.xlu0 %594
    %596 = vrot.lane.b32.xlu0 %v440, 4
    %v597 = vpop.permute.xlu0 %596
    %598 = vrot.lane.b32.xlu0 %v441, 4
    %v599 = vpop.permute.xlu0 %598
    %600 = vrot.lane.b32.xlu0 %v442, 4
    %v601 = vpop.permute.xlu0 %600
    %602 = vrot.lane.b32.xlu0 %v443, 4
    %v603 = vpop.permute.xlu0 %602
    %604 = vrot.lane.b32.xlu0 %v444, 4
    %v605 = vpop.permute.xlu0 %604
    %606 = vrot.lane.b32.xlu0 %v445, 4
    %v607 = vpop.permute.xlu0 %606
    %608 = vrot.lane.b32.xlu0 %v446, 4
    %v609 = vpop.permute.xlu0 %608
    %610 = vrot.lane.b32.xlu0 %v447, 4
    %v611 = vpop.permute.xlu0 %610
    %612 = vrot.lane.b32.xlu0 %v448, 4
    %v613 = vpop.permute.xlu0 %612
    %614 = vrot.lane.b32.xlu0 %v449, 4
    %v615 = vpop.permute.xlu0 %614
    %616 = vrot.lane.b32.xlu0 %v450, 4
    %v617 = vpop.permute.xlu0 %616
    %618 = vrot.lane.b32.xlu0 %v451, 4
    %v619 = vpop.permute.xlu0 %618
    %620 = vrot.lane.b32.xlu0 %v452, 4
    %v621 = vpop.permute.xlu0 %620
    %622 = vrot.lane.b32.xlu0 %v453, 4
    %v623 = vpop.permute.xlu0 %622
    %624 = vrot.lane.b32.xlu0 %v454, 4
    %v625 = vpop.permute.xlu0 %624
    %626 = vrot.lane.b32.xlu0 %v455, 4
    %v627 = vpop.permute.xlu0 %626
    %628 = vrot.lane.b32.xlu0 %v456, 4
    %v629 = vpop.permute.xlu0 %628
    %630 = vrot.lane.b32.xlu0 %v457, 4
    %v631 = vpop.permute.xlu0 %630
    %632 = vrot.lane.b32.xlu0 %v458, 4
    %v633 = vpop.permute.xlu0 %632
    %634 = vrot.lane.b32.xlu0 %v459, 4
    %v635 = vpop.permute.xlu0 %634
    %636 = vrot.lane.b32.xlu0 %v460, 4
    %v637 = vpop.permute.xlu0 %636
    %638 = vrot.lane.b32.xlu0 %v461, 4
    %v639 = vpop.permute.xlu0 %638
    %640 = vrot.lane.b32.xlu0 %v462, 4
    %v641 = vpop.permute.xlu0 %640
    %642 = vrot.lane.b32.xlu0 %v463, 4
    %v643 = vpop.permute.xlu0 %642
    %644 = vrot.lane.b32.xlu0 %v464, 4
    %v645 = vpop.permute.xlu0 %644
    %646 = vrot.lane.b32.xlu0 %v465, 4
    %v647 = vpop.permute.xlu0 %646
    %648 = vrot.lane.b32.xlu0 %v466, 4
    %v649 = vpop.permute.xlu0 %648
    %650 = vrot.lane.b32.xlu0 %v467, 4
    %v651 = vpop.permute.xlu0 %650
    %652 = vrot.lane.b32.xlu0 %v468, 4
    %v653 = vpop.permute.xlu0 %652
    %654 = vrot.lane.b32.xlu0 %v469, 4
    %v655 = vpop.permute.xlu0 %654
    %656 = vrot.lane.b32.xlu0 %v470, 4
    %v657 = vpop.permute.xlu0 %656
    %658 = vrot.lane.b32.xlu0 %v471, 4
    %v659 = vpop.permute.xlu0 %658
    %660 = vrot.lane.b32.xlu0 %v472, 4
    %v661 = vpop.permute.xlu0 %660
    %662 = vrot.lane.b32.xlu0 %v473, 4
    %v663 = vpop.permute.xlu0 %662
    %664 = vrot.lane.b32.xlu0 %v474, 4
    %v665 = vpop.permute.xlu0 %664
    %666 = vrot.lane.b32.xlu0 %v475, 4
    %v667 = vpop.permute.xlu0 %666
    %vm732 = vcmask 64544
    %733 = vst.msk [vmem:[#allocation3] sm:$0xff] %vm732, %v541
    %734 = vst.msk [vmem:[#allocation3 + $0x8] sm:$0xff] %vm732, %v543
    %735 = vst.msk [vmem:[#allocation3 + $0x10] sm:$0xff] %vm732, %v545
    %736 = vst.msk [vmem:[#allocation3 + $0x18] sm:$0xff] %vm732, %v547
    %737 = vst.msk [vmem:[#allocation3 + $0x20] sm:$0xff] %vm732, %v549
    %738 = vst.msk [vmem:[#allocation3 + $0x28] sm:$0xff] %vm732, %v551
    %739 = vst.msk [vmem:[#allocation3 + $0x30] sm:$0xff] %vm732, %v553
    %740 = vst.msk [vmem:[#allocation3 + $0x38] sm:$0xff] %vm732, %v555
    %741 = vst.msk [vmem:[#allocation3 + $0x40] sm:$0xff] %vm732, %v557
    %742 = vst.msk [vmem:[#allocation3 + $0x48] sm:$0xff] %vm732, %v559
    %743 = vst.msk [vmem:[#allocation3 + $0x50] sm:$0xff] %vm732, %v561
    %744 = vst.msk [vmem:[#allocation3 + $0x58] sm:$0xff] %vm732, %v563
    %745 = vst.msk [vmem:[#allocation3 + $0x60] sm:$0xff] %vm732, %v565
    %746 = vst.msk [vmem:[#allocation3 + $0x68] sm:$0xff] %vm732, %v567
    %747 = vst.msk [vmem:[#allocation3 + $0x70] sm:$0xff] %vm732, %v569
    %748 = vst.msk [vmem:[#allocation3 + $0x78] sm:$0xff] %vm732, %v571
    %749 = vst.msk [vmem:[#allocation3 + $0x80] sm:$0xff] %vm732, %v573
    %750 = vst.msk [vmem:[#allocation3 + $0x88] sm:$0xff] %vm732, %v575
    %751 = vst.msk [vmem:[#allocation3 + $0x90] sm:$0xff] %vm732, %v577
    %752 = vst.msk [vmem:[#allocation3 + $0x98] sm:$0xff] %vm732, %v579
    %753 = vst.msk [vmem:[#allocation3 + $0xa0] sm:$0xff] %vm732, %v581
    %754 = vst.msk [vmem:[#allocation3 + $0xa8] sm:$0xff] %vm732, %v583
    %755 = vst.msk [vmem:[#allocation3 + $0xb0] sm:$0xff] %vm732, %v585
    %756 = vst.msk [vmem:[#allocation3 + $0xb8] sm:$0xff] %vm732, %v587
    %757 = vst.msk [vmem:[#allocation3 + $0xc0] sm:$0xff] %vm732, %v589
    %758 = vst.msk [vmem:[#allocation3 + $0xc8] sm:$0xff] %vm732, %v591
    %759 = vst.msk [vmem:[#allocation3 + $0xd0] sm:$0xff] %vm732, %v593
    %760 = vst.msk [vmem:[#allocation3 + $0xd8] sm:$0xff] %vm732, %v595
    %761 = vst.msk [vmem:[#allocation3 + $0xe0] sm:$0xff] %vm732, %v597
    %762 = vst.msk [vmem:[#allocation3 + $0xe8] sm:$0xff] %vm732, %v599
    %763 = vst.msk [vmem:[#allocation3 + $0xf0] sm:$0xff] %vm732, %v601
    %764 = vst.msk [vmem:[#allocation3 + $0xf8] sm:$0xff] %vm732, %v603
    %765 = vst.msk [vmem:[#allocation3 + $0x100] sm:$0xff] %vm732, %v605
    %766 = vst.msk [vmem:[#allocation3 + $0x108] sm:$0xff] %vm732, %v607
    %767 = vst.msk [vmem:[#allocation3 + $0x110] sm:$0xff] %vm732, %v609
    %768 = vst.msk [vmem:[#allocation3 + $0x118] sm:$0xff] %vm732, %v611
    %769 = vst.msk [vmem:[#allocation3 + $0x120] sm:$0xff] %vm732, %v613
    %770 = vst.msk [vmem:[#allocation3 + $0x128] sm:$0xff] %vm732, %v615
    %771 = vst.msk [vmem:[#allocation3 + $0x130] sm:$0xff] %vm732, %v617
    %772 = vst.msk [vmem:[#allocation3 + $0x138] sm:$0xff] %vm732, %v619
    %773 = vst.msk [vmem:[#allocation3 + $0x140] sm:$0xff] %vm732, %v621
    %774 = vst.msk [vmem:[#allocation3 + $0x148] sm:$0xff] %vm732, %v623
    %775 = vst.msk [vmem:[#allocation3 + $0x150] sm:$0xff] %vm732, %v625
    %776 = vst.msk [vmem:[#allocation3 + $0x158] sm:$0xff] %vm732, %v627
    %777 = vst.msk [vmem:[#allocation3 + $0x160] sm:$0xff] %vm732, %v629
    %778 = vst.msk [vmem:[#allocation3 + $0x168] sm:$0xff] %vm732, %v631
    %779 = vst.msk [vmem:[#allocation3 + $0x170] sm:$0xff] %vm732, %v633
    %780 = vst.msk [vmem:[#allocation3 + $0x178] sm:$0xff] %vm732, %v635
    %781 = vst.msk [vmem:[#allocation3 + $0x180] sm:$0xff] %vm732, %v637
    %782 = vst.msk [vmem:[#allocation3 + $0x188] sm:$0xff] %vm732, %v639
    %783 = vst.msk [vmem:[#allocation3 + $0x190] sm:$0xff] %vm732, %v641
    %784 = vst.msk [vmem:[#allocation3 + $0x198] sm:$0xff] %vm732, %v643
    %785 = vst.msk [vmem:[#allocation3 + $0x1a0] sm:$0xff] %vm732, %v645
    %786 = vst.msk [vmem:[#allocation3 + $0x1a8] sm:$0xff] %vm732, %v647
    %787 = vst.msk [vmem:[#allocation3 + $0x1b0] sm:$0xff] %vm732, %v649
    %788 = vst.msk [vmem:[#allocation3 + $0x1b8] sm:$0xff] %vm732, %v651
    %789 = vst.msk [vmem:[#allocation3 + $0x1c0] sm:$0xff] %vm732, %v653
    %790 = vst.msk [vmem:[#allocation3 + $0x1c8] sm:$0xff] %vm732, %v655
    %791 = vst.msk [vmem:[#allocation3 + $0x1d0] sm:$0xff] %vm732, %v657
    %792 = vst.msk [vmem:[#allocation3 + $0x1d8] sm:$0xff] %vm732, %v659
    %793 = vst.msk [vmem:[#allocation3 + $0x1e0] sm:$0xff] %vm732, %v661
    %794 = vst.msk [vmem:[#allocation3 + $0x1e8] sm:$0xff] %vm732, %v663
    %795 = vst.msk [vmem:[#allocation3 + $0x1f0] sm:$0xff] %vm732, %v665
    %796 = vst.msk [vmem:[#allocation3 + $0x1f8] sm:$0xff] %vm732, %v667
    %v797 = vld [vmem:[#allocation2 + $0x2] sm:$0xff]
    %v798 = vld [vmem:[#allocation2 + $0xa] sm:$0xff]
    %v799 = vld [vmem:[#allocation2 + $0x1a] sm:$0xff]
    %v800 = vld [vmem:[#allocation2 + $0x22] sm:$0xff]
    %v801 = vld [vmem:[#allocation2 + $0x32] sm:$0xff]
    %v802 = vld [vmem:[#allocation2 + $0x3a] sm:$0xff]
    %v803 = vld [vmem:[#allocation2 + $0x4a] sm:$0xff]
    %v804 = vld [vmem:[#allocation2 + $0x52] sm:$0xff]
    %v805 = vld [vmem:[#allocation2 + $0x62] sm:$0xff]
    %v806 = vld [vmem:[#allocation2 + $0x6a] sm:$0xff]
    %v807 = vld [vmem:[#allocation2 + $0x7a] sm:$0xff]
    %v808 = vld [vmem:[#allocation2 + $0x82] sm:$0xff]
    %v809 = vld [vmem:[#allocation2 + $0x92] sm:$0xff]
    %v810 = vld [vmem:[#allocation2 + $0x9a] sm:$0xff]
    %v811 = vld [vmem:[#allocation2 + $0xaa] sm:$0xff]
    %v812 = vld [vmem:[#allocation2 + $0xb2] sm:$0xff]
    %v813 = vld [vmem:[#allocation2 + $0xc2] sm:$0xff]
    %v814 = vld [vmem:[#allocation2 + $0xca] sm:$0xff]
    %v815 = vld [vmem:[#allocation2 + $0xda] sm:$0xff]
    %v816 = vld [vmem:[#allocation2 + $0xe2] sm:$0xff]
    %v817 = vld [vmem:[#allocation2 + $0xf2] sm:$0xff]
    %v818 = vld [vmem:[#allocation2 + $0xfa] sm:$0xff]
    %v819 = vld [vmem:[#allocation2 + $0x10a] sm:$0xff]
    %v820 = vld [vmem:[#allocation2 + $0x112] sm:$0xff]
    %v821 = vld [vmem:[#allocation2 + $0x122] sm:$0xff]
    %v822 = vld [vmem:[#allocation2 + $0x12a] sm:$0xff]
    %v823 = vld [vmem:[#allocation2 + $0x13a] sm:$0xff]
    %v824 = vld [vmem:[#allocation2 + $0x142] sm:$0xff]
    %v825 = vld [vmem:[#allocation2 + $0x152] sm:$0xff]
    %v826 = vld [vmem:[#allocation2 + $0x15a] sm:$0xff]
    %v827 = vld [vmem:[#allocation2 + $0x16a] sm:$0xff]
    %v828 = vld [vmem:[#allocation2 + $0x172] sm:$0xff]
    %v829 = vld [vmem:[#allocation2 + $0x1b2] sm:$0xff]
    %v830 = vld [vmem:[#allocation2 + $0x1ba] sm:$0xff]
    %v831 = vld [vmem:[#allocation2 + $0x1ca] sm:$0xff]
    %v832 = vld [vmem:[#allocation2 + $0x1d2] sm:$0xff]
    %v833 = vld [vmem:[#allocation2 + $0x1e2] sm:$0xff]
    %v834 = vld [vmem:[#allocation2 + $0x1ea] sm:$0xff]
    %v835 = vld [vmem:[#allocation2 + $0x1fa] sm:$0xff]
    %v836 = vld [vmem:[#allocation2 + $0x202] sm:$0xff]
    %v837 = vld [vmem:[#allocation2 + $0x212] sm:$0xff]
    %v838 = vld [vmem:[#allocation2 + $0x21a] sm:$0xff]
    %v839 = vld [vmem:[#allocation2 + $0x22a] sm:$0xff]
    %v840 = vld [vmem:[#allocation2 + $0x232] sm:$0xff]
    %v841 = vld [vmem:[#allocation2 + $0x242] sm:$0xff]
    %v842 = vld [vmem:[#allocation2 + $0x24a] sm:$0xff]
    %v843 = vld [vmem:[#allocation2 + $0x25a] sm:$0xff]
    %v844 = vld [vmem:[#allocation2 + $0x262] sm:$0xff]
    %v845 = vld [vmem:[#allocation2 + $0x272] sm:$0xff]
    %v846 = vld [vmem:[#allocation2 + $0x27a] sm:$0xff]
    %v847 = vld [vmem:[#allocation2 + $0x28a] sm:$0xff]
    %v848 = vld [vmem:[#allocation2 + $0x292] sm:$0xff]
    %v849 = vld [vmem:[#allocation2 + $0x2a2] sm:$0xff]
    %v850 = vld [vmem:[#allocation2 + $0x2aa] sm:$0xff]
    %v851 = vld [vmem:[#allocation2 + $0x2ba] sm:$0xff]
    %v852 = vld [vmem:[#allocation2 + $0x2c2] sm:$0xff]
    %v853 = vld [vmem:[#allocation2 + $0x2d2] sm:$0xff]
    %v854 = vld [vmem:[#allocation2 + $0x2da] sm:$0xff]
    %v855 = vld [vmem:[#allocation2 + $0x2ea] sm:$0xff]
    %v856 = vld [vmem:[#allocation2 + $0x2f2] sm:$0xff]
    %v857 = vld [vmem:[#allocation2 + $0x302] sm:$0xff]
    %v858 = vld [vmem:[#allocation2 + $0x30a] sm:$0xff]
    %v859 = vld [vmem:[#allocation2 + $0x31a] sm:$0xff]
    %v860 = vld [vmem:[#allocation2 + $0x322] sm:$0xff]
    %925 = vrot.lane.b32.xlu0 %v797, 8
    %v926 = vpop.permute.xlu0 %925
    %927 = vrot.lane.b32.xlu0 %v798, 8
    %v928 = vpop.permute.xlu0 %927
    %929 = vrot.lane.b32.xlu0 %v799, 8
    %v930 = vpop.permute.xlu0 %929
    %931 = vrot.lane.b32.xlu0 %v800, 8
    %v932 = vpop.permute.xlu0 %931
    %933 = vrot.lane.b32.xlu0 %v801, 8
    %v934 = vpop.permute.xlu0 %933
    %935 = vrot.lane.b32.xlu0 %v802, 8
    %v936 = vpop.permute.xlu0 %935
    %937 = vrot.lane.b32.xlu0 %v803, 8
    %v938 = vpop.permute.xlu0 %937
    %939 = vrot.lane.b32.xlu0 %v804, 8
    %v940 = vpop.permute.xlu0 %939
    %941 = vrot.lane.b32.xlu0 %v805, 8
    %v942 = vpop.permute.xlu0 %941
    %943 = vrot.lane.b32.xlu0 %v806, 8
    %v944 = vpop.permute.xlu0 %943
    %945 = vrot.lane.b32.xlu0 %v807, 8
    %v946 = vpop.permute.xlu0 %945
    %947 = vrot.lane.b32.xlu0 %v808, 8
    %v948 = vpop.permute.xlu0 %947
    %949 = vrot.lane.b32.xlu0 %v809, 8
    %v950 = vpop.permute.xlu0 %949
    %951 = vrot.lane.b32.xlu0 %v810, 8
    %v952 = vpop.permute.xlu0 %951
    %953 = vrot.lane.b32.xlu0 %v811, 8
    %v954 = vpop.permute.xlu0 %953
    %955 = vrot.lane.b32.xlu0 %v812, 8
    %v956 = vpop.permute.xlu0 %955
    %957 = vrot.lane.b32.xlu0 %v813, 8
    %v958 = vpop.permute.xlu0 %957
    %959 = vrot.lane.b32.xlu0 %v814, 8
    %v960 = vpop.permute.xlu0 %959
    %961 = vrot.lane.b32.xlu0 %v815, 8
    %v962 = vpop.permute.xlu0 %961
    %963 = vrot.lane.b32.xlu0 %v816, 8
    %v964 = vpop.permute.xlu0 %963
    %965 = vrot.lane.b32.xlu0 %v817, 8
    %v966 = vpop.permute.xlu0 %965
    %967 = vrot.lane.b32.xlu0 %v818, 8
    %v968 = vpop.permute.xlu0 %967
    %969 = vrot.lane.b32.xlu0 %v819, 8
    %v970 = vpop.permute.xlu0 %969
    %971 = vrot.lane.b32.xlu0 %v820, 8
    %v972 = vpop.permute.xlu0 %971
    %973 = vrot.lane.b32.xlu0 %v821, 8
    %v974 = vpop.permute.xlu0 %973
    %975 = vrot.lane.b32.xlu0 %v822, 8
    %v976 = vpop.permute.xlu0 %975
    %977 = vrot.lane.b32.xlu0 %v823, 8
    %v978 = vpop.permute.xlu0 %977
    %979 = vrot.lane.b32.xlu0 %v824, 8
    %v980 = vpop.permute.xlu0 %979
    %981 = vrot.lane.b32.xlu0 %v825, 8
    %v982 = vpop.permute.xlu0 %981
    %983 = vrot.lane.b32.xlu0 %v826, 8
    %v984 = vpop.permute.xlu0 %983
    %985 = vrot.lane.b32.xlu0 %v827, 8
    %v986 = vpop.permute.xlu0 %985
    %987 = vrot.lane.b32.xlu0 %v828, 8
    %v988 = vpop.permute.xlu0 %987
    %989 = vrot.lane.b32.xlu0 %v829, 8
    %v990 = vpop.permute.xlu0 %989
    %991 = vrot.lane.b32.xlu0 %v830, 8
    %v992 = vpop.permute.xlu0 %991
    %993 = vrot.lane.b32.xlu0 %v831, 8
    %v994 = vpop.permute.xlu0 %993
    %995 = vrot.lane.b32.xlu0 %v832, 8
    %v996 = vpop.permute.xlu0 %995
    %997 = vrot.lane.b32.xlu0 %v833, 8
    %v998 = vpop.permute.xlu0 %997
    %999 = vrot.lane.b32.xlu0 %v834, 8
    %v1000 = vpop.permute.xlu0 %999
    %1001 = vrot.lane.b32.xlu0 %v835, 8
    %v1002 = vpop.permute.xlu0 %1001
    %1003 = vrot.lane.b32.xlu0 %v836, 8
    %v1004 = vpop.permute.xlu0 %1003
    %1005 = vrot.lane.b32.xlu0 %v837, 8
    %v1006 = vpop.permute.xlu0 %1005
    %1007 = vrot.lane.b32.xlu0 %v838, 8
    %v1008 = vpop.permute.xlu0 %1007
    %1009 = vrot.lane.b32.xlu0 %v839, 8
    %v1010 = vpop.permute.xlu0 %1009
    %1011 = vrot.lane.b32.xlu0 %v840, 8
    %v1012 = vpop.permute.xlu0 %1011
    %1013 = vrot.lane.b32.xlu0 %v841, 8
    %v1014 = vpop.permute.xlu0 %1013
    %1015 = vrot.lane.b32.xlu0 %v842, 8
    %v1016 = vpop.permute.xlu0 %1015
    %1017 = vrot.lane.b32.xlu0 %v843, 8
    %v1018 = vpop.permute.xlu0 %1017
    %1019 = vrot.lane.b32.xlu0 %v844, 8
    %v1020 = vpop.permute.xlu0 %1019
    %1021 = vrot.lane.b32.xlu0 %v845, 8
    %v1022 = vpop.permute.xlu0 %1021
    %1023 = vrot.lane.b32.xlu0 %v846, 8
    %v1024 = vpop.permute.xlu0 %1023
    %1025 = vrot.lane.b32.xlu0 %v847, 8
    %v1026 = vpop.permute.xlu0 %1025
    %1027 = vrot.lane.b32.xlu0 %v848, 8
    %v1028 = vpop.permute.xlu0 %1027
    %1029 = vrot.lane.b32.xlu0 %v849, 8
    %v1030 = vpop.permute.xlu0 %1029
    %1031 = vrot.lane.b32.xlu0 %v850, 8
    %v1032 = vpop.permute.xlu0 %1031
    %1033 = vrot.lane.b32.xlu0 %v851, 8
    %v1034 = vpop.permute.xlu0 %1033
    %1035 = vrot.lane.b32.xlu0 %v852, 8
    %v1036 = vpop.permute.xlu0 %1035
    %1037 = vrot.lane.b32.xlu0 %v853, 8
    %v1038 = vpop.permute.xlu0 %1037
    %1039 = vrot.lane.b32.xlu0 %v854, 8
    %v1040 = vpop.permute.xlu0 %1039
    %1041 = vrot.lane.b32.xlu0 %v855, 8
    %v1042 = vpop.permute.xlu0 %1041
    %1043 = vrot.lane.b32.xlu0 %v856, 8
    %v1044 = vpop.permute.xlu0 %1043
    %1045 = vrot.lane.b32.xlu0 %v857, 8
    %v1046 = vpop.permute.xlu0 %1045
    %1047 = vrot.lane.b32.xlu0 %v858, 8
    %v1048 = vpop.permute.xlu0 %1047
    %1049 = vrot.lane.b32.xlu0 %v859, 8
    %v1050 = vpop.permute.xlu0 %1049
    %1051 = vrot.lane.b32.xlu0 %v860, 8
    %v1052 = vpop.permute.xlu0 %1051
    %vm1117 = vcmask 97344
    %1118 = vst.msk [vmem:[#allocation3] sm:$0xff] %vm1117, %v926
    %1119 = vst.msk [vmem:[#allocation3 + $0x8] sm:$0xff] %vm1117, %v928
    %1120 = vst.msk [vmem:[#allocation3 + $0x10] sm:$0xff] %vm1117, %v930
    %1121 = vst.msk [vmem:[#allocation3 + $0x18] sm:$0xff] %vm1117, %v932
    %1122 = vst.msk [vmem:[#allocation3 + $0x20] sm:$0xff] %vm1117, %v934
    %1123 = vst.msk [vmem:[#allocation3 + $0x28] sm:$0xff] %vm1117, %v936
    %1124 = vst.msk [vmem:[#allocation3 + $0x30] sm:$0xff] %vm1117, %v938
    %1125 = vst.msk [vmem:[#allocation3 + $0x38] sm:$0xff] %vm1117, %v940
    %1126 = vst.msk [vmem:[#allocation3 + $0x40] sm:$0xff] %vm1117, %v942
    %1127 = vst.msk [vmem:[#allocation3 + $0x48] sm:$0xff] %vm1117, %v944
    %1128 = vst.msk [vmem:[#allocation3 + $0x50] sm:$0xff] %vm1117, %v946
    %1129 = vst.msk [vmem:[#allocation3 + $0x58] sm:$0xff] %vm1117, %v948
    %1130 = vst.msk [vmem:[#allocation3 + $0x60] sm:$0xff] %vm1117, %v950
    %1131 = vst.msk [vmem:[#allocation3 + $0x68] sm:$0xff] %vm1117, %v952
    %1132 = vst.msk [vmem:[#allocation3 + $0x70] sm:$0xff] %vm1117, %v954
    %1133 = vst.msk [vmem:[#allocation3 + $0x78] sm:$0xff] %vm1117, %v956
    %1134 = vst.msk [vmem:[#allocation3 + $0x80] sm:$0xff] %vm1117, %v958
    %1135 = vst.msk [vmem:[#allocation3 + $0x88] sm:$0xff] %vm1117, %v960
    %1136 = vst.msk [vmem:[#allocation3 + $0x90] sm:$0xff] %vm1117, %v962
    %1137 = vst.msk [vmem:[#allocation3 + $0x98] sm:$0xff] %vm1117, %v964
    %1138 = vst.msk [vmem:[#allocation3 + $0xa0] sm:$0xff] %vm1117, %v966
    %1139 = vst.msk [vmem:[#allocation3 + $0xa8] sm:$0xff] %vm1117, %v968
    %1140 = vst.msk [vmem:[#allocation3 + $0xb0] sm:$0xff] %vm1117, %v970
    %1141 = vst.msk [vmem:[#allocation3 + $0xb8] sm:$0xff] %vm1117, %v972
    %1142 = vst.msk [vmem:[#allocation3 + $0xc0] sm:$0xff] %vm1117, %v974
    %1143 = vst.msk [vmem:[#allocation3 + $0xc8] sm:$0xff] %vm1117, %v976
    %1144 = vst.msk [vmem:[#allocation3 + $0xd0] sm:$0xff] %vm1117, %v978
    %1145 = vst.msk [vmem:[#allocation3 + $0xd8] sm:$0xff] %vm1117, %v980
    %1146 = vst.msk [vmem:[#allocation3 + $0xe0] sm:$0xff] %vm1117, %v982
    %1147 = vst.msk [vmem:[#allocation3 + $0xe8] sm:$0xff] %vm1117, %v984
    %1148 = vst.msk [vmem:[#allocation3 + $0xf0] sm:$0xff] %vm1117, %v986
    %1149 = vst.msk [vmem:[#allocation3 + $0xf8] sm:$0xff] %vm1117, %v988
    %1150 = vst.msk [vmem:[#allocation3 + $0x100] sm:$0xff] %vm1117, %v990
    %1151 = vst.msk [vmem:[#allocation3 + $0x108] sm:$0xff] %vm1117, %v992
    %1152 = vst.msk [vmem:[#allocation3 + $0x110] sm:$0xff] %vm1117, %v994
    %1153 = vst.msk [vmem:[#allocation3 + $0x118] sm:$0xff] %vm1117, %v996
    %1154 = vst.msk [vmem:[#allocation3 + $0x120] sm:$0xff] %vm1117, %v998
    %1155 = vst.msk [vmem:[#allocation3 + $0x128] sm:$0xff] %vm1117, %v1000
    %1156 = vst.msk [vmem:[#allocation3 + $0x130] sm:$0xff] %vm1117, %v1002
    %1157 = vst.msk [vmem:[#allocation3 + $0x138] sm:$0xff] %vm1117, %v1004
    %1158 = vst.msk [vmem:[#allocation3 + $0x140] sm:$0xff] %vm1117, %v1006
    %1159 = vst.msk [vmem:[#allocation3 + $0x148] sm:$0xff] %vm1117, %v1008
    %1160 = vst.msk [vmem:[#allocation3 + $0x150] sm:$0xff] %vm1117, %v1010
    %1161 = vst.msk [vmem:[#allocation3 + $0x158] sm:$0xff] %vm1117, %v1012
    %1162 = vst.msk [vmem:[#allocation3 + $0x160] sm:$0xff] %vm1117, %v1014
    %1163 = vst.msk [vmem:[#allocation3 + $0x168] sm:$0xff] %vm1117, %v1016
    %1164 = vst.msk [vmem:[#allocation3 + $0x170] sm:$0xff] %vm1117, %v1018
    %1165 = vst.msk [vmem:[#allocation3 + $0x178] sm:$0xff] %vm1117, %v1020
    %1166 = vst.msk [vmem:[#allocation3 + $0x180] sm:$0xff] %vm1117, %v1022
    %1167 = vst.msk [vmem:[#allocation3 + $0x188] sm:$0xff] %vm1117, %v1024
    %1168 = vst.msk [vmem:[#allocation3 + $0x190] sm:$0xff] %vm1117, %v1026
    %1169 = vst.msk [vmem:[#allocation3 + $0x198] sm:$0xff] %vm1117, %v1028
    %1170 = vst.msk [vmem:[#allocation3 + $0x1a0] sm:$0xff] %vm1117, %v1030
    %1171 = vst.msk [vmem:[#allocation3 + $0x1a8] sm:$0xff] %vm1117, %v1032
    %1172 = vst.msk [vmem:[#allocation3 + $0x1b0] sm:$0xff] %vm1117, %v1034
    %1173 = vst.msk [vmem:[#allocation3 + $0x1b8] sm:$0xff] %vm1117, %v1036
    %1174 = vst.msk [vmem:[#allocation3 + $0x1c0] sm:$0xff] %vm1117, %v1038
    %1175 = vst.msk [vmem:[#allocation3 + $0x1c8] sm:$0xff] %vm1117, %v1040
    %1176 = vst.msk [vmem:[#allocation3 + $0x1d0] sm:$0xff] %vm1117, %v1042
    %1177 = vst.msk [vmem:[#allocation3 + $0x1d8] sm:$0xff] %vm1117, %v1044
    %1178 = vst.msk [vmem:[#allocation3 + $0x1e0] sm:$0xff] %vm1117, %v1046
    %1179 = vst.msk [vmem:[#allocation3 + $0x1e8] sm:$0xff] %vm1117, %v1048
    %1180 = vst.msk [vmem:[#allocation3 + $0x1f0] sm:$0xff] %vm1117, %v1050
    %1181 = vst.msk [vmem:[#allocation3 + $0x1f8] sm:$0xff] %vm1117, %v1052
    %v1182 = vld [vmem:[%s219] sm:$0xff]
    %v1183 = vld [vmem:[%s219 + $0x8] sm:$0xff]
    %v1184 = vld [vmem:[%s219 + $0x18] sm:$0xff]
    %v1185 = vld [vmem:[%s219 + $0x20] sm:$0xff]
    %v1186 = vld [vmem:[%s219 + $0x30] sm:$0xff]
    %v1187 = vld [vmem:[%s219 + $0x38] sm:$0xff]
    %v1188 = vld [vmem:[%s219 + $0x48] sm:$0xff]
    %v1189 = vld [vmem:[%s219 + $0x50] sm:$0xff]
    %v1190 = vld [vmem:[%s219 + $0x60] sm:$0xff]
    %v1191 = vld [vmem:[%s219 + $0x68] sm:$0xff]
    %v1192 = vld [vmem:[%s219 + $0x78] sm:$0xff]
    %v1193 = vld [vmem:[%s219 + $0x80] sm:$0xff]
    %v1194 = vld [vmem:[%s219 + $0x90] sm:$0xff]
    %v1195 = vld [vmem:[%s219 + $0x98] sm:$0xff]
    %v1196 = vld [vmem:[%s219 + $0xa8] sm:$0xff]
    %v1197 = vld [vmem:[%s219 + $0xb0] sm:$0xff]
    %v1198 = vld [vmem:[%s219 + $0xc0] sm:$0xff]
    %v1199 = vld [vmem:[%s219 + $0xc8] sm:$0xff]
    %v1200 = vld [vmem:[%s219 + $0xd8] sm:$0xff]
    %v1201 = vld [vmem:[%s219 + $0xe0] sm:$0xff]
    %v1202 = vld [vmem:[%s219 + $0xf0] sm:$0xff]
    %v1203 = vld [vmem:[%s219 + $0xf8] sm:$0xff]
    %v1204 = vld [vmem:[%s219 + $0x108] sm:$0xff]
    %v1205 = vld [vmem:[%s219 + $0x110] sm:$0xff]
    %v1206 = vld [vmem:[%s219 + $0x120] sm:$0xff]
    %v1207 = vld [vmem:[%s219 + $0x128] sm:$0xff]
    %v1208 = vld [vmem:[%s219 + $0x138] sm:$0xff]
    %v1209 = vld [vmem:[%s219 + $0x140] sm:$0xff]
    %v1210 = vld [vmem:[%s219 + $0x150] sm:$0xff]
    %v1211 = vld [vmem:[%s219 + $0x158] sm:$0xff]
    %v1212 = vld [vmem:[%s219 + $0x168] sm:$0xff]
    %v1213 = vld [vmem:[%s219 + $0x170] sm:$0xff]
    %v1214 = vld [vmem:[%s219 + $0x1b0] sm:$0xff]
    %v1215 = vld [vmem:[%s219 + $0x1b8] sm:$0xff]
    %v1216 = vld [vmem:[%s219 + $0x1c8] sm:$0xff]
    %v1217 = vld [vmem:[%s219 + $0x1d0] sm:$0xff]
    %v1218 = vld [vmem:[%s219 + $0x1e0] sm:$0xff]
    %v1219 = vld [vmem:[%s219 + $0x1e8] sm:$0xff]
    %v1220 = vld [vmem:[%s219 + $0x1f8] sm:$0xff]
    %v1221 = vld [vmem:[%s219 + $0x200] sm:$0xff]
    %v1222 = vld [vmem:[%s219 + $0x210] sm:$0xff]
    %v1223 = vld [vmem:[%s219 + $0x218] sm:$0xff]
    %v1224 = vld [vmem:[%s219 + $0x228] sm:$0xff]
    %v1225 = vld [vmem:[%s219 + $0x230] sm:$0xff]
    %v1226 = vld [vmem:[%s219 + $0x240] sm:$0xff]
    %v1227 = vld [vmem:[%s219 + $0x248] sm:$0xff]
    %v1228 = vld [vmem:[%s219 + $0x258] sm:$0xff]
    %v1229 = vld [vmem:[%s219 + $0x260] sm:$0xff]
    %v1230 = vld [vmem:[%s219 + $0x270] sm:$0xff]
    %v1231 = vld [vmem:[%s219 + $0x278] sm:$0xff]
    %v1232 = vld [vmem:[%s219 + $0x288] sm:$0xff]
    %v1233 = vld [vmem:[%s219 + $0x290] sm:$0xff]
    %v1234 = vld [vmem:[%s219 + $0x2a0] sm:$0xff]
    %v1235 = vld [vmem:[%s219 + $0x2a8] sm:$0xff]
    %v1236 = vld [vmem:[%s219 + $0x2b8] sm:$0xff]
    %v1237 = vld [vmem:[%s219 + $0x2c0] sm:$0xff]
    %v1238 = vld [vmem:[%s219 + $0x2d0] sm:$0xff]
    %v1239 = vld [vmem:[%s219 + $0x2d8] sm:$0xff]
    %v1240 = vld [vmem:[%s219 + $0x2e8] sm:$0xff]
    %v1241 = vld [vmem:[%s219 + $0x2f0] sm:$0xff]
    %v1242 = vld [vmem:[%s219 + $0x300] sm:$0xff]
    %v1243 = vld [vmem:[%s219 + $0x308] sm:$0xff]
    %v1244 = vld [vmem:[%s219 + $0x318] sm:$0xff]
    %v1245 = vld [vmem:[%s219 + $0x320] sm:$0xff]
    %1310 = vrot.lane.b32.xlu0 %v1182, 12
    %v1311 = vpop.permute.xlu0 %1310
    %1312 = vrot.lane.b32.xlu0 %v1183, 12
    %v1313 = vpop.permute.xlu0 %1312
    %1314 = vrot.lane.b32.xlu0 %v1184, 12
    %v1315 = vpop.permute.xlu0 %1314
    %1316 = vrot.lane.b32.xlu0 %v1185, 12
    %v1317 = vpop.permute.xlu0 %1316
    %1318 = vrot.lane.b32.xlu0 %v1186, 12
    %v1319 = vpop.permute.xlu0 %1318
    %1320 = vrot.lane.b32.xlu0 %v1187, 12
    %v1321 = vpop.permute.xlu0 %1320
    %1322 = vrot.lane.b32.xlu0 %v1188, 12
    %v1323 = vpop.permute.xlu0 %1322
    %1324 = vrot.lane.b32.xlu0 %v1189, 12
    %v1325 = vpop.permute.xlu0 %1324
    %1326 = vrot.lane.b32.xlu0 %v1190, 12
    %v1327 = vpop.permute.xlu0 %1326
    %1328 = vrot.lane.b32.xlu0 %v1191, 12
    %v1329 = vpop.permute.xlu0 %1328
    %1330 = vrot.lane.b32.xlu0 %v1192, 12
    %v1331 = vpop.permute.xlu0 %1330
    %1332 = vrot.lane.b32.xlu0 %v1193, 12
    %v1333 = vpop.permute.xlu0 %1332
    %1334 = vrot.lane.b32.xlu0 %v1194, 12
    %v1335 = vpop.permute.xlu0 %1334
    %1336 = vrot.lane.b32.xlu0 %v1195, 12
    %v1337 = vpop.permute.xlu0 %1336
    %1338 = vrot.lane.b32.xlu0 %v1196, 12
    %v1339 = vpop.permute.xlu0 %1338
    %1340 = vrot.lane.b32.xlu0 %v1197, 12
    %v1341 = vpop.permute.xlu0 %1340
    %1342 = vrot.lane.b32.xlu0 %v1198, 12
    %v1343 = vpop.permute.xlu0 %1342
    %1344 = vrot.lane.b32.xlu0 %v1199, 12
    %v1345 = vpop.permute.xlu0 %1344
    %1346 = vrot.lane.b32.xlu0 %v1200, 12
    %v1347 = vpop.permute.xlu0 %1346
    %1348 = vrot.lane.b32.xlu0 %v1201, 12
    %v1349 = vpop.permute.xlu0 %1348
    %1350 = vrot.lane.b32.xlu0 %v1202, 12
    %v1351 = vpop.permute.xlu0 %1350
    %1352 = vrot.lane.b32.xlu0 %v1203, 12
    %v1353 = vpop.permute.xlu0 %1352
    %1354 = vrot.lane.b32.xlu0 %v1204, 12
    %v1355 = vpop.permute.xlu0 %1354
    %1356 = vrot.lane.b32.xlu0 %v1205, 12
    %v1357 = vpop.permute.xlu0 %1356
    %1358 = vrot.lane.b32.xlu0 %v1206, 12
    %v1359 = vpop.permute.xlu0 %1358
    %1360 = vrot.lane.b32.xlu0 %v1207, 12
    %v1361 = vpop.permute.xlu0 %1360
    %1362 = vrot.lane.b32.xlu0 %v1208, 12
    %v1363 = vpop.permute.xlu0 %1362
    %1364 = vrot.lane.b32.xlu0 %v1209, 12
    %v1365 = vpop.permute.xlu0 %1364
    %1366 = vrot.lane.b32.xlu0 %v1210, 12
    %v1367 = vpop.permute.xlu0 %1366
    %1368 = vrot.lane.b32.xlu0 %v1211, 12
    %v1369 = vpop.permute.xlu0 %1368
    %1370 = vrot.lane.b32.xlu0 %v1212, 12
    %v1371 = vpop.permute.xlu0 %1370
    %1372 = vrot.lane.b32.xlu0 %v1213, 12
    %v1373 = vpop.permute.xlu0 %1372
    %1374 = vrot.lane.b32.xlu0 %v1214, 12
    %v1375 = vpop.permute.xlu0 %1374
    %1376 = vrot.lane.b32.xlu0 %v1215, 12
    %v1377 = vpop.permute.xlu0 %1376
    %1378 = vrot.lane.b32.xlu0 %v1216, 12
    %v1379 = vpop.permute.xlu0 %1378
    %1380 = vrot.lane.b32.xlu0 %v1217, 12
    %v1381 = vpop.permute.xlu0 %1380
    %1382 = vrot.lane.b32.xlu0 %v1218, 12
    %v1383 = vpop.permute.xlu0 %1382
    %1384 = vrot.lane.b32.xlu0 %v1219, 12
    %v1385 = vpop.permute.xlu0 %1384
    %1386 = vrot.lane.b32.xlu0 %v1220, 12
    %v1387 = vpop.permute.xlu0 %1386
    %1388 = vrot.lane.b32.xlu0 %v1221, 12
    %v1389 = vpop.permute.xlu0 %1388
    %1390 = vrot.lane.b32.xlu0 %v1222, 12
    %v1391 = vpop.permute.xlu0 %1390
    %1392 = vrot.lane.b32.xlu0 %v1223, 12
    %v1393 = vpop.permute.xlu0 %1392
    %1394 = vrot.lane.b32.xlu0 %v1224, 12
    %v1395 = vpop.permute.xlu0 %1394
    %1396 = vrot.lane.b32.xlu0 %v1225, 12
    %v1397 = vpop.permute.xlu0 %1396
    %1398 = vrot.lane.b32.xlu0 %v1226, 12
    %v1399 = vpop.permute.xlu0 %1398
    %1400 = vrot.lane.b32.xlu0 %v1227, 12
    %v1401 = vpop.permute.xlu0 %1400
    %1402 = vrot.lane.b32.xlu0 %v1228, 12
    %v1403 = vpop.permute.xlu0 %1402
    %1404 = vrot.lane.b32.xlu0 %v1229, 12
    %v1405 = vpop.permute.xlu0 %1404
    %1406 = vrot.lane.b32.xlu0 %v1230, 12
    %v1407 = vpop.permute.xlu0 %1406
    %1408 = vrot.lane.b32.xlu0 %v1231, 12
    %v1409 = vpop.permute.xlu0 %1408
    %1410 = vrot.lane.b32.xlu0 %v1232, 12
    %v1411 = vpop.permute.xlu0 %1410
    %1412 = vrot.lane.b32.xlu0 %v1233, 12
    %v1413 = vpop.permute.xlu0 %1412
    %1414 = vrot.lane.b32.xlu0 %v1234, 12
    %v1415 = vpop.permute.xlu0 %1414
    %1416 = vrot.lane.b32.xlu0 %v1235, 12
    %v1417 = vpop.permute.xlu0 %1416
    %1418 = vrot.lane.b32.xlu0 %v1236, 12
    %v1419 = vpop.permute.xlu0 %1418
    %1420 = vrot.lane.b32.xlu0 %v1237, 12
    %v1421 = vpop.permute.xlu0 %1420
    %1422 = vrot.lane.b32.xlu0 %v1238, 12
    %v1423 = vpop.permute.xlu0 %1422
    %1424 = vrot.lane.b32.xlu0 %v1239, 12
    %v1425 = vpop.permute.xlu0 %1424
    %1426 = vrot.lane.b32.xlu0 %v1240, 12
    %v1427 = vpop.permute.xlu0 %1426
    %1428 = vrot.lane.b32.xlu0 %v1241, 12
    %v1429 = vpop.permute.xlu0 %1428
    %1430 = vrot.lane.b32.xlu0 %v1242, 12
    %v1431 = vpop.permute.xlu0 %1430
    %1432 = vrot.lane.b32.xlu0 %v1243, 12
    %v1433 = vpop.permute.xlu0 %1432
    %1434 = vrot.lane.b32.xlu0 %v1244, 12
    %v1435 = vpop.permute.xlu0 %1434
    %1436 = vrot.lane.b32.xlu0 %v1245, 12
    %v1437 = vpop.permute.xlu0 %1436
    %vm1502 = vcmask 130144
    %1503 = vst.msk [vmem:[#allocation3] sm:$0xff] %vm1502, %v1311
    %1504 = vst.msk [vmem:[#allocation3 + $0x8] sm:$0xff] %vm1502, %v1313
    %1505 = vst.msk [vmem:[#allocation3 + $0x10] sm:$0xff] %vm1502, %v1315
    %1506 = vst.msk [vmem:[#allocation3 + $0x18] sm:$0xff] %vm1502, %v1317
    %1507 = vst.msk [vmem:[#allocation3 + $0x20] sm:$0xff] %vm1502, %v1319
    %1508 = vst.msk [vmem:[#allocation3 + $0x28] sm:$0xff] %vm1502, %v1321
    %1509 = vst.msk [vmem:[#allocation3 + $0x30] sm:$0xff] %vm1502, %v1323
    %1510 = vst.msk [vmem:[#allocation3 + $0x38] sm:$0xff] %vm1502, %v1325
    %1511 = vst.msk [vmem:[#allocation3 + $0x40] sm:$0xff] %vm1502, %v1327
    %1512 = vst.msk [vmem:[#allocation3 + $0x48] sm:$0xff] %vm1502, %v1329
    %1513 = vst.msk [vmem:[#allocation3 + $0x50] sm:$0xff] %vm1502, %v1331
    %1514 = vst.msk [vmem:[#allocation3 + $0x58] sm:$0xff] %vm1502, %v1333
    %1515 = vst.msk [vmem:[#allocation3 + $0x60] sm:$0xff] %vm1502, %v1335
    %1516 = vst.msk [vmem:[#allocation3 + $0x68] sm:$0xff] %vm1502, %v1337
    %1517 = vst.msk [vmem:[#allocation3 + $0x70] sm:$0xff] %vm1502, %v1339
    %1518 = vst.msk [vmem:[#allocation3 + $0x78] sm:$0xff] %vm1502, %v1341
    %1519 = vst.msk [vmem:[#allocation3 + $0x80] sm:$0xff] %vm1502, %v1343
    %1520 = vst.msk [vmem:[#allocation3 + $0x88] sm:$0xff] %vm1502, %v1345
    %1521 = vst.msk [vmem:[#allocation3 + $0x90] sm:$0xff] %vm1502, %v1347
    %1522 = vst.msk [vmem:[#allocation3 + $0x98] sm:$0xff] %vm1502, %v1349
    %1523 = vst.msk [vmem:[#allocation3 + $0xa0] sm:$0xff] %vm1502, %v1351
    %1524 = vst.msk [vmem:[#allocation3 + $0xa8] sm:$0xff] %vm1502, %v1353
    %1525 = vst.msk [vmem:[#allocation3 + $0xb0] sm:$0xff] %vm1502, %v1355
    %1526 = vst.msk [vmem:[#allocation3 + $0xb8] sm:$0xff] %vm1502, %v1357
    %1527 = vst.msk [vmem:[#allocation3 + $0xc0] sm:$0xff] %vm1502, %v1359
    %1528 = vst.msk [vmem:[#allocation3 + $0xc8] sm:$0xff] %vm1502, %v1361
    %1529 = vst.msk [vmem:[#allocation3 + $0xd0] sm:$0xff] %vm1502, %v1363
    %1530 = vst.msk [vmem:[#allocation3 + $0xd8] sm:$0xff] %vm1502, %v1365
    %1531 = vst.msk [vmem:[#allocation3 + $0xe0] sm:$0xff] %vm1502, %v1367
    %1532 = vst.msk [vmem:[#allocation3 + $0xe8] sm:$0xff] %vm1502, %v1369
    %1533 = vst.msk [vmem:[#allocation3 + $0xf0] sm:$0xff] %vm1502, %v1371
    %1534 = vst.msk [vmem:[#allocation3 + $0xf8] sm:$0xff] %vm1502, %v1373
    %1535 = vst.msk [vmem:[#allocation3 + $0x100] sm:$0xff] %vm1502, %v1375
    %1536 = vst.msk [vmem:[#allocation3 + $0x108] sm:$0xff] %vm1502, %v1377
    %1537 = vst.msk [vmem:[#allocation3 + $0x110] sm:$0xff] %vm1502, %v1379
    %1538 = vst.msk [vmem:[#allocation3 + $0x118] sm:$0xff] %vm1502, %v1381
    %1539 = vst.msk [vmem:[#allocation3 + $0x120] sm:$0xff] %vm1502, %v1383
    %1540 = vst.msk [vmem:[#allocation3 + $0x128] sm:$0xff] %vm1502, %v1385
    %1541 = vst.msk [vmem:[#allocation3 + $0x130] sm:$0xff] %vm1502, %v1387
    %1542 = vst.msk [vmem:[#allocation3 + $0x138] sm:$0xff] %vm1502, %v1389
    %1543 = vst.msk [vmem:[#allocation3 + $0x140] sm:$0xff] %vm1502, %v1391
    %1544 = vst.msk [vmem:[#allocation3 + $0x148] sm:$0xff] %vm1502, %v1393
    %1545 = vst.msk [vmem:[#allocation3 + $0x150] sm:$0xff] %vm1502, %v1395
    %1546 = vst.msk [vmem:[#allocation3 + $0x158] sm:$0xff] %vm1502, %v1397
    %1547 = vst.msk [vmem:[#allocation3 + $0x160] sm:$0xff] %vm1502, %v1399
    %1548 = vst.msk [vmem:[#allocation3 + $0x168] sm:$0xff] %vm1502, %v1401
    %1549 = vst.msk [vmem:[#allocation3 + $0x170] sm:$0xff] %vm1502, %v1403
    %1550 = vst.msk [vmem:[#allocation3 + $0x178] sm:$0xff] %vm1502, %v1405
    %1551 = vst.msk [vmem:[#allocation3 + $0x180] sm:$0xff] %vm1502, %v1407
    %1552 = vst.msk [vmem:[#allocation3 + $0x188] sm:$0xff] %vm1502, %v1409
    %1553 = vst.msk [vmem:[#allocation3 + $0x190] sm:$0xff] %vm1502, %v1411
    %1554 = vst.msk [vmem:[#allocation3 + $0x198] sm:$0xff] %vm1502, %v1413
    %1555 = vst.msk [vmem:[#allocation3 + $0x1a0] sm:$0xff] %vm1502, %v1415
    %1556 = vst.msk [vmem:[#allocation3 + $0x1a8] sm:$0xff] %vm1502, %v1417
    %1557 = vst.msk [vmem:[#allocation3 + $0x1b0] sm:$0xff] %vm1502, %v1419
    %1558 = vst.msk [vmem:[#allocation3 + $0x1b8] sm:$0xff] %vm1502, %v1421
    %1559 = vst.msk [vmem:[#allocation3 + $0x1c0] sm:$0xff] %vm1502, %v1423
    %1560 = vst.msk [vmem:[#allocation3 + $0x1c8] sm:$0xff] %vm1502, %v1425
    %1561 = vst.msk [vmem:[#allocation3 + $0x1d0] sm:$0xff] %vm1502, %v1427
    %1562 = vst.msk [vmem:[#allocation3 + $0x1d8] sm:$0xff] %vm1502, %v1429
    %1563 = vst.msk [vmem:[#allocation3 + $0x1e0] sm:$0xff] %vm1502, %v1431
    %1564 = vst.msk [vmem:[#allocation3 + $0x1e8] sm:$0xff] %vm1502, %v1433
    %1565 = vst.msk [vmem:[#allocation3 + $0x1f0] sm:$0xff] %vm1502, %v1435
    %1566 = vst.msk [vmem:[#allocation3 + $0x1f8] sm:$0xff] %vm1502, %v1437
    %v1567 = vld [vmem:[%s219 + $0x1] sm:$0xff]
    %v1568 = vld [vmem:[%s219 + $0x9] sm:$0xff]
    %v1569 = vld [vmem:[%s219 + $0x19] sm:$0xff]
    %v1570 = vld [vmem:[%s219 + $0x21] sm:$0xff]
    %v1571 = vld [vmem:[%s219 + $0x31] sm:$0xff]
    %v1572 = vld [vmem:[%s219 + $0x39] sm:$0xff]
    %v1573 = vld [vmem:[%s219 + $0x49] sm:$0xff]
    %v1574 = vld [vmem:[%s219 + $0x51] sm:$0xff]
    %v1575 = vld [vmem:[%s219 + $0x61] sm:$0xff]
    %v1576 = vld [vmem:[%s219 + $0x69] sm:$0xff]
    %v1577 = vld [vmem:[%s219 + $0x79] sm:$0xff]
    %v1578 = vld [vmem:[%s219 + $0x81] sm:$0xff]
    %v1579 = vld [vmem:[%s219 + $0x91] sm:$0xff]
    %v1580 = vld [vmem:[%s219 + $0x99] sm:$0xff]
    %v1581 = vld [vmem:[%s219 + $0xa9] sm:$0xff]
    %v1582 = vld [vmem:[%s219 + $0xb1] sm:$0xff]
    %v1583 = vld [vmem:[%s219 + $0xc1] sm:$0xff]
    %v1584 = vld [vmem:[%s219 + $0xc9] sm:$0xff]
    %v1585 = vld [vmem:[%s219 + $0xd9] sm:$0xff]
    %v1586 = vld [vmem:[%s219 + $0xe1] sm:$0xff]
    %v1587 = vld [vmem:[%s219 + $0xf1] sm:$0xff]
    %v1588 = vld [vmem:[%s219 + $0xf9] sm:$0xff]
    %v1589 = vld [vmem:[%s219 + $0x109] sm:$0xff]
    %v1590 = vld [vmem:[%s219 + $0x111] sm:$0xff]
    %v1591 = vld [vmem:[%s219 + $0x121] sm:$0xff]
    %v1592 = vld [vmem:[%s219 + $0x129] sm:$0xff]
    %v1593 = vld [vmem:[%s219 + $0x139] sm:$0xff]
    %v1594 = vld [vmem:[%s219 + $0x141] sm:$0xff]
    %v1595 = vld [vmem:[%s219 + $0x151] sm:$0xff]
    %v1596 = vld [vmem:[%s219 + $0x159] sm:$0xff]
    %v1597 = vld [vmem:[%s219 + $0x169] sm:$0xff]
    %v1598 = vld [vmem:[%s219 + $0x171] sm:$0xff]
    %v1599 = vld [vmem:[%s219 + $0x1b1] sm:$0xff]
    %v1600 = vld [vmem:[%s219 + $0x1b9] sm:$0xff]
    %v1601 = vld [vmem:[%s219 + $0x1c9] sm:$0xff]
    %v1602 = vld [vmem:[%s219 + $0x1d1] sm:$0xff]
    %v1603 = vld [vmem:[%s219 + $0x1e1] sm:$0xff]
    %v1604 = vld [vmem:[%s219 + $0x1e9] sm:$0xff]
    %v1605 = vld [vmem:[%s219 + $0x1f9] sm:$0xff]
    %v1606 = vld [vmem:[%s219 + $0x201] sm:$0xff]
    %v1607 = vld [vmem:[%s219 + $0x211] sm:$0xff]
    %v1608 = vld [vmem:[%s219 + $0x219] sm:$0xff]
    %v1609 = vld [vmem:[%s219 + $0x229] sm:$0xff]
    %v1610 = vld [vmem:[%s219 + $0x231] sm:$0xff]
    %v1611 = vld [vmem:[%s219 + $0x241] sm:$0xff]
    %v1612 = vld [vmem:[%s219 + $0x249] sm:$0xff]
    %v1613 = vld [vmem:[%s219 + $0x259] sm:$0xff]
    %v1614 = vld [vmem:[%s219 + $0x261] sm:$0xff]
    %v1615 = vld [vmem:[%s219 + $0x271] sm:$0xff]
    %v1616 = vld [vmem:[%s219 + $0x279] sm:$0xff]
    %v1617 = vld [vmem:[%s219 + $0x289] sm:$0xff]
    %v1618 = vld [vmem:[%s219 + $0x291] sm:$0xff]
    %v1619 = vld [vmem:[%s219 + $0x2a1] sm:$0xff]
    %v1620 = vld [vmem:[%s219 + $0x2a9] sm:$0xff]
    %v1621 = vld [vmem:[%s219 + $0x2b9] sm:$0xff]
    %v1622 = vld [vmem:[%s219 + $0x2c1] sm:$0xff]
    %v1623 = vld [vmem:[%s219 + $0x2d1] sm:$0xff]
    %v1624 = vld [vmem:[%s219 + $0x2d9] sm:$0xff]
    %v1625 = vld [vmem:[%s219 + $0x2e9] sm:$0xff]
    %v1626 = vld [vmem:[%s219 + $0x2f1] sm:$0xff]
    %v1627 = vld [vmem:[%s219 + $0x301] sm:$0xff]
    %v1628 = vld [vmem:[%s219 + $0x309] sm:$0xff]
    %v1629 = vld [vmem:[%s219 + $0x319] sm:$0xff]
    %v1630 = vld [vmem:[%s219 + $0x321] sm:$0xff]
    %1695 = vrot.lane.b32.xlu0 %v1567, 16
    %v1696 = vpop.permute.xlu0 %1695
    %1697 = vrot.lane.b32.xlu0 %v1568, 16
    %v1698 = vpop.permute.xlu0 %1697
    %1699 = vrot.lane.b32.xlu0 %v1569, 16
    %v1700 = vpop.permute.xlu0 %1699
    %1701 = vrot.lane.b32.xlu0 %v1570, 16
    %v1702 = vpop.permute.xlu0 %1701
    %1703 = vrot.lane.b32.xlu0 %v1571, 16
    %v1704 = vpop.permute.xlu0 %1703
    %1705 = vrot.lane.b32.xlu0 %v1572, 16
    %v1706 = vpop.permute.xlu0 %1705
    %1707 = vrot.lane.b32.xlu0 %v1573, 16
    %v1708 = vpop.permute.xlu0 %1707
    %1709 = vrot.lane.b32.xlu0 %v1574, 16
    %v1710 = vpop.permute.xlu0 %1709
    %1711 = vrot.lane.b32.xlu0 %v1575, 16
    %v1712 = vpop.permute.xlu0 %1711
    %1713 = vrot.lane.b32.xlu0 %v1576, 16
    %v1714 = vpop.permute.xlu0 %1713
    %1715 = vrot.lane.b32.xlu0 %v1577, 16
    %v1716 = vpop.permute.xlu0 %1715
    %1717 = vrot.lane.b32.xlu0 %v1578, 16
    %v1718 = vpop.permute.xlu0 %1717
    %1719 = vrot.lane.b32.xlu0 %v1579, 16
    %v1720 = vpop.permute.xlu0 %1719
    %1721 = vrot.lane.b32.xlu0 %v1580, 16
    %v1722 = vpop.permute.xlu0 %1721
    %1723 = vrot.lane.b32.xlu0 %v1581, 16
    %v1724 = vpop.permute.xlu0 %1723
    %1725 = vrot.lane.b32.xlu0 %v1582, 16
    %v1726 = vpop.permute.xlu0 %1725
    %1727 = vrot.lane.b32.xlu0 %v1583, 16
    %v1728 = vpop.permute.xlu0 %1727
    %1729 = vrot.lane.b32.xlu0 %v1584, 16
    %v1730 = vpop.permute.xlu0 %1729
    %1731 = vrot.lane.b32.xlu0 %v1585, 16
    %v1732 = vpop.permute.xlu0 %1731
    %1733 = vrot.lane.b32.xlu0 %v1586, 16
    %v1734 = vpop.permute.xlu0 %1733
    %1735 = vrot.lane.b32.xlu0 %v1587, 16
    %v1736 = vpop.permute.xlu0 %1735
    %1737 = vrot.lane.b32.xlu0 %v1588, 16
    %v1738 = vpop.permute.xlu0 %1737
    %1739 = vrot.lane.b32.xlu0 %v1589, 16
    %v1740 = vpop.permute.xlu0 %1739
    %1741 = vrot.lane.b32.xlu0 %v1590, 16
    %v1742 = vpop.permute.xlu0 %1741
    %1743 = vrot.lane.b32.xlu0 %v1591, 16
    %v1744 = vpop.permute.xlu0 %1743
    %1745 = vrot.lane.b32.xlu0 %v1592, 16
    %v1746 = vpop.permute.xlu0 %1745
    %1747 = vrot.lane.b32.xlu0 %v1593, 16
    %v1748 = vpop.permute.xlu0 %1747
    %1749 = vrot.lane.b32.xlu0 %v1594, 16
    %v1750 = vpop.permute.xlu0 %1749
    %1751 = vrot.lane.b32.xlu0 %v1595, 16
    %v1752 = vpop.permute.xlu0 %1751
    %1753 = vrot.lane.b32.xlu0 %v1596, 16
    %v1754 = vpop.permute.xlu0 %1753
    %1755 = vrot.lane.b32.xlu0 %v1597, 16
    %v1756 = vpop.permute.xlu0 %1755
    %1757 = vrot.lane.b32.xlu0 %v1598, 16
    %v1758 = vpop.permute.xlu0 %1757
    %1759 = vrot.lane.b32.xlu0 %v1599, 16
    %v1760 = vpop.permute.xlu0 %1759
    %1761 = vrot.lane.b32.xlu0 %v1600, 16
    %v1762 = vpop.permute.xlu0 %1761
    %1763 = vrot.lane.b32.xlu0 %v1601, 16
    %v1764 = vpop.permute.xlu0 %1763
    %1765 = vrot.lane.b32.xlu0 %v1602, 16
    %v1766 = vpop.permute.xlu0 %1765
    %1767 = vrot.lane.b32.xlu0 %v1603, 16
    %v1768 = vpop.permute.xlu0 %1767
    %1769 = vrot.lane.b32.xlu0 %v1604, 16
    %v1770 = vpop.permute.xlu0 %1769
    %1771 = vrot.lane.b32.xlu0 %v1605, 16
    %v1772 = vpop.permute.xlu0 %1771
    %1773 = vrot.lane.b32.xlu0 %v1606, 16
    %v1774 = vpop.permute.xlu0 %1773
    %1775 = vrot.lane.b32.xlu0 %v1607, 16
    %v1776 = vpop.permute.xlu0 %1775
    %1777 = vrot.lane.b32.xlu0 %v1608, 16
    %v1778 = vpop.permute.xlu0 %1777
    %1779 = vrot.lane.b32.xlu0 %v1609, 16
    %v1780 = vpop.permute.xlu0 %1779
    %1781 = vrot.lane.b32.xlu0 %v1610, 16
    %v1782 = vpop.permute.xlu0 %1781
    %1783 = vrot.lane.b32.xlu0 %v1611, 16
    %v1784 = vpop.permute.xlu0 %1783
    %1785 = vrot.lane.b32.xlu0 %v1612, 16
    %v1786 = vpop.permute.xlu0 %1785
    %1787 = vrot.lane.b32.xlu0 %v1613, 16
    %v1788 = vpop.permute.xlu0 %1787
    %1789 = vrot.lane.b32.xlu0 %v1614, 16
    %v1790 = vpop.permute.xlu0 %1789
    %1791 = vrot.lane.b32.xlu0 %v1615, 16
    %v1792 = vpop.permute.xlu0 %1791
    %1793 = vrot.lane.b32.xlu0 %v1616, 16
    %v1794 = vpop.permute.xlu0 %1793
    %1795 = vrot.lane.b32.xlu0 %v1617, 16
    %v1796 = vpop.permute.xlu0 %1795
    %1797 = vrot.lane.b32.xlu0 %v1618, 16
    %v1798 = vpop.permute.xlu0 %1797
    %1799 = vrot.lane.b32.xlu0 %v1619, 16
    %v1800 = vpop.permute.xlu0 %1799
    %1801 = vrot.lane.b32.xlu0 %v1620, 16
    %v1802 = vpop.permute.xlu0 %1801
    %1803 = vrot.lane.b32.xlu0 %v1621, 16
    %v1804 = vpop.permute.xlu0 %1803
    %1805 = vrot.lane.b32.xlu0 %v1622, 16
    %v1806 = vpop.permute.xlu0 %1805
    %1807 = vrot.lane.b32.xlu0 %v1623, 16
    %v1808 = vpop.permute.xlu0 %1807
    %1809 = vrot.lane.b32.xlu0 %v1624, 16
    %v1810 = vpop.permute.xlu0 %1809
    %1811 = vrot.lane.b32.xlu0 %v1625, 16
    %v1812 = vpop.permute.xlu0 %1811
    %1813 = vrot.lane.b32.xlu0 %v1626, 16
    %v1814 = vpop.permute.xlu0 %1813
    %1815 = vrot.lane.b32.xlu0 %v1627, 16
    %v1816 = vpop.permute.xlu0 %1815
    %1817 = vrot.lane.b32.xlu0 %v1628, 16
    %v1818 = vpop.permute.xlu0 %1817
    %1819 = vrot.lane.b32.xlu0 %v1629, 16
    %v1820 = vpop.permute.xlu0 %1819
    %1821 = vrot.lane.b32.xlu0 %v1630, 16
    %v1822 = vpop.permute.xlu0 %1821
    %vm1887 = vcmask 162944
    %1888 = vst.msk [vmem:[#allocation3] sm:$0xff] %vm1887, %v1696
    %1889 = vst.msk [vmem:[#allocation3 + $0x8] sm:$0xff] %vm1887, %v1698
    %1890 = vst.msk [vmem:[#allocation3 + $0x10] sm:$0xff] %vm1887, %v1700
    %1891 = vst.msk [vmem:[#allocation3 + $0x18] sm:$0xff] %vm1887, %v1702
    %1892 = vst.msk [vmem:[#allocation3 + $0x20] sm:$0xff] %vm1887, %v1704
    %1893 = vst.msk [vmem:[#allocation3 + $0x28] sm:$0xff] %vm1887, %v1706
    %1894 = vst.msk [vmem:[#allocation3 + $0x30] sm:$0xff] %vm1887, %v1708
    %1895 = vst.msk [vmem:[#allocation3 + $0x38] sm:$0xff] %vm1887, %v1710
    %1896 = vst.msk [vmem:[#allocation3 + $0x40] sm:$0xff] %vm1887, %v1712
    %1897 = vst.msk [vmem:[#allocation3 + $0x48] sm:$0xff] %vm1887, %v1714
    %1898 = vst.msk [vmem:[#allocation3 + $0x50] sm:$0xff] %vm1887, %v1716
    %1899 = vst.msk [vmem:[#allocation3 + $0x58] sm:$0xff] %vm1887, %v1718
    %1900 = vst.msk [vmem:[#allocation3 + $0x60] sm:$0xff] %vm1887, %v1720
    %1901 = vst.msk [vmem:[#allocation3 + $0x68] sm:$0xff] %vm1887, %v1722
    %1902 = vst.msk [vmem:[#allocation3 + $0x70] sm:$0xff] %vm1887, %v1724
    %1903 = vst.msk [vmem:[#allocation3 + $0x78] sm:$0xff] %vm1887, %v1726
    %1904 = vst.msk [vmem:[#allocation3 + $0x80] sm:$0xff] %vm1887, %v1728
    %1905 = vst.msk [vmem:[#allocation3 + $0x88] sm:$0xff] %vm1887, %v1730
    %1906 = vst.msk [vmem:[#allocation3 + $0x90] sm:$0xff] %vm1887, %v1732
    %1907 = vst.msk [vmem:[#allocation3 + $0x98] sm:$0xff] %vm1887, %v1734
    %1908 = vst.msk [vmem:[#allocation3 + $0xa0] sm:$0xff] %vm1887, %v1736
    %1909 = vst.msk [vmem:[#allocation3 + $0xa8] sm:$0xff] %vm1887, %v1738
    %1910 = vst.msk [vmem:[#allocation3 + $0xb0] sm:$0xff] %vm1887, %v1740
    %1911 = vst.msk [vmem:[#allocation3 + $0xb8] sm:$0xff] %vm1887, %v1742
    %1912 = vst.msk [vmem:[#allocation3 + $0xc0] sm:$0xff] %vm1887, %v1744
    %1913 = vst.msk [vmem:[#allocation3 + $0xc8] sm:$0xff] %vm1887, %v1746
    %1914 = vst.msk [vmem:[#allocation3 + $0xd0] sm:$0xff] %vm1887, %v1748
    %1915 = vst.msk [vmem:[#allocation3 + $0xd8] sm:$0xff] %vm1887, %v1750
    %1916 = vst.msk [vmem:[#allocation3 + $0xe0] sm:$0xff] %vm1887, %v1752
    %1917 = vst.msk [vmem:[#allocation3 + $0xe8] sm:$0xff] %vm1887, %v1754
    %1918 = vst.msk [vmem:[#allocation3 + $0xf0] sm:$0xff] %vm1887, %v1756
    %1919 = vst.msk [vmem:[#allocation3 + $0xf8] sm:$0xff] %vm1887, %v1758
    %1920 = vst.msk [vmem:[#allocation3 + $0x100] sm:$0xff] %vm1887, %v1760
    %1921 = vst.msk [vmem:[#allocation3 + $0x108] sm:$0xff] %vm1887, %v1762
    %1922 = vst.msk [vmem:[#allocation3 + $0x110] sm:$0xff] %vm1887, %v1764
    %1923 = vst.msk [vmem:[#allocation3 + $0x118] sm:$0xff] %vm1887, %v1766
    %1924 = vst.msk [vmem:[#allocation3 + $0x120] sm:$0xff] %vm1887, %v1768
    %1925 = vst.msk [vmem:[#allocation3 + $0x128] sm:$0xff] %vm1887, %v1770
    %1926 = vst.msk [vmem:[#allocation3 + $0x130] sm:$0xff] %vm1887, %v1772
    %1927 = vst.msk [vmem:[#allocation3 + $0x138] sm:$0xff] %vm1887, %v1774
    %1928 = vst.msk [vmem:[#allocation3 + $0x140] sm:$0xff] %vm1887, %v1776
    %1929 = vst.msk [vmem:[#allocation3 + $0x148] sm:$0xff] %vm1887, %v1778
    %1930 = vst.msk [vmem:[#allocation3 + $0x150] sm:$0xff] %vm1887, %v1780
    %1931 = vst.msk [vmem:[#allocation3 + $0x158] sm:$0xff] %vm1887, %v1782
    %1932 = vst.msk [vmem:[#allocation3 + $0x160] sm:$0xff] %vm1887, %v1784
    %1933 = vst.msk [vmem:[#allocation3 + $0x168] sm:$0xff] %vm1887, %v1786
    %1934 = vst.msk [vmem:[#allocation3 + $0x170] sm:$0xff] %vm1887, %v1788
    %1935 = vst.msk [vmem:[#allocation3 + $0x178] sm:$0xff] %vm1887, %v1790
    %1936 = vst.msk [vmem:[#allocation3 + $0x180] sm:$0xff] %vm1887, %v1792
    %1937 = vst.msk [vmem:[#allocation3 + $0x188] sm:$0xff] %vm1887, %v1794
    %1938 = vst.msk [vmem:[#allocation3 + $0x190] sm:$0xff] %vm1887, %v1796
    %1939 = vst.msk [vmem:[#allocation3 + $0x198] sm:$0xff] %vm1887, %v1798
    %1940 = vst.msk [vmem:[#allocation3 + $0x1a0] sm:$0xff] %vm1887, %v1800
    %1941 = vst.msk [vmem:[#allocation3 + $0x1a8] sm:$0xff] %vm1887, %v1802
    %1942 = vst.msk [vmem:[#allocation3 + $0x1b0] sm:$0xff] %vm1887, %v1804
    %1943 = vst.msk [vmem:[#allocation3 + $0x1b8] sm:$0xff] %vm1887, %v1806
    %1944 = vst.msk [vmem:[#allocation3 + $0x1c0] sm:$0xff] %vm1887, %v1808
    %1945 = vst.msk [vmem:[#allocation3 + $0x1c8] sm:$0xff] %vm1887, %v1810
    %1946 = vst.msk [vmem:[#allocation3 + $0x1d0] sm:$0xff] %vm1887, %v1812
    %1947 = vst.msk [vmem:[#allocation3 + $0x1d8] sm:$0xff] %vm1887, %v1814
    %1948 = vst.msk [vmem:[#allocation3 + $0x1e0] sm:$0xff] %vm1887, %v1816
    %1949 = vst.msk [vmem:[#allocation3 + $0x1e8] sm:$0xff] %vm1887, %v1818
    %1950 = vst.msk [vmem:[#allocation3 + $0x1f0] sm:$0xff] %vm1887, %v1820
    %1951 = vst.msk [vmem:[#allocation3 + $0x1f8] sm:$0xff] %vm1887, %v1822
    %v1952 = vld [vmem:[%s219 + $0x2] sm:$0xff]
    %v1953 = vld [vmem:[%s219 + $0xa] sm:$0xff]
    %v1954 = vld [vmem:[%s219 + $0x1a] sm:$0xff]
    %v1955 = vld [vmem:[%s219 + $0x22] sm:$0xff]
    %v1956 = vld [vmem:[%s219 + $0x32] sm:$0xff]
    %v1957 = vld [vmem:[%s219 + $0x3a] sm:$0xff]
    %v1958 = vld [vmem:[%s219 + $0x4a] sm:$0xff]
    %v1959 = vld [vmem:[%s219 + $0x52] sm:$0xff]
    %v1960 = vld [vmem:[%s219 + $0x62] sm:$0xff]
    %v1961 = vld [vmem:[%s219 + $0x6a] sm:$0xff]
    %v1962 = vld [vmem:[%s219 + $0x7a] sm:$0xff]
    %v1963 = vld [vmem:[%s219 + $0x82] sm:$0xff]
    %v1964 = vld [vmem:[%s219 + $0x92] sm:$0xff]
    %v1965 = vld [vmem:[%s219 + $0x9a] sm:$0xff]
    %v1966 = vld [vmem:[%s219 + $0xaa] sm:$0xff]
    %v1967 = vld [vmem:[%s219 + $0xb2] sm:$0xff]
    %v1968 = vld [vmem:[%s219 + $0xc2] sm:$0xff]
    %v1969 = vld [vmem:[%s219 + $0xca] sm:$0xff]
    %v1970 = vld [vmem:[%s219 + $0xda] sm:$0xff]
    %v1971 = vld [vmem:[%s219 + $0xe2] sm:$0xff]
    %v1972 = vld [vmem:[%s219 + $0xf2] sm:$0xff]
    %v1973 = vld [vmem:[%s219 + $0xfa] sm:$0xff]
    %v1974 = vld [vmem:[%s219 + $0x10a] sm:$0xff]
    %v1975 = vld [vmem:[%s219 + $0x112] sm:$0xff]
    %v1976 = vld [vmem:[%s219 + $0x122] sm:$0xff]
    %v1977 = vld [vmem:[%s219 + $0x12a] sm:$0xff]
    %v1978 = vld [vmem:[%s219 + $0x13a] sm:$0xff]
    %v1979 = vld [vmem:[%s219 + $0x142] sm:$0xff]
    %v1980 = vld [vmem:[%s219 + $0x152] sm:$0xff]
    %v1981 = vld [vmem:[%s219 + $0x15a] sm:$0xff]
    %v1982 = vld [vmem:[%s219 + $0x16a] sm:$0xff]
    %v1983 = vld [vmem:[%s219 + $0x172] sm:$0xff]
    %v1984 = vld [vmem:[%s219 + $0x1b2] sm:$0xff]
    %v1985 = vld [vmem:[%s219 + $0x1ba] sm:$0xff]
    %v1986 = vld [vmem:[%s219 + $0x1ca] sm:$0xff]
    %v1987 = vld [vmem:[%s219 + $0x1d2] sm:$0xff]
    %v1988 = vld [vmem:[%s219 + $0x1e2] sm:$0xff]
    %v1989 = vld [vmem:[%s219 + $0x1ea] sm:$0xff]
    %v1990 = vld [vmem:[%s219 + $0x1fa] sm:$0xff]
    %v1991 = vld [vmem:[%s219 + $0x202] sm:$0xff]
    %v1992 = vld [vmem:[%s219 + $0x212] sm:$0xff]
    %v1993 = vld [vmem:[%s219 + $0x21a] sm:$0xff]
    %v1994 = vld [vmem:[%s219 + $0x22a] sm:$0xff]
    %v1995 = vld [vmem:[%s219 + $0x232] sm:$0xff]
    %v1996 = vld [vmem:[%s219 + $0x242] sm:$0xff]
    %v1997 = vld [vmem:[%s219 + $0x24a] sm:$0xff]
    %v1998 = vld [vmem:[%s219 + $0x25a] sm:$0xff]
    %v1999 = vld [vmem:[%s219 + $0x262] sm:$0xff]
    %v2000 = vld [vmem:[%s219 + $0x272] sm:$0xff]
    %v2001 = vld [vmem:[%s219 + $0x27a] sm:$0xff]
    %v2002 = vld [vmem:[%s219 + $0x28a] sm:$0xff]
    %v2003 = vld [vmem:[%s219 + $0x292] sm:$0xff]
    %v2004 = vld [vmem:[%s219 + $0x2a2] sm:$0xff]
    %v2005 = vld [vmem:[%s219 + $0x2aa] sm:$0xff]
    %v2006 = vld [vmem:[%s219 + $0x2ba] sm:$0xff]
    %v2007 = vld [vmem:[%s219 + $0x2c2] sm:$0xff]
    %v2008 = vld [vmem:[%s219 + $0x2d2] sm:$0xff]
    %v2009 = vld [vmem:[%s219 + $0x2da] sm:$0xff]
    %v2010 = vld [vmem:[%s219 + $0x2ea] sm:$0xff]
    %v2011 = vld [vmem:[%s219 + $0x2f2] sm:$0xff]
    %v2012 = vld [vmem:[%s219 + $0x302] sm:$0xff]
    %v2013 = vld [vmem:[%s219 + $0x30a] sm:$0xff]
    %v2014 = vld [vmem:[%s219 + $0x31a] sm:$0xff]
    %v2015 = vld [vmem:[%s219 + $0x322] sm:$0xff]
    %2080 = vrot.lane.b32.xlu0 %v1952, 20
    %v2081 = vpop.permute.xlu0 %2080
    %2082 = vrot.lane.b32.xlu0 %v1953, 20
    %v2083 = vpop.permute.xlu0 %2082
    %2084 = vrot.lane.b32.xlu0 %v1954, 20
    %v2085 = vpop.permute.xlu0 %2084
    %2086 = vrot.lane.b32.xlu0 %v1955, 20
    %v2087 = vpop.permute.xlu0 %2086
    %2088 = vrot.lane.b32.xlu0 %v1956, 20
    %v2089 = vpop.permute.xlu0 %2088
    %2090 = vrot.lane.b32.xlu0 %v1957, 20
    %v2091 = vpop.permute.xlu0 %2090
    %2092 = vrot.lane.b32.xlu0 %v1958, 20
    %v2093 = vpop.permute.xlu0 %2092
    %2094 = vrot.lane.b32.xlu0 %v1959, 20
    %v2095 = vpop.permute.xlu0 %2094
    %2096 = vrot.lane.b32.xlu0 %v1960, 20
    %v2097 = vpop.permute.xlu0 %2096
    %2098 = vrot.lane.b32.xlu0 %v1961, 20
    %v2099 = vpop.permute.xlu0 %2098
    %2100 = vrot.lane.b32.xlu0 %v1962, 20
    %v2101 = vpop.permute.xlu0 %2100
    %2102 = vrot.lane.b32.xlu0 %v1963, 20
    %v2103 = vpop.permute.xlu0 %2102
    %2104 = vrot.lane.b32.xlu0 %v1964, 20
    %v2105 = vpop.permute.xlu0 %2104
    %2106 = vrot.lane.b32.xlu0 %v1965, 20
    %v2107 = vpop.permute.xlu0 %2106
    %2108 = vrot.lane.b32.xlu0 %v1966, 20
    %v2109 = vpop.permute.xlu0 %2108
    %2110 = vrot.lane.b32.xlu0 %v1967, 20
    %v2111 = vpop.permute.xlu0 %2110
    %2112 = vrot.lane.b32.xlu0 %v1968, 20
    %v2113 = vpop.permute.xlu0 %2112
    %2114 = vrot.lane.b32.xlu0 %v1969, 20
    %v2115 = vpop.permute.xlu0 %2114
    %2116 = vrot.lane.b32.xlu0 %v1970, 20
    %v2117 = vpop.permute.xlu0 %2116
    %2118 = vrot.lane.b32.xlu0 %v1971, 20
    %v2119 = vpop.permute.xlu0 %2118
    %2120 = vrot.lane.b32.xlu0 %v1972, 20
    %v2121 = vpop.permute.xlu0 %2120
    %2122 = vrot.lane.b32.xlu0 %v1973, 20
    %v2123 = vpop.permute.xlu0 %2122
    %2124 = vrot.lane.b32.xlu0 %v1974, 20
    %v2125 = vpop.permute.xlu0 %2124
    %2126 = vrot.lane.b32.xlu0 %v1975, 20
    %v2127 = vpop.permute.xlu0 %2126
    %2128 = vrot.lane.b32.xlu0 %v1976, 20
    %v2129 = vpop.permute.xlu0 %2128
    %2130 = vrot.lane.b32.xlu0 %v1977, 20
    %v2131 = vpop.permute.xlu0 %2130
    %2132 = vrot.lane.b32.xlu0 %v1978, 20
    %v2133 = vpop.permute.xlu0 %2132
    %2134 = vrot.lane.b32.xlu0 %v1979, 20
    %v2135 = vpop.permute.xlu0 %2134
    %2136 = vrot.lane.b32.xlu0 %v1980, 20
    %v2137 = vpop.permute.xlu0 %2136
    %2138 = vrot.lane.b32.xlu0 %v1981, 20
    %v2139 = vpop.permute.xlu0 %2138
    %2140 = vrot.lane.b32.xlu0 %v1982, 20
    %v2141 = vpop.permute.xlu0 %2140
    %2142 = vrot.lane.b32.xlu0 %v1983, 20
    %v2143 = vpop.permute.xlu0 %2142
    %2144 = vrot.lane.b32.xlu0 %v1984, 20
    %v2145 = vpop.permute.xlu0 %2144
    %2146 = vrot.lane.b32.xlu0 %v1985, 20
    %v2147 = vpop.permute.xlu0 %2146
    %2148 = vrot.lane.b32.xlu0 %v1986, 20
    %v2149 = vpop.permute.xlu0 %2148
    %2150 = vrot.lane.b32.xlu0 %v1987, 20
    %v2151 = vpop.permute.xlu0 %2150
    %2152 = vrot.lane.b32.xlu0 %v1988, 20
    %v2153 = vpop.permute.xlu0 %2152
    %2154 = vrot.lane.b32.xlu0 %v1989, 20
    %v2155 = vpop.permute.xlu0 %2154
    %2156 = vrot.lane.b32.xlu0 %v1990, 20
    %v2157 = vpop.permute.xlu0 %2156
    %2158 = vrot.lane.b32.xlu0 %v1991, 20
    %v2159 = vpop.permute.xlu0 %2158
    %2160 = vrot.lane.b32.xlu0 %v1992, 20
    %v2161 = vpop.permute.xlu0 %2160
    %2162 = vrot.lane.b32.xlu0 %v1993, 20
    %v2163 = vpop.permute.xlu0 %2162
    %2164 = vrot.lane.b32.xlu0 %v1994, 20
    %v2165 = vpop.permute.xlu0 %2164
    %2166 = vrot.lane.b32.xlu0 %v1995, 20
    %v2167 = vpop.permute.xlu0 %2166
    %2168 = vrot.lane.b32.xlu0 %v1996, 20
    %v2169 = vpop.permute.xlu0 %2168
    %2170 = vrot.lane.b32.xlu0 %v1997, 20
    %v2171 = vpop.permute.xlu0 %2170
    %2172 = vrot.lane.b32.xlu0 %v1998, 20
    %v2173 = vpop.permute.xlu0 %2172
    %2174 = vrot.lane.b32.xlu0 %v1999, 20
    %v2175 = vpop.permute.xlu0 %2174
    %2176 = vrot.lane.b32.xlu0 %v2000, 20
    %v2177 = vpop.permute.xlu0 %2176
    %2178 = vrot.lane.b32.xlu0 %v2001, 20
    %v2179 = vpop.permute.xlu0 %2178
    %2180 = vrot.lane.b32.xlu0 %v2002, 20
    %v2181 = vpop.permute.xlu0 %2180
    %2182 = vrot.lane.b32.xlu0 %v2003, 20
    %v2183 = vpop.permute.xlu0 %2182
    %2184 = vrot.lane.b32.xlu0 %v2004, 20
    %v2185 = vpop.permute.xlu0 %2184
    %2186 = vrot.lane.b32.xlu0 %v2005, 20
    %v2187 = vpop.permute.xlu0 %2186
    %2188 = vrot.lane.b32.xlu0 %v2006, 20
    %v2189 = vpop.permute.xlu0 %2188
    %2190 = vrot.lane.b32.xlu0 %v2007, 20
    %v2191 = vpop.permute.xlu0 %2190
    %2192 = vrot.lane.b32.xlu0 %v2008, 20
    %v2193 = vpop.permute.xlu0 %2192
    %2194 = vrot.lane.b32.xlu0 %v2009, 20
    %v2195 = vpop.permute.xlu0 %2194
    %2196 = vrot.lane.b32.xlu0 %v2010, 20
    %v2197 = vpop.permute.xlu0 %2196
    %2198 = vrot.lane.b32.xlu0 %v2011, 20
    %v2199 = vpop.permute.xlu0 %2198
    %2200 = vrot.lane.b32.xlu0 %v2012, 20
    %v2201 = vpop.permute.xlu0 %2200
    %2202 = vrot.lane.b32.xlu0 %v2013, 20
    %v2203 = vpop.permute.xlu0 %2202
    %2204 = vrot.lane.b32.xlu0 %v2014, 20
    %v2205 = vpop.permute.xlu0 %2204
    %2206 = vrot.lane.b32.xlu0 %v2015, 20
    %v2207 = vpop.permute.xlu0 %2206
    %vm2272 = vcmask 195744
    %2273 = vst.msk [vmem:[#allocation3] sm:$0xff] %vm2272, %v2081
    %2274 = vst.msk [vmem:[#allocation3 + $0x8] sm:$0xff] %vm2272, %v2083
    %2275 = vst.msk [vmem:[#allocation3 + $0x10] sm:$0xff] %vm2272, %v2085
    %2276 = vst.msk [vmem:[#allocation3 + $0x18] sm:$0xff] %vm2272, %v2087
    %2277 = vst.msk [vmem:[#allocation3 + $0x20] sm:$0xff] %vm2272, %v2089
    %2278 = vst.msk [vmem:[#allocation3 + $0x28] sm:$0xff] %vm2272, %v2091
    %2279 = vst.msk [vmem:[#allocation3 + $0x30] sm:$0xff] %vm2272, %v2093
    %2280 = vst.msk [vmem:[#allocation3 + $0x38] sm:$0xff] %vm2272, %v2095
    %2281 = vst.msk [vmem:[#allocation3 + $0x40] sm:$0xff] %vm2272, %v2097
    %2282 = vst.msk [vmem:[#allocation3 + $0x48] sm:$0xff] %vm2272, %v2099
    %2283 = vst.msk [vmem:[#allocation3 + $0x50] sm:$0xff] %vm2272, %v2101
    %2284 = vst.msk [vmem:[#allocation3 + $0x58] sm:$0xff] %vm2272, %v2103
    %2285 = vst.msk [vmem:[#allocation3 + $0x60] sm:$0xff] %vm2272, %v2105
    %2286 = vst.msk [vmem:[#allocation3 + $0x68] sm:$0xff] %vm2272, %v2107
    %2287 = vst.msk [vmem:[#allocation3 + $0x70] sm:$0xff] %vm2272, %v2109
    %2288 = vst.msk [vmem:[#allocation3 + $0x78] sm:$0xff] %vm2272, %v2111
    %2289 = vst.msk [vmem:[#allocation3 + $0x80] sm:$0xff] %vm2272, %v2113
    %2290 = vst.msk [vmem:[#allocation3 + $0x88] sm:$0xff] %vm2272, %v2115
    %2291 = vst.msk [vmem:[#allocation3 + $0x90] sm:$0xff] %vm2272, %v2117
    %2292 = vst.msk [vmem:[#allocation3 + $0x98] sm:$0xff] %vm2272, %v2119
    %2293 = vst.msk [vmem:[#allocation3 + $0xa0] sm:$0xff] %vm2272, %v2121
    %2294 = vst.msk [vmem:[#allocation3 + $0xa8] sm:$0xff] %vm2272, %v2123
    %2295 = vst.msk [vmem:[#allocation3 + $0xb0] sm:$0xff] %vm2272, %v2125
    %2296 = vst.msk [vmem:[#allocation3 + $0xb8] sm:$0xff] %vm2272, %v2127
    %2297 = vst.msk [vmem:[#allocation3 + $0xc0] sm:$0xff] %vm2272, %v2129
    %2298 = vst.msk [vmem:[#allocation3 + $0xc8] sm:$0xff] %vm2272, %v2131
    %2299 = vst.msk [vmem:[#allocation3 + $0xd0] sm:$0xff] %vm2272, %v2133
    %2300 = vst.msk [vmem:[#allocation3 + $0xd8] sm:$0xff] %vm2272, %v2135
    %2301 = vst.msk [vmem:[#allocation3 + $0xe0] sm:$0xff] %vm2272, %v2137
    %2302 = vst.msk [vmem:[#allocation3 + $0xe8] sm:$0xff] %vm2272, %v2139
    %2303 = vst.msk [vmem:[#allocation3 + $0xf0] sm:$0xff] %vm2272, %v2141
    %2304 = vst.msk [vmem:[#allocation3 + $0xf8] sm:$0xff] %vm2272, %v2143
    %2305 = vst.msk [vmem:[#allocation3 + $0x100] sm:$0xff] %vm2272, %v2145
    %2306 = vst.msk [vmem:[#allocation3 + $0x108] sm:$0xff] %vm2272, %v2147
    %2307 = vst.msk [vmem:[#allocation3 + $0x110] sm:$0xff] %vm2272, %v2149
    %2308 = vst.msk [vmem:[#allocation3 + $0x118] sm:$0xff] %vm2272, %v2151
    %2309 = vst.msk [vmem:[#allocation3 + $0x120] sm:$0xff] %vm2272, %v2153
    %2310 = vst.msk [vmem:[#allocation3 + $0x128] sm:$0xff] %vm2272, %v2155
    %2311 = vst.msk [vmem:[#allocation3 + $0x130] sm:$0xff] %vm2272, %v2157
    %2312 = vst.msk [vmem:[#allocation3 + $0x138] sm:$0xff] %vm2272, %v2159
    %2313 = vst.msk [vmem:[#allocation3 + $0x140] sm:$0xff] %vm2272, %v2161
    %2314 = vst.msk [vmem:[#allocation3 + $0x148] sm:$0xff] %vm2272, %v2163
    %2315 = vst.msk [vmem:[#allocation3 + $0x150] sm:$0xff] %vm2272, %v2165
    %2316 = vst.msk [vmem:[#allocation3 + $0x158] sm:$0xff] %vm2272, %v2167
    %2317 = vst.msk [vmem:[#allocation3 + $0x160] sm:$0xff] %vm2272, %v2169
    %2318 = vst.msk [vmem:[#allocation3 + $0x168] sm:$0xff] %vm2272, %v2171
    %2319 = vst.msk [vmem:[#allocation3 + $0x170] sm:$0xff] %vm2272, %v2173
    %2320 = vst.msk [vmem:[#allocation3 + $0x178] sm:$0xff] %vm2272, %v2175
    %2321 = vst.msk [vmem:[#allocation3 + $0x180] sm:$0xff] %vm2272, %v2177
    %2322 = vst.msk [vmem:[#allocation3 + $0x188] sm:$0xff] %vm2272, %v2179
    %2323 = vst.msk [vmem:[#allocation3 + $0x190] sm:$0xff] %vm2272, %v2181
    %2324 = vst.msk [vmem:[#allocation3 + $0x198] sm:$0xff] %vm2272, %v2183
    %2325 = vst.msk [vmem:[#allocation3 + $0x1a0] sm:$0xff] %vm2272, %v2185
    %2326 = vst.msk [vmem:[#allocation3 + $0x1a8] sm:$0xff] %vm2272, %v2187
    %2327 = vst.msk [vmem:[#allocation3 + $0x1b0] sm:$0xff] %vm2272, %v2189
    %2328 = vst.msk [vmem:[#allocation3 + $0x1b8] sm:$0xff] %vm2272, %v2191
    %2329 = vst.msk [vmem:[#allocation3 + $0x1c0] sm:$0xff] %vm2272, %v2193
    %2330 = vst.msk [vmem:[#allocation3 + $0x1c8] sm:$0xff] %vm2272, %v2195
    %2331 = vst.msk [vmem:[#allocation3 + $0x1d0] sm:$0xff] %vm2272, %v2197
    %2332 = vst.msk [vmem:[#allocation3 + $0x1d8] sm:$0xff] %vm2272, %v2199
    %2333 = vst.msk [vmem:[#allocation3 + $0x1e0] sm:$0xff] %vm2272, %v2201
    %2334 = vst.msk [vmem:[#allocation3 + $0x1e8] sm:$0xff] %vm2272, %v2203
    %2335 = vst.msk [vmem:[#allocation3 + $0x1f0] sm:$0xff] %vm2272, %v2205
    %2336 = vst.msk [vmem:[#allocation3 + $0x1f8] sm:$0xff] %vm2272, %v2207
    %s2337 = scalar_lea.vmem [#allocation2], 48
    %v2338 = vld [vmem:[%s2337] sm:$0xff]
    %v2339 = vld [vmem:[%s2337 + $0x8] sm:$0xff]
    %v2340 = vld [vmem:[%s2337 + $0x18] sm:$0xff]
    %v2341 = vld [vmem:[%s2337 + $0x20] sm:$0xff]
    %v2342 = vld [vmem:[%s2337 + $0x30] sm:$0xff]
    %v2343 = vld [vmem:[%s2337 + $0x38] sm:$0xff]
    %v2344 = vld [vmem:[%s2337 + $0x48] sm:$0xff]
    %v2345 = vld [vmem:[%s2337 + $0x50] sm:$0xff]
    %v2346 = vld [vmem:[%s2337 + $0x60] sm:$0xff]
    %v2347 = vld [vmem:[%s2337 + $0x68] sm:$0xff]
    %v2348 = vld [vmem:[%s2337 + $0x78] sm:$0xff]
    %v2349 = vld [vmem:[%s2337 + $0x80] sm:$0xff]
    %v2350 = vld [vmem:[%s2337 + $0x90] sm:$0xff]
    %v2351 = vld [vmem:[%s2337 + $0x98] sm:$0xff]
    %v2352 = vld [vmem:[%s2337 + $0xa8] sm:$0xff]
    %v2353 = vld [vmem:[%s2337 + $0xb0] sm:$0xff]
    %v2354 = vld [vmem:[%s2337 + $0xc0] sm:$0xff]
    %v2355 = vld [vmem:[%s2337 + $0xc8] sm:$0xff]
    %v2356 = vld [vmem:[%s2337 + $0xd8] sm:$0xff]
    %v2357 = vld [vmem:[%s2337 + $0xe0] sm:$0xff]
    %v2358 = vld [vmem:[%s2337 + $0xf0] sm:$0xff]
    %v2359 = vld [vmem:[%s2337 + $0xf8] sm:$0xff]
    %v2360 = vld [vmem:[%s2337 + $0x108] sm:$0xff]
    %v2361 = vld [vmem:[%s2337 + $0x110] sm:$0xff]
    %v2362 = vld [vmem:[%s2337 + $0x120] sm:$0xff]
    %v2363 = vld [vmem:[%s2337 + $0x128] sm:$0xff]
    %v2364 = vld [vmem:[%s2337 + $0x138] sm:$0xff]
    %v2365 = vld [vmem:[%s2337 + $0x140] sm:$0xff]
    %v2366 = vld [vmem:[%s2337 + $0x150] sm:$0xff]
    %v2367 = vld [vmem:[%s2337 + $0x158] sm:$0xff]
    %v2368 = vld [vmem:[%s2337 + $0x168] sm:$0xff]
    %v2369 = vld [vmem:[%s2337 + $0x170] sm:$0xff]
    %v2370 = vld [vmem:[%s2337 + $0x1b0] sm:$0xff]
    %v2371 = vld [vmem:[%s2337 + $0x1b8] sm:$0xff]
    %v2372 = vld [vmem:[%s2337 + $0x1c8] sm:$0xff]
    %v2373 = vld [vmem:[%s2337 + $0x1d0] sm:$0xff]
    %v2374 = vld [vmem:[%s2337 + $0x1e0] sm:$0xff]
    %v2375 = vld [vmem:[%s2337 + $0x1e8] sm:$0xff]
    %v2376 = vld [vmem:[%s2337 + $0x1f8] sm:$0xff]
    %v2377 = vld [vmem:[%s2337 + $0x200] sm:$0xff]
    %v2378 = vld [vmem:[%s2337 + $0x210] sm:$0xff]
    %v2379 = vld [vmem:[%s2337 + $0x218] sm:$0xff]
    %v2380 = vld [vmem:[%s2337 + $0x228] sm:$0xff]
    %v2381 = vld [vmem:[%s2337 + $0x230] sm:$0xff]
    %v2382 = vld [vmem:[%s2337 + $0x240] sm:$0xff]
    %v2383 = vld [vmem:[%s2337 + $0x248] sm:$0xff]
    %v2384 = vld [vmem:[%s2337 + $0x258] sm:$0xff]
    %v2385 = vld [vmem:[%s2337 + $0x260] sm:$0xff]
    %v2386 = vld [vmem:[%s2337 + $0x270] sm:$0xff]
    %v2387 = vld [vmem:[%s2337 + $0x278] sm:$0xff]
    %v2388 = vld [vmem:[%s2337 + $0x288] sm:$0xff]
    %v2389 = vld [vmem:[%s2337 + $0x290] sm:$0xff]
    %v2390 = vld [vmem:[%s2337 + $0x2a0] sm:$0xff]
    %v2391 = vld [vmem:[%s2337 + $0x2a8] sm:$0xff]
    %v2392 = vld [vmem:[%s2337 + $0x2b8] sm:$0xff]
    %v2393 = vld [vmem:[%s2337 + $0x2c0] sm:$0xff]
    %v2394 = vld [vmem:[%s2337 + $0x2d0] sm:$0xff]
    %v2395 = vld [vmem:[%s2337 + $0x2d8] sm:$0xff]
    %v2396 = vld [vmem:[%s2337 + $0x2e8] sm:$0xff]
    %v2397 = vld [vmem:[%s2337 + $0x2f0] sm:$0xff]
    %v2398 = vld [vmem:[%s2337 + $0x300] sm:$0xff]
    %v2399 = vld [vmem:[%s2337 + $0x308] sm:$0xff]
    %v2400 = vld [vmem:[%s2337 + $0x318] sm:$0xff]
    %v2401 = vld [vmem:[%s2337 + $0x320] sm:$0xff]
    %2466 = vrot.lane.b32.xlu0 %v2338, 24
    %v2467 = vpop.permute.xlu0 %2466
    %2468 = vrot.lane.b32.xlu0 %v2339, 24
    %v2469 = vpop.permute.xlu0 %2468
    %2470 = vrot.lane.b32.xlu0 %v2340, 24
    %v2471 = vpop.permute.xlu0 %2470
    %2472 = vrot.lane.b32.xlu0 %v2341, 24
    %v2473 = vpop.permute.xlu0 %2472
    %2474 = vrot.lane.b32.xlu0 %v2342, 24
    %v2475 = vpop.permute.xlu0 %2474
    %2476 = vrot.lane.b32.xlu0 %v2343, 24
    %v2477 = vpop.permute.xlu0 %2476
    %2478 = vrot.lane.b32.xlu0 %v2344, 24
    %v2479 = vpop.permute.xlu0 %2478
    %2480 = vrot.lane.b32.xlu0 %v2345, 24
    %v2481 = vpop.permute.xlu0 %2480
    %2482 = vrot.lane.b32.xlu0 %v2346, 24
    %v2483 = vpop.permute.xlu0 %2482
    %2484 = vrot.lane.b32.xlu0 %v2347, 24
    %v2485 = vpop.permute.xlu0 %2484
    %2486 = vrot.lane.b32.xlu0 %v2348, 24
    %v2487 = vpop.permute.xlu0 %2486
    %2488 = vrot.lane.b32.xlu0 %v2349, 24
    %v2489 = vpop.permute.xlu0 %2488
    %2490 = vrot.lane.b32.xlu0 %v2350, 24
    %v2491 = vpop.permute.xlu0 %2490
    %2492 = vrot.lane.b32.xlu0 %v2351, 24
    %v2493 = vpop.permute.xlu0 %2492
    %2494 = vrot.lane.b32.xlu0 %v2352, 24
    %v2495 = vpop.permute.xlu0 %2494
    %2496 = vrot.lane.b32.xlu0 %v2353, 24
    %v2497 = vpop.permute.xlu0 %2496
    %2498 = vrot.lane.b32.xlu0 %v2354, 24
    %v2499 = vpop.permute.xlu0 %2498
    %2500 = vrot.lane.b32.xlu0 %v2355, 24
    %v2501 = vpop.permute.xlu0 %2500
    %2502 = vrot.lane.b32.xlu0 %v2356, 24
    %v2503 = vpop.permute.xlu0 %2502
    %2504 = vrot.lane.b32.xlu0 %v2357, 24
    %v2505 = vpop.permute.xlu0 %2504
    %2506 = vrot.lane.b32.xlu0 %v2358, 24
    %v2507 = vpop.permute.xlu0 %2506
    %2508 = vrot.lane.b32.xlu0 %v2359, 24
    %v2509 = vpop.permute.xlu0 %2508
    %2510 = vrot.lane.b32.xlu0 %v2360, 24
    %v2511 = vpop.permute.xlu0 %2510
    %2512 = vrot.lane.b32.xlu0 %v2361, 24
    %v2513 = vpop.permute.xlu0 %2512
    %2514 = vrot.lane.b32.xlu0 %v2362, 24
    %v2515 = vpop.permute.xlu0 %2514
    %2516 = vrot.lane.b32.xlu0 %v2363, 24
    %v2517 = vpop.permute.xlu0 %2516
    %2518 = vrot.lane.b32.xlu0 %v2364, 24
    %v2519 = vpop.permute.xlu0 %2518
    %2520 = vrot.lane.b32.xlu0 %v2365, 24
    %v2521 = vpop.permute.xlu0 %2520
    %2522 = vrot.lane.b32.xlu0 %v2366, 24
    %v2523 = vpop.permute.xlu0 %2522
    %2524 = vrot.lane.b32.xlu0 %v2367, 24
    %v2525 = vpop.permute.xlu0 %2524
    %2526 = vrot.lane.b32.xlu0 %v2368, 24
    %v2527 = vpop.permute.xlu0 %2526
    %2528 = vrot.lane.b32.xlu0 %v2369, 24
    %v2529 = vpop.permute.xlu0 %2528
    %2530 = vrot.lane.b32.xlu0 %v2370, 24
    %v2531 = vpop.permute.xlu0 %2530
    %2532 = vrot.lane.b32.xlu0 %v2371, 24
    %v2533 = vpop.permute.xlu0 %2532
    %2534 = vrot.lane.b32.xlu0 %v2372, 24
    %v2535 = vpop.permute.xlu0 %2534
    %2536 = vrot.lane.b32.xlu0 %v2373, 24
    %v2537 = vpop.permute.xlu0 %2536
    %2538 = vrot.lane.b32.xlu0 %v2374, 24
    %v2539 = vpop.permute.xlu0 %2538
    %2540 = vrot.lane.b32.xlu0 %v2375, 24
    %v2541 = vpop.permute.xlu0 %2540
    %2542 = vrot.lane.b32.xlu0 %v2376, 24
    %v2543 = vpop.permute.xlu0 %2542
    %2544 = vrot.lane.b32.xlu0 %v2377, 24
    %v2545 = vpop.permute.xlu0 %2544
    %2546 = vrot.lane.b32.xlu0 %v2378, 24
    %v2547 = vpop.permute.xlu0 %2546
    %2548 = vrot.lane.b32.xlu0 %v2379, 24
    %v2549 = vpop.permute.xlu0 %2548
    %2550 = vrot.lane.b32.xlu0 %v2380, 24
    %v2551 = vpop.permute.xlu0 %2550
    %2552 = vrot.lane.b32.xlu0 %v2381, 24
    %v2553 = vpop.permute.xlu0 %2552
    %2554 = vrot.lane.b32.xlu0 %v2382, 24
    %v2555 = vpop.permute.xlu0 %2554
    %2556 = vrot.lane.b32.xlu0 %v2383, 24
    %v2557 = vpop.permute.xlu0 %2556
    %2558 = vrot.lane.b32.xlu0 %v2384, 24
    %v2559 = vpop.permute.xlu0 %2558
    %2560 = vrot.lane.b32.xlu0 %v2385, 24
    %v2561 = vpop.permute.xlu0 %2560
    %2562 = vrot.lane.b32.xlu0 %v2386, 24
    %v2563 = vpop.permute.xlu0 %2562
    %2564 = vrot.lane.b32.xlu0 %v2387, 24
    %v2565 = vpop.permute.xlu0 %2564
    %2566 = vrot.lane.b32.xlu0 %v2388, 24
    %v2567 = vpop.permute.xlu0 %2566
    %2568 = vrot.lane.b32.xlu0 %v2389, 24
    %v2569 = vpop.permute.xlu0 %2568
    %2570 = vrot.lane.b32.xlu0 %v2390, 24
    %v2571 = vpop.permute.xlu0 %2570
    %2572 = vrot.lane.b32.xlu0 %v2391, 24
    %v2573 = vpop.permute.xlu0 %2572
    %2574 = vrot.lane.b32.xlu0 %v2392, 24
    %v2575 = vpop.permute.xlu0 %2574
    %2576 = vrot.lane.b32.xlu0 %v2393, 24
    %v2577 = vpop.permute.xlu0 %2576
    %2578 = vrot.lane.b32.xlu0 %v2394, 24
    %v2579 = vpop.permute.xlu0 %2578
    %2580 = vrot.lane.b32.xlu0 %v2395, 24
    %v2581 = vpop.permute.xlu0 %2580
    %2582 = vrot.lane.b32.xlu0 %v2396, 24
    %v2583 = vpop.permute.xlu0 %2582
    %2584 = vrot.lane.b32.xlu0 %v2397, 24
    %v2585 = vpop.permute.xlu0 %2584
    %2586 = vrot.lane.b32.xlu0 %v2398, 24
    %v2587 = vpop.permute.xlu0 %2586
    %2588 = vrot.lane.b32.xlu0 %v2399, 24
    %v2589 = vpop.permute.xlu0 %2588
    %2590 = vrot.lane.b32.xlu0 %v2400, 24
    %v2591 = vpop.permute.xlu0 %2590
    %2592 = vrot.lane.b32.xlu0 %v2401, 24
    %v2593 = vpop.permute.xlu0 %2592
    %vm2658 = vcmask 228544
    %2659 = vst.msk [vmem:[#allocation3] sm:$0xff] %vm2658, %v2467
    %2660 = vst.msk [vmem:[#allocation3 + $0x8] sm:$0xff] %vm2658, %v2469
    %2661 = vst.msk [vmem:[#allocation3 + $0x10] sm:$0xff] %vm2658, %v2471
    %2662 = vst.msk [vmem:[#allocation3 + $0x18] sm:$0xff] %vm2658, %v2473
    %2663 = vst.msk [vmem:[#allocation3 + $0x20] sm:$0xff] %vm2658, %v2475
    %2664 = vst.msk [vmem:[#allocation3 + $0x28] sm:$0xff] %vm2658, %v2477
    %2665 = vst.msk [vmem:[#allocation3 + $0x30] sm:$0xff] %vm2658, %v2479
    %2666 = vst.msk [vmem:[#allocation3 + $0x38] sm:$0xff] %vm2658, %v2481
    %2667 = vst.msk [vmem:[#allocation3 + $0x40] sm:$0xff] %vm2658, %v2483
    %2668 = vst.msk [vmem:[#allocation3 + $0x48] sm:$0xff] %vm2658, %v2485
    %2669 = vst.msk [vmem:[#allocation3 + $0x50] sm:$0xff] %vm2658, %v2487
    %2670 = vst.msk [vmem:[#allocation3 + $0x58] sm:$0xff] %vm2658, %v2489
    %2671 = vst.msk [vmem:[#allocation3 + $0x60] sm:$0xff] %vm2658, %v2491
    %2672 = vst.msk [vmem:[#allocation3 + $0x68] sm:$0xff] %vm2658, %v2493
    %2673 = vst.msk [vmem:[#allocation3 + $0x70] sm:$0xff] %vm2658, %v2495
    %2674 = vst.msk [vmem:[#allocation3 + $0x78] sm:$0xff] %vm2658, %v2497
    %2675 = vst.msk [vmem:[#allocation3 + $0x80] sm:$0xff] %vm2658, %v2499
    %2676 = vst.msk [vmem:[#allocation3 + $0x88] sm:$0xff] %vm2658, %v2501
    %2677 = vst.msk [vmem:[#allocation3 + $0x90] sm:$0xff] %vm2658, %v2503
    %2678 = vst.msk [vmem:[#allocation3 + $0x98] sm:$0xff] %vm2658, %v2505
    %2679 = vst.msk [vmem:[#allocation3 + $0xa0] sm:$0xff] %vm2658, %v2507
    %2680 = vst.msk [vmem:[#allocation3 + $0xa8] sm:$0xff] %vm2658, %v2509
    %2681 = vst.msk [vmem:[#allocation3 + $0xb0] sm:$0xff] %vm2658, %v2511
    %2682 = vst.msk [vmem:[#allocation3 + $0xb8] sm:$0xff] %vm2658, %v2513
    %2683 = vst.msk [vmem:[#allocation3 + $0xc0] sm:$0xff] %vm2658, %v2515
    %2684 = vst.msk [vmem:[#allocation3 + $0xc8] sm:$0xff] %vm2658, %v2517
    %2685 = vst.msk [vmem:[#allocation3 + $0xd0] sm:$0xff] %vm2658, %v2519
    %2686 = vst.msk [vmem:[#allocation3 + $0xd8] sm:$0xff] %vm2658, %v2521
    %2687 = vst.msk [vmem:[#allocation3 + $0xe0] sm:$0xff] %vm2658, %v2523
    %2688 = vst.msk [vmem:[#allocation3 + $0xe8] sm:$0xff] %vm2658, %v2525
    %2689 = vst.msk [vmem:[#allocation3 + $0xf0] sm:$0xff] %vm2658, %v2527
    %2690 = vst.msk [vmem:[#allocation3 + $0xf8] sm:$0xff] %vm2658, %v2529
    %2691 = vst.msk [vmem:[#allocation3 + $0x100] sm:$0xff] %vm2658, %v2531
    %2692 = vst.msk [vmem:[#allocation3 + $0x108] sm:$0xff] %vm2658, %v2533
    %2693 = vst.msk [vmem:[#allocation3 + $0x110] sm:$0xff] %vm2658, %v2535
    %2694 = vst.msk [vmem:[#allocation3 + $0x118] sm:$0xff] %vm2658, %v2537
    %2695 = vst.msk [vmem:[#allocation3 + $0x120] sm:$0xff] %vm2658, %v2539
    %2696 = vst.msk [vmem:[#allocation3 + $0x128] sm:$0xff] %vm2658, %v2541
    %2697 = vst.msk [vmem:[#allocation3 + $0x130] sm:$0xff] %vm2658, %v2543
    %2698 = vst.msk [vmem:[#allocation3 + $0x138] sm:$0xff] %vm2658, %v2545
    %2699 = vst.msk [vmem:[#allocation3 + $0x140] sm:$0xff] %vm2658, %v2547
    %2700 = vst.msk [vmem:[#allocation3 + $0x148] sm:$0xff] %vm2658, %v2549
    %2701 = vst.msk [vmem:[#allocation3 + $0x150] sm:$0xff] %vm2658, %v2551
    %2702 = vst.msk [vmem:[#allocation3 + $0x158] sm:$0xff] %vm2658, %v2553
    %2703 = vst.msk [vmem:[#allocation3 + $0x160] sm:$0xff] %vm2658, %v2555
    %2704 = vst.msk [vmem:[#allocation3 + $0x168] sm:$0xff] %vm2658, %v2557
    %2705 = vst.msk [vmem:[#allocation3 + $0x170] sm:$0xff] %vm2658, %v2559
    %2706 = vst.msk [vmem:[#allocation3 + $0x178] sm:$0xff] %vm2658, %v2561
    %2707 = vst.msk [vmem:[#allocation3 + $0x180] sm:$0xff] %vm2658, %v2563
    %2708 = vst.msk [vmem:[#allocation3 + $0x188] sm:$0xff] %vm2658, %v2565
    %2709 = vst.msk [vmem:[#allocation3 + $0x190] sm:$0xff] %vm2658, %v2567
    %2710 = vst.msk [vmem:[#allocation3 + $0x198] sm:$0xff] %vm2658, %v2569
    %2711 = vst.msk [vmem:[#allocation3 + $0x1a0] sm:$0xff] %vm2658, %v2571
    %2712 = vst.msk [vmem:[#allocation3 + $0x1a8] sm:$0xff] %vm2658, %v2573
    %2713 = vst.msk [vmem:[#allocation3 + $0x1b0] sm:$0xff] %vm2658, %v2575
    %2714 = vst.msk [vmem:[#allocation3 + $0x1b8] sm:$0xff] %vm2658, %v2577
    %2715 = vst.msk [vmem:[#allocation3 + $0x1c0] sm:$0xff] %vm2658, %v2579
    %2716 = vst.msk [vmem:[#allocation3 + $0x1c8] sm:$0xff] %vm2658, %v2581
    %2717 = vst.msk [vmem:[#allocation3 + $0x1d0] sm:$0xff] %vm2658, %v2583
    %2718 = vst.msk [vmem:[#allocation3 + $0x1d8] sm:$0xff] %vm2658, %v2585
    %2719 = vst.msk [vmem:[#allocation3 + $0x1e0] sm:$0xff] %vm2658, %v2587
    %2720 = vst.msk [vmem:[#allocation3 + $0x1e8] sm:$0xff] %vm2658, %v2589
    %2721 = vst.msk [vmem:[#allocation3 + $0x1f0] sm:$0xff] %vm2658, %v2591
    %2722 = vst.msk [vmem:[#allocation3 + $0x1f8] sm:$0xff] %vm2658, %v2593
    %v2723 = vld [vmem:[%s2337 + $0x1] sm:$0xff]
    %v2724 = vld [vmem:[%s2337 + $0x9] sm:$0xff]
    %v2725 = vld [vmem:[%s2337 + $0x19] sm:$0xff]
    %v2726 = vld [vmem:[%s2337 + $0x21] sm:$0xff]
    %v2727 = vld [vmem:[%s2337 + $0x31] sm:$0xff]
    %v2728 = vld [vmem:[%s2337 + $0x39] sm:$0xff]
    %v2729 = vld [vmem:[%s2337 + $0x49] sm:$0xff]
    %v2730 = vld [vmem:[%s2337 + $0x51] sm:$0xff]
    %v2731 = vld [vmem:[%s2337 + $0x61] sm:$0xff]
    %v2732 = vld [vmem:[%s2337 + $0x69] sm:$0xff]
    %v2733 = vld [vmem:[%s2337 + $0x79] sm:$0xff]
    %v2734 = vld [vmem:[%s2337 + $0x81] sm:$0xff]
    %v2735 = vld [vmem:[%s2337 + $0x91] sm:$0xff]
    %v2736 = vld [vmem:[%s2337 + $0x99] sm:$0xff]
    %v2737 = vld [vmem:[%s2337 + $0xa9] sm:$0xff]
    %v2738 = vld [vmem:[%s2337 + $0xb1] sm:$0xff]
    %v2739 = vld [vmem:[%s2337 + $0xc1] sm:$0xff]
    %v2740 = vld [vmem:[%s2337 + $0xc9] sm:$0xff]
    %v2741 = vld [vmem:[%s2337 + $0xd9] sm:$0xff]
    %v2742 = vld [vmem:[%s2337 + $0xe1] sm:$0xff]
    %v2743 = vld [vmem:[%s2337 + $0xf1] sm:$0xff]
    %v2744 = vld [vmem:[%s2337 + $0xf9] sm:$0xff]
    %v2745 = vld [vmem:[%s2337 + $0x109] sm:$0xff]
    %v2746 = vld [vmem:[%s2337 + $0x111] sm:$0xff]
    %v2747 = vld [vmem:[%s2337 + $0x121] sm:$0xff]
    %v2748 = vld [vmem:[%s2337 + $0x129] sm:$0xff]
    %v2749 = vld [vmem:[%s2337 + $0x139] sm:$0xff]
    %v2750 = vld [vmem:[%s2337 + $0x141] sm:$0xff]
    %v2751 = vld [vmem:[%s2337 + $0x151] sm:$0xff]
    %v2752 = vld [vmem:[%s2337 + $0x159] sm:$0xff]
    %v2753 = vld [vmem:[%s2337 + $0x169] sm:$0xff]
    %v2754 = vld [vmem:[%s2337 + $0x171] sm:$0xff]
    %v2755 = vld [vmem:[%s2337 + $0x1b1] sm:$0xff]
    %v2756 = vld [vmem:[%s2337 + $0x1b9] sm:$0xff]
    %v2757 = vld [vmem:[%s2337 + $0x1c9] sm:$0xff]
    %v2758 = vld [vmem:[%s2337 + $0x1d1] sm:$0xff]
    %v2759 = vld [vmem:[%s2337 + $0x1e1] sm:$0xff]
    %v2760 = vld [vmem:[%s2337 + $0x1e9] sm:$0xff]
    %v2761 = vld [vmem:[%s2337 + $0x1f9] sm:$0xff]
    %v2762 = vld [vmem:[%s2337 + $0x201] sm:$0xff]
    %v2763 = vld [vmem:[%s2337 + $0x211] sm:$0xff]
    %v2764 = vld [vmem:[%s2337 + $0x219] sm:$0xff]
    %v2765 = vld [vmem:[%s2337 + $0x229] sm:$0xff]
    %v2766 = vld [vmem:[%s2337 + $0x231] sm:$0xff]
    %v2767 = vld [vmem:[%s2337 + $0x241] sm:$0xff]
    %v2768 = vld [vmem:[%s2337 + $0x249] sm:$0xff]
    %v2769 = vld [vmem:[%s2337 + $0x259] sm:$0xff]
    %v2770 = vld [vmem:[%s2337 + $0x261] sm:$0xff]
    %v2771 = vld [vmem:[%s2337 + $0x271] sm:$0xff]
    %v2772 = vld [vmem:[%s2337 + $0x279] sm:$0xff]
    %v2773 = vld [vmem:[%s2337 + $0x289] sm:$0xff]
    %v2774 = vld [vmem:[%s2337 + $0x291] sm:$0xff]
    %v2775 = vld [vmem:[%s2337 + $0x2a1] sm:$0xff]
    %v2776 = vld [vmem:[%s2337 + $0x2a9] sm:$0xff]
    %v2777 = vld [vmem:[%s2337 + $0x2b9] sm:$0xff]
    %v2778 = vld [vmem:[%s2337 + $0x2c1] sm:$0xff]
    %v2779 = vld [vmem:[%s2337 + $0x2d1] sm:$0xff]
    %v2780 = vld [vmem:[%s2337 + $0x2d9] sm:$0xff]
    %v2781 = vld [vmem:[%s2337 + $0x2e9] sm:$0xff]
    %v2782 = vld [vmem:[%s2337 + $0x2f1] sm:$0xff]
    %v2783 = vld [vmem:[%s2337 + $0x301] sm:$0xff]
    %v2784 = vld [vmem:[%s2337 + $0x309] sm:$0xff]
    %v2785 = vld [vmem:[%s2337 + $0x319] sm:$0xff]
    %v2786 = vld [vmem:[%s2337 + $0x321] sm:$0xff]
    %2851 = vrot.lane.b32.xlu0 %v2723, 28
    %v2852 = vpop.permute.xlu0 %2851
    %2853 = vrot.lane.b32.xlu0 %v2724, 28
    %v2854 = vpop.permute.xlu0 %2853
    %2855 = vrot.lane.b32.xlu0 %v2725, 28
    %v2856 = vpop.permute.xlu0 %2855
    %2857 = vrot.lane.b32.xlu0 %v2726, 28
    %v2858 = vpop.permute.xlu0 %2857
    %2859 = vrot.lane.b32.xlu0 %v2727, 28
    %v2860 = vpop.permute.xlu0 %2859
    %2861 = vrot.lane.b32.xlu0 %v2728, 28
    %v2862 = vpop.permute.xlu0 %2861
    %2863 = vrot.lane.b32.xlu0 %v2729, 28
    %v2864 = vpop.permute.xlu0 %2863
    %2865 = vrot.lane.b32.xlu0 %v2730, 28
    %v2866 = vpop.permute.xlu0 %2865
    %2867 = vrot.lane.b32.xlu0 %v2731, 28
    %v2868 = vpop.permute.xlu0 %2867
    %2869 = vrot.lane.b32.xlu0 %v2732, 28
    %v2870 = vpop.permute.xlu0 %2869
    %2871 = vrot.lane.b32.xlu0 %v2733, 28
    %v2872 = vpop.permute.xlu0 %2871
    %2873 = vrot.lane.b32.xlu0 %v2734, 28
    %v2874 = vpop.permute.xlu0 %2873
    %2875 = vrot.lane.b32.xlu0 %v2735, 28
    %v2876 = vpop.permute.xlu0 %2875
    %2877 = vrot.lane.b32.xlu0 %v2736, 28
    %v2878 = vpop.permute.xlu0 %2877
    %2879 = vrot.lane.b32.xlu0 %v2737, 28
    %v2880 = vpop.permute.xlu0 %2879
    %2881 = vrot.lane.b32.xlu0 %v2738, 28
    %v2882 = vpop.permute.xlu0 %2881
    %2883 = vrot.lane.b32.xlu0 %v2739, 28
    %v2884 = vpop.permute.xlu0 %2883
    %2885 = vrot.lane.b32.xlu0 %v2740, 28
    %v2886 = vpop.permute.xlu0 %2885
    %2887 = vrot.lane.b32.xlu0 %v2741, 28
    %v2888 = vpop.permute.xlu0 %2887
    %2889 = vrot.lane.b32.xlu0 %v2742, 28
    %v2890 = vpop.permute.xlu0 %2889
    %2891 = vrot.lane.b32.xlu0 %v2743, 28
    %v2892 = vpop.permute.xlu0 %2891
    %2893 = vrot.lane.b32.xlu0 %v2744, 28
    %v2894 = vpop.permute.xlu0 %2893
    %2895 = vrot.lane.b32.xlu0 %v2745, 28
    %v2896 = vpop.permute.xlu0 %2895
    %2897 = vrot.lane.b32.xlu0 %v2746, 28
    %v2898 = vpop.permute.xlu0 %2897
    %2899 = vrot.lane.b32.xlu0 %v2747, 28
    %v2900 = vpop.permute.xlu0 %2899
    %2901 = vrot.lane.b32.xlu0 %v2748, 28
    %v2902 = vpop.permute.xlu0 %2901
    %2903 = vrot.lane.b32.xlu0 %v2749, 28
    %v2904 = vpop.permute.xlu0 %2903
    %2905 = vrot.lane.b32.xlu0 %v2750, 28
    %v2906 = vpop.permute.xlu0 %2905
    %2907 = vrot.lane.b32.xlu0 %v2751, 28
    %v2908 = vpop.permute.xlu0 %2907
    %2909 = vrot.lane.b32.xlu0 %v2752, 28
    %v2910 = vpop.permute.xlu0 %2909
    %2911 = vrot.lane.b32.xlu0 %v2753, 28
    %v2912 = vpop.permute.xlu0 %2911
    %2913 = vrot.lane.b32.xlu0 %v2754, 28
    %v2914 = vpop.permute.xlu0 %2913
    %2915 = vrot.lane.b32.xlu0 %v2755, 28
    %v2916 = vpop.permute.xlu0 %2915
    %2917 = vrot.lane.b32.xlu0 %v2756, 28
    %v2918 = vpop.permute.xlu0 %2917
    %2919 = vrot.lane.b32.xlu0 %v2757, 28
    %v2920 = vpop.permute.xlu0 %2919
    %2921 = vrot.lane.b32.xlu0 %v2758, 28
    %v2922 = vpop.permute.xlu0 %2921
    %2923 = vrot.lane.b32.xlu0 %v2759, 28
    %v2924 = vpop.permute.xlu0 %2923
    %2925 = vrot.lane.b32.xlu0 %v2760, 28
    %v2926 = vpop.permute.xlu0 %2925
    %2927 = vrot.lane.b32.xlu0 %v2761, 28
    %v2928 = vpop.permute.xlu0 %2927
    %2929 = vrot.lane.b32.xlu0 %v2762, 28
    %v2930 = vpop.permute.xlu0 %2929
    %2931 = vrot.lane.b32.xlu0 %v2763, 28
    %v2932 = vpop.permute.xlu0 %2931
    %2933 = vrot.lane.b32.xlu0 %v2764, 28
    %v2934 = vpop.permute.xlu0 %2933
    %2935 = vrot.lane.b32.xlu0 %v2765, 28
    %v2936 = vpop.permute.xlu0 %2935
    %2937 = vrot.lane.b32.xlu0 %v2766, 28
    %v2938 = vpop.permute.xlu0 %2937
    %2939 = vrot.lane.b32.xlu0 %v2767, 28
    %v2940 = vpop.permute.xlu0 %2939
    %2941 = vrot.lane.b32.xlu0 %v2768, 28
    %v2942 = vpop.permute.xlu0 %2941
    %2943 = vrot.lane.b32.xlu0 %v2769, 28
    %v2944 = vpop.permute.xlu0 %2943
    %2945 = vrot.lane.b32.xlu0 %v2770, 28
    %v2946 = vpop.permute.xlu0 %2945
    %2947 = vrot.lane.b32.xlu0 %v2771, 28
    %v2948 = vpop.permute.xlu0 %2947
    %2949 = vrot.lane.b32.xlu0 %v2772, 28
    %v2950 = vpop.permute.xlu0 %2949
    %2951 = vrot.lane.b32.xlu0 %v2773, 28
    %v2952 = vpop.permute.xlu0 %2951
    %2953 = vrot.lane.b32.xlu0 %v2774, 28
    %v2954 = vpop.permute.xlu0 %2953
    %2955 = vrot.lane.b32.xlu0 %v2775, 28
    %v2956 = vpop.permute.xlu0 %2955
    %2957 = vrot.lane.b32.xlu0 %v2776, 28
    %v2958 = vpop.permute.xlu0 %2957
    %2959 = vrot.lane.b32.xlu0 %v2777, 28
    %v2960 = vpop.permute.xlu0 %2959
    %2961 = vrot.lane.b32.xlu0 %v2778, 28
    %v2962 = vpop.permute.xlu0 %2961
    %2963 = vrot.lane.b32.xlu0 %v2779, 28
    %v2964 = vpop.permute.xlu0 %2963
    %2965 = vrot.lane.b32.xlu0 %v2780, 28
    %v2966 = vpop.permute.xlu0 %2965
    %2967 = vrot.lane.b32.xlu0 %v2781, 28
    %v2968 = vpop.permute.xlu0 %2967
    %2969 = vrot.lane.b32.xlu0 %v2782, 28
    %v2970 = vpop.permute.xlu0 %2969
    %2971 = vrot.lane.b32.xlu0 %v2783, 28
    %v2972 = vpop.permute.xlu0 %2971
    %2973 = vrot.lane.b32.xlu0 %v2784, 28
    %v2974 = vpop.permute.xlu0 %2973
    %2975 = vrot.lane.b32.xlu0 %v2785, 28
    %v2976 = vpop.permute.xlu0 %2975
    %2977 = vrot.lane.b32.xlu0 %v2786, 28
    %v2978 = vpop.permute.xlu0 %2977
    %vm3043 = vcmask 261344
    %3044 = vst.msk [vmem:[#allocation3] sm:$0xff] %vm3043, %v2852
    %3045 = vst.msk [vmem:[#allocation3 + $0x8] sm:$0xff] %vm3043, %v2854
    %3046 = vst.msk [vmem:[#allocation3 + $0x10] sm:$0xff] %vm3043, %v2856
    %3047 = vst.msk [vmem:[#allocation3 + $0x18] sm:$0xff] %vm3043, %v2858
    %3048 = vst.msk [vmem:[#allocation3 + $0x20] sm:$0xff] %vm3043, %v2860
    %3049 = vst.msk [vmem:[#allocation3 + $0x28] sm:$0xff] %vm3043, %v2862
    %3050 = vst.msk [vmem:[#allocation3 + $0x30] sm:$0xff] %vm3043, %v2864
    %3051 = vst.msk [vmem:[#allocation3 + $0x38] sm:$0xff] %vm3043, %v2866
    %3052 = vst.msk [vmem:[#allocation3 + $0x40] sm:$0xff] %vm3043, %v2868
    %3053 = vst.msk [vmem:[#allocation3 + $0x48] sm:$0xff] %vm3043, %v2870
    %3054 = vst.msk [vmem:[#allocation3 + $0x50] sm:$0xff] %vm3043, %v2872
    %3055 = vst.msk [vmem:[#allocation3 + $0x58] sm:$0xff] %vm3043, %v2874
    %3056 = vst.msk [vmem:[#allocation3 + $0x60] sm:$0xff] %vm3043, %v2876
    %3057 = vst.msk [vmem:[#allocation3 + $0x68] sm:$0xff] %vm3043, %v2878
    %3058 = vst.msk [vmem:[#allocation3 + $0x70] sm:$0xff] %vm3043, %v2880
    %3059 = vst.msk [vmem:[#allocation3 + $0x78] sm:$0xff] %vm3043, %v2882
    %3060 = vst.msk [vmem:[#allocation3 + $0x80] sm:$0xff] %vm3043, %v2884
    %3061 = vst.msk [vmem:[#allocation3 + $0x88] sm:$0xff] %vm3043, %v2886
    %3062 = vst.msk [vmem:[#allocation3 + $0x90] sm:$0xff] %vm3043, %v2888
    %3063 = vst.msk [vmem:[#allocation3 + $0x98] sm:$0xff] %vm3043, %v2890
    %3064 = vst.msk [vmem:[#allocation3 + $0xa0] sm:$0xff] %vm3043, %v2892
    %3065 = vst.msk [vmem:[#allocation3 + $0xa8] sm:$0xff] %vm3043, %v2894
    %3066 = vst.msk [vmem:[#allocation3 + $0xb0] sm:$0xff] %vm3043, %v2896
    %3067 = vst.msk [vmem:[#allocation3 + $0xb8] sm:$0xff] %vm3043, %v2898
    %3068 = vst.msk [vmem:[#allocation3 + $0xc0] sm:$0xff] %vm3043, %v2900
    %3069 = vst.msk [vmem:[#allocation3 + $0xc8] sm:$0xff] %vm3043, %v2902
    %3070 = vst.msk [vmem:[#allocation3 + $0xd0] sm:$0xff] %vm3043, %v2904
    %3071 = vst.msk [vmem:[#allocation3 + $0xd8] sm:$0xff] %vm3043, %v2906
    %3072 = vst.msk [vmem:[#allocation3 + $0xe0] sm:$0xff] %vm3043, %v2908
    %3073 = vst.msk [vmem:[#allocation3 + $0xe8] sm:$0xff] %vm3043, %v2910
    %3074 = vst.msk [vmem:[#allocation3 + $0xf0] sm:$0xff] %vm3043, %v2912
    %3075 = vst.msk [vmem:[#allocation3 + $0xf8] sm:$0xff] %vm3043, %v2914
    %3076 = vst.msk [vmem:[#allocation3 + $0x100] sm:$0xff] %vm3043, %v2916
    %3077 = vst.msk [vmem:[#allocation3 + $0x108] sm:$0xff] %vm3043, %v2918
    %3078 = vst.msk [vmem:[#allocation3 + $0x110] sm:$0xff] %vm3043, %v2920
    %3079 = vst.msk [vmem:[#allocation3 + $0x118] sm:$0xff] %vm3043, %v2922
    %3080 = vst.msk [vmem:[#allocation3 + $0x120] sm:$0xff] %vm3043, %v2924
    %3081 = vst.msk [vmem:[#allocation3 + $0x128] sm:$0xff] %vm3043, %v2926
    %3082 = vst.msk [vmem:[#allocation3 + $0x130] sm:$0xff] %vm3043, %v2928
    %3083 = vst.msk [vmem:[#allocation3 + $0x138] sm:$0xff] %vm3043, %v2930
    %3084 = vst.msk [vmem:[#allocation3 + $0x140] sm:$0xff] %vm3043, %v2932
    %3085 = vst.msk [vmem:[#allocation3 + $0x148] sm:$0xff] %vm3043, %v2934
    %3086 = vst.msk [vmem:[#allocation3 + $0x150] sm:$0xff] %vm3043, %v2936
    %3087 = vst.msk [vmem:[#allocation3 + $0x158] sm:$0xff] %vm3043, %v2938
    %3088 = vst.msk [vmem:[#allocation3 + $0x160] sm:$0xff] %vm3043, %v2940
    %3089 = vst.msk [vmem:[#allocation3 + $0x168] sm:$0xff] %vm3043, %v2942
    %3090 = vst.msk [vmem:[#allocation3 + $0x170] sm:$0xff] %vm3043, %v2944
    %3091 = vst.msk [vmem:[#allocation3 + $0x178] sm:$0xff] %vm3043, %v2946
    %3092 = vst.msk [vmem:[#allocation3 + $0x180] sm:$0xff] %vm3043, %v2948
    %3093 = vst.msk [vmem:[#allocation3 + $0x188] sm:$0xff] %vm3043, %v2950
    %3094 = vst.msk [vmem:[#allocation3 + $0x190] sm:$0xff] %vm3043, %v2952
    %3095 = vst.msk [vmem:[#allocation3 + $0x198] sm:$0xff] %vm3043, %v2954
    %3096 = vst.msk [vmem:[#allocation3 + $0x1a0] sm:$0xff] %vm3043, %v2956
    %3097 = vst.msk [vmem:[#allocation3 + $0x1a8] sm:$0xff] %vm3043, %v2958
    %3098 = vst.msk [vmem:[#allocation3 + $0x1b0] sm:$0xff] %vm3043, %v2960
    %3099 = vst.msk [vmem:[#allocation3 + $0x1b8] sm:$0xff] %vm3043, %v2962
    %3100 = vst.msk [vmem:[#allocation3 + $0x1c0] sm:$0xff] %vm3043, %v2964
    %3101 = vst.msk [vmem:[#allocation3 + $0x1c8] sm:$0xff] %vm3043, %v2966
    %3102 = vst.msk [vmem:[#allocation3 + $0x1d0] sm:$0xff] %vm3043, %v2968
    %3103 = vst.msk [vmem:[#allocation3 + $0x1d8] sm:$0xff] %vm3043, %v2970
    %3104 = vst.msk [vmem:[#allocation3 + $0x1e0] sm:$0xff] %vm3043, %v2972
    %3105 = vst.msk [vmem:[#allocation3 + $0x1e8] sm:$0xff] %vm3043, %v2974
    %3106 = vst.msk [vmem:[#allocation3 + $0x1f0] sm:$0xff] %vm3043, %v2976
    %3107 = vst.msk [vmem:[#allocation3 + $0x1f8] sm:$0xff] %vm3043, %v2978
    %v3108 = vld [vmem:[%s2337 + $0x2] sm:$0xff]
    %v3109 = vld [vmem:[%s2337 + $0xa] sm:$0xff]
    %v3110 = vld [vmem:[%s2337 + $0x1a] sm:$0xff]
    %v3111 = vld [vmem:[%s2337 + $0x22] sm:$0xff]
    %v3112 = vld [vmem:[%s2337 + $0x32] sm:$0xff]
    %v3113 = vld [vmem:[%s2337 + $0x3a] sm:$0xff]
    %v3114 = vld [vmem:[%s2337 + $0x4a] sm:$0xff]
    %v3115 = vld [vmem:[%s2337 + $0x52] sm:$0xff]
    %v3116 = vld [vmem:[%s2337 + $0x62] sm:$0xff]
    %v3117 = vld [vmem:[%s2337 + $0x6a] sm:$0xff]
    %v3118 = vld [vmem:[%s2337 + $0x7a] sm:$0xff]
    %v3119 = vld [vmem:[%s2337 + $0x82] sm:$0xff]
    %v3120 = vld [vmem:[%s2337 + $0x92] sm:$0xff]
    %v3121 = vld [vmem:[%s2337 + $0x9a] sm:$0xff]
    %v3122 = vld [vmem:[%s2337 + $0xaa] sm:$0xff]
    %v3123 = vld [vmem:[%s2337 + $0xb2] sm:$0xff]
    %v3124 = vld [vmem:[%s2337 + $0xc2] sm:$0xff]
    %v3125 = vld [vmem:[%s2337 + $0xca] sm:$0xff]
    %v3126 = vld [vmem:[%s2337 + $0xda] sm:$0xff]
    %v3127 = vld [vmem:[%s2337 + $0xe2] sm:$0xff]
    %v3128 = vld [vmem:[%s2337 + $0xf2] sm:$0xff]
    %v3129 = vld [vmem:[%s2337 + $0xfa] sm:$0xff]
    %v3130 = vld [vmem:[%s2337 + $0x10a] sm:$0xff]
    %v3131 = vld [vmem:[%s2337 + $0x112] sm:$0xff]
    %v3132 = vld [vmem:[%s2337 + $0x122] sm:$0xff]
    %v3133 = vld [vmem:[%s2337 + $0x12a] sm:$0xff]
    %v3134 = vld [vmem:[%s2337 + $0x13a] sm:$0xff]
    %v3135 = vld [vmem:[%s2337 + $0x142] sm:$0xff]
    %v3136 = vld [vmem:[%s2337 + $0x152] sm:$0xff]
    %v3137 = vld [vmem:[%s2337 + $0x15a] sm:$0xff]
    %v3138 = vld [vmem:[%s2337 + $0x16a] sm:$0xff]
    %v3139 = vld [vmem:[%s2337 + $0x172] sm:$0xff]
    %v3140 = vld [vmem:[%s2337 + $0x1b2] sm:$0xff]
    %v3141 = vld [vmem:[%s2337 + $0x1ba] sm:$0xff]
    %v3142 = vld [vmem:[%s2337 + $0x1ca] sm:$0xff]
    %v3143 = vld [vmem:[%s2337 + $0x1d2] sm:$0xff]
    %v3144 = vld [vmem:[%s2337 + $0x1e2] sm:$0xff]
    %v3145 = vld [vmem:[%s2337 + $0x1ea] sm:$0xff]
    %v3146 = vld [vmem:[%s2337 + $0x1fa] sm:$0xff]
    %v3147 = vld [vmem:[%s2337 + $0x202] sm:$0xff]
    %v3148 = vld [vmem:[%s2337 + $0x212] sm:$0xff]
    %v3149 = vld [vmem:[%s2337 + $0x21a] sm:$0xff]
    %v3150 = vld [vmem:[%s2337 + $0x22a] sm:$0xff]
    %v3151 = vld [vmem:[%s2337 + $0x232] sm:$0xff]
    %v3152 = vld [vmem:[%s2337 + $0x242] sm:$0xff]
    %v3153 = vld [vmem:[%s2337 + $0x24a] sm:$0xff]
    %v3154 = vld [vmem:[%s2337 + $0x25a] sm:$0xff]
    %v3155 = vld [vmem:[%s2337 + $0x262] sm:$0xff]
    %v3156 = vld [vmem:[%s2337 + $0x272] sm:$0xff]
    %v3157 = vld [vmem:[%s2337 + $0x27a] sm:$0xff]
    %v3158 = vld [vmem:[%s2337 + $0x28a] sm:$0xff]
    %v3159 = vld [vmem:[%s2337 + $0x292] sm:$0xff]
    %v3160 = vld [vmem:[%s2337 + $0x2a2] sm:$0xff]
    %v3161 = vld [vmem:[%s2337 + $0x2aa] sm:$0xff]
    %v3162 = vld [vmem:[%s2337 + $0x2ba] sm:$0xff]
    %v3163 = vld [vmem:[%s2337 + $0x2c2] sm:$0xff]
    %v3164 = vld [vmem:[%s2337 + $0x2d2] sm:$0xff]
    %v3165 = vld [vmem:[%s2337 + $0x2da] sm:$0xff]
    %v3166 = vld [vmem:[%s2337 + $0x2ea] sm:$0xff]
    %v3167 = vld [vmem:[%s2337 + $0x2f2] sm:$0xff]
    %v3168 = vld [vmem:[%s2337 + $0x302] sm:$0xff]
    %v3169 = vld [vmem:[%s2337 + $0x30a] sm:$0xff]
    %v3170 = vld [vmem:[%s2337 + $0x31a] sm:$0xff]
    %v3171 = vld [vmem:[%s2337 + $0x322] sm:$0xff]
    %3236 = vrot.lane.b32.xlu0 %v3108, 32
    %v3237 = vpop.permute.xlu0 %3236
    %3238 = vrot.lane.b32.xlu0 %v3109, 32
    %v3239 = vpop.permute.xlu0 %3238
    %3240 = vrot.lane.b32.xlu0 %v3110, 32
    %v3241 = vpop.permute.xlu0 %3240
    %3242 = vrot.lane.b32.xlu0 %v3111, 32
    %v3243 = vpop.permute.xlu0 %3242
    %3244 = vrot.lane.b32.xlu0 %v3112, 32
    %v3245 = vpop.permute.xlu0 %3244
    %3246 = vrot.lane.b32.xlu0 %v3113, 32
    %v3247 = vpop.permute.xlu0 %3246
    %3248 = vrot.lane.b32.xlu0 %v3114, 32
    %v3249 = vpop.permute.xlu0 %3248
    %3250 = vrot.lane.b32.xlu0 %v3115, 32
    %v3251 = vpop.permute.xlu0 %3250
    %3252 = vrot.lane.b32.xlu0 %v3116, 32
    %v3253 = vpop.permute.xlu0 %3252
    %3254 = vrot.lane.b32.xlu0 %v3117, 32
    %v3255 = vpop.permute.xlu0 %3254
    %3256 = vrot.lane.b32.xlu0 %v3118, 32
    %v3257 = vpop.permute.xlu0 %3256
    %3258 = vrot.lane.b32.xlu0 %v3119, 32
    %v3259 = vpop.permute.xlu0 %3258
    %3260 = vrot.lane.b32.xlu0 %v3120, 32
    %v3261 = vpop.permute.xlu0 %3260
    %3262 = vrot.lane.b32.xlu0 %v3121, 32
    %v3263 = vpop.permute.xlu0 %3262
    %3264 = vrot.lane.b32.xlu0 %v3122, 32
    %v3265 = vpop.permute.xlu0 %3264
    %3266 = vrot.lane.b32.xlu0 %v3123, 32
    %v3267 = vpop.permute.xlu0 %3266
    %3268 = vrot.lane.b32.xlu0 %v3124, 32
    %v3269 = vpop.permute.xlu0 %3268
    %3270 = vrot.lane.b32.xlu0 %v3125, 32
    %v3271 = vpop.permute.xlu0 %3270
    %3272 = vrot.lane.b32.xlu0 %v3126, 32
    %v3273 = vpop.permute.xlu0 %3272
    %3274 = vrot.lane.b32.xlu0 %v3127, 32
    %v3275 = vpop.permute.xlu0 %3274
    %3276 = vrot.lane.b32.xlu0 %v3128, 32
    %v3277 = vpop.permute.xlu0 %3276
    %3278 = vrot.lane.b32.xlu0 %v3129, 32
    %v3279 = vpop.permute.xlu0 %3278
    %3280 = vrot.lane.b32.xlu0 %v3130, 32
    %v3281 = vpop.permute.xlu0 %3280
    %3282 = vrot.lane.b32.xlu0 %v3131, 32
    %v3283 = vpop.permute.xlu0 %3282
    %3284 = vrot.lane.b32.xlu0 %v3132, 32
    %v3285 = vpop.permute.xlu0 %3284
    %3286 = vrot.lane.b32.xlu0 %v3133, 32
    %v3287 = vpop.permute.xlu0 %3286
    %3288 = vrot.lane.b32.xlu0 %v3134, 32
    %v3289 = vpop.permute.xlu0 %3288
    %3290 = vrot.lane.b32.xlu0 %v3135, 32
    %v3291 = vpop.permute.xlu0 %3290
    %3292 = vrot.lane.b32.xlu0 %v3136, 32
    %v3293 = vpop.permute.xlu0 %3292
    %3294 = vrot.lane.b32.xlu0 %v3137, 32
    %v3295 = vpop.permute.xlu0 %3294
    %3296 = vrot.lane.b32.xlu0 %v3138, 32
    %v3297 = vpop.permute.xlu0 %3296
    %3298 = vrot.lane.b32.xlu0 %v3139, 32
    %v3299 = vpop.permute.xlu0 %3298
    %3300 = vrot.lane.b32.xlu0 %v3140, 32
    %v3301 = vpop.permute.xlu0 %3300
    %3302 = vrot.lane.b32.xlu0 %v3141, 32
    %v3303 = vpop.permute.xlu0 %3302
    %3304 = vrot.lane.b32.xlu0 %v3142, 32
    %v3305 = vpop.permute.xlu0 %3304
    %3306 = vrot.lane.b32.xlu0 %v3143, 32
    %v3307 = vpop.permute.xlu0 %3306
    %3308 = vrot.lane.b32.xlu0 %v3144, 32
    %v3309 = vpop.permute.xlu0 %3308
    %3310 = vrot.lane.b32.xlu0 %v3145, 32
    %v3311 = vpop.permute.xlu0 %3310
    %3312 = vrot.lane.b32.xlu0 %v3146, 32
    %v3313 = vpop.permute.xlu0 %3312
    %3314 = vrot.lane.b32.xlu0 %v3147, 32
    %v3315 = vpop.permute.xlu0 %3314
    %3316 = vrot.lane.b32.xlu0 %v3148, 32
    %v3317 = vpop.permute.xlu0 %3316
    %3318 = vrot.lane.b32.xlu0 %v3149, 32
    %v3319 = vpop.permute.xlu0 %3318
    %3320 = vrot.lane.b32.xlu0 %v3150, 32
    %v3321 = vpop.permute.xlu0 %3320
    %3322 = vrot.lane.b32.xlu0 %v3151, 32
    %v3323 = vpop.permute.xlu0 %3322
    %3324 = vrot.lane.b32.xlu0 %v3152, 32
    %v3325 = vpop.permute.xlu0 %3324
    %3326 = vrot.lane.b32.xlu0 %v3153, 32
    %v3327 = vpop.permute.xlu0 %3326
    %3328 = vrot.lane.b32.xlu0 %v3154, 32
    %v3329 = vpop.permute.xlu0 %3328
    %3330 = vrot.lane.b32.xlu0 %v3155, 32
    %v3331 = vpop.permute.xlu0 %3330
    %3332 = vrot.lane.b32.xlu0 %v3156, 32
    %v3333 = vpop.permute.xlu0 %3332
    %3334 = vrot.lane.b32.xlu0 %v3157, 32
    %v3335 = vpop.permute.xlu0 %3334
    %3336 = vrot.lane.b32.xlu0 %v3158, 32
    %v3337 = vpop.permute.xlu0 %3336
    %3338 = vrot.lane.b32.xlu0 %v3159, 32
    %v3339 = vpop.permute.xlu0 %3338
    %3340 = vrot.lane.b32.xlu0 %v3160, 32
    %v3341 = vpop.permute.xlu0 %3340
    %3342 = vrot.lane.b32.xlu0 %v3161, 32
    %v3343 = vpop.permute.xlu0 %3342
    %3344 = vrot.lane.b32.xlu0 %v3162, 32
    %v3345 = vpop.permute.xlu0 %3344
    %3346 = vrot.lane.b32.xlu0 %v3163, 32
    %v3347 = vpop.permute.xlu0 %3346
    %3348 = vrot.lane.b32.xlu0 %v3164, 32
    %v3349 = vpop.permute.xlu0 %3348
    %3350 = vrot.lane.b32.xlu0 %v3165, 32
    %v3351 = vpop.permute.xlu0 %3350
    %3352 = vrot.lane.b32.xlu0 %v3166, 32
    %v3353 = vpop.permute.xlu0 %3352
    %3354 = vrot.lane.b32.xlu0 %v3167, 32
    %v3355 = vpop.permute.xlu0 %3354
    %3356 = vrot.lane.b32.xlu0 %v3168, 32
    %v3357 = vpop.permute.xlu0 %3356
    %3358 = vrot.lane.b32.xlu0 %v3169, 32
    %v3359 = vpop.permute.xlu0 %3358
    %3360 = vrot.lane.b32.xlu0 %v3170, 32
    %v3361 = vpop.permute.xlu0 %3360
    %3362 = vrot.lane.b32.xlu0 %v3171, 32
    %v3363 = vpop.permute.xlu0 %3362
    %vm3428 = vcmask 294144
    %3429 = vst.msk [vmem:[#allocation3] sm:$0xff] %vm3428, %v3237
    %3430 = vst.msk [vmem:[#allocation3 + $0x8] sm:$0xff] %vm3428, %v3239
    %3431 = vst.msk [vmem:[#allocation3 + $0x10] sm:$0xff] %vm3428, %v3241
    %3432 = vst.msk [vmem:[#allocation3 + $0x18] sm:$0xff] %vm3428, %v3243
    %3433 = vst.msk [vmem:[#allocation3 + $0x20] sm:$0xff] %vm3428, %v3245
    %3434 = vst.msk [vmem:[#allocation3 + $0x28] sm:$0xff] %vm3428, %v3247
    %3435 = vst.msk [vmem:[#allocation3 + $0x30] sm:$0xff] %vm3428, %v3249
    %3436 = vst.msk [vmem:[#allocation3 + $0x38] sm:$0xff] %vm3428, %v3251
    %3437 = vst.msk [vmem:[#allocation3 + $0x40] sm:$0xff] %vm3428, %v3253
    %3438 = vst.msk [vmem:[#allocation3 + $0x48] sm:$0xff] %vm3428, %v3255
    %3439 = vst.msk [vmem:[#allocation3 + $0x50] sm:$0xff] %vm3428, %v3257
    %3440 = vst.msk [vmem:[#allocation3 + $0x58] sm:$0xff] %vm3428, %v3259
    %3441 = vst.msk [vmem:[#allocation3 + $0x60] sm:$0xff] %vm3428, %v3261
    %3442 = vst.msk [vmem:[#allocation3 + $0x68] sm:$0xff] %vm3428, %v3263
    %3443 = vst.msk [vmem:[#allocation3 + $0x70] sm:$0xff] %vm3428, %v3265
    %3444 = vst.msk [vmem:[#allocation3 + $0x78] sm:$0xff] %vm3428, %v3267
    %3445 = vst.msk [vmem:[#allocation3 + $0x80] sm:$0xff] %vm3428, %v3269
    %3446 = vst.msk [vmem:[#allocation3 + $0x88] sm:$0xff] %vm3428, %v3271
    %3447 = vst.msk [vmem:[#allocation3 + $0x90] sm:$0xff] %vm3428, %v3273
    %3448 = vst.msk [vmem:[#allocation3 + $0x98] sm:$0xff] %vm3428, %v3275
    %3449 = vst.msk [vmem:[#allocation3 + $0xa0] sm:$0xff] %vm3428, %v3277
    %3450 = vst.msk [vmem:[#allocation3 + $0xa8] sm:$0xff] %vm3428, %v3279
    %3451 = vst.msk [vmem:[#allocation3 + $0xb0] sm:$0xff] %vm3428, %v3281
    %3452 = vst.msk [vmem:[#allocation3 + $0xb8] sm:$0xff] %vm3428, %v3283
    %3453 = vst.msk [vmem:[#allocation3 + $0xc0] sm:$0xff] %vm3428, %v3285
    %3454 = vst.msk [vmem:[#allocation3 + $0xc8] sm:$0xff] %vm3428, %v3287
    %3455 = vst.msk [vmem:[#allocation3 + $0xd0] sm:$0xff] %vm3428, %v3289
    %3456 = vst.msk [vmem:[#allocation3 + $0xd8] sm:$0xff] %vm3428, %v3291
    %3457 = vst.msk [vmem:[#allocation3 + $0xe0] sm:$0xff] %vm3428, %v3293
    %3458 = vst.msk [vmem:[#allocation3 + $0xe8] sm:$0xff] %vm3428, %v3295
    %3459 = vst.msk [vmem:[#allocation3 + $0xf0] sm:$0xff] %vm3428, %v3297
    %3460 = vst.msk [vmem:[#allocation3 + $0xf8] sm:$0xff] %vm3428, %v3299
    %3461 = vst.msk [vmem:[#allocation3 + $0x100] sm:$0xff] %vm3428, %v3301
    %3462 = vst.msk [vmem:[#allocation3 + $0x108] sm:$0xff] %vm3428, %v3303
    %3463 = vst.msk [vmem:[#allocation3 + $0x110] sm:$0xff] %vm3428, %v3305
    %3464 = vst.msk [vmem:[#allocation3 + $0x118] sm:$0xff] %vm3428, %v3307
    %3465 = vst.msk [vmem:[#allocation3 + $0x120] sm:$0xff] %vm3428, %v3309
    %3466 = vst.msk [vmem:[#allocation3 + $0x128] sm:$0xff] %vm3428, %v3311
    %3467 = vst.msk [vmem:[#allocation3 + $0x130] sm:$0xff] %vm3428, %v3313
    %3468 = vst.msk [vmem:[#allocation3 + $0x138] sm:$0xff] %vm3428, %v3315
    %3469 = vst.msk [vmem:[#allocation3 + $0x140] sm:$0xff] %vm3428, %v3317
    %3470 = vst.msk [vmem:[#allocation3 + $0x148] sm:$0xff] %vm3428, %v3319
    %3471 = vst.msk [vmem:[#allocation3 + $0x150] sm:$0xff] %vm3428, %v3321
    %3472 = vst.msk [vmem:[#allocation3 + $0x158] sm:$0xff] %vm3428, %v3323
    %3473 = vst.msk [vmem:[#allocation3 + $0x160] sm:$0xff] %vm3428, %v3325
    %3474 = vst.msk [vmem:[#allocation3 + $0x168] sm:$0xff] %vm3428, %v3327
    %3475 = vst.msk [vmem:[#allocation3 + $0x170] sm:$0xff] %vm3428, %v3329
    %3476 = vst.msk [vmem:[#allocation3 + $0x178] sm:$0xff] %vm3428, %v3331
    %3477 = vst.msk [vmem:[#allocation3 + $0x180] sm:$0xff] %vm3428, %v3333
    %3478 = vst.msk [vmem:[#allocation3 + $0x188] sm:$0xff] %vm3428, %v3335
    %3479 = vst.msk [vmem:[#allocation3 + $0x190] sm:$0xff] %vm3428, %v3337
    %3480 = vst.msk [vmem:[#allocation3 + $0x198] sm:$0xff] %vm3428, %v3339
    %3481 = vst.msk [vmem:[#allocation3 + $0x1a0] sm:$0xff] %vm3428, %v3341
    %3482 = vst.msk [vmem:[#allocation3 + $0x1a8] sm:$0xff] %vm3428, %v3343
    %3483 = vst.msk [vmem:[#allocation3 + $0x1b0] sm:$0xff] %vm3428, %v3345
    %3484 = vst.msk [vmem:[#allocation3 + $0x1b8] sm:$0xff] %vm3428, %v3347
    %3485 = vst.msk [vmem:[#allocation3 + $0x1c0] sm:$0xff] %vm3428, %v3349
    %3486 = vst.msk [vmem:[#allocation3 + $0x1c8] sm:$0xff] %vm3428, %v3351
    %3487 = vst.msk [vmem:[#allocation3 + $0x1d0] sm:$0xff] %vm3428, %v3353
    %3488 = vst.msk [vmem:[#allocation3 + $0x1d8] sm:$0xff] %vm3428, %v3355
    %3489 = vst.msk [vmem:[#allocation3 + $0x1e0] sm:$0xff] %vm3428, %v3357
    %3490 = vst.msk [vmem:[#allocation3 + $0x1e8] sm:$0xff] %vm3428, %v3359
    %3491 = vst.msk [vmem:[#allocation3 + $0x1f0] sm:$0xff] %vm3428, %v3361
    %3492 = vst.msk [vmem:[#allocation3 + $0x1f8] sm:$0xff] %vm3428, %v3363
    %v3493 = vld [vmem:[#allocation3] sm:$0xff]
    %v3494 = vld [vmem:[#allocation3 + $0x8] sm:$0xff]
    %v3495 = vld [vmem:[#allocation3 + $0x10] sm:$0xff]
    %v3496 = vld [vmem:[#allocation3 + $0x18] sm:$0xff]
    %v3497 = vld [vmem:[#allocation3 + $0x20] sm:$0xff]
    %v3498 = vld [vmem:[#allocation3 + $0x28] sm:$0xff]
    %v3499 = vld [vmem:[#allocation3 + $0x30] sm:$0xff]
    %v3500 = vld [vmem:[#allocation3 + $0x38] sm:$0xff]
    %v3501 = vld [vmem:[#allocation3 + $0x40] sm:$0xff]
    %v3502 = vld [vmem:[#allocation3 + $0x48] sm:$0xff]
    %v3503 = vld [vmem:[#allocation3 + $0x50] sm:$0xff]
    %v3504 = vld [vmem:[#allocation3 + $0x58] sm:$0xff]
    %v3505 = vld [vmem:[#allocation3 + $0x60] sm:$0xff]
    %v3506 = vld [vmem:[#allocation3 + $0x68] sm:$0xff]
    %v3507 = vld [vmem:[#allocation3 + $0x70] sm:$0xff]
    %v3508 = vld [vmem:[#allocation3 + $0x78] sm:$0xff]
    %v3509 = vld [vmem:[#allocation3 + $0x80] sm:$0xff]
    %v3510 = vld [vmem:[#allocation3 + $0x88] sm:$0xff]
    %v3511 = vld [vmem:[#allocation3 + $0x90] sm:$0xff]
    %v3512 = vld [vmem:[#allocation3 + $0x98] sm:$0xff]
    %v3513 = vld [vmem:[#allocation3 + $0xa0] sm:$0xff]
    %v3514 = vld [vmem:[#allocation3 + $0xa8] sm:$0xff]
    %v3515 = vld [vmem:[#allocation3 + $0xb0] sm:$0xff]
    %v3516 = vld [vmem:[#allocation3 + $0xb8] sm:$0xff]
    %v3517 = vld [vmem:[#allocation3 + $0xc0] sm:$0xff]
    %v3518 = vld [vmem:[#allocation3 + $0xc8] sm:$0xff]
    %v3519 = vld [vmem:[#allocation3 + $0xd0] sm:$0xff]
    %v3520 = vld [vmem:[#allocation3 + $0xd8] sm:$0xff]
    %v3521 = vld [vmem:[#allocation3 + $0xe0] sm:$0xff]
    %v3522 = vld [vmem:[#allocation3 + $0xe8] sm:$0xff]
    %v3523 = vld [vmem:[#allocation3 + $0xf0] sm:$0xff]
    %v3524 = vld [vmem:[#allocation3 + $0xf8] sm:$0xff]
    %v3525 = vld [vmem:[#allocation3 + $0x100] sm:$0xff]
    %v3526 = vld [vmem:[#allocation3 + $0x108] sm:$0xff]
    %v3527 = vld [vmem:[#allocation3 + $0x110] sm:$0xff]
    %v3528 = vld [vmem:[#allocation3 + $0x118] sm:$0xff]
    %v3529 = vld [vmem:[#allocation3 + $0x120] sm:$0xff]
    %v3530 = vld [vmem:[#allocation3 + $0x128] sm:$0xff]
    %v3531 = vld [vmem:[#allocation3 + $0x130] sm:$0xff]
    %v3532 = vld [vmem:[#allocation3 + $0x138] sm:$0xff]
    %v3533 = vld [vmem:[#allocation3 + $0x140] sm:$0xff]
    %v3534 = vld [vmem:[#allocation3 + $0x148] sm:$0xff]
    %v3535 = vld [vmem:[#allocation3 + $0x150] sm:$0xff]
    %v3536 = vld [vmem:[#allocation3 + $0x158] sm:$0xff]
    %v3537 = vld [vmem:[#allocation3 + $0x160] sm:$0xff]
    %v3538 = vld [vmem:[#allocation3 + $0x168] sm:$0xff]
    %v3539 = vld [vmem:[#allocation3 + $0x170] sm:$0xff]
    %v3540 = vld [vmem:[#allocation3 + $0x178] sm:$0xff]
    %v3541 = vld [vmem:[#allocation3 + $0x180] sm:$0xff]
    %v3542 = vld [vmem:[#allocation3 + $0x188] sm:$0xff]
    %v3543 = vld [vmem:[#allocation3 + $0x190] sm:$0xff]
    %v3544 = vld [vmem:[#allocation3 + $0x198] sm:$0xff]
    %v3545 = vld [vmem:[#allocation3 + $0x1a0] sm:$0xff]
    %v3546 = vld [vmem:[#allocation3 + $0x1a8] sm:$0xff]
    %v3547 = vld [vmem:[#allocation3 + $0x1b0] sm:$0xff]
    %v3548 = vld [vmem:[#allocation3 + $0x1b8] sm:$0xff]
    %v3549 = vld [vmem:[#allocation3 + $0x1c0] sm:$0xff]
    %v3550 = vld [vmem:[#allocation3 + $0x1c8] sm:$0xff]
    %v3551 = vld [vmem:[#allocation3 + $0x1d0] sm:$0xff]
    %v3552 = vld [vmem:[#allocation3 + $0x1d8] sm:$0xff]
    %v3553 = vld [vmem:[#allocation3 + $0x1e0] sm:$0xff]
    %v3554 = vld [vmem:[#allocation3 + $0x1e8] sm:$0xff]
    %v3555 = vld [vmem:[#allocation3 + $0x1f0] sm:$0xff]
    %v3556 = vld [vmem:[#allocation3 + $0x1f8] sm:$0xff]
    %v3557 = vld [vmem:[%s1] sm:$0xff]
    %v3558 = vld [vmem:[%s1 + $0x8] sm:$0xff]
    %v3559 = vld [vmem:[%s1 + $0x10] sm:$0xff]
    %v3560 = vld [vmem:[%s1 + $0x18] sm:$0xff]
    %v3561 = vld [vmem:[%s1 + $0x20] sm:$0xf]
    %v3562 = vld [vmem:[%s2] sm:$0x1]
    %v3564 = vlaneseq
    %v3565 = vshrl.u32 %v3564, 7
    %v3566 = vsub.s32 0, %v3565
    %v3567 = vrot.slane %v3562, %v3566
    %vm3569 = vcmask 293888
    %v3571 = vsel %vm3569, %v3493, 0
    %v3574 = vsel %vm3569, %v3494, 0
    %v3577 = vsel %vm3569, %v3495, 0
    %v3580 = vsel %vm3569, %v3496, 0
    %v3583 = vsel %vm3569, %v3497, 0
    %v3586 = vsel %vm3569, %v3498, 0
    %v3589 = vsel %vm3569, %v3499, 0
    %v3592 = vsel %vm3569, %v3500, 0
    %v3595 = vsel %vm3569, %v3501, 0
    %v3598 = vsel %vm3569, %v3502, 0
    %v3601 = vsel %vm3569, %v3503, 0
    %v3604 = vsel %vm3569, %v3504, 0
    %v3607 = vsel %vm3569, %v3505, 0
    %v3610 = vsel %vm3569, %v3506, 0
    %v3613 = vsel %vm3569, %v3507, 0
    %v3616 = vsel %vm3569, %v3508, 0
    %v3619 = vsel %vm3569, %v3509, 0
    %v3622 = vsel %vm3569, %v3510, 0
    %v3625 = vsel %vm3569, %v3511, 0
    %v3628 = vsel %vm3569, %v3512, 0
    %v3631 = vsel %vm3569, %v3513, 0
    %v3634 = vsel %vm3569, %v3514, 0
    %v3637 = vsel %vm3569, %v3515, 0
    %v3640 = vsel %vm3569, %v3516, 0
    %v3643 = vsel %vm3569, %v3517, 0
    %v3646 = vsel %vm3569, %v3518, 0
    %v3649 = vsel %vm3569, %v3519, 0
    %v3652 = vsel %vm3569, %v3520, 0
    %v3655 = vsel %vm3569, %v3521, 0
    %v3658 = vsel %vm3569, %v3522, 0
    %v3661 = vsel %vm3569, %v3523, 0
    %v3664 = vsel %vm3569, %v3524, 0
    %v3667 = vsel %vm3569, %v3525, 0
    %v3670 = vsel %vm3569, %v3526, 0
    %v3673 = vsel %vm3569, %v3527, 0
    %v3676 = vsel %vm3569, %v3528, 0
    %v3679 = vsel %vm3569, %v3529, 0
    %v3682 = vsel %vm3569, %v3530, 0
    %v3685 = vsel %vm3569, %v3531, 0
    %v3688 = vsel %vm3569, %v3532, 0
    %v3691 = vsel %vm3569, %v3533, 0
    %v3694 = vsel %vm3569, %v3534, 0
    %v3697 = vsel %vm3569, %v3535, 0
    %v3700 = vsel %vm3569, %v3536, 0
    %v3703 = vsel %vm3569, %v3537, 0
    %v3706 = vsel %vm3569, %v3538, 0
    %v3709 = vsel %vm3569, %v3539, 0
    %v3712 = vsel %vm3569, %v3540, 0
    %v3715 = vsel %vm3569, %v3541, 0
    %v3718 = vsel %vm3569, %v3542, 0
    %v3721 = vsel %vm3569, %v3543, 0
    %v3724 = vsel %vm3569, %v3544, 0
    %v3727 = vsel %vm3569, %v3545, 0
    %v3730 = vsel %vm3569, %v3546, 0
    %v3733 = vsel %vm3569, %v3547, 0
    %v3736 = vsel %vm3569, %v3548, 0
    %v3739 = vsel %vm3569, %v3549, 0
    %v3742 = vsel %vm3569, %v3550, 0
    %v3745 = vsel %vm3569, %v3551, 0
    %v3748 = vsel %vm3569, %v3552, 0
    %v3751 = vsel %vm3569, %v3553, 0
    %v3754 = vsel %vm3569, %v3554, 0
    %v3757 = vsel %vm3569, %v3555, 0
    %v3760 = vsel %vm3569, %v3556, 0
    %vm3762 = vcmask 1043456
    %v3764 = vsel %vm3762, %v3561, 0
    %3766 = vmatprep.subr.mxu0 0.0
    %3767 = vmatpush1.msra.mxu0 0.0
    %3768 = vmatprep.subr.mxu0 0.0
    %3769 = vmatpush1.msra.mxu0 0.0
    %3770 = vmatprep.subr.mxu0 0.0
    %3771 = vmatpush1.msra.mxu0 0.0
    %3772 = vmatprep.subr.mxu0 0.0
    %3773 = vmatpush1.msra.mxu0 0.0
    %3774 = vmatprep.subr.mxu0 0.0
    %3775 = vmatpush1.msra.mxu0 0.0
    %3776 = vmatprep.subr.mxu0 0.0
    %3777 = vmatpush1.msra.mxu0 0.0
    %3778 = vmatprep.subr.mxu0 0.0
    %3779 = vmatpush1.msra.mxu0 0.0
    %3780 = vmatprep.subr.mxu0 0.0
    %3781 = vmatpush1.msra.mxu0 0.0
    %3782 = vmatprep.subr.mxu0 0.0
    %3783 = vmatpush1.msra.mxu0 0.0
    %3784 = vmatprep.subr.mxu0 0.0
    %3785 = vmatpush1.msra.mxu0 0.0
    %3786 = vmatprep.subr.mxu0 0.0
    %3787 = vmatpush1.msra.mxu0 0.0
    %3788 = vmatprep.subr.mxu0 0.0
    %3789 = vmatpush1.msra.mxu0 %v3764
    %3790 = vmatprep.subr.mxu0 0.0
    %3791 = vmatpush1.msra.mxu0 %v3560
    %3792 = vmatprep.subr.mxu0 0.0
    %3793 = vmatpush1.msra.mxu0 %v3559
    %3794 = vmatprep.subr.mxu0 0.0
    %3795 = vmatpush1.msra.mxu0 %v3558
    %3796 = vmatprep.subr.mxu0 0.0
    %3797 = vmatpush1.msra.mxu0 %v3557
    %3798 = vmatprep.subr.mxu0 0.0
    %3799 = vmatpush2.msra.mxu0 0.0
    %3800 = vmatprep.subr.mxu0 0.0
    %3801 = vmatpush2.msra.mxu0 0.0
    %3802 = vmatprep.subr.mxu0 0.0
    %3803 = vmatpush2.msra.mxu0 0.0
    %3804 = vmatprep.subr.mxu0 0.0
    %3805 = vmatpush2.msra.mxu0 0.0
    %3806 = vmatprep.subr.mxu0 0.0
    %3807 = vmatpush2.msra.mxu0 0.0
    %3808 = vmatprep.subr.mxu0 0.0
    %3809 = vmatpush2.msra.mxu0 0.0
    %3810 = vmatprep.subr.mxu0 0.0
    %3811 = vmatpush2.msra.mxu0 0.0
    %3812 = vmatprep.subr.mxu0 0.0
    %3813 = vmatpush2.msra.mxu0 0.0
    %3814 = vmatprep.subr.mxu0 0.0
    %3815 = vmatpush2.msra.mxu0 0.0
    %3816 = vmatprep.subr.mxu0 0.0
    %3817 = vmatpush2.msra.mxu0 0.0
    %3818 = vmatprep.subr.mxu0 0.0
    %3819 = vmatpush2.msra.mxu0 0.0
    %3820 = vmatprep.subr.mxu0 0.0
    %3821 = vmatpush2.msra.mxu0 0.0
    %3822 = vmatprep.subr.mxu0 0.0
    %3823 = vmatpush2.msra.mxu0 0.0
    %3824 = vmatprep.subr.mxu0 0.0
    %3825 = vmatpush2.msra.mxu0 0.0
    %3826 = vmatprep.subr.mxu0 0.0
    %3827 = vmatpush2.msra.mxu0 0.0
    %3828 = vmatprep.subr.mxu0 0.0
    %3829 = vmatpush2.msra.mxu0 0.0
    %3830 = vmatprep.mubr.f32.mxu0 0.0
    %3831 = vmatmul.mubr.f32.gmra.mxu0 %v3571
    %v3832 = vpop.f32.mrf.mxu0
    %v3833 = vadd.f32 %v3567, %v3832
    %v3834 = vpop.f32.mrf.mxu0
    %3835 = vmatprep.mubr.f32.mxu0 0.0
    %3836 = vmatmul.mubr.f32.gmra.mxu0 %v3574
    %v3837 = vpop.f32.mrf.mxu0
    %v3838 = vadd.f32 %v3567, %v3837
    %v3839 = vpop.f32.mrf.mxu0
    %3840 = vmatprep.mubr.f32.mxu0 0.0
    %3841 = vmatmul.mubr.f32.gmra.mxu0 %v3577
    %v3842 = vpop.f32.mrf.mxu0
    %v3843 = vadd.f32 %v3567, %v3842
    %v3844 = vpop.f32.mrf.mxu0
    %3845 = vmatprep.mubr.f32.mxu0 0.0
    %3846 = vmatmul.mubr.f32.gmra.mxu0 %v3580
    %v3847 = vpop.f32.mrf.mxu0
    %v3848 = vadd.f32 %v3567, %v3847
    %v3849 = vpop.f32.mrf.mxu0
    %3850 = vmatprep.mubr.f32.mxu0 0.0
    %3851 = vmatmul.mubr.f32.gmra.mxu0 %v3583
    %v3852 = vpop.f32.mrf.mxu0
    %v3853 = vadd.f32 %v3567, %v3852
    %v3854 = vpop.f32.mrf.mxu0
    %3855 = vmatprep.mubr.f32.mxu0 0.0
    %3856 = vmatmul.mubr.f32.gmra.mxu0 %v3586
    %v3857 = vpop.f32.mrf.mxu0
    %v3858 = vadd.f32 %v3567, %v3857
    %v3859 = vpop.f32.mrf.mxu0
    %3860 = vmatprep.mubr.f32.mxu0 0.0
    %3861 = vmatmul.mubr.f32.gmra.mxu0 %v3589
    %v3862 = vpop.f32.mrf.mxu0
    %v3863 = vadd.f32 %v3567, %v3862
    %v3864 = vpop.f32.mrf.mxu0
    %3865 = vmatprep.mubr.f32.mxu0 0.0
    %3866 = vmatmul.mubr.f32.gmra.mxu0 %v3592
    %v3867 = vpop.f32.mrf.mxu0
    %v3868 = vadd.f32 %v3567, %v3867
    %v3869 = vpop.f32.mrf.mxu0
    %3870 = vmatprep.mubr.f32.mxu0 0.0
    %3871 = vmatmul.mubr.f32.gmra.mxu0 %v3595
    %v3872 = vpop.f32.mrf.mxu0
    %v3873 = vadd.f32 %v3567, %v3872
    %v3874 = vpop.f32.mrf.mxu0
    %3875 = vmatprep.mubr.f32.mxu0 0.0
    %3876 = vmatmul.mubr.f32.gmra.mxu0 %v3598
    %v3877 = vpop.f32.mrf.mxu0
    %v3878 = vadd.f32 %v3567, %v3877
    %v3879 = vpop.f32.mrf.mxu0
    %3880 = vmatprep.mubr.f32.mxu0 0.0
    %3881 = vmatmul.mubr.f32.gmra.mxu0 %v3601
    %v3882 = vpop.f32.mrf.mxu0
    %v3883 = vadd.f32 %v3567, %v3882
    %v3884 = vpop.f32.mrf.mxu0
    %3885 = vmatprep.mubr.f32.mxu0 0.0
    %3886 = vmatmul.mubr.f32.gmra.mxu0 %v3604
    %v3887 = vpop.f32.mrf.mxu0
    %v3888 = vadd.f32 %v3567, %v3887
    %v3889 = vpop.f32.mrf.mxu0
    %3890 = vmatprep.mubr.f32.mxu0 0.0
    %3891 = vmatmul.mubr.f32.gmra.mxu0 %v3607
    %v3892 = vpop.f32.mrf.mxu0
    %v3893 = vadd.f32 %v3567, %v3892
    %v3894 = vpop.f32.mrf.mxu0
    %3895 = vmatprep.mubr.f32.mxu0 0.0
    %3896 = vmatmul.mubr.f32.gmra.mxu0 %v3610
    %v3897 = vpop.f32.mrf.mxu0
    %v3898 = vadd.f32 %v3567, %v3897
    %v3899 = vpop.f32.mrf.mxu0
    %3900 = vmatprep.mubr.f32.mxu0 0.0
    %3901 = vmatmul.mubr.f32.gmra.mxu0 %v3613
    %v3902 = vpop.f32.mrf.mxu0
    %v3903 = vadd.f32 %v3567, %v3902
    %v3904 = vpop.f32.mrf.mxu0
    %3905 = vmatprep.mubr.f32.mxu0 0.0
    %3906 = vmatmul.mubr.f32.gmra.mxu0 %v3616
    %v3907 = vpop.f32.mrf.mxu0
    %v3908 = vadd.f32 %v3567, %v3907
    %v3909 = vpop.f32.mrf.mxu0
    %3910 = vmatprep.mubr.f32.mxu0 0.0
    %3911 = vmatmul.mubr.f32.gmra.mxu0 %v3619
    %v3912 = vpop.f32.mrf.mxu0
    %v3913 = vadd.f32 %v3567, %v3912
    %v3914 = vpop.f32.mrf.mxu0
    %3915 = vmatprep.mubr.f32.mxu0 0.0
    %3916 = vmatmul.mubr.f32.gmra.mxu0 %v3622
    %v3917 = vpop.f32.mrf.mxu0
    %v3918 = vadd.f32 %v3567, %v3917
    %v3919 = vpop.f32.mrf.mxu0
    %3920 = vmatprep.mubr.f32.mxu0 0.0
    %3921 = vmatmul.mubr.f32.gmra.mxu0 %v3625
    %v3922 = vpop.f32.mrf.mxu0
    %v3923 = vadd.f32 %v3567, %v3922
    %v3924 = vpop.f32.mrf.mxu0
    %3925 = vmatprep.mubr.f32.mxu0 0.0
    %3926 = vmatmul.mubr.f32.gmra.mxu0 %v3628
    %v3927 = vpop.f32.mrf.mxu0
    %v3928 = vadd.f32 %v3567, %v3927
    %v3929 = vpop.f32.mrf.mxu0
    %3930 = vmatprep.mubr.f32.mxu0 0.0
    %3931 = vmatmul.mubr.f32.gmra.mxu0 %v3631
    %v3932 = vpop.f32.mrf.mxu0
    %v3933 = vadd.f32 %v3567, %v3932
    %v3934 = vpop.f32.mrf.mxu0
    %3935 = vmatprep.mubr.f32.mxu0 0.0
    %3936 = vmatmul.mubr.f32.gmra.mxu0 %v3634
    %v3937 = vpop.f32.mrf.mxu0
    %v3938 = vadd.f32 %v3567, %v3937
    %v3939 = vpop.f32.mrf.mxu0
    %3940 = vmatprep.mubr.f32.mxu0 0.0
    %3941 = vmatmul.mubr.f32.gmra.mxu0 %v3637
    %v3942 = vpop.f32.mrf.mxu0
    %v3943 = vadd.f32 %v3567, %v3942
    %v3944 = vpop.f32.mrf.mxu0
    %3945 = vmatprep.mubr.f32.mxu0 0.0
    %3946 = vmatmul.mubr.f32.gmra.mxu0 %v3640
    %v3947 = vpop.f32.mrf.mxu0
    %v3948 = vadd.f32 %v3567, %v3947
    %v3949 = vpop.f32.mrf.mxu0
    %3950 = vmatprep.mubr.f32.mxu0 0.0
    %3951 = vmatmul.mubr.f32.gmra.mxu0 %v3643
    %v3952 = vpop.f32.mrf.mxu0
    %v3953 = vadd.f32 %v3567, %v3952
    %v3954 = vpop.f32.mrf.mxu0
    %3955 = vmatprep.mubr.f32.mxu0 0.0
    %3956 = vmatmul.mubr.f32.gmra.mxu0 %v3646
    %v3957 = vpop.f32.mrf.mxu0
    %v3958 = vadd.f32 %v3567, %v3957
    %v3959 = vpop.f32.mrf.mxu0
    %3960 = vmatprep.mubr.f32.mxu0 0.0
    %3961 = vmatmul.mubr.f32.gmra.mxu0 %v3649
    %v3962 = vpop.f32.mrf.mxu0
    %v3963 = vadd.f32 %v3567, %v3962
    %v3964 = vpop.f32.mrf.mxu0
    %3965 = vmatprep.mubr.f32.mxu0 0.0
    %3966 = vmatmul.mubr.f32.gmra.mxu0 %v3652
    %v3967 = vpop.f32.mrf.mxu0
    %v3968 = vadd.f32 %v3567, %v3967
    %v3969 = vpop.f32.mrf.mxu0
    %3970 = vmatprep.mubr.f32.mxu0 0.0
    %3971 = vmatmul.mubr.f32.gmra.mxu0 %v3655
    %v3972 = vpop.f32.mrf.mxu0
    %v3973 = vadd.f32 %v3567, %v3972
    %v3974 = vpop.f32.mrf.mxu0
    %3975 = vmatprep.mubr.f32.mxu0 0.0
    %3976 = vmatmul.mubr.f32.gmra.mxu0 %v3658
    %v3977 = vpop.f32.mrf.mxu0
    %v3978 = vadd.f32 %v3567, %v3977
    %v3979 = vpop.f32.mrf.mxu0
    %3980 = vmatprep.mubr.f32.mxu0 0.0
    %3981 = vmatmul.mubr.f32.gmra.mxu0 %v3661
    %v3982 = vpop.f32.mrf.mxu0
    %v3983 = vadd.f32 %v3567, %v3982
    %v3984 = vpop.f32.mrf.mxu0
    %3985 = vmatprep.mubr.f32.mxu0 0.0
    %3986 = vmatmul.mubr.f32.gmra.mxu0 %v3664
    %v3987 = vpop.f32.mrf.mxu0
    %v3988 = vadd.f32 %v3567, %v3987
    %v3989 = vpop.f32.mrf.mxu0
    %3990 = vmatprep.mubr.f32.mxu0 0.0
    %3991 = vmatmul.mubr.f32.gmra.mxu0 %v3667
    %v3992 = vpop.f32.mrf.mxu0
    %v3993 = vadd.f32 %v3567, %v3992
    %v3994 = vpop.f32.mrf.mxu0
    %3995 = vmatprep.mubr.f32.mxu0 0.0
    %3996 = vmatmul.mubr.f32.gmra.mxu0 %v3670
    %v3997 = vpop.f32.mrf.mxu0
    %v3998 = vadd.f32 %v3567, %v3997
    %v3999 = vpop.f32.mrf.mxu0
    %4000 = vmatprep.mubr.f32.mxu0 0.0
    %4001 = vmatmul.mubr.f32.gmra.mxu0 %v3673
    %v4002 = vpop.f32.mrf.mxu0
    %v4003 = vadd.f32 %v3567, %v4002
    %v4004 = vpop.f32.mrf.mxu0
    %4005 = vmatprep.mubr.f32.mxu0 0.0
    %4006 = vmatmul.mubr.f32.gmra.mxu0 %v3676
    %v4007 = vpop.f32.mrf.mxu0
    %v4008 = vadd.f32 %v3567, %v4007
    %v4009 = vpop.f32.mrf.mxu0
    %4010 = vmatprep.mubr.f32.mxu0 0.0
    %4011 = vmatmul.mubr.f32.gmra.mxu0 %v3679
    %v4012 = vpop.f32.mrf.mxu0
    %v4013 = vadd.f32 %v3567, %v4012
    %v4014 = vpop.f32.mrf.mxu0
    %4015 = vmatprep.mubr.f32.mxu0 0.0
    %4016 = vmatmul.mubr.f32.gmra.mxu0 %v3682
    %v4017 = vpop.f32.mrf.mxu0
    %v4018 = vadd.f32 %v3567, %v4017
    %v4019 = vpop.f32.mrf.mxu0
    %4020 = vmatprep.mubr.f32.mxu0 0.0
    %4021 = vmatmul.mubr.f32.gmra.mxu0 %v3685
    %v4022 = vpop.f32.mrf.mxu0
    %v4023 = vadd.f32 %v3567, %v4022
    %v4024 = vpop.f32.mrf.mxu0
    %4025 = vmatprep.mubr.f32.mxu0 0.0
    %4026 = vmatmul.mubr.f32.gmra.mxu0 %v3688
    %v4027 = vpop.f32.mrf.mxu0
    %v4028 = vadd.f32 %v3567, %v4027
    %v4029 = vpop.f32.mrf.mxu0
    %4030 = vmatprep.mubr.f32.mxu0 0.0
    %4031 = vmatmul.mubr.f32.gmra.mxu0 %v3691
    %v4032 = vpop.f32.mrf.mxu0
    %v4033 = vadd.f32 %v3567, %v4032
    %v4034 = vpop.f32.mrf.mxu0
    %4035 = vmatprep.mubr.f32.mxu0 0.0
    %4036 = vmatmul.mubr.f32.gmra.mxu0 %v3694
    %v4037 = vpop.f32.mrf.mxu0
    %v4038 = vadd.f32 %v3567, %v4037
    %v4039 = vpop.f32.mrf.mxu0
    %4040 = vmatprep.mubr.f32.mxu0 0.0
    %4041 = vmatmul.mubr.f32.gmra.mxu0 %v3697
    %v4042 = vpop.f32.mrf.mxu0
    %v4043 = vadd.f32 %v3567, %v4042
    %v4044 = vpop.f32.mrf.mxu0
    %4045 = vmatprep.mubr.f32.mxu0 0.0
    %4046 = vmatmul.mubr.f32.gmra.mxu0 %v3700
    %v4047 = vpop.f32.mrf.mxu0
    %v4048 = vadd.f32 %v3567, %v4047
    %v4049 = vpop.f32.mrf.mxu0
    %4050 = vmatprep.mubr.f32.mxu0 0.0
    %4051 = vmatmul.mubr.f32.gmra.mxu0 %v3703
    %v4052 = vpop.f32.mrf.mxu0
    %v4053 = vadd.f32 %v3567, %v4052
    %v4054 = vpop.f32.mrf.mxu0
    %4055 = vmatprep.mubr.f32.mxu0 0.0
    %4056 = vmatmul.mubr.f32.gmra.mxu0 %v3706
    %v4057 = vpop.f32.mrf.mxu0
    %v4058 = vadd.f32 %v3567, %v4057
    %v4059 = vpop.f32.mrf.mxu0
    %4060 = vmatprep.mubr.f32.mxu0 0.0
    %4061 = vmatmul.mubr.f32.gmra.mxu0 %v3709
    %v4062 = vpop.f32.mrf.mxu0
    %v4063 = vadd.f32 %v3567, %v4062
    %v4064 = vpop.f32.mrf.mxu0
    %4065 = vmatprep.mubr.f32.mxu0 0.0
    %4066 = vmatmul.mubr.f32.gmra.mxu0 %v3712
    %v4067 = vpop.f32.mrf.mxu0
    %v4068 = vadd.f32 %v3567, %v4067
    %v4069 = vpop.f32.mrf.mxu0
    %4070 = vmatprep.mubr.f32.mxu0 0.0
    %4071 = vmatmul.mubr.f32.gmra.mxu0 %v3715
    %v4072 = vpop.f32.mrf.mxu0
    %v4073 = vadd.f32 %v3567, %v4072
    %v4074 = vpop.f32.mrf.mxu0
    %4075 = vmatprep.mubr.f32.mxu0 0.0
    %4076 = vmatmul.mubr.f32.gmra.mxu0 %v3718
    %v4077 = vpop.f32.mrf.mxu0
    %v4078 = vadd.f32 %v3567, %v4077
    %v4079 = vpop.f32.mrf.mxu0
    %4080 = vmatprep.mubr.f32.mxu0 0.0
    %4081 = vmatmul.mubr.f32.gmra.mxu0 %v3721
    %v4082 = vpop.f32.mrf.mxu0
    %v4083 = vadd.f32 %v3567, %v4082
    %v4084 = vpop.f32.mrf.mxu0
    %4085 = vmatprep.mubr.f32.mxu0 0.0
    %4086 = vmatmul.mubr.f32.gmra.mxu0 %v3724
    %v4087 = vpop.f32.mrf.mxu0
    %v4088 = vadd.f32 %v3567, %v4087
    %v4089 = vpop.f32.mrf.mxu0
    %4090 = vmatprep.mubr.f32.mxu0 0.0
    %4091 = vmatmul.mubr.f32.gmra.mxu0 %v3727
    %v4092 = vpop.f32.mrf.mxu0
    %v4093 = vadd.f32 %v3567, %v4092
    %v4094 = vpop.f32.mrf.mxu0
    %4095 = vmatprep.mubr.f32.mxu0 0.0
    %4096 = vmatmul.mubr.f32.gmra.mxu0 %v3730
    %v4097 = vpop.f32.mrf.mxu0
    %v4098 = vadd.f32 %v3567, %v4097
    %v4099 = vpop.f32.mrf.mxu0
    %4100 = vmatprep.mubr.f32.mxu0 0.0
    %4101 = vmatmul.mubr.f32.gmra.mxu0 %v3733
    %v4102 = vpop.f32.mrf.mxu0
    %v4103 = vadd.f32 %v3567, %v4102
    %v4104 = vpop.f32.mrf.mxu0
    %4105 = vmatprep.mubr.f32.mxu0 0.0
    %4106 = vmatmul.mubr.f32.gmra.mxu0 %v3736
    %v4107 = vpop.f32.mrf.mxu0
    %v4108 = vadd.f32 %v3567, %v4107
    %v4109 = vpop.f32.mrf.mxu0
    %4110 = vmatprep.mubr.f32.mxu0 0.0
    %4111 = vmatmul.mubr.f32.gmra.mxu0 %v3739
    %v4112 = vpop.f32.mrf.mxu0
    %v4113 = vadd.f32 %v3567, %v4112
    %v4114 = vpop.f32.mrf.mxu0
    %4115 = vmatprep.mubr.f32.mxu0 0.0
    %4116 = vmatmul.mubr.f32.gmra.mxu0 %v3742
    %v4117 = vpop.f32.mrf.mxu0
    %v4118 = vadd.f32 %v3567, %v4117
    %v4119 = vpop.f32.mrf.mxu0
    %4120 = vmatprep.mubr.f32.mxu0 0.0
    %4121 = vmatmul.mubr.f32.gmra.mxu0 %v3745
    %v4122 = vpop.f32.mrf.mxu0
    %v4123 = vadd.f32 %v3567, %v4122
    %v4124 = vpop.f32.mrf.mxu0
    %4125 = vmatprep.mubr.f32.mxu0 0.0
    %4126 = vmatmul.mubr.f32.gmra.mxu0 %v3748
    %v4127 = vpop.f32.mrf.mxu0
    %v4128 = vadd.f32 %v3567, %v4127
    %v4129 = vpop.f32.mrf.mxu0
    %4130 = vmatprep.mubr.f32.mxu0 0.0
    %4131 = vmatmul.mubr.f32.gmra.mxu0 %v3751
    %v4132 = vpop.f32.mrf.mxu0
    %v4133 = vadd.f32 %v3567, %v4132
    %v4134 = vpop.f32.mrf.mxu0
    %4135 = vmatprep.mubr.f32.mxu0 0.0
    %4136 = vmatmul.mubr.f32.gmra.mxu0 %v3754
    %v4137 = vpop.f32.mrf.mxu0
    %v4138 = vadd.f32 %v3567, %v4137
    %v4139 = vpop.f32.mrf.mxu0
    %4140 = vmatprep.mubr.f32.mxu0 0.0
    %4141 = vmatmul.mubr.f32.gmra.mxu0 %v3757
    %v4142 = vpop.f32.mrf.mxu0
    %v4143 = vadd.f32 %v3567, %v4142
    %v4144 = vpop.f32.mrf.mxu0
    %4145 = vmatprep.mubr.f32.mxu0 0.0
    %4146 = vmatmul.mubr.f32.gmra.mxu0 %v3760
    %v4147 = vpop.f32.mrf.mxu0
    %v4148 = vadd.f32 %v3567, %v4147
    %v4149 = vpop.f32.mrf.mxu0
    %4150 = vdwg.mxu0
    %vm4151 = vcmask 64512
    %v4152 = vsel %vm4151, %v3833, 0.0
    %v4153 = vsel %vm4151, %v3838, 0.0
    %v4154 = vadd.f32 %v4152, %v4153
    %v4155 = vsel %vm4151, %v3843, 0.0
    %v4156 = vadd.f32 %v4154, %v4155
    %v4157 = vsel %vm4151, %v3848, 0.0
    %v4158 = vadd.f32 %v4156, %v4157
    %v4159 = vsel %vm4151, %v3853, 0.0
    %v4160 = vadd.f32 %v4158, %v4159
    %v4161 = vsel %vm4151, %v3858, 0.0
    %v4162 = vadd.f32 %v4160, %v4161
    %v4163 = vsel %vm4151, %v3863, 0.0
    %v4164 = vadd.f32 %v4162, %v4163
    %v4165 = vsel %vm4151, %v3868, 0.0
    %v4166 = vadd.f32 %v4164, %v4165
    %v4167 = vsel %vm4151, %v3873, 0.0
    %v4168 = vadd.f32 %v4166, %v4167
    %v4169 = vsel %vm4151, %v3878, 0.0
    %v4170 = vadd.f32 %v4168, %v4169
    %v4171 = vsel %vm4151, %v3883, 0.0
    %v4172 = vadd.f32 %v4170, %v4171
    %v4173 = vsel %vm4151, %v3888, 0.0
    %v4174 = vadd.f32 %v4172, %v4173
    %v4175 = vsel %vm4151, %v3893, 0.0
    %v4176 = vadd.f32 %v4174, %v4175
    %v4177 = vsel %vm4151, %v3898, 0.0
    %v4178 = vadd.f32 %v4176, %v4177
    %v4179 = vsel %vm4151, %v3903, 0.0
    %v4180 = vadd.f32 %v4178, %v4179
    %v4181 = vsel %vm4151, %v3908, 0.0
    %v4182 = vadd.f32 %v4180, %v4181
    %v4183 = vsel %vm4151, %v3913, 0.0
    %v4184 = vadd.f32 %v4182, %v4183
    %v4185 = vsel %vm4151, %v3918, 0.0
    %v4186 = vadd.f32 %v4184, %v4185
    %v4187 = vsel %vm4151, %v3923, 0.0
    %v4188 = vadd.f32 %v4186, %v4187
    %v4189 = vsel %vm4151, %v3928, 0.0
    %v4190 = vadd.f32 %v4188, %v4189
    %v4191 = vsel %vm4151, %v3933, 0.0
    %v4192 = vadd.f32 %v4190, %v4191
    %v4193 = vsel %vm4151, %v3938, 0.0
    %v4194 = vadd.f32 %v4192, %v4193
    %v4195 = vsel %vm4151, %v3943, 0.0
    %v4196 = vadd.f32 %v4194, %v4195
    %v4197 = vsel %vm4151, %v3948, 0.0
    %v4198 = vadd.f32 %v4196, %v4197
    %v4199 = vsel %vm4151, %v3953, 0.0
    %v4200 = vadd.f32 %v4198, %v4199
    %v4201 = vsel %vm4151, %v3958, 0.0
    %v4202 = vadd.f32 %v4200, %v4201
    %v4203 = vsel %vm4151, %v3963, 0.0
    %v4204 = vadd.f32 %v4202, %v4203
    %v4205 = vsel %vm4151, %v3968, 0.0
    %v4206 = vadd.f32 %v4204, %v4205
    %v4207 = vsel %vm4151, %v3973, 0.0
    %v4208 = vadd.f32 %v4206, %v4207
    %v4209 = vsel %vm4151, %v3978, 0.0
    %v4210 = vadd.f32 %v4208, %v4209
    %v4211 = vsel %vm4151, %v3983, 0.0
    %v4212 = vadd.f32 %v4210, %v4211
    %v4213 = vsel %vm4151, %v3988, 0.0
    %v4214 = vadd.f32 %v4212, %v4213
    %v4215 = vsel %vm4151, %v3993, 0.0
    %v4216 = vadd.f32 %v4214, %v4215
    %v4217 = vsel %vm4151, %v3998, 0.0
    %v4218 = vadd.f32 %v4216, %v4217
    %v4219 = vsel %vm4151, %v4003, 0.0
    %v4220 = vadd.f32 %v4218, %v4219
    %v4221 = vsel %vm4151, %v4008, 0.0
    %v4222 = vadd.f32 %v4220, %v4221
    %v4223 = vsel %vm4151, %v4013, 0.0
    %v4224 = vadd.f32 %v4222, %v4223
    %v4225 = vsel %vm4151, %v4018, 0.0
    %v4226 = vadd.f32 %v4224, %v4225
    %v4227 = vsel %vm4151, %v4023, 0.0
    %v4228 = vadd.f32 %v4226, %v4227
    %v4229 = vsel %vm4151, %v4028, 0.0
    %v4230 = vadd.f32 %v4228, %v4229
    %v4231 = vsel %vm4151, %v4033, 0.0
    %v4232 = vadd.f32 %v4230, %v4231
    %v4233 = vsel %vm4151, %v4038, 0.0
    %v4234 = vadd.f32 %v4232, %v4233
    %v4235 = vsel %vm4151, %v4043, 0.0
    %v4236 = vadd.f32 %v4234, %v4235
    %v4237 = vsel %vm4151, %v4048, 0.0
    %v4238 = vadd.f32 %v4236, %v4237
    %v4239 = vsel %vm4151, %v4053, 0.0
    %v4240 = vadd.f32 %v4238, %v4239
    %v4241 = vsel %vm4151, %v4058, 0.0
    %v4242 = vadd.f32 %v4240, %v4241
    %v4243 = vsel %vm4151, %v4063, 0.0
    %v4244 = vadd.f32 %v4242, %v4243
    %v4245 = vsel %vm4151, %v4068, 0.0
    %v4246 = vadd.f32 %v4244, %v4245
    %v4247 = vsel %vm4151, %v4073, 0.0
    %v4248 = vadd.f32 %v4246, %v4247
    %v4249 = vsel %vm4151, %v4078, 0.0
    %v4250 = vadd.f32 %v4248, %v4249
    %v4251 = vsel %vm4151, %v4083, 0.0
    %v4252 = vadd.f32 %v4250, %v4251
    %v4253 = vsel %vm4151, %v4088, 0.0
    %v4254 = vadd.f32 %v4252, %v4253
    %v4255 = vsel %vm4151, %v4093, 0.0
    %v4256 = vadd.f32 %v4254, %v4255
    %v4257 = vsel %vm4151, %v4098, 0.0
    %v4258 = vadd.f32 %v4256, %v4257
    %v4259 = vsel %vm4151, %v4103, 0.0
    %v4260 = vadd.f32 %v4258, %v4259
    %v4261 = vsel %vm4151, %v4108, 0.0
    %v4262 = vadd.f32 %v4260, %v4261
    %v4263 = vsel %vm4151, %v4113, 0.0
    %v4264 = vadd.f32 %v4262, %v4263
    %v4265 = vsel %vm4151, %v4118, 0.0
    %v4266 = vadd.f32 %v4264, %v4265
    %v4267 = vsel %vm4151, %v4123, 0.0
    %v4268 = vadd.f32 %v4266, %v4267
    %v4269 = vsel %vm4151, %v4128, 0.0
    %v4270 = vadd.f32 %v4268, %v4269
    %v4271 = vsel %vm4151, %v4133, 0.0
    %v4272 = vadd.f32 %v4270, %v4271
    %v4273 = vsel %vm4151, %v4138, 0.0
    %v4274 = vadd.f32 %v4272, %v4273
    %v4275 = vsel %vm4151, %v4143, 0.0
    %v4276 = vadd.f32 %v4274, %v4275
    %v4277 = vsel %vm4151, %v4148, 0.0
    %v4278 = vadd.f32 %v4276, %v4277
    %v4279 = vrot.slane %v4278, 4
    %v4280 = vadd.f32 %v4278, %v4279
    %v4281 = vrot.slane %v4280, 2
    %v4282 = vadd.f32 %v4280, %v4281
    %v4283 = vrot.slane %v4282, 1
    %v4284 = vadd.f32 %v4282, %v4283
    %v4285 = vmul.f32 %v4284, 0.001953125
    %v4286 = vsub.f32 %v3833, %v4285
    %v4287 = vsub.f32 %v3838, %v4285
    %v4288 = vsub.f32 %v3843, %v4285
    %v4289 = vsub.f32 %v3848, %v4285
    %v4290 = vsub.f32 %v3853, %v4285
    %v4291 = vsub.f32 %v3858, %v4285
    %v4292 = vsub.f32 %v3863, %v4285
    %v4293 = vsub.f32 %v3868, %v4285
    %v4294 = vsub.f32 %v3873, %v4285
    %v4295 = vsub.f32 %v3878, %v4285
    %v4296 = vsub.f32 %v3883, %v4285
    %v4297 = vsub.f32 %v3888, %v4285
    %v4298 = vsub.f32 %v3893, %v4285
    %v4299 = vsub.f32 %v3898, %v4285
    %v4300 = vsub.f32 %v3903, %v4285
    %v4301 = vsub.f32 %v3908, %v4285
    %v4302 = vsub.f32 %v3913, %v4285
    %v4303 = vsub.f32 %v3918, %v4285
    %v4304 = vsub.f32 %v3923, %v4285
    %v4305 = vsub.f32 %v3928, %v4285
    %v4306 = vsub.f32 %v3933, %v4285
    %v4307 = vsub.f32 %v3938, %v4285
    %v4308 = vsub.f32 %v3943, %v4285
    %v4309 = vsub.f32 %v3948, %v4285
    %v4310 = vsub.f32 %v3953, %v4285
    %v4311 = vsub.f32 %v3958, %v4285
    %v4312 = vsub.f32 %v3963, %v4285
    %v4313 = vsub.f32 %v3968, %v4285
    %v4314 = vsub.f32 %v3973, %v4285
    %v4315 = vsub.f32 %v3978, %v4285
    %v4316 = vsub.f32 %v3983, %v4285
    %v4317 = vsub.f32 %v3988, %v4285
    %v4318 = vsub.f32 %v3993, %v4285
    %v4319 = vsub.f32 %v3998, %v4285
    %v4320 = vsub.f32 %v4003, %v4285
    %v4321 = vsub.f32 %v4008, %v4285
    %v4322 = vsub.f32 %v4013, %v4285
    %v4323 = vsub.f32 %v4018, %v4285
    %v4324 = vsub.f32 %v4023, %v4285
    %v4325 = vsub.f32 %v4028, %v4285
    %v4326 = vsub.f32 %v4033, %v4285
    %v4327 = vsub.f32 %v4038, %v4285
    %v4328 = vsub.f32 %v4043, %v4285
    %v4329 = vsub.f32 %v4048, %v4285
    %v4330 = vsub.f32 %v4053, %v4285
    %v4331 = vsub.f32 %v4058, %v4285
    %v4332 = vsub.f32 %v4063, %v4285
    %v4333 = vsub.f32 %v4068, %v4285
    %v4334 = vsub.f32 %v4073, %v4285
    %v4335 = vsub.f32 %v4078, %v4285
    %v4336 = vsub.f32 %v4083, %v4285
    %v4337 = vsub.f32 %v4088, %v4285
    %v4338 = vsub.f32 %v4093, %v4285
    %v4339 = vsub.f32 %v4098, %v4285
    %v4340 = vsub.f32 %v4103, %v4285
    %v4341 = vsub.f32 %v4108, %v4285
    %v4342 = vsub.f32 %v4113, %v4285
    %v4343 = vsub.f32 %v4118, %v4285
    %v4344 = vsub.f32 %v4123, %v4285
    %v4345 = vsub.f32 %v4128, %v4285
    %v4346 = vsub.f32 %v4133, %v4285
    %v4347 = vsub.f32 %v4138, %v4285
    %v4348 = vsub.f32 %v4143, %v4285
    %v4349 = vsub.f32 %v4148, %v4285
    %v4350 = vmul.f32 %v4286, %v4286
    %v4351 = vmul.f32 %v4287, %v4287
    %v4352 = vmul.f32 %v4288, %v4288
    %v4353 = vmul.f32 %v4289, %v4289
    %v4354 = vmul.f32 %v4290, %v4290
    %v4355 = vmul.f32 %v4291, %v4291
    %v4356 = vmul.f32 %v4292, %v4292
    %v4357 = vmul.f32 %v4293, %v4293
    %v4358 = vmul.f32 %v4294, %v4294
    %v4359 = vmul.f32 %v4295, %v4295
    %v4360 = vmul.f32 %v4296, %v4296
    %v4361 = vmul.f32 %v4297, %v4297
    %v4362 = vmul.f32 %v4298, %v4298
    %v4363 = vmul.f32 %v4299, %v4299
    %v4364 = vmul.f32 %v4300, %v4300
    %v4365 = vmul.f32 %v4301, %v4301
    %v4366 = vmul.f32 %v4302, %v4302
    %v4367 = vmul.f32 %v4303, %v4303
    %v4368 = vmul.f32 %v4304, %v4304
    %v4369 = vmul.f32 %v4305, %v4305
    %v4370 = vmul.f32 %v4306, %v4306
    %v4371 = vmul.f32 %v4307, %v4307
    %v4372 = vmul.f32 %v4308, %v4308
    %v4373 = vmul.f32 %v4309, %v4309
    %v4374 = vmul.f32 %v4310, %v4310
    %v4375 = vmul.f32 %v4311, %v4311
    %v4376 = vmul.f32 %v4312, %v4312
    %v4377 = vmul.f32 %v4313, %v4313
    %v4378 = vmul.f32 %v4314, %v4314
    %v4379 = vmul.f32 %v4315, %v4315
    %v4380 = vmul.f32 %v4316, %v4316
    %v4381 = vmul.f32 %v4317, %v4317
    %v4382 = vmul.f32 %v4318, %v4318
    %v4383 = vmul.f32 %v4319, %v4319
    %v4384 = vmul.f32 %v4320, %v4320
    %v4385 = vmul.f32 %v4321, %v4321
    %v4386 = vmul.f32 %v4322, %v4322
    %v4387 = vmul.f32 %v4323, %v4323
    %v4388 = vmul.f32 %v4324, %v4324
    %v4389 = vmul.f32 %v4325, %v4325
    %v4390 = vmul.f32 %v4326, %v4326
    %v4391 = vmul.f32 %v4327, %v4327
    %v4392 = vmul.f32 %v4328, %v4328
    %v4393 = vmul.f32 %v4329, %v4329
    %v4394 = vmul.f32 %v4330, %v4330
    %v4395 = vmul.f32 %v4331, %v4331
    %v4396 = vmul.f32 %v4332, %v4332
    %v4397 = vmul.f32 %v4333, %v4333
    %v4398 = vmul.f32 %v4334, %v4334
    %v4399 = vmul.f32 %v4335, %v4335
    %v4400 = vmul.f32 %v4336, %v4336
    %v4401 = vmul.f32 %v4337, %v4337
    %v4402 = vmul.f32 %v4338, %v4338
    %v4403 = vmul.f32 %v4339, %v4339
    %v4404 = vmul.f32 %v4340, %v4340
    %v4405 = vmul.f32 %v4341, %v4341
    %v4406 = vmul.f32 %v4342, %v4342
    %v4407 = vmul.f32 %v4343, %v4343
    %v4408 = vmul.f32 %v4344, %v4344
    %v4409 = vmul.f32 %v4345, %v4345
    %v4410 = vmul.f32 %v4346, %v4346
    %v4411 = vmul.f32 %v4347, %v4347
    %v4412 = vmul.f32 %v4348, %v4348
    %v4413 = vmul.f32 %v4349, %v4349
    %v4414 = vsel %vm4151, %v4350, 0.0
    %v4415 = vsel %vm4151, %v4351, 0.0
    %v4416 = vadd.f32 %v4414, %v4415
    %v4417 = vsel %vm4151, %v4352, 0.0
    %v4418 = vadd.f32 %v4416, %v4417
    %v4419 = vsel %vm4151, %v4353, 0.0
    %v4420 = vadd.f32 %v4418, %v4419
    %v4421 = vsel %vm4151, %v4354, 0.0
    %v4422 = vadd.f32 %v4420, %v4421
    %v4423 = vsel %vm4151, %v4355, 0.0
    %v4424 = vadd.f32 %v4422, %v4423
    %v4425 = vsel %vm4151, %v4356, 0.0
    %v4426 = vadd.f32 %v4424, %v4425
    %v4427 = vsel %vm4151, %v4357, 0.0
    %v4428 = vadd.f32 %v4426, %v4427
    %v4429 = vsel %vm4151, %v4358, 0.0
    %v4430 = vadd.f32 %v4428, %v4429
    %v4431 = vsel %vm4151, %v4359, 0.0
    %v4432 = vadd.f32 %v4430, %v4431
    %v4433 = vsel %vm4151, %v4360, 0.0
    %v4434 = vadd.f32 %v4432, %v4433
    %v4435 = vsel %vm4151, %v4361, 0.0
    %v4436 = vadd.f32 %v4434, %v4435
    %v4437 = vsel %vm4151, %v4362, 0.0
    %v4438 = vadd.f32 %v4436, %v4437
    %v4439 = vsel %vm4151, %v4363, 0.0
    %v4440 = vadd.f32 %v4438, %v4439
    %v4441 = vsel %vm4151, %v4364, 0.0
    %v4442 = vadd.f32 %v4440, %v4441
    %v4443 = vsel %vm4151, %v4365, 0.0
    %v4444 = vadd.f32 %v4442, %v4443
    %v4445 = vsel %vm4151, %v4366, 0.0
    %v4446 = vadd.f32 %v4444, %v4445
    %v4447 = vsel %vm4151, %v4367, 0.0
    %v4448 = vadd.f32 %v4446, %v4447
    %v4449 = vsel %vm4151, %v4368, 0.0
    %v4450 = vadd.f32 %v4448, %v4449
    %v4451 = vsel %vm4151, %v4369, 0.0
    %v4452 = vadd.f32 %v4450, %v4451
    %v4453 = vsel %vm4151, %v4370, 0.0
    %v4454 = vadd.f32 %v4452, %v4453
    %v4455 = vsel %vm4151, %v4371, 0.0
    %v4456 = vadd.f32 %v4454, %v4455
    %v4457 = vsel %vm4151, %v4372, 0.0
    %v4458 = vadd.f32 %v4456, %v4457
    %v4459 = vsel %vm4151, %v4373, 0.0
    %v4460 = vadd.f32 %v4458, %v4459
    %v4461 = vsel %vm4151, %v4374, 0.0
    %v4462 = vadd.f32 %v4460, %v4461
    %v4463 = vsel %vm4151, %v4375, 0.0
    %v4464 = vadd.f32 %v4462, %v4463
    %v4465 = vsel %vm4151, %v4376, 0.0
    %v4466 = vadd.f32 %v4464, %v4465
    %v4467 = vsel %vm4151, %v4377, 0.0
    %v4468 = vadd.f32 %v4466, %v4467
    %v4469 = vsel %vm4151, %v4378, 0.0
    %v4470 = vadd.f32 %v4468, %v4469
    %v4471 = vsel %vm4151, %v4379, 0.0
    %v4472 = vadd.f32 %v4470, %v4471
    %v4473 = vsel %vm4151, %v4380, 0.0
    %v4474 = vadd.f32 %v4472, %v4473
    %v4475 = vsel %vm4151, %v4381, 0.0
    %v4476 = vadd.f32 %v4474, %v4475
    %v4477 = vsel %vm4151, %v4382, 0.0
    %v4478 = vadd.f32 %v4476, %v4477
    %v4479 = vsel %vm4151, %v4383, 0.0
    %v4480 = vadd.f32 %v4478, %v4479
    %v4481 = vsel %vm4151, %v4384, 0.0
    %v4482 = vadd.f32 %v4480, %v4481
    %v4483 = vsel %vm4151, %v4385, 0.0
    %v4484 = vadd.f32 %v4482, %v4483
    %v4485 = vsel %vm4151, %v4386, 0.0
    %v4486 = vadd.f32 %v4484, %v4485
    %v4487 = vsel %vm4151, %v4387, 0.0
    %v4488 = vadd.f32 %v4486, %v4487
    %v4489 = vsel %vm4151, %v4388, 0.0
    %v4490 = vadd.f32 %v4488, %v4489
    %v4491 = vsel %vm4151, %v4389, 0.0
    %v4492 = vadd.f32 %v4490, %v4491
    %v4493 = vsel %vm4151, %v4390, 0.0
    %v4494 = vadd.f32 %v4492, %v4493
    %v4495 = vsel %vm4151, %v4391, 0.0
    %v4496 = vadd.f32 %v4494, %v4495
    %v4497 = vsel %vm4151, %v4392, 0.0
    %v4498 = vadd.f32 %v4496, %v4497
    %v4499 = vsel %vm4151, %v4393, 0.0
    %v4500 = vadd.f32 %v4498, %v4499
    %v4501 = vsel %vm4151, %v4394, 0.0
    %v4502 = vadd.f32 %v4500, %v4501
    %v4503 = vsel %vm4151, %v4395, 0.0
    %v4504 = vadd.f32 %v4502, %v4503
    %v4505 = vsel %vm4151, %v4396, 0.0
    %v4506 = vadd.f32 %v4504, %v4505
    %v4507 = vsel %vm4151, %v4397, 0.0
    %v4508 = vadd.f32 %v4506, %v4507
    %v4509 = vsel %vm4151, %v4398, 0.0
    %v4510 = vadd.f32 %v4508, %v4509
    %v4511 = vsel %vm4151, %v4399, 0.0
    %v4512 = vadd.f32 %v4510, %v4511
    %v4513 = vsel %vm4151, %v4400, 0.0
    %v4514 = vadd.f32 %v4512, %v4513
    %v4515 = vsel %vm4151, %v4401, 0.0
    %v4516 = vadd.f32 %v4514, %v4515
    %v4517 = vsel %vm4151, %v4402, 0.0
    %v4518 = vadd.f32 %v4516, %v4517
    %v4519 = vsel %vm4151, %v4403, 0.0
    %v4520 = vadd.f32 %v4518, %v4519
    %v4521 = vsel %vm4151, %v4404, 0.0
    %v4522 = vadd.f32 %v4520, %v4521
    %v4523 = vsel %vm4151, %v4405, 0.0
    %v4524 = vadd.f32 %v4522, %v4523
    %v4525 = vsel %vm4151, %v4406, 0.0
    %v4526 = vadd.f32 %v4524, %v4525
    %v4527 = vsel %vm4151, %v4407, 0.0
    %v4528 = vadd.f32 %v4526, %v4527
    %v4529 = vsel %vm4151, %v4408, 0.0
    %v4530 = vadd.f32 %v4528, %v4529
    %v4531 = vsel %vm4151, %v4409, 0.0
    %v4532 = vadd.f32 %v4530, %v4531
    %v4533 = vsel %vm4151, %v4410, 0.0
    %v4534 = vadd.f32 %v4532, %v4533
    %v4535 = vsel %vm4151, %v4411, 0.0
    %v4536 = vadd.f32 %v4534, %v4535
    %v4537 = vsel %vm4151, %v4412, 0.0
    %v4538 = vadd.f32 %v4536, %v4537
    %v4539 = vsel %vm4151, %v4413, 0.0
    %v4540 = vadd.f32 %v4538, %v4539
    %v4541 = vrot.slane %v4540, 4
    %v4542 = vadd.f32 %v4540, %v4541
    %v4543 = vrot.slane %v4542, 2
    %v4544 = vadd.f32 %v4542, %v4543
    %v4545 = vrot.slane %v4544, 1
    %v4546 = vadd.f32 %v4544, %v4545
    %v4547 = vmul.f32 %v4546, 0.001953125
    %v4548 = vld [vmem:[%s3] sm:$0x1]
    %v4549 = vadd.f32 %v4547, 1e-05
    %v4550 = vrsqrt.pop %v4549
    %v4551 = vmul.f32 %v4548, %v4550
    %v4553 = vlaneseq
    %v4554 = vshrl.u32 %v4553, 7
    %v4555 = vsub.s32 0, %v4554
    %v4556 = vrot.slane %v4551, %v4555
    %v4558 = vmul.f32 %v4286, %v4556
    %v4559 = vmul.f32 %v4287, %v4556
    %v4560 = vmul.f32 %v4288, %v4556
    %v4561 = vmul.f32 %v4289, %v4556
    %v4562 = vmul.f32 %v4290, %v4556
    %v4563 = vmul.f32 %v4291, %v4556
    %v4564 = vmul.f32 %v4292, %v4556
    %v4565 = vmul.f32 %v4293, %v4556
    %v4566 = vmul.f32 %v4294, %v4556
    %v4567 = vmul.f32 %v4295, %v4556
    %v4568 = vmul.f32 %v4296, %v4556
    %v4569 = vmul.f32 %v4297, %v4556
    %v4570 = vmul.f32 %v4298, %v4556
    %v4571 = vmul.f32 %v4299, %v4556
    %v4572 = vmul.f32 %v4300, %v4556
    %v4573 = vmul.f32 %v4301, %v4556
    %v4574 = vmul.f32 %v4302, %v4556
    %v4575 = vmul.f32 %v4303, %v4556
    %v4576 = vmul.f32 %v4304, %v4556
    %v4577 = vmul.f32 %v4305, %v4556
    %v4578 = vmul.f32 %v4306, %v4556
    %v4579 = vmul.f32 %v4307, %v4556
    %v4580 = vmul.f32 %v4308, %v4556
    %v4581 = vmul.f32 %v4309, %v4556
    %v4582 = vmul.f32 %v4310, %v4556
    %v4583 = vmul.f32 %v4311, %v4556
    %v4584 = vmul.f32 %v4312, %v4556
    %v4585 = vmul.f32 %v4313, %v4556
    %v4586 = vmul.f32 %v4314, %v4556
    %v4587 = vmul.f32 %v4315, %v4556
    %v4588 = vmul.f32 %v4316, %v4556
    %v4589 = vmul.f32 %v4317, %v4556
    %v4590 = vmul.f32 %v4318, %v4556
    %v4591 = vmul.f32 %v4319, %v4556
    %v4592 = vmul.f32 %v4320, %v4556
    %v4593 = vmul.f32 %v4321, %v4556
    %v4594 = vmul.f32 %v4322, %v4556
    %v4595 = vmul.f32 %v4323, %v4556
    %v4596 = vmul.f32 %v4324, %v4556
    %v4597 = vmul.f32 %v4325, %v4556
    %v4598 = vmul.f32 %v4326, %v4556
    %v4599 = vmul.f32 %v4327, %v4556
    %v4600 = vmul.f32 %v4328, %v4556
    %v4601 = vmul.f32 %v4329, %v4556
    %v4602 = vmul.f32 %v4330, %v4556
    %v4603 = vmul.f32 %v4331, %v4556
    %v4604 = vmul.f32 %v4332, %v4556
    %v4605 = vmul.f32 %v4333, %v4556
    %v4606 = vmul.f32 %v4334, %v4556
    %v4607 = vmul.f32 %v4335, %v4556
    %v4608 = vmul.f32 %v4336, %v4556
    %v4609 = vmul.f32 %v4337, %v4556
    %v4610 = vmul.f32 %v4338, %v4556
    %v4611 = vmul.f32 %v4339, %v4556
    %v4612 = vmul.f32 %v4340, %v4556
    %v4613 = vmul.f32 %v4341, %v4556
    %v4614 = vmul.f32 %v4342, %v4556
    %v4615 = vmul.f32 %v4343, %v4556
    %v4616 = vmul.f32 %v4344, %v4556
    %v4617 = vmul.f32 %v4345, %v4556
    %v4618 = vmul.f32 %v4346, %v4556
    %v4619 = vmul.f32 %v4347, %v4556
    %v4620 = vmul.f32 %v4348, %v4556
    %v4621 = vmul.f32 %v4349, %v4556
    %v4622 = vld [vmem:[%s4] sm:$0x1]
    %v4624 = vlaneseq
    %v4625 = vshrl.u32 %v4624, 7
    %v4626 = vsub.s32 0, %v4625
    %v4627 = vrot.slane %v4622, %v4626
    %v4629 = vadd.f32 %v4558, %v4627
    %v4630 = vadd.f32 %v4559, %v4627
    %v4631 = vadd.f32 %v4560, %v4627
    %v4632 = vadd.f32 %v4561, %v4627
    %v4633 = vadd.f32 %v4562, %v4627
    %v4634 = vadd.f32 %v4563, %v4627
    %v4635 = vadd.f32 %v4564, %v4627
    %v4636 = vadd.f32 %v4565, %v4627
    %v4637 = vadd.f32 %v4566, %v4627
    %v4638 = vadd.f32 %v4567, %v4627
    %v4639 = vadd.f32 %v4568, %v4627
    %v4640 = vadd.f32 %v4569, %v4627
    %v4641 = vadd.f32 %v4570, %v4627
    %v4642 = vadd.f32 %v4571, %v4627
    %v4643 = vadd.f32 %v4572, %v4627
    %v4644 = vadd.f32 %v4573, %v4627
    %v4645 = vadd.f32 %v4574, %v4627
    %v4646 = vadd.f32 %v4575, %v4627
    %v4647 = vadd.f32 %v4576, %v4627
    %v4648 = vadd.f32 %v4577, %v4627
    %v4649 = vadd.f32 %v4578, %v4627
    %v4650 = vadd.f32 %v4579, %v4627
    %v4651 = vadd.f32 %v4580, %v4627
    %v4652 = vadd.f32 %v4581, %v4627
    %v4653 = vadd.f32 %v4582, %v4627
    %v4654 = vadd.f32 %v4583, %v4627
    %v4655 = vadd.f32 %v4584, %v4627
    %v4656 = vadd.f32 %v4585, %v4627
    %v4657 = vadd.f32 %v4586, %v4627
    %v4658 = vadd.f32 %v4587, %v4627
    %v4659 = vadd.f32 %v4588, %v4627
    %v4660 = vadd.f32 %v4589, %v4627
    %v4661 = vadd.f32 %v4590, %v4627
    %v4662 = vadd.f32 %v4591, %v4627
    %v4663 = vadd.f32 %v4592, %v4627
    %v4664 = vadd.f32 %v4593, %v4627
    %v4665 = vadd.f32 %v4594, %v4627
    %v4666 = vadd.f32 %v4595, %v4627
    %v4667 = vadd.f32 %v4596, %v4627
    %v4668 = vadd.f32 %v4597, %v4627
    %v4669 = vadd.f32 %v4598, %v4627
    %v4670 = vadd.f32 %v4599, %v4627
    %v4671 = vadd.f32 %v4600, %v4627
    %v4672 = vadd.f32 %v4601, %v4627
    %v4673 = vadd.f32 %v4602, %v4627
    %v4674 = vadd.f32 %v4603, %v4627
    %v4675 = vadd.f32 %v4604, %v4627
    %v4676 = vadd.f32 %v4605, %v4627
    %v4677 = vadd.f32 %v4606, %v4627
    %v4678 = vadd.f32 %v4607, %v4627
    %v4679 = vadd.f32 %v4608, %v4627
    %v4680 = vadd.f32 %v4609, %v4627
    %v4681 = vadd.f32 %v4610, %v4627
    %v4682 = vadd.f32 %v4611, %v4627
    %v4683 = vadd.f32 %v4612, %v4627
    %v4684 = vadd.f32 %v4613, %v4627
    %v4685 = vadd.f32 %v4614, %v4627
    %v4686 = vadd.f32 %v4615, %v4627
    %v4687 = vadd.f32 %v4616, %v4627
    %v4688 = vadd.f32 %v4617, %v4627
    %v4689 = vadd.f32 %v4618, %v4627
    %v4690 = vadd.f32 %v4619, %v4627
    %v4691 = vadd.f32 %v4620, %v4627
    %v4692 = vadd.f32 %v4621, %v4627
    %v4693 = vmax.f32 %v4629, 0.0
    %v4694 = vmax.f32 %v4630, 0.0
    %v4695 = vmax.f32 %v4631, 0.0
    %v4696 = vmax.f32 %v4632, 0.0
    %v4697 = vmax.f32 %v4633, 0.0
    %v4698 = vmax.f32 %v4634, 0.0
    %v4699 = vmax.f32 %v4635, 0.0
    %v4700 = vmax.f32 %v4636, 0.0
    %v4701 = vmax.f32 %v4637, 0.0
    %v4702 = vmax.f32 %v4638, 0.0
    %v4703 = vmax.f32 %v4639, 0.0
    %v4704 = vmax.f32 %v4640, 0.0
    %v4705 = vmax.f32 %v4641, 0.0
    %v4706 = vmax.f32 %v4642, 0.0
    %v4707 = vmax.f32 %v4643, 0.0
    %v4708 = vmax.f32 %v4644, 0.0
    %v4709 = vmax.f32 %v4645, 0.0
    %v4710 = vmax.f32 %v4646, 0.0
    %v4711 = vmax.f32 %v4647, 0.0
    %v4712 = vmax.f32 %v4648, 0.0
    %v4713 = vmax.f32 %v4649, 0.0
    %v4714 = vmax.f32 %v4650, 0.0
    %v4715 = vmax.f32 %v4651, 0.0
    %v4716 = vmax.f32 %v4652, 0.0
    %v4717 = vmax.f32 %v4653, 0.0
    %v4718 = vmax.f32 %v4654, 0.0
    %v4719 = vmax.f32 %v4655, 0.0
    %v4720 = vmax.f32 %v4656, 0.0
    %v4721 = vmax.f32 %v4657, 0.0
    %v4722 = vmax.f32 %v4658, 0.0
    %v4723 = vmax.f32 %v4659, 0.0
    %v4724 = vmax.f32 %v4660, 0.0
    %v4725 = vmax.f32 %v4661, 0.0
    %v4726 = vmax.f32 %v4662, 0.0
    %v4727 = vmax.f32 %v4663, 0.0
    %v4728 = vmax.f32 %v4664, 0.0
    %v4729 = vmax.f32 %v4665, 0.0
    %v4730 = vmax.f32 %v4666, 0.0
    %v4731 = vmax.f32 %v4667, 0.0
    %v4732 = vmax.f32 %v4668, 0.0
    %v4733 = vmax.f32 %v4669, 0.0
    %v4734 = vmax.f32 %v4670, 0.0
    %v4735 = vmax.f32 %v4671, 0.0
    %v4736 = vmax.f32 %v4672, 0.0
    %v4737 = vmax.f32 %v4673, 0.0
    %v4738 = vmax.f32 %v4674, 0.0
    %v4739 = vmax.f32 %v4675, 0.0
    %v4740 = vmax.f32 %v4676, 0.0
    %v4741 = vmax.f32 %v4677, 0.0
    %v4742 = vmax.f32 %v4678, 0.0
    %v4743 = vmax.f32 %v4679, 0.0
    %v4744 = vmax.f32 %v4680, 0.0
    %v4745 = vmax.f32 %v4681, 0.0
    %v4746 = vmax.f32 %v4682, 0.0
    %v4747 = vmax.f32 %v4683, 0.0
    %v4748 = vmax.f32 %v4684, 0.0
    %v4749 = vmax.f32 %v4685, 0.0
    %v4750 = vmax.f32 %v4686, 0.0
    %v4751 = vmax.f32 %v4687, 0.0
    %v4752 = vmax.f32 %v4688, 0.0
    %v4753 = vmax.f32 %v4689, 0.0
    %v4754 = vmax.f32 %v4690, 0.0
    %v4755 = vmax.f32 %v4691, 0.0
    %v4756 = vmax.f32 %v4692, 0.0
    %4757 = vst.msk [vmem:[#allocation4] sm:$0xff] %vm4151, %v4693
    %4758 = vst.msk [vmem:[#allocation4 + $0x8] sm:$0xff] %vm4151, %v4694
    %4759 = vst.msk [vmem:[#allocation4 + $0x10] sm:$0xff] %vm4151, %v4695
    %4760 = vst.msk [vmem:[#allocation4 + $0x18] sm:$0xff] %vm4151, %v4696
    %4761 = vst.msk [vmem:[#allocation4 + $0x20] sm:$0xff] %vm4151, %v4697
    %4762 = vst.msk [vmem:[#allocation4 + $0x28] sm:$0xff] %vm4151, %v4698
    %4763 = vst.msk [vmem:[#allocation4 + $0x30] sm:$0xff] %vm4151, %v4699
    %4764 = vst.msk [vmem:[#allocation4 + $0x38] sm:$0xff] %vm4151, %v4700
    %4765 = vst.msk [vmem:[#allocation4 + $0x40] sm:$0xff] %vm4151, %v4701
    %4766 = vst.msk [vmem:[#allocation4 + $0x48] sm:$0xff] %vm4151, %v4702
    %4767 = vst.msk [vmem:[#allocation4 + $0x50] sm:$0xff] %vm4151, %v4703
    %4768 = vst.msk [vmem:[#allocation4 + $0x58] sm:$0xff] %vm4151, %v4704
    %4769 = vst.msk [vmem:[#allocation4 + $0x60] sm:$0xff] %vm4151, %v4705
    %4770 = vst.msk [vmem:[#allocation4 + $0x68] sm:$0xff] %vm4151, %v4706
    %4771 = vst.msk [vmem:[#allocation4 + $0x70] sm:$0xff] %vm4151, %v4707
    %4772 = vst.msk [vmem:[#allocation4 + $0x78] sm:$0xff] %vm4151, %v4708
    %4773 = vst.msk [vmem:[#allocation4 + $0x80] sm:$0xff] %vm4151, %v4709
    %4774 = vst.msk [vmem:[#allocation4 + $0x88] sm:$0xff] %vm4151, %v4710
    %4775 = vst.msk [vmem:[#allocation4 + $0x90] sm:$0xff] %vm4151, %v4711
    %4776 = vst.msk [vmem:[#allocation4 + $0x98] sm:$0xff] %vm4151, %v4712
    %4777 = vst.msk [vmem:[#allocation4 + $0xa0] sm:$0xff] %vm4151, %v4713
    %4778 = vst.msk [vmem:[#allocation4 + $0xa8] sm:$0xff] %vm4151, %v4714
    %4779 = vst.msk [vmem:[#allocation4 + $0xb0] sm:$0xff] %vm4151, %v4715
    %4780 = vst.msk [vmem:[#allocation4 + $0xb8] sm:$0xff] %vm4151, %v4716
    %4781 = vst.msk [vmem:[#allocation4 + $0xc0] sm:$0xff] %vm4151, %v4717
    %4782 = vst.msk [vmem:[#allocation4 + $0xc8] sm:$0xff] %vm4151, %v4718
    %4783 = vst.msk [vmem:[#allocation4 + $0xd0] sm:$0xff] %vm4151, %v4719
    %4784 = vst.msk [vmem:[#allocation4 + $0xd8] sm:$0xff] %vm4151, %v4720
    %4785 = vst.msk [vmem:[#allocation4 + $0xe0] sm:$0xff] %vm4151, %v4721
    %4786 = vst.msk [vmem:[#allocation4 + $0xe8] sm:$0xff] %vm4151, %v4722
    %4787 = vst.msk [vmem:[#allocation4 + $0xf0] sm:$0xff] %vm4151, %v4723
    %4788 = vst.msk [vmem:[#allocation4 + $0xf8] sm:$0xff] %vm4151, %v4724
    %4789 = vst.msk [vmem:[#allocation4 + $0x100] sm:$0xff] %vm4151, %v4725
    %4790 = vst.msk [vmem:[#allocation4 + $0x108] sm:$0xff] %vm4151, %v4726
    %4791 = vst.msk [vmem:[#allocation4 + $0x110] sm:$0xff] %vm4151, %v4727
    %4792 = vst.msk [vmem:[#allocation4 + $0x118] sm:$0xff] %vm4151, %v4728
    %4793 = vst.msk [vmem:[#allocation4 + $0x120] sm:$0xff] %vm4151, %v4729
    %4794 = vst.msk [vmem:[#allocation4 + $0x128] sm:$0xff] %vm4151, %v4730
    %4795 = vst.msk [vmem:[#allocation4 + $0x130] sm:$0xff] %vm4151, %v4731
    %4796 = vst.msk [vmem:[#allocation4 + $0x138] sm:$0xff] %vm4151, %v4732
    %4797 = vst.msk [vmem:[#allocation4 + $0x140] sm:$0xff] %vm4151, %v4733
    %4798 = vst.msk [vmem:[#allocation4 + $0x148] sm:$0xff] %vm4151, %v4734
    %4799 = vst.msk [vmem:[#allocation4 + $0x150] sm:$0xff] %vm4151, %v4735
    %4800 = vst.msk [vmem:[#allocation4 + $0x158] sm:$0xff] %vm4151, %v4736
    %4801 = vst.msk [vmem:[#allocation4 + $0x160] sm:$0xff] %vm4151, %v4737
    %4802 = vst.msk [vmem:[#allocation4 + $0x168] sm:$0xff] %vm4151, %v4738
    %4803 = vst.msk [vmem:[#allocation4 + $0x170] sm:$0xff] %vm4151, %v4739
    %4804 = vst.msk [vmem:[#allocation4 + $0x178] sm:$0xff] %vm4151, %v4740
    %4805 = vst.msk [vmem:[#allocation4 + $0x180] sm:$0xff] %vm4151, %v4741
    %4806 = vst.msk [vmem:[#allocation4 + $0x188] sm:$0xff] %vm4151, %v4742
    %4807 = vst.msk [vmem:[#allocation4 + $0x190] sm:$0xff] %vm4151, %v4743
    %4808 = vst.msk [vmem:[#allocation4 + $0x198] sm:$0xff] %vm4151, %v4744
    %4809 = vst.msk [vmem:[#allocation4 + $0x1a0] sm:$0xff] %vm4151, %v4745
    %4810 = vst.msk [vmem:[#allocation4 + $0x1a8] sm:$0xff] %vm4151, %v4746
    %4811 = vst.msk [vmem:[#allocation4 + $0x1b0] sm:$0xff] %vm4151, %v4747
    %4812 = vst.msk [vmem:[#allocation4 + $0x1b8] sm:$0xff] %vm4151, %v4748
    %4813 = vst.msk [vmem:[#allocation4 + $0x1c0] sm:$0xff] %vm4151, %v4749
    %4814 = vst.msk [vmem:[#allocation4 + $0x1c8] sm:$0xff] %vm4151, %v4750
    %4815 = vst.msk [vmem:[#allocation4 + $0x1d0] sm:$0xff] %vm4151, %v4751
    %4816 = vst.msk [vmem:[#allocation4 + $0x1d8] sm:$0xff] %vm4151, %v4752
    %4817 = vst.msk [vmem:[#allocation4 + $0x1e0] sm:$0xff] %vm4151, %v4753
    %4818 = vst.msk [vmem:[#allocation4 + $0x1e8] sm:$0xff] %vm4151, %v4754
    %4819 = vst.msk [vmem:[#allocation4 + $0x1f0] sm:$0xff] %vm4151, %v4755
    %4820 = vst.msk [vmem:[#allocation4 + $0x1f8] sm:$0xff] %vm4151, %v4756
    %v4821 = vld [vmem:[#allocation4] ss:$2 sm:$0xff]
    %s4822 = scalar_lea.vmem [#allocation4], 16
    %v4823 = vld [vmem:[%s4822] ss:$2 sm:$0xff]
    %s4824 = scalar_lea.vmem [#allocation4], 32
    %v4825 = vld [vmem:[%s4824] ss:$2 sm:$0xff]
    %s4826 = scalar_lea.vmem [#allocation4], 48
    %v4827 = vld [vmem:[%s4826] ss:$2 sm:$0xff]
    %s4828 = scalar_lea.vmem [#allocation4], 64
    %v4829 = vld [vmem:[%s4828] ss:$2 sm:$0xff]
    %s4830 = scalar_lea.vmem [#allocation4], 80
    %v4831 = vld [vmem:[%s4830] ss:$2 sm:$0xff]
    %s4832 = scalar_lea.vmem [#allocation4], 96
    %v4833 = vld [vmem:[%s4832] ss:$2 sm:$0xff]
    %s4834 = scalar_lea.vmem [#allocation4], 112
    %v4835 = vld [vmem:[%s4834] ss:$2 sm:$0xff]
    %s4836 = scalar_lea.vmem [#allocation4], 128
    %v4837 = vld [vmem:[%s4836] ss:$2 sm:$0xff]
    %s4838 = scalar_lea.vmem [#allocation4], 144
    %v4839 = vld [vmem:[%s4838] ss:$2 sm:$0xff]
    %s4840 = scalar_lea.vmem [#allocation4], 160
    %v4841 = vld [vmem:[%s4840] ss:$2 sm:$0xff]
    %s4842 = scalar_lea.vmem [#allocation4], 176
    %v4843 = vld [vmem:[%s4842] ss:$2 sm:$0xff]
    %s4844 = scalar_lea.vmem [#allocation4], 192
    %v4845 = vld [vmem:[%s4844] ss:$2 sm:$0xff]
    %s4846 = scalar_lea.vmem [#allocation4], 208
    %v4847 = vld [vmem:[%s4846] ss:$2 sm:$0xff]
    %s4848 = scalar_lea.vmem [#allocation4], 224
    %v4849 = vld [vmem:[%s4848] ss:$2 sm:$0xff]
    %s4850 = scalar_lea.vmem [#allocation4], 240
    %v4851 = vld [vmem:[%s4850] ss:$2 sm:$0xff]
    %s4852 = scalar_lea.vmem [#allocation4], 256
    %v4853 = vld [vmem:[%s4852] ss:$2 sm:$0xff]
    %s4854 = scalar_lea.vmem [#allocation4], 272
    %v4855 = vld [vmem:[%s4854] ss:$2 sm:$0xff]
    %s4856 = scalar_lea.vmem [#allocation4], 288
    %v4857 = vld [vmem:[%s4856] ss:$2 sm:$0xff]
    %s4858 = scalar_lea.vmem [#allocation4], 304
    %v4859 = vld [vmem:[%s4858] ss:$2 sm:$0xff]
    %s4860 = scalar_lea.vmem [#allocation4], 320
    %v4861 = vld [vmem:[%s4860] ss:$2 sm:$0xff]
    %s4862 = scalar_lea.vmem [#allocation4], 336
    %v4863 = vld [vmem:[%s4862] ss:$2 sm:$0xff]
    %s4864 = scalar_lea.vmem [#allocation4], 352
    %v4865 = vld [vmem:[%s4864] ss:$2 sm:$0xff]
    %s4866 = scalar_lea.vmem [#allocation4], 368
    %v4867 = vld [vmem:[%s4866] ss:$2 sm:$0xff]
    %s4868 = scalar_lea.vmem [#allocation4], 384
    %v4869 = vld [vmem:[%s4868] ss:$2 sm:$0xff]
    %s4870 = scalar_lea.vmem [#allocation4], 400
    %v4871 = vld [vmem:[%s4870] ss:$2 sm:$0xff]
    %s4872 = scalar_lea.vmem [#allocation4], 416
    %v4873 = vld [vmem:[%s4872] ss:$2 sm:$0xff]
    %s4874 = scalar_lea.vmem [#allocation4], 432
    %v4875 = vld [vmem:[%s4874] ss:$2 sm:$0xff]
    %s4876 = scalar_lea.vmem [#allocation4], 448
    %v4877 = vld [vmem:[%s4876] ss:$2 sm:$0xff]
    %s4878 = scalar_lea.vmem [#allocation4], 464
    %v4879 = vld [vmem:[%s4878] ss:$2 sm:$0xff]
    %s4880 = scalar_lea.vmem [#allocation4], 480
    %v4881 = vld [vmem:[%s4880] ss:$2 sm:$0xff]
    %s4882 = scalar_lea.vmem [#allocation4], 496
    %v4883 = vld [vmem:[%s4882] ss:$2 sm:$0xff]
    %s4884 = scalar_lea.vmem [#allocation4], 1
    %v4885 = vld [vmem:[%s4884] ss:$2 sm:$0xff]
    %s4886 = scalar_lea.vmem [#allocation4], 17
    %v4887 = vld [vmem:[%s4886] ss:$2 sm:$0xff]
    %s4888 = scalar_lea.vmem [#allocation4], 33
    %v4889 = vld [vmem:[%s4888] ss:$2 sm:$0xff]
    %s4890 = scalar_lea.vmem [#allocation4], 49
    %v4891 = vld [vmem:[%s4890] ss:$2 sm:$0xff]
    %s4892 = scalar_lea.vmem [#allocation4], 65
    %v4893 = vld [vmem:[%s4892] ss:$2 sm:$0xff]
    %s4894 = scalar_lea.vmem [#allocation4], 81
    %v4895 = vld [vmem:[%s4894] ss:$2 sm:$0xff]
    %s4896 = scalar_lea.vmem [#allocation4], 97
    %v4897 = vld [vmem:[%s4896] ss:$2 sm:$0xff]
    %s4898 = scalar_lea.vmem [#allocation4], 113
    %v4899 = vld [vmem:[%s4898] ss:$2 sm:$0xff]
    %s4900 = scalar_lea.vmem [#allocation4], 129
    %v4901 = vld [vmem:[%s4900] ss:$2 sm:$0xff]
    %s4902 = scalar_lea.vmem [#allocation4], 145
    %v4903 = vld [vmem:[%s4902] ss:$2 sm:$0xff]
    %s4904 = scalar_lea.vmem [#allocation4], 161
    %v4905 = vld [vmem:[%s4904] ss:$2 sm:$0xff]
    %s4906 = scalar_lea.vmem [#allocation4], 177
    %v4907 = vld [vmem:[%s4906] ss:$2 sm:$0xff]
    %s4908 = scalar_lea.vmem [#allocation4], 193
    %v4909 = vld [vmem:[%s4908] ss:$2 sm:$0xff]
    %s4910 = scalar_lea.vmem [#allocation4], 209
    %v4911 = vld [vmem:[%s4910] ss:$2 sm:$0xff]
    %s4912 = scalar_lea.vmem [#allocation4], 225
    %v4913 = vld [vmem:[%s4912] ss:$2 sm:$0xff]
    %s4914 = scalar_lea.vmem [#allocation4], 241
    %v4915 = vld [vmem:[%s4914] ss:$2 sm:$0xff]
    %s4916 = scalar_lea.vmem [#allocation4], 257
    %v4917 = vld [vmem:[%s4916] ss:$2 sm:$0xff]
    %s4918 = scalar_lea.vmem [#allocation4], 273
    %v4919 = vld [vmem:[%s4918] ss:$2 sm:$0xff]
    %s4920 = scalar_lea.vmem [#allocation4], 289
    %v4921 = vld [vmem:[%s4920] ss:$2 sm:$0xff]
    %s4922 = scalar_lea.vmem [#allocation4], 305
    %v4923 = vld [vmem:[%s4922] ss:$2 sm:$0xff]
    %s4924 = scalar_lea.vmem [#allocation4], 321
    %v4925 = vld [vmem:[%s4924] ss:$2 sm:$0xff]
    %s4926 = scalar_lea.vmem [#allocation4], 337
    %v4927 = vld [vmem:[%s4926] ss:$2 sm:$0xff]
    %s4928 = scalar_lea.vmem [#allocation4], 353
    %v4929 = vld [vmem:[%s4928] ss:$2 sm:$0xff]
    %s4930 = scalar_lea.vmem [#allocation4], 369
    %v4931 = vld [vmem:[%s4930] ss:$2 sm:$0xff]
    %s4932 = scalar_lea.vmem [#allocation4], 385
    %v4933 = vld [vmem:[%s4932] ss:$2 sm:$0xff]
    %s4934 = scalar_lea.vmem [#allocation4], 401
    %v4935 = vld [vmem:[%s4934] ss:$2 sm:$0xff]
    %s4936 = scalar_lea.vmem [#allocation4], 417
    %v4937 = vld [vmem:[%s4936] ss:$2 sm:$0xff]
    %s4938 = scalar_lea.vmem [#allocation4], 433
    %v4939 = vld [vmem:[%s4938] ss:$2 sm:$0xff]
    %s4940 = scalar_lea.vmem [#allocation4], 449
    %v4941 = vld [vmem:[%s4940] ss:$2 sm:$0xff]
    %s4942 = scalar_lea.vmem [#allocation4], 465
    %v4943 = vld [vmem:[%s4942] ss:$2 sm:$0xff]
    %s4944 = scalar_lea.vmem [#allocation4], 481
    %v4945 = vld [vmem:[%s4944] ss:$2 sm:$0xff]
    %s4946 = scalar_lea.vmem [#allocation4], 497
    %v4947 = vld [vmem:[%s4946] ss:$2 sm:$0xff]
    %v4948 = vmax.f32 %v4821, %v4885
    %v4949 = vmax.f32 %v4823, %v4887
    %v4950 = vmax.f32 %v4825, %v4889
    %v4951 = vmax.f32 %v4827, %v4891
    %v4952 = vmax.f32 %v4829, %v4893
    %v4953 = vmax.f32 %v4831, %v4895
    %v4954 = vmax.f32 %v4833, %v4897
    %v4955 = vmax.f32 %v4835, %v4899
    %v4956 = vmax.f32 %v4837, %v4901
    %v4957 = vmax.f32 %v4839, %v4903
    %v4958 = vmax.f32 %v4841, %v4905
    %v4959 = vmax.f32 %v4843, %v4907
    %v4960 = vmax.f32 %v4845, %v4909
    %v4961 = vmax.f32 %v4847, %v4911
    %v4962 = vmax.f32 %v4849, %v4913
    %v4963 = vmax.f32 %v4851, %v4915
    %v4964 = vmax.f32 %v4853, %v4917
    %v4965 = vmax.f32 %v4855, %v4919
    %v4966 = vmax.f32 %v4857, %v4921
    %v4967 = vmax.f32 %v4859, %v4923
    %v4968 = vmax.f32 %v4861, %v4925
    %v4969 = vmax.f32 %v4863, %v4927
    %v4970 = vmax.f32 %v4865, %v4929
    %v4971 = vmax.f32 %v4867, %v4931
    %v4972 = vmax.f32 %v4869, %v4933
    %v4973 = vmax.f32 %v4871, %v4935
    %v4974 = vmax.f32 %v4873, %v4937
    %v4975 = vmax.f32 %v4875, %v4939
    %v4976 = vmax.f32 %v4877, %v4941
    %v4977 = vmax.f32 %v4879, %v4943
    %v4978 = vmax.f32 %v4881, %v4945
    %v4979 = vmax.f32 %v4883, %v4947
    %v4980 = vmax.f32 %v4948, %v4949
    %v4981 = vmax.f32 %v4950, %v4951
    %v4982 = vmax.f32 %v4952, %v4953
    %v4983 = vmax.f32 %v4954, %v4955
    %v4984 = vmax.f32 %v4956, %v4957
    %v4985 = vmax.f32 %v4958, %v4959
    %v4986 = vmax.f32 %v4960, %v4961
    %v4987 = vmax.f32 %v4962, %v4963
    %v4988 = vmax.f32 %v4964, %v4965
    %v4989 = vmax.f32 %v4966, %v4967
    %v4990 = vmax.f32 %v4968, %v4969
    %v4991 = vmax.f32 %v4970, %v4971
    %v4992 = vmax.f32 %v4972, %v4973
    %v4993 = vmax.f32 %v4974, %v4975
    %v4994 = vmax.f32 %v4976, %v4977
    %v4995 = vmax.f32 %v4978, %v4979
    %4996 = vst.msk [vmem:[#allocation5] sm:$0xff] %vm4151, 0.0
    %vm4997 = vcmask 58368
    %4998 = vst.msk [vmem:[#allocation5 + $0x8] sm:$0x3] %vm4997, 0.0
    %4999 = vst.msk [vmem:[#allocation5 + $0x10] sm:$0xff] %vm4151, 0.0
    %5000 = vst.msk [vmem:[#allocation5 + $0x18] sm:$0x3] %vm4997, 0.0
    %5001 = vst.msk [vmem:[#allocation5 + $0x20] sm:$0xff] %vm4151, 0.0
    %5002 = vst.msk [vmem:[#allocation5 + $0x28] sm:$0x3] %vm4997, 0.0
    %5003 = vst.msk [vmem:[#allocation5 + $0x30] sm:$0xff] %vm4151, 0.0
    %5004 = vst.msk [vmem:[#allocation5 + $0x38] sm:$0x3] %vm4997, 0.0
    %5005 = vst.msk [vmem:[#allocation5 + $0x40] sm:$0xff] %vm4151, 0.0
    %5006 = vst.msk [vmem:[#allocation5 + $0x48] sm:$0x3] %vm4997, 0.0
    %5007 = vst.msk [vmem:[#allocation5 + $0x50] sm:$0xff] %vm4151, 0.0
    %5008 = vst.msk [vmem:[#allocation5 + $0x58] sm:$0x3] %vm4997, 0.0
    %5009 = vst.msk [vmem:[#allocation5 + $0x60] sm:$0xff] %vm4151, 0.0
    %5010 = vst.msk [vmem:[#allocation5 + $0x68] sm:$0x3] %vm4997, 0.0
    %5011 = vst.msk [vmem:[#allocation5 + $0x70] sm:$0xff] %vm4151, 0.0
    %5012 = vst.msk [vmem:[#allocation5 + $0x78] sm:$0x3] %vm4997, 0.0
    %5013 = vst.msk [vmem:[#allocation5 + $0x80] sm:$0xff] %vm4151, 0.0
    %5014 = vst.msk [vmem:[#allocation5 + $0x88] sm:$0x3] %vm4997, 0.0
    %5015 = vst.msk [vmem:[#allocation5 + $0x90] sm:$0xff] %vm4151, 0.0
    %5016 = vst.msk [vmem:[#allocation5 + $0x98] sm:$0x3] %vm4997, 0.0
    %5017 = vst.msk [vmem:[#allocation5 + $0xa0] sm:$0xff] %vm4151, 0.0
    %5018 = vst.msk [vmem:[#allocation5 + $0xa8] sm:$0x3] %vm4997, 0.0
    %5019 = vst.msk [vmem:[#allocation5 + $0xb0] sm:$0xff] %vm4151, 0.0
    %5020 = vst.msk [vmem:[#allocation5 + $0xb8] sm:$0x3] %vm4997, 0.0
    %5021 = vst.msk [vmem:[#allocation5 + $0xc0] sm:$0xff] %vm4151, 0.0
    %5022 = vst.msk [vmem:[#allocation5 + $0xc8] sm:$0x3] %vm4997, 0.0
    %5023 = vst.msk [vmem:[#allocation5 + $0xd0] sm:$0xff] %vm4151, 0.0
    %5024 = vst.msk [vmem:[#allocation5 + $0xd8] sm:$0x3] %vm4997, 0.0
    %5025 = vst.msk [vmem:[#allocation5 + $0xe0] sm:$0xff] %vm4151, 0.0
    %5026 = vst.msk [vmem:[#allocation5 + $0xe8] sm:$0x3] %vm4997, 0.0
    %5027 = vst.msk [vmem:[#allocation5 + $0xf0] sm:$0xff] %vm4151, 0.0
    %5028 = vst.msk [vmem:[#allocation5 + $0xf8] sm:$0x3] %vm4997, 0.0
    %5029 = vst.msk [vmem:[#allocation5 + $0x100] sm:$0xff] %vm4151, 0.0
    %5030 = vst.msk [vmem:[#allocation5 + $0x108] sm:$0x3] %vm4997, 0.0
    %5031 = vst.msk [vmem:[#allocation5 + $0x110] sm:$0xff] %vm4151, 0.0
    %5032 = vst.msk [vmem:[#allocation5 + $0x118] sm:$0x3] %vm4997, 0.0
    %5033 = vst.msk [vmem:[#allocation5 + $0x120] sm:$0xff] %vm4151, 0.0
    %5034 = vst.msk [vmem:[#allocation5 + $0x128] sm:$0x3] %vm4997, 0.0
    %5035 = vst.msk [vmem:[#allocation5 + $0x130] sm:$0xff] %vm4151, 0.0
    %5036 = vst.msk [vmem:[#allocation5 + $0x138] sm:$0x3] %vm4997, 0.0
    %s5037 = scalar_lea.vmem [#allocation5], 16
    %5038 = vst.msk [vmem:[%s5037 + $0x1] sm:$0xff] %vm4151, %v4980
    %5039 = vst.msk [vmem:[%s5037 + $0x11] sm:$0xff] %vm4151, %v4981
    %5040 = vst.msk [vmem:[%s5037 + $0x21] sm:$0xff] %vm4151, %v4982
    %5041 = vst.msk [vmem:[%s5037 + $0x31] sm:$0xff] %vm4151, %v4983
    %5042 = vst.msk [vmem:[%s5037 + $0x41] sm:$0xff] %vm4151, %v4984
    %5043 = vst.msk [vmem:[%s5037 + $0x51] sm:$0xff] %vm4151, %v4985
    %5044 = vst.msk [vmem:[%s5037 + $0x61] sm:$0xff] %vm4151, %v4986
    %5045 = vst.msk [vmem:[%s5037 + $0x71] sm:$0xff] %vm4151, %v4987
    %5046 = vst.msk [vmem:[%s5037 + $0xa1] sm:$0xff] %vm4151, %v4988
    %5047 = vst.msk [vmem:[%s5037 + $0xb1] sm:$0xff] %vm4151, %v4989
    %5048 = vst.msk [vmem:[%s5037 + $0xc1] sm:$0xff] %vm4151, %v4990
    %5049 = vst.msk [vmem:[%s5037 + $0xd1] sm:$0xff] %vm4151, %v4991
    %5050 = vst.msk [vmem:[%s5037 + $0xe1] sm:$0xff] %vm4151, %v4992
    %5051 = vst.msk [vmem:[%s5037 + $0xf1] sm:$0xff] %vm4151, %v4993
    %5052 = vst.msk [vmem:[%s5037 + $0x101] sm:$0xff] %vm4151, %v4994
    %5053 = vst.msk [vmem:[%s5037 + $0x111] sm:$0xff] %vm4151, %v4995
    %v5054 = vld [vmem:[#allocation5] sm:$0xff]
    %v5055 = vld [vmem:[#allocation5 + $0x10] sm:$0xff]
    %v5056 = vld [vmem:[#allocation5 + $0x20] sm:$0xff]
    %v5057 = vld [vmem:[#allocation5 + $0x30] sm:$0xff]
    %v5058 = vld [vmem:[#allocation5 + $0x40] sm:$0xff]
    %v5059 = vld [vmem:[#allocation5 + $0x50] sm:$0xff]
    %v5060 = vld [vmem:[#allocation5 + $0x60] sm:$0xff]
    %v5061 = vld [vmem:[#allocation5 + $0x70] sm:$0xff]
    %v5062 = vld [vmem:[#allocation5 + $0xa0] sm:$0xff]
    %v5063 = vld [vmem:[#allocation5 + $0xb0] sm:$0xff]
    %v5064 = vld [vmem:[#allocation5 + $0xc0] sm:$0xff]
    %v5065 = vld [vmem:[#allocation5 + $0xd0] sm:$0xff]
    %v5066 = vld [vmem:[#allocation5 + $0xe0] sm:$0xff]
    %v5067 = vld [vmem:[#allocation5 + $0xf0] sm:$0xff]
    %v5068 = vld [vmem:[#allocation5 + $0x100] sm:$0xff]
    %v5069 = vld [vmem:[#allocation5 + $0x110] sm:$0xff]
    %5070 = vst.msk [vmem:[#allocation6] sm:$0xff] %vm4151, %v5054
    %5071 = vst.msk [vmem:[#allocation6 + $0x8] sm:$0xff] %vm4151, %v5055
    %5072 = vst.msk [vmem:[#allocation6 + $0x10] sm:$0xff] %vm4151, %v5056
    %5073 = vst.msk [vmem:[#allocation6 + $0x18] sm:$0xff] %vm4151, %v5057
    %5074 = vst.msk [vmem:[#allocation6 + $0x20] sm:$0xff] %vm4151, %v5058
    %5075 = vst.msk [vmem:[#allocation6 + $0x28] sm:$0xff] %vm4151, %v5059
    %5076 = vst.msk [vmem:[#allocation6 + $0x30] sm:$0xff] %vm4151, %v5060
    %5077 = vst.msk [vmem:[#allocation6 + $0x38] sm:$0xff] %vm4151, %v5061
    %5078 = vst.msk [vmem:[#allocation6 + $0x40] sm:$0xff] %vm4151, %v5062
    %5079 = vst.msk [vmem:[#allocation6 + $0x48] sm:$0xff] %vm4151, %v5063
    %5080 = vst.msk [vmem:[#allocation6 + $0x50] sm:$0xff] %vm4151, %v5064
    %5081 = vst.msk [vmem:[#allocation6 + $0x58] sm:$0xff] %vm4151, %v5065
    %5082 = vst.msk [vmem:[#allocation6 + $0x60] sm:$0xff] %vm4151, %v5066
    %5083 = vst.msk [vmem:[#allocation6 + $0x68] sm:$0xff] %vm4151, %v5067
    %5084 = vst.msk [vmem:[#allocation6 + $0x70] sm:$0xff] %vm4151, %v5068
    %5085 = vst.msk [vmem:[#allocation6 + $0x78] sm:$0xff] %vm4151, %v5069
    %v5086 = vld [vmem:[#allocation5 + $0x1] sm:$0xff]
    %v5087 = vld [vmem:[#allocation5 + $0x11] sm:$0xff]
    %v5088 = vld [vmem:[#allocation5 + $0x21] sm:$0xff]
    %v5089 = vld [vmem:[#allocation5 + $0x31] sm:$0xff]
    %v5090 = vld [vmem:[#allocation5 + $0x41] sm:$0xff]
    %v5091 = vld [vmem:[#allocation5 + $0x51] sm:$0xff]
    %v5092 = vld [vmem:[#allocation5 + $0x61] sm:$0xff]
    %v5093 = vld [vmem:[#allocation5 + $0x71] sm:$0xff]
    %v5094 = vld [vmem:[#allocation5 + $0xa1] sm:$0xff]
    %v5095 = vld [vmem:[#allocation5 + $0xb1] sm:$0xff]
    %v5096 = vld [vmem:[#allocation5 + $0xc1] sm:$0xff]
    %v5097 = vld [vmem:[#allocation5 + $0xd1] sm:$0xff]
    %v5098 = vld [vmem:[#allocation5 + $0xe1] sm:$0xff]
    %v5099 = vld [vmem:[#allocation5 + $0xf1] sm:$0xff]
    %v5100 = vld [vmem:[#allocation5 + $0x101] sm:$0xff]
    %v5101 = vld [vmem:[#allocation5 + $0x111] sm:$0xff]
    %5118 = vrot.lane.b32.xlu0 %v5086, 8
    %v5119 = vpop.permute.xlu0 %5118
    %5120 = vrot.lane.b32.xlu0 %v5087, 8
    %v5121 = vpop.permute.xlu0 %5120
    %5122 = vrot.lane.b32.xlu0 %v5088, 8
    %v5123 = vpop.permute.xlu0 %5122
    %5124 = vrot.lane.b32.xlu0 %v5089, 8
    %v5125 = vpop.permute.xlu0 %5124
    %5126 = vrot.lane.b32.xlu0 %v5090, 8
    %v5127 = vpop.permute.xlu0 %5126
    %5128 = vrot.lane.b32.xlu0 %v5091, 8
    %v5129 = vpop.permute.xlu0 %5128
    %5130 = vrot.lane.b32.xlu0 %v5092, 8
    %v5131 = vpop.permute.xlu0 %5130
    %5132 = vrot.lane.b32.xlu0 %v5093, 8
    %v5133 = vpop.permute.xlu0 %5132
    %5134 = vrot.lane.b32.xlu0 %v5094, 8
    %v5135 = vpop.permute.xlu0 %5134
    %5136 = vrot.lane.b32.xlu0 %v5095, 8
    %v5137 = vpop.permute.xlu0 %5136
    %5138 = vrot.lane.b32.xlu0 %v5096, 8
    %v5139 = vpop.permute.xlu0 %5138
    %5140 = vrot.lane.b32.xlu0 %v5097, 8
    %v5141 = vpop.permute.xlu0 %5140
    %5142 = vrot.lane.b32.xlu0 %v5098, 8
    %v5143 = vpop.permute.xlu0 %5142
    %5144 = vrot.lane.b32.xlu0 %v5099, 8
    %v5145 = vpop.permute.xlu0 %5144
    %5146 = vrot.lane.b32.xlu0 %v5100, 8
    %v5147 = vpop.permute.xlu0 %5146
    %5148 = vrot.lane.b32.xlu0 %v5101, 8
    %v5149 = vpop.permute.xlu0 %5148
    %vm5166 = vcmask 130112
    %5167 = vst.msk [vmem:[#allocation6] sm:$0xff] %vm5166, %v5119
    %5168 = vst.msk [vmem:[#allocation6 + $0x8] sm:$0xff] %vm5166, %v5121
    %5169 = vst.msk [vmem:[#allocation6 + $0x10] sm:$0xff] %vm5166, %v5123
    %5170 = vst.msk [vmem:[#allocation6 + $0x18] sm:$0xff] %vm5166, %v5125
    %5171 = vst.msk [vmem:[#allocation6 + $0x20] sm:$0xff] %vm5166, %v5127
    %5172 = vst.msk [vmem:[#allocation6 + $0x28] sm:$0xff] %vm5166, %v5129
    %5173 = vst.msk [vmem:[#allocation6 + $0x30] sm:$0xff] %vm5166, %v5131
    %5174 = vst.msk [vmem:[#allocation6 + $0x38] sm:$0xff] %vm5166, %v5133
    %5175 = vst.msk [vmem:[#allocation6 + $0x40] sm:$0xff] %vm5166, %v5135
    %5176 = vst.msk [vmem:[#allocation6 + $0x48] sm:$0xff] %vm5166, %v5137
    %5177 = vst.msk [vmem:[#allocation6 + $0x50] sm:$0xff] %vm5166, %v5139
    %5178 = vst.msk [vmem:[#allocation6 + $0x58] sm:$0xff] %vm5166, %v5141
    %5179 = vst.msk [vmem:[#allocation6 + $0x60] sm:$0xff] %vm5166, %v5143
    %5180 = vst.msk [vmem:[#allocation6 + $0x68] sm:$0xff] %vm5166, %v5145
    %5181 = vst.msk [vmem:[#allocation6 + $0x70] sm:$0xff] %vm5166, %v5147
    %5182 = vst.msk [vmem:[#allocation6 + $0x78] sm:$0xff] %vm5166, %v5149
    %v5183 = vld [vmem:[#allocation5 + $0x2] sm:$0xff]
    %v5184 = vld [vmem:[#allocation5 + $0x12] sm:$0xff]
    %v5185 = vld [vmem:[#allocation5 + $0x22] sm:$0xff]
    %v5186 = vld [vmem:[#allocation5 + $0x32] sm:$0xff]
    %v5187 = vld [vmem:[#allocation5 + $0x42] sm:$0xff]
    %v5188 = vld [vmem:[#allocation5 + $0x52] sm:$0xff]
    %v5189 = vld [vmem:[#allocation5 + $0x62] sm:$0xff]
    %v5190 = vld [vmem:[#allocation5 + $0x72] sm:$0xff]
    %v5191 = vld [vmem:[#allocation5 + $0xa2] sm:$0xff]
    %v5192 = vld [vmem:[#allocation5 + $0xb2] sm:$0xff]
    %v5193 = vld [vmem:[#allocation5 + $0xc2] sm:$0xff]
    %v5194 = vld [vmem:[#allocation5 + $0xd2] sm:$0xff]
    %v5195 = vld [vmem:[#allocation5 + $0xe2] sm:$0xff]
    %v5196 = vld [vmem:[#allocation5 + $0xf2] sm:$0xff]
    %v5197 = vld [vmem:[#allocation5 + $0x102] sm:$0xff]
    %v5198 = vld [vmem:[#allocation5 + $0x112] sm:$0xff]
    %5215 = vrot.lane.b32.xlu0 %v5183, 16
    %v5216 = vpop.permute.xlu0 %5215
    %5217 = vrot.lane.b32.xlu0 %v5184, 16
    %v5218 = vpop.permute.xlu0 %5217
    %5219 = vrot.lane.b32.xlu0 %v5185, 16
    %v5220 = vpop.permute.xlu0 %5219
    %5221 = vrot.lane.b32.xlu0 %v5186, 16
    %v5222 = vpop.permute.xlu0 %5221
    %5223 = vrot.lane.b32.xlu0 %v5187, 16
    %v5224 = vpop.permute.xlu0 %5223
    %5225 = vrot.lane.b32.xlu0 %v5188, 16
    %v5226 = vpop.permute.xlu0 %5225
    %5227 = vrot.lane.b32.xlu0 %v5189, 16
    %v5228 = vpop.permute.xlu0 %5227
    %5229 = vrot.lane.b32.xlu0 %v5190, 16
    %v5230 = vpop.permute.xlu0 %5229
    %5231 = vrot.lane.b32.xlu0 %v5191, 16
    %v5232 = vpop.permute.xlu0 %5231
    %5233 = vrot.lane.b32.xlu0 %v5192, 16
    %v5234 = vpop.permute.xlu0 %5233
    %5235 = vrot.lane.b32.xlu0 %v5193, 16
    %v5236 = vpop.permute.xlu0 %5235
    %5237 = vrot.lane.b32.xlu0 %v5194, 16
    %v5238 = vpop.permute.xlu0 %5237
    %5239 = vrot.lane.b32.xlu0 %v5195, 16
    %v5240 = vpop.permute.xlu0 %5239
    %5241 = vrot.lane.b32.xlu0 %v5196, 16
    %v5242 = vpop.permute.xlu0 %5241
    %5243 = vrot.lane.b32.xlu0 %v5197, 16
    %v5244 = vpop.permute.xlu0 %5243
    %5245 = vrot.lane.b32.xlu0 %v5198, 16
    %v5246 = vpop.permute.xlu0 %5245
    %vm5263 = vcmask 195712
    %5264 = vst.msk [vmem:[#allocation6] sm:$0xff] %vm5263, %v5216
    %5265 = vst.msk [vmem:[#allocation6 + $0x8] sm:$0xff] %vm5263, %v5218
    %5266 = vst.msk [vmem:[#allocation6 + $0x10] sm:$0xff] %vm5263, %v5220
    %5267 = vst.msk [vmem:[#allocation6 + $0x18] sm:$0xff] %vm5263, %v5222
    %5268 = vst.msk [vmem:[#allocation6 + $0x20] sm:$0xff] %vm5263, %v5224
    %5269 = vst.msk [vmem:[#allocation6 + $0x28] sm:$0xff] %vm5263, %v5226
    %5270 = vst.msk [vmem:[#allocation6 + $0x30] sm:$0xff] %vm5263, %v5228
    %5271 = vst.msk [vmem:[#allocation6 + $0x38] sm:$0xff] %vm5263, %v5230
    %5272 = vst.msk [vmem:[#allocation6 + $0x40] sm:$0xff] %vm5263, %v5232
    %5273 = vst.msk [vmem:[#allocation6 + $0x48] sm:$0xff] %vm5263, %v5234
    %5274 = vst.msk [vmem:[#allocation6 + $0x50] sm:$0xff] %vm5263, %v5236
    %5275 = vst.msk [vmem:[#allocation6 + $0x58] sm:$0xff] %vm5263, %v5238
    %5276 = vst.msk [vmem:[#allocation6 + $0x60] sm:$0xff] %vm5263, %v5240
    %5277 = vst.msk [vmem:[#allocation6 + $0x68] sm:$0xff] %vm5263, %v5242
    %5278 = vst.msk [vmem:[#allocation6 + $0x70] sm:$0xff] %vm5263, %v5244
    %5279 = vst.msk [vmem:[#allocation6 + $0x78] sm:$0xff] %vm5263, %v5246
    %v5280 = vld [vmem:[%s5037] sm:$0xff]
    %v5281 = vld [vmem:[%s5037 + $0x10] sm:$0xff]
    %v5282 = vld [vmem:[%s5037 + $0x20] sm:$0xff]
    %v5283 = vld [vmem:[%s5037 + $0x30] sm:$0xff]
    %v5284 = vld [vmem:[%s5037 + $0x40] sm:$0xff]
    %v5285 = vld [vmem:[%s5037 + $0x50] sm:$0xff]
    %v5286 = vld [vmem:[%s5037 + $0x60] sm:$0xff]
    %v5287 = vld [vmem:[%s5037 + $0x70] sm:$0xff]
    %v5288 = vld [vmem:[%s5037 + $0xa0] sm:$0xff]
    %v5289 = vld [vmem:[%s5037 + $0xb0] sm:$0xff]
    %v5290 = vld [vmem:[%s5037 + $0xc0] sm:$0xff]
    %v5291 = vld [vmem:[%s5037 + $0xd0] sm:$0xff]
    %v5292 = vld [vmem:[%s5037 + $0xe0] sm:$0xff]
    %v5293 = vld [vmem:[%s5037 + $0xf0] sm:$0xff]
    %v5294 = vld [vmem:[%s5037 + $0x100] sm:$0xff]
    %v5295 = vld [vmem:[%s5037 + $0x110] sm:$0xff]
    %5312 = vrot.lane.b32.xlu0 %v5280, 24
    %v5313 = vpop.permute.xlu0 %5312
    %5314 = vrot.lane.b32.xlu0 %v5281, 24
    %v5315 = vpop.permute.xlu0 %5314
    %5316 = vrot.lane.b32.xlu0 %v5282, 24
    %v5317 = vpop.permute.xlu0 %5316
    %5318 = vrot.lane.b32.xlu0 %v5283, 24
    %v5319 = vpop.permute.xlu0 %5318
    %5320 = vrot.lane.b32.xlu0 %v5284, 24
    %v5321 = vpop.permute.xlu0 %5320
    %5322 = vrot.lane.b32.xlu0 %v5285, 24
    %v5323 = vpop.permute.xlu0 %5322
    %5324 = vrot.lane.b32.xlu0 %v5286, 24
    %v5325 = vpop.permute.xlu0 %5324
    %5326 = vrot.lane.b32.xlu0 %v5287, 24
    %v5327 = vpop.permute.xlu0 %5326
    %5328 = vrot.lane.b32.xlu0 %v5288, 24
    %v5329 = vpop.permute.xlu0 %5328
    %5330 = vrot.lane.b32.xlu0 %v5289, 24
    %v5331 = vpop.permute.xlu0 %5330
    %5332 = vrot.lane.b32.xlu0 %v5290, 24
    %v5333 = vpop.permute.xlu0 %5332
    %5334 = vrot.lane.b32.xlu0 %v5291, 24
    %v5335 = vpop.permute.xlu0 %5334
    %5336 = vrot.lane.b32.xlu0 %v5292, 24
    %v5337 = vpop.permute.xlu0 %5336
    %5338 = vrot.lane.b32.xlu0 %v5293, 24
    %v5339 = vpop.permute.xlu0 %5338
    %5340 = vrot.lane.b32.xlu0 %v5294, 24
    %v5341 = vpop.permute.xlu0 %5340
    %5342 = vrot.lane.b32.xlu0 %v5295, 24
    %v5343 = vpop.permute.xlu0 %5342
    %vm5360 = vcmask 261312
    %5361 = vst.msk [vmem:[#allocation6] sm:$0xff] %vm5360, %v5313
    %5362 = vst.msk [vmem:[#allocation6 + $0x8] sm:$0xff] %vm5360, %v5315
    %5363 = vst.msk [vmem:[#allocation6 + $0x10] sm:$0xff] %vm5360, %v5317
    %5364 = vst.msk [vmem:[#allocation6 + $0x18] sm:$0xff] %vm5360, %v5319
    %5365 = vst.msk [vmem:[#allocation6 + $0x20] sm:$0xff] %vm5360, %v5321
    %5366 = vst.msk [vmem:[#allocation6 + $0x28] sm:$0xff] %vm5360, %v5323
    %5367 = vst.msk [vmem:[#allocation6 + $0x30] sm:$0xff] %vm5360, %v5325
    %5368 = vst.msk [vmem:[#allocation6 + $0x38] sm:$0xff] %vm5360, %v5327
    %5369 = vst.msk [vmem:[#allocation6 + $0x40] sm:$0xff] %vm5360, %v5329
    %5370 = vst.msk [vmem:[#allocation6 + $0x48] sm:$0xff] %vm5360, %v5331
    %5371 = vst.msk [vmem:[#allocation6 + $0x50] sm:$0xff] %vm5360, %v5333
    %5372 = vst.msk [vmem:[#allocation6 + $0x58] sm:$0xff] %vm5360, %v5335
    %5373 = vst.msk [vmem:[#allocation6 + $0x60] sm:$0xff] %vm5360, %v5337
    %5374 = vst.msk [vmem:[#allocation6 + $0x68] sm:$0xff] %vm5360, %v5339
    %5375 = vst.msk [vmem:[#allocation6 + $0x70] sm:$0xff] %vm5360, %v5341
    %5376 = vst.msk [vmem:[#allocation6 + $0x78] sm:$0xff] %vm5360, %v5343
    %v5377 = vld [vmem:[%s5037 + $0x1] sm:$0xff]
    %v5378 = vld [vmem:[%s5037 + $0x11] sm:$0xff]
    %v5379 = vld [vmem:[%s5037 + $0x21] sm:$0xff]
    %v5380 = vld [vmem:[%s5037 + $0x31] sm:$0xff]
    %v5381 = vld [vmem:[%s5037 + $0x41] sm:$0xff]
    %v5382 = vld [vmem:[%s5037 + $0x51] sm:$0xff]
    %v5383 = vld [vmem:[%s5037 + $0x61] sm:$0xff]
    %v5384 = vld [vmem:[%s5037 + $0x71] sm:$0xff]
    %v5385 = vld [vmem:[%s5037 + $0xa1] sm:$0xff]
    %v5386 = vld [vmem:[%s5037 + $0xb1] sm:$0xff]
    %v5387 = vld [vmem:[%s5037 + $0xc1] sm:$0xff]
    %v5388 = vld [vmem:[%s5037 + $0xd1] sm:$0xff]
    %v5389 = vld [vmem:[%s5037 + $0xe1] sm:$0xff]
    %v5390 = vld [vmem:[%s5037 + $0xf1] sm:$0xff]
    %v5391 = vld [vmem:[%s5037 + $0x101] sm:$0xff]
    %v5392 = vld [vmem:[%s5037 + $0x111] sm:$0xff]
    %5409 = vrot.lane.b32.xlu0 %v5377, 32
    %v5410 = vpop.permute.xlu0 %5409
    %5411 = vrot.lane.b32.xlu0 %v5378, 32
    %v5412 = vpop.permute.xlu0 %5411
    %5413 = vrot.lane.b32.xlu0 %v5379, 32
    %v5414 = vpop.permute.xlu0 %5413
    %5415 = vrot.lane.b32.xlu0 %v5380, 32
    %v5416 = vpop.permute.xlu0 %5415
    %5417 = vrot.lane.b32.xlu0 %v5381, 32
    %v5418 = vpop.permute.xlu0 %5417
    %5419 = vrot.lane.b32.xlu0 %v5382, 32
    %v5420 = vpop.permute.xlu0 %5419
    %5421 = vrot.lane.b32.xlu0 %v5383, 32
    %v5422 = vpop.permute.xlu0 %5421
    %5423 = vrot.lane.b32.xlu0 %v5384, 32
    %v5424 = vpop.permute.xlu0 %5423
    %5425 = vrot.lane.b32.xlu0 %v5385, 32
    %v5426 = vpop.permute.xlu0 %5425
    %5427 = vrot.lane.b32.xlu0 %v5386, 32
    %v5428 = vpop.permute.xlu0 %5427
    %5429 = vrot.lane.b32.xlu0 %v5387, 32
    %v5430 = vpop.permute.xlu0 %5429
    %5431 = vrot.lane.b32.xlu0 %v5388, 32
    %v5432 = vpop.permute.xlu0 %5431
    %5433 = vrot.lane.b32.xlu0 %v5389, 32
    %v5434 = vpop.permute.xlu0 %5433
    %5435 = vrot.lane.b32.xlu0 %v5390, 32
    %v5436 = vpop.permute.xlu0 %5435
    %5437 = vrot.lane.b32.xlu0 %v5391, 32
    %v5438 = vpop.permute.xlu0 %5437
    %5439 = vrot.lane.b32.xlu0 %v5392, 32
    %v5440 = vpop.permute.xlu0 %5439
    %vm5457 = vcmask 326912
    %5458 = vst.msk [vmem:[#allocation6] sm:$0xff] %vm5457, %v5410
    %5459 = vst.msk [vmem:[#allocation6 + $0x8] sm:$0xff] %vm5457, %v5412
    %5460 = vst.msk [vmem:[#allocation6 + $0x10] sm:$0xff] %vm5457, %v5414
    %5461 = vst.msk [vmem:[#allocation6 + $0x18] sm:$0xff] %vm5457, %v5416
    %5462 = vst.msk [vmem:[#allocation6 + $0x20] sm:$0xff] %vm5457, %v5418
    %5463 = vst.msk [vmem:[#allocation6 + $0x28] sm:$0xff] %vm5457, %v5420
    %5464 = vst.msk [vmem:[#allocation6 + $0x30] sm:$0xff] %vm5457, %v5422
    %5465 = vst.msk [vmem:[#allocation6 + $0x38] sm:$0xff] %vm5457, %v5424
    %5466 = vst.msk [vmem:[#allocation6 + $0x40] sm:$0xff] %vm5457, %v5426
    %5467 = vst.msk [vmem:[#allocation6 + $0x48] sm:$0xff] %vm5457, %v5428
    %5468 = vst.msk [vmem:[#allocation6 + $0x50] sm:$0xff] %vm5457, %v5430
    %5469 = vst.msk [vmem:[#allocation6 + $0x58] sm:$0xff] %vm5457, %v5432
    %5470 = vst.msk [vmem:[#allocation6 + $0x60] sm:$0xff] %vm5457, %v5434
    %5471 = vst.msk [vmem:[#allocation6 + $0x68] sm:$0xff] %vm5457, %v5436
    %5472 = vst.msk [vmem:[#allocation6 + $0x70] sm:$0xff] %vm5457, %v5438
    %5473 = vst.msk [vmem:[#allocation6 + $0x78] sm:$0xff] %vm5457, %v5440
    %v5474 = vld [vmem:[%s5037 + $0x2] sm:$0xff]
    %v5475 = vld [vmem:[%s5037 + $0x12] sm:$0xff]
    %v5476 = vld [vmem:[%s5037 + $0x22] sm:$0xff]
    %v5477 = vld [vmem:[%s5037 + $0x32] sm:$0xff]
    %v5478 = vld [vmem:[%s5037 + $0x42] sm:$0xff]
    %v5479 = vld [vmem:[%s5037 + $0x52] sm:$0xff]
    %v5480 = vld [vmem:[%s5037 + $0x62] sm:$0xff]
    %v5481 = vld [vmem:[%s5037 + $0x72] sm:$0xff]
    %v5482 = vld [vmem:[%s5037 + $0xa2] sm:$0xff]
    %v5483 = vld [vmem:[%s5037 + $0xb2] sm:$0xff]
    %v5484 = vld [vmem:[%s5037 + $0xc2] sm:$0xff]
    %v5485 = vld [vmem:[%s5037 + $0xd2] sm:$0xff]
    %v5486 = vld [vmem:[%s5037 + $0xe2] sm:$0xff]
    %v5487 = vld [vmem:[%s5037 + $0xf2] sm:$0xff]
    %v5488 = vld [vmem:[%s5037 + $0x102] sm:$0xff]
    %v5489 = vld [vmem:[%s5037 + $0x112] sm:$0xff]
    %5506 = vrot.lane.b32.xlu0 %v5474, 40
    %v5507 = vpop.permute.xlu0 %5506
    %5508 = vrot.lane.b32.xlu0 %v5475, 40
    %v5509 = vpop.permute.xlu0 %5508
    %5510 = vrot.lane.b32.xlu0 %v5476, 40
    %v5511 = vpop.permute.xlu0 %5510
    %5512 = vrot.lane.b32.xlu0 %v5477, 40
    %v5513 = vpop.permute.xlu0 %5512
    %5514 = vrot.lane.b32.xlu0 %v5478, 40
    %v5515 = vpop.permute.xlu0 %5514
    %5516 = vrot.lane.b32.xlu0 %v5479, 40
    %v5517 = vpop.permute.xlu0 %5516
    %5518 = vrot.lane.b32.xlu0 %v5480, 40
    %v5519 = vpop.permute.xlu0 %5518
    %5520 = vrot.lane.b32.xlu0 %v5481, 40
    %v5521 = vpop.permute.xlu0 %5520
    %5522 = vrot.lane.b32.xlu0 %v5482, 40
    %v5523 = vpop.permute.xlu0 %5522
    %5524 = vrot.lane.b32.xlu0 %v5483, 40
    %v5525 = vpop.permute.xlu0 %5524
    %5526 = vrot.lane.b32.xlu0 %v5484, 40
    %v5527 = vpop.permute.xlu0 %5526
    %5528 = vrot.lane.b32.xlu0 %v5485, 40
    %v5529 = vpop.permute.xlu0 %5528
    %5530 = vrot.lane.b32.xlu0 %v5486, 40
    %v5531 = vpop.permute.xlu0 %5530
    %5532 = vrot.lane.b32.xlu0 %v5487, 40
    %v5533 = vpop.permute.xlu0 %5532
    %5534 = vrot.lane.b32.xlu0 %v5488, 40
    %v5535 = vpop.permute.xlu0 %5534
    %5536 = vrot.lane.b32.xlu0 %v5489, 40
    %v5537 = vpop.permute.xlu0 %5536
    %vm5554 = vcmask 392512
    %5555 = vst.msk [vmem:[#allocation6] sm:$0xff] %vm5554, %v5507
    %5556 = vst.msk [vmem:[#allocation6 + $0x8] sm:$0xff] %vm5554, %v5509
    %5557 = vst.msk [vmem:[#allocation6 + $0x10] sm:$0xff] %vm5554, %v5511
    %5558 = vst.msk [vmem:[#allocation6 + $0x18] sm:$0xff] %vm5554, %v5513
    %5559 = vst.msk [vmem:[#allocation6 + $0x20] sm:$0xff] %vm5554, %v5515
    %5560 = vst.msk [vmem:[#allocation6 + $0x28] sm:$0xff] %vm5554, %v5517
    %5561 = vst.msk [vmem:[#allocation6 + $0x30] sm:$0xff] %vm5554, %v5519
    %5562 = vst.msk [vmem:[#allocation6 + $0x38] sm:$0xff] %vm5554, %v5521
    %5563 = vst.msk [vmem:[#allocation6 + $0x40] sm:$0xff] %vm5554, %v5523
    %5564 = vst.msk [vmem:[#allocation6 + $0x48] sm:$0xff] %vm5554, %v5525
    %5565 = vst.msk [vmem:[#allocation6 + $0x50] sm:$0xff] %vm5554, %v5527
    %5566 = vst.msk [vmem:[#allocation6 + $0x58] sm:$0xff] %vm5554, %v5529
    %5567 = vst.msk [vmem:[#allocation6 + $0x60] sm:$0xff] %vm5554, %v5531
    %5568 = vst.msk [vmem:[#allocation6 + $0x68] sm:$0xff] %vm5554, %v5533
    %5569 = vst.msk [vmem:[#allocation6 + $0x70] sm:$0xff] %vm5554, %v5535
    %5570 = vst.msk [vmem:[#allocation6 + $0x78] sm:$0xff] %vm5554, %v5537
    %s5571 = scalar_lea.vmem [#allocation5], 32
    %v5572 = vld [vmem:[%s5571] sm:$0xff]
    %v5573 = vld [vmem:[%s5571 + $0x10] sm:$0xff]
    %v5574 = vld [vmem:[%s5571 + $0x20] sm:$0xff]
    %v5575 = vld [vmem:[%s5571 + $0x30] sm:$0xff]
    %v5576 = vld [vmem:[%s5571 + $0x40] sm:$0xff]
    %v5577 = vld [vmem:[%s5571 + $0x50] sm:$0xff]
    %v5578 = vld [vmem:[%s5571 + $0x60] sm:$0xff]
    %v5579 = vld [vmem:[%s5571 + $0x70] sm:$0xff]
    %v5580 = vld [vmem:[%s5571 + $0xa0] sm:$0xff]
    %v5581 = vld [vmem:[%s5571 + $0xb0] sm:$0xff]
    %v5582 = vld [vmem:[%s5571 + $0xc0] sm:$0xff]
    %v5583 = vld [vmem:[%s5571 + $0xd0] sm:$0xff]
    %v5584 = vld [vmem:[%s5571 + $0xe0] sm:$0xff]
    %v5585 = vld [vmem:[%s5571 + $0xf0] sm:$0xff]
    %v5586 = vld [vmem:[%s5571 + $0x100] sm:$0xff]
    %v5587 = vld [vmem:[%s5571 + $0x110] sm:$0xff]
    %5604 = vrot.lane.b32.xlu0 %v5572, 48
    %v5605 = vpop.permute.xlu0 %5604
    %5606 = vrot.lane.b32.xlu0 %v5573, 48
    %v5607 = vpop.permute.xlu0 %5606
    %5608 = vrot.lane.b32.xlu0 %v5574, 48
    %v5609 = vpop.permute.xlu0 %5608
    %5610 = vrot.lane.b32.xlu0 %v5575, 48
    %v5611 = vpop.permute.xlu0 %5610
    %5612 = vrot.lane.b32.xlu0 %v5576, 48
    %v5613 = vpop.permute.xlu0 %5612
    %5614 = vrot.lane.b32.xlu0 %v5577, 48
    %v5615 = vpop.permute.xlu0 %5614
    %5616 = vrot.lane.b32.xlu0 %v5578, 48
    %v5617 = vpop.permute.xlu0 %5616
    %5618 = vrot.lane.b32.xlu0 %v5579, 48
    %v5619 = vpop.permute.xlu0 %5618
    %5620 = vrot.lane.b32.xlu0 %v5580, 48
    %v5621 = vpop.permute.xlu0 %5620
    %5622 = vrot.lane.b32.xlu0 %v5581, 48
    %v5623 = vpop.permute.xlu0 %5622
    %5624 = vrot.lane.b32.xlu0 %v5582, 48
    %v5625 = vpop.permute.xlu0 %5624
    %5626 = vrot.lane.b32.xlu0 %v5583, 48
    %v5627 = vpop.permute.xlu0 %5626
    %5628 = vrot.lane.b32.xlu0 %v5584, 48
    %v5629 = vpop.permute.xlu0 %5628
    %5630 = vrot.lane.b32.xlu0 %v5585, 48
    %v5631 = vpop.permute.xlu0 %5630
    %5632 = vrot.lane.b32.xlu0 %v5586, 48
    %v5633 = vpop.permute.xlu0 %5632
    %5634 = vrot.lane.b32.xlu0 %v5587, 48
    %v5635 = vpop.permute.xlu0 %5634
    %vm5652 = vcmask 458112
    %5653 = vst.msk [vmem:[#allocation6] sm:$0xff] %vm5652, %v5605
    %5654 = vst.msk [vmem:[#allocation6 + $0x8] sm:$0xff] %vm5652, %v5607
    %5655 = vst.msk [vmem:[#allocation6 + $0x10] sm:$0xff] %vm5652, %v5609
    %5656 = vst.msk [vmem:[#allocation6 + $0x18] sm:$0xff] %vm5652, %v5611
    %5657 = vst.msk [vmem:[#allocation6 + $0x20] sm:$0xff] %vm5652, %v5613
    %5658 = vst.msk [vmem:[#allocation6 + $0x28] sm:$0xff] %vm5652, %v5615
    %5659 = vst.msk [vmem:[#allocation6 + $0x30] sm:$0xff] %vm5652, %v5617
    %5660 = vst.msk [vmem:[#allocation6 + $0x38] sm:$0xff] %vm5652, %v5619
    %5661 = vst.msk [vmem:[#allocation6 + $0x40] sm:$0xff] %vm5652, %v5621
    %5662 = vst.msk [vmem:[#allocation6 + $0x48] sm:$0xff] %vm5652, %v5623
    %5663 = vst.msk [vmem:[#allocation6 + $0x50] sm:$0xff] %vm5652, %v5625
    %5664 = vst.msk [vmem:[#allocation6 + $0x58] sm:$0xff] %vm5652, %v5627
    %5665 = vst.msk [vmem:[#allocation6 + $0x60] sm:$0xff] %vm5652, %v5629
    %5666 = vst.msk [vmem:[#allocation6 + $0x68] sm:$0xff] %vm5652, %v5631
    %5667 = vst.msk [vmem:[#allocation6 + $0x70] sm:$0xff] %vm5652, %v5633
    %5668 = vst.msk [vmem:[#allocation6 + $0x78] sm:$0xff] %vm5652, %v5635
    %v5669 = vld [vmem:[%s5571 + $0x1] sm:$0xff]
    %v5670 = vld [vmem:[%s5571 + $0x11] sm:$0xff]
    %v5671 = vld [vmem:[%s5571 + $0x21] sm:$0xff]
    %v5672 = vld [vmem:[%s5571 + $0x31] sm:$0xff]
    %v5673 = vld [vmem:[%s5571 + $0x41] sm:$0xff]
    %v5674 = vld [vmem:[%s5571 + $0x51] sm:$0xff]
    %v5675 = vld [vmem:[%s5571 + $0x61] sm:$0xff]
    %v5676 = vld [vmem:[%s5571 + $0x71] sm:$0xff]
    %v5677 = vld [vmem:[%s5571 + $0xa1] sm:$0xff]
    %v5678 = vld [vmem:[%s5571 + $0xb1] sm:$0xff]
    %v5679 = vld [vmem:[%s5571 + $0xc1] sm:$0xff]
    %v5680 = vld [vmem:[%s5571 + $0xd1] sm:$0xff]
    %v5681 = vld [vmem:[%s5571 + $0xe1] sm:$0xff]
    %v5682 = vld [vmem:[%s5571 + $0xf1] sm:$0xff]
    %v5683 = vld [vmem:[%s5571 + $0x101] sm:$0xff]
    %v5684 = vld [vmem:[%s5571 + $0x111] sm:$0xff]
    %5701 = vrot.lane.b32.xlu0 %v5669, 56
    %v5702 = vpop.permute.xlu0 %5701
    %5703 = vrot.lane.b32.xlu0 %v5670, 56
    %v5704 = vpop.permute.xlu0 %5703
    %5705 = vrot.lane.b32.xlu0 %v5671, 56
    %v5706 = vpop.permute.xlu0 %5705
    %5707 = vrot.lane.b32.xlu0 %v5672, 56
    %v5708 = vpop.permute.xlu0 %5707
    %5709 = vrot.lane.b32.xlu0 %v5673, 56
    %v5710 = vpop.permute.xlu0 %5709
    %5711 = vrot.lane.b32.xlu0 %v5674, 56
    %v5712 = vpop.permute.xlu0 %5711
    %5713 = vrot.lane.b32.xlu0 %v5675, 56
    %v5714 = vpop.permute.xlu0 %5713
    %5715 = vrot.lane.b32.xlu0 %v5676, 56
    %v5716 = vpop.permute.xlu0 %5715
    %5717 = vrot.lane.b32.xlu0 %v5677, 56
    %v5718 = vpop.permute.xlu0 %5717
    %5719 = vrot.lane.b32.xlu0 %v5678, 56
    %v5720 = vpop.permute.xlu0 %5719
    %5721 = vrot.lane.b32.xlu0 %v5679, 56
    %v5722 = vpop.permute.xlu0 %5721
    %5723 = vrot.lane.b32.xlu0 %v5680, 56
    %v5724 = vpop.permute.xlu0 %5723
    %5725 = vrot.lane.b32.xlu0 %v5681, 56
    %v5726 = vpop.permute.xlu0 %5725
    %5727 = vrot.lane.b32.xlu0 %v5682, 56
    %v5728 = vpop.permute.xlu0 %5727
    %5729 = vrot.lane.b32.xlu0 %v5683, 56
    %v5730 = vpop.permute.xlu0 %5729
    %5731 = vrot.lane.b32.xlu0 %v5684, 56
    %v5732 = vpop.permute.xlu0 %5731
    %vm5749 = vcmask 523712
    %5750 = vst.msk [vmem:[#allocation6] sm:$0xff] %vm5749, %v5702
    %5751 = vst.msk [vmem:[#allocation6 + $0x8] sm:$0xff] %vm5749, %v5704
    %5752 = vst.msk [vmem:[#allocation6 + $0x10] sm:$0xff] %vm5749, %v5706
    %5753 = vst.msk [vmem:[#allocation6 + $0x18] sm:$0xff] %vm5749, %v5708
    %5754 = vst.msk [vmem:[#allocation6 + $0x20] sm:$0xff] %vm5749, %v5710
    %5755 = vst.msk [vmem:[#allocation6 + $0x28] sm:$0xff] %vm5749, %v5712
    %5756 = vst.msk [vmem:[#allocation6 + $0x30] sm:$0xff] %vm5749, %v5714
    %5757 = vst.msk [vmem:[#allocation6 + $0x38] sm:$0xff] %vm5749, %v5716
    %5758 = vst.msk [vmem:[#allocation6 + $0x40] sm:$0xff] %vm5749, %v5718
    %5759 = vst.msk [vmem:[#allocation6 + $0x48] sm:$0xff] %vm5749, %v5720
    %5760 = vst.msk [vmem:[#allocation6 + $0x50] sm:$0xff] %vm5749, %v5722
    %5761 = vst.msk [vmem:[#allocation6 + $0x58] sm:$0xff] %vm5749, %v5724
    %5762 = vst.msk [vmem:[#allocation6 + $0x60] sm:$0xff] %vm5749, %v5726
    %5763 = vst.msk [vmem:[#allocation6 + $0x68] sm:$0xff] %vm5749, %v5728
    %5764 = vst.msk [vmem:[#allocation6 + $0x70] sm:$0xff] %vm5749, %v5730
    %5765 = vst.msk [vmem:[#allocation6 + $0x78] sm:$0xff] %vm5749, %v5732
    %v5766 = vld [vmem:[%s5571 + $0x2] sm:$0xff]
    %v5767 = vld [vmem:[%s5571 + $0x12] sm:$0xff]
    %v5768 = vld [vmem:[%s5571 + $0x22] sm:$0xff]
    %v5769 = vld [vmem:[%s5571 + $0x32] sm:$0xff]
    %v5770 = vld [vmem:[%s5571 + $0x42] sm:$0xff]
    %v5771 = vld [vmem:[%s5571 + $0x52] sm:$0xff]
    %v5772 = vld [vmem:[%s5571 + $0x62] sm:$0xff]
    %v5773 = vld [vmem:[%s5571 + $0x72] sm:$0xff]
    %v5774 = vld [vmem:[%s5571 + $0xa2] sm:$0xff]
    %v5775 = vld [vmem:[%s5571 + $0xb2] sm:$0xff]
    %v5776 = vld [vmem:[%s5571 + $0xc2] sm:$0xff]
    %v5777 = vld [vmem:[%s5571 + $0xd2] sm:$0xff]
    %v5778 = vld [vmem:[%s5571 + $0xe2] sm:$0xff]
    %v5779 = vld [vmem:[%s5571 + $0xf2] sm:$0xff]
    %v5780 = vld [vmem:[%s5571 + $0x102] sm:$0xff]
    %v5781 = vld [vmem:[%s5571 + $0x112] sm:$0xff]
    %5798 = vrot.lane.b32.xlu0 %v5766, 64
    %v5799 = vpop.permute.xlu0 %5798
    %5800 = vrot.lane.b32.xlu0 %v5767, 64
    %v5801 = vpop.permute.xlu0 %5800
    %5802 = vrot.lane.b32.xlu0 %v5768, 64
    %v5803 = vpop.permute.xlu0 %5802
    %5804 = vrot.lane.b32.xlu0 %v5769, 64
    %v5805 = vpop.permute.xlu0 %5804
    %5806 = vrot.lane.b32.xlu0 %v5770, 64
    %v5807 = vpop.permute.xlu0 %5806
    %5808 = vrot.lane.b32.xlu0 %v5771, 64
    %v5809 = vpop.permute.xlu0 %5808
    %5810 = vrot.lane.b32.xlu0 %v5772, 64
    %v5811 = vpop.permute.xlu0 %5810
    %5812 = vrot.lane.b32.xlu0 %v5773, 64
    %v5813 = vpop.permute.xlu0 %5812
    %5814 = vrot.lane.b32.xlu0 %v5774, 64
    %v5815 = vpop.permute.xlu0 %5814
    %5816 = vrot.lane.b32.xlu0 %v5775, 64
    %v5817 = vpop.permute.xlu0 %5816
    %5818 = vrot.lane.b32.xlu0 %v5776, 64
    %v5819 = vpop.permute.xlu0 %5818
    %5820 = vrot.lane.b32.xlu0 %v5777, 64
    %v5821 = vpop.permute.xlu0 %5820
    %5822 = vrot.lane.b32.xlu0 %v5778, 64
    %v5823 = vpop.permute.xlu0 %5822
    %5824 = vrot.lane.b32.xlu0 %v5779, 64
    %v5825 = vpop.permute.xlu0 %5824
    %5826 = vrot.lane.b32.xlu0 %v5780, 64
    %v5827 = vpop.permute.xlu0 %5826
    %5828 = vrot.lane.b32.xlu0 %v5781, 64
    %v5829 = vpop.permute.xlu0 %5828
    %vm5846 = vcmask 589312
    %5847 = vst.msk [vmem:[#allocation6] sm:$0xff] %vm5846, %v5799
    %5848 = vst.msk [vmem:[#allocation6 + $0x8] sm:$0xff] %vm5846, %v5801
    %5849 = vst.msk [vmem:[#allocation6 + $0x10] sm:$0xff] %vm5846, %v5803
    %5850 = vst.msk [vmem:[#allocation6 + $0x18] sm:$0xff] %vm5846, %v5805
    %5851 = vst.msk [vmem:[#allocation6 + $0x20] sm:$0xff] %vm5846, %v5807
    %5852 = vst.msk [vmem:[#allocation6 + $0x28] sm:$0xff] %vm5846, %v5809
    %5853 = vst.msk [vmem:[#allocation6 + $0x30] sm:$0xff] %vm5846, %v5811
    %5854 = vst.msk [vmem:[#allocation6 + $0x38] sm:$0xff] %vm5846, %v5813
    %5855 = vst.msk [vmem:[#allocation6 + $0x40] sm:$0xff] %vm5846, %v5815
    %5856 = vst.msk [vmem:[#allocation6 + $0x48] sm:$0xff] %vm5846, %v5817
    %5857 = vst.msk [vmem:[#allocation6 + $0x50] sm:$0xff] %vm5846, %v5819
    %5858 = vst.msk [vmem:[#allocation6 + $0x58] sm:$0xff] %vm5846, %v5821
    %5859 = vst.msk [vmem:[#allocation6 + $0x60] sm:$0xff] %vm5846, %v5823
    %5860 = vst.msk [vmem:[#allocation6 + $0x68] sm:$0xff] %vm5846, %v5825
    %5861 = vst.msk [vmem:[#allocation6 + $0x70] sm:$0xff] %vm5846, %v5827
    %5862 = vst.msk [vmem:[#allocation6 + $0x78] sm:$0xff] %vm5846, %v5829
    %v5863 = vld [vmem:[#allocation6] sm:$0xff]
    %v5864 = vld [vmem:[#allocation6 + $0x8] sm:$0xff]
    %v5865 = vld [vmem:[#allocation6 + $0x10] sm:$0xff]
    %v5866 = vld [vmem:[#allocation6 + $0x18] sm:$0xff]
    %v5867 = vld [vmem:[#allocation6 + $0x20] sm:$0xff]
    %v5868 = vld [vmem:[#allocation6 + $0x28] sm:$0xff]
    %v5869 = vld [vmem:[#allocation6 + $0x30] sm:$0xff]
    %v5870 = vld [vmem:[#allocation6 + $0x38] sm:$0xff]
    %v5871 = vld [vmem:[#allocation6 + $0x40] sm:$0xff]
    %v5872 = vld [vmem:[#allocation6 + $0x48] sm:$0xff]
    %v5873 = vld [vmem:[#allocation6 + $0x50] sm:$0xff]
    %v5874 = vld [vmem:[#allocation6 + $0x58] sm:$0xff]
    %v5875 = vld [vmem:[#allocation6 + $0x60] sm:$0xff]
    %v5876 = vld [vmem:[#allocation6 + $0x68] sm:$0xff]
    %v5877 = vld [vmem:[#allocation6 + $0x70] sm:$0xff]
    %v5878 = vld [vmem:[#allocation6 + $0x78] sm:$0xff]
    %v5879 = vld [vmem:[%s5] sm:$0xff]
    %v5880 = vld [vmem:[%s5 + $0x8] sm:$0xff]
    %v5881 = vld [vmem:[%s5 + $0x10] sm:$0xff]
    %v5882 = vld [vmem:[%s5 + $0x18] sm:$0xff]
    %v5883 = vld [vmem:[%s5 + $0x20] sm:$0xff]
    %v5884 = vld [vmem:[%s5 + $0x28] sm:$0xff]
    %v5885 = vld [vmem:[%s5 + $0x30] sm:$0xff]
    %v5886 = vld [vmem:[%s5 + $0x38] sm:$0xff]
    %v5887 = vld [vmem:[%s5 + $0x40] sm:$0xff]
    %v5888 = vld [vmem:[%s6] sm:$0x1]
    %v5890 = vlaneseq
    %v5891 = vshrl.u32 %v5890, 7
    %v5892 = vsub.s32 0, %v5891
    %v5893 = vrot.slane %v5888, %v5892
    %vm5895 = vcmask 588800
    %v5897 = vsel %vm5895, %v5863, 0
    %v5900 = vsel %vm5895, %v5864, 0
    %v5903 = vsel %vm5895, %v5865, 0
    %v5906 = vsel %vm5895, %v5866, 0
    %v5909 = vsel %vm5895, %v5867, 0
    %v5912 = vsel %vm5895, %v5868, 0
    %v5915 = vsel %vm5895, %v5869, 0
    %v5918 = vsel %vm5895, %v5870, 0
    %v5921 = vsel %vm5895, %v5871, 0
    %v5924 = vsel %vm5895, %v5872, 0
    %v5927 = vsel %vm5895, %v5873, 0
    %v5930 = vsel %vm5895, %v5874, 0
    %v5933 = vsel %vm5895, %v5875, 0
    %v5936 = vsel %vm5895, %v5876, 0
    %v5939 = vsel %vm5895, %v5877, 0
    %v5942 = vsel %vm5895, %v5878, 0
    %5944 = vmatprep.subr.mxu0 0.0
    %5945 = vmatpush1.msra.mxu0 0.0
    %5946 = vmatprep.subr.mxu0 0.0
    %5947 = vmatpush1.msra.mxu0 0.0
    %5948 = vmatprep.subr.mxu0 0.0
    %5949 = vmatpush1.msra.mxu0 0.0
    %5950 = vmatprep.subr.mxu0 0.0
    %5951 = vmatpush1.msra.mxu0 0.0
    %5952 = vmatprep.subr.mxu0 0.0
    %5953 = vmatpush1.msra.mxu0 0.0
    %5954 = vmatprep.subr.mxu0 0.0
    %5955 = vmatpush1.msra.mxu0 0.0
    %5956 = vmatprep.subr.mxu0 0.0
    %5957 = vmatpush1.msra.mxu0 0.0
    %5958 = vmatprep.subr.mxu0 0.0
    %5959 = vmatpush1.msra.mxu0 %v5887
    %5960 = vmatprep.subr.mxu0 0.0
    %5961 = vmatpush1.msra.mxu0 %v5886
    %5962 = vmatprep.subr.mxu0 0.0
    %5963 = vmatpush1.msra.mxu0 %v5885
    %5964 = vmatprep.subr.mxu0 0.0
    %5965 = vmatpush1.msra.mxu0 %v5884
    %5966 = vmatprep.subr.mxu0 0.0
    %5967 = vmatpush1.msra.mxu0 %v5883
    %5968 = vmatprep.subr.mxu0 0.0
    %5969 = vmatpush1.msra.mxu0 %v5882
    %5970 = vmatprep.subr.mxu0 0.0
    %5971 = vmatpush1.msra.mxu0 %v5881
    %5972 = vmatprep.subr.mxu0 0.0
    %5973 = vmatpush1.msra.mxu0 %v5880
    %5974 = vmatprep.subr.mxu0 0.0
    %5975 = vmatpush1.msra.mxu0 %v5879
    %5976 = vmatprep.subr.mxu0 0.0
    %5977 = vmatpush2.msra.mxu0 0.0
    %5978 = vmatprep.subr.mxu0 0.0
    %5979 = vmatpush2.msra.mxu0 0.0
    %5980 = vmatprep.subr.mxu0 0.0
    %5981 = vmatpush2.msra.mxu0 0.0
    %5982 = vmatprep.subr.mxu0 0.0
    %5983 = vmatpush2.msra.mxu0 0.0
    %5984 = vmatprep.subr.mxu0 0.0
    %5985 = vmatpush2.msra.mxu0 0.0
    %5986 = vmatprep.subr.mxu0 0.0
    %5987 = vmatpush2.msra.mxu0 0.0
    %5988 = vmatprep.subr.mxu0 0.0
    %5989 = vmatpush2.msra.mxu0 0.0
    %5990 = vmatprep.subr.mxu0 0.0
    %5991 = vmatpush2.msra.mxu0 0.0
    %5992 = vmatprep.subr.mxu0 0.0
    %5993 = vmatpush2.msra.mxu0 0.0
    %5994 = vmatprep.subr.mxu0 0.0
    %5995 = vmatpush2.msra.mxu0 0.0
    %5996 = vmatprep.subr.mxu0 0.0
    %5997 = vmatpush2.msra.mxu0 0.0
    %5998 = vmatprep.subr.mxu0 0.0
    %5999 = vmatpush2.msra.mxu0 0.0
    %6000 = vmatprep.subr.mxu0 0.0
    %6001 = vmatpush2.msra.mxu0 0.0
    %6002 = vmatprep.subr.mxu0 0.0
    %6003 = vmatpush2.msra.mxu0 0.0
    %6004 = vmatprep.subr.mxu0 0.0
    %6005 = vmatpush2.msra.mxu0 0.0
    %6006 = vmatprep.subr.mxu0 0.0
    %6007 = vmatpush2.msra.mxu0 0.0
    %6008 = vmatprep.mubr.f32.mxu0 0.0
    %6009 = vmatmul.mubr.f32.gmra.mxu0 %v5897
    %v6010 = vpop.f32.mrf.mxu0
    %v6011 = vadd.f32 %v5893, %v6010
    %v6012 = vpop.f32.mrf.mxu0
    %6013 = vmatprep.mubr.f32.mxu0 0.0
    %6014 = vmatmul.mubr.f32.gmra.mxu0 %v5900
    %v6015 = vpop.f32.mrf.mxu0
    %v6016 = vadd.f32 %v5893, %v6015
    %v6017 = vpop.f32.mrf.mxu0
    %6018 = vmatprep.mubr.f32.mxu0 0.0
    %6019 = vmatmul.mubr.f32.gmra.mxu0 %v5903
    %v6020 = vpop.f32.mrf.mxu0
    %v6021 = vadd.f32 %v5893, %v6020
    %v6022 = vpop.f32.mrf.mxu0
    %6023 = vmatprep.mubr.f32.mxu0 0.0
    %6024 = vmatmul.mubr.f32.gmra.mxu0 %v5906
    %v6025 = vpop.f32.mrf.mxu0
    %v6026 = vadd.f32 %v5893, %v6025
    %v6027 = vpop.f32.mrf.mxu0
    %6028 = vmatprep.mubr.f32.mxu0 0.0
    %6029 = vmatmul.mubr.f32.gmra.mxu0 %v5909
    %v6030 = vpop.f32.mrf.mxu0
    %v6031 = vadd.f32 %v5893, %v6030
    %v6032 = vpop.f32.mrf.mxu0
    %6033 = vmatprep.mubr.f32.mxu0 0.0
    %6034 = vmatmul.mubr.f32.gmra.mxu0 %v5912
    %v6035 = vpop.f32.mrf.mxu0
    %v6036 = vadd.f32 %v5893, %v6035
    %v6037 = vpop.f32.mrf.mxu0
    %6038 = vmatprep.mubr.f32.mxu0 0.0
    %6039 = vmatmul.mubr.f32.gmra.mxu0 %v5915
    %v6040 = vpop.f32.mrf.mxu0
    %v6041 = vadd.f32 %v5893, %v6040
    %v6042 = vpop.f32.mrf.mxu0
    %6043 = vmatprep.mubr.f32.mxu0 0.0
    %6044 = vmatmul.mubr.f32.gmra.mxu0 %v5918
    %v6045 = vpop.f32.mrf.mxu0
    %v6046 = vadd.f32 %v5893, %v6045
    %v6047 = vpop.f32.mrf.mxu0
    %6048 = vmatprep.mubr.f32.mxu0 0.0
    %6049 = vmatmul.mubr.f32.gmra.mxu0 %v5921
    %v6050 = vpop.f32.mrf.mxu0
    %v6051 = vadd.f32 %v5893, %v6050
    %v6052 = vpop.f32.mrf.mxu0
    %6053 = vmatprep.mubr.f32.mxu0 0.0
    %6054 = vmatmul.mubr.f32.gmra.mxu0 %v5924
    %v6055 = vpop.f32.mrf.mxu0
    %v6056 = vadd.f32 %v5893, %v6055
    %v6057 = vpop.f32.mrf.mxu0
    %6058 = vmatprep.mubr.f32.mxu0 0.0
    %6059 = vmatmul.mubr.f32.gmra.mxu0 %v5927
    %v6060 = vpop.f32.mrf.mxu0
    %v6061 = vadd.f32 %v5893, %v6060
    %v6062 = vpop.f32.mrf.mxu0
    %6063 = vmatprep.mubr.f32.mxu0 0.0
    %6064 = vmatmul.mubr.f32.gmra.mxu0 %v5930
    %v6065 = vpop.f32.mrf.mxu0
    %v6066 = vadd.f32 %v5893, %v6065
    %v6067 = vpop.f32.mrf.mxu0
    %6068 = vmatprep.mubr.f32.mxu0 0.0
    %6069 = vmatmul.mubr.f32.gmra.mxu0 %v5933
    %v6070 = vpop.f32.mrf.mxu0
    %v6071 = vadd.f32 %v5893, %v6070
    %v6072 = vpop.f32.mrf.mxu0
    %6073 = vmatprep.mubr.f32.mxu0 0.0
    %6074 = vmatmul.mubr.f32.gmra.mxu0 %v5936
    %v6075 = vpop.f32.mrf.mxu0
    %v6076 = vadd.f32 %v5893, %v6075
    %v6077 = vpop.f32.mrf.mxu0
    %6078 = vmatprep.mubr.f32.mxu0 0.0
    %6079 = vmatmul.mubr.f32.gmra.mxu0 %v5939
    %v6080 = vpop.f32.mrf.mxu0
    %v6081 = vadd.f32 %v5893, %v6080
    %v6082 = vpop.f32.mrf.mxu0
    %6083 = vmatprep.mubr.f32.mxu0 0.0
    %6084 = vmatmul.mubr.f32.gmra.mxu0 %v5942
    %v6085 = vpop.f32.mrf.mxu0
    %v6086 = vadd.f32 %v5893, %v6085
    %v6087 = vpop.f32.mrf.mxu0
    %6088 = vdwg.mxu0
    %vm6089 = vcmask 130048
    %v6090 = vsel %vm6089, %v6011, 0.0
    %v6091 = vsel %vm6089, %v6016, 0.0
    %v6092 = vadd.f32 %v6090, %v6091
    %v6093 = vsel %vm6089, %v6021, 0.0
    %v6094 = vadd.f32 %v6092, %v6093
    %v6095 = vsel %vm6089, %v6026, 0.0
    %v6096 = vadd.f32 %v6094, %v6095
    %v6097 = vsel %vm6089, %v6031, 0.0
    %v6098 = vadd.f32 %v6096, %v6097
    %v6099 = vsel %vm6089, %v6036, 0.0
    %v6100 = vadd.f32 %v6098, %v6099
    %v6101 = vsel %vm6089, %v6041, 0.0
    %v6102 = vadd.f32 %v6100, %v6101
    %v6103 = vsel %vm6089, %v6046, 0.0
    %v6104 = vadd.f32 %v6102, %v6103
    %v6105 = vsel %vm6089, %v6051, 0.0
    %v6106 = vadd.f32 %v6104, %v6105
    %v6107 = vsel %vm6089, %v6056, 0.0
    %v6108 = vadd.f32 %v6106, %v6107
    %v6109 = vsel %vm6089, %v6061, 0.0
    %v6110 = vadd.f32 %v6108, %v6109
    %v6111 = vsel %vm6089, %v6066, 0.0
    %v6112 = vadd.f32 %v6110, %v6111
    %v6113 = vsel %vm6089, %v6071, 0.0
    %v6114 = vadd.f32 %v6112, %v6113
    %v6115 = vsel %vm6089, %v6076, 0.0
    %v6116 = vadd.f32 %v6114, %v6115
    %v6117 = vsel %vm6089, %v6081, 0.0
    %v6118 = vadd.f32 %v6116, %v6117
    %v6119 = vsel %vm6089, %v6086, 0.0
    %v6120 = vadd.f32 %v6118, %v6119
    %v6121 = vrot.slane %v6120, 4
    %v6122 = vadd.f32 %v6120, %v6121
    %v6123 = vrot.slane %v6122, 2
    %v6124 = vadd.f32 %v6122, %v6123
    %v6125 = vrot.slane %v6124, 1
    %v6126 = vadd.f32 %v6124, %v6125
    %v6127 = vmul.f32 %v6126, 0.0078125
    %v6128 = vsub.f32 %v6011, %v6127
    %v6129 = vsub.f32 %v6016, %v6127
    %v6130 = vsub.f32 %v6021, %v6127
    %v6131 = vsub.f32 %v6026, %v6127
    %v6132 = vsub.f32 %v6031, %v6127
    %v6133 = vsub.f32 %v6036, %v6127
    %v6134 = vsub.f32 %v6041, %v6127
    %v6135 = vsub.f32 %v6046, %v6127
    %v6136 = vsub.f32 %v6051, %v6127
    %v6137 = vsub.f32 %v6056, %v6127
    %v6138 = vsub.f32 %v6061, %v6127
    %v6139 = vsub.f32 %v6066, %v6127
    %v6140 = vsub.f32 %v6071, %v6127
    %v6141 = vsub.f32 %v6076, %v6127
    %v6142 = vsub.f32 %v6081, %v6127
    %v6143 = vsub.f32 %v6086, %v6127
    %v6144 = vmul.f32 %v6128, %v6128
    %v6145 = vmul.f32 %v6129, %v6129
    %v6146 = vmul.f32 %v6130, %v6130
    %v6147 = vmul.f32 %v6131, %v6131
    %v6148 = vmul.f32 %v6132, %v6132
    %v6149 = vmul.f32 %v6133, %v6133
    %v6150 = vmul.f32 %v6134, %v6134
    %v6151 = vmul.f32 %v6135, %v6135
    %v6152 = vmul.f32 %v6136, %v6136
    %v6153 = vmul.f32 %v6137, %v6137
    %v6154 = vmul.f32 %v6138, %v6138
    %v6155 = vmul.f32 %v6139, %v6139
    %v6156 = vmul.f32 %v6140, %v6140
    %v6157 = vmul.f32 %v6141, %v6141
    %v6158 = vmul.f32 %v6142, %v6142
    %v6159 = vmul.f32 %v6143, %v6143
    %v6160 = vsel %vm6089, %v6144, 0.0
    %v6161 = vsel %vm6089, %v6145, 0.0
    %v6162 = vadd.f32 %v6160, %v6161
    %v6163 = vsel %vm6089, %v6146, 0.0
    %v6164 = vadd.f32 %v6162, %v6163
    %v6165 = vsel %vm6089, %v6147, 0.0
    %v6166 = vadd.f32 %v6164, %v6165
    %v6167 = vsel %vm6089, %v6148, 0.0
    %v6168 = vadd.f32 %v6166, %v6167
    %v6169 = vsel %vm6089, %v6149, 0.0
    %v6170 = vadd.f32 %v6168, %v6169
    %v6171 = vsel %vm6089, %v6150, 0.0
    %v6172 = vadd.f32 %v6170, %v6171
    %v6173 = vsel %vm6089, %v6151, 0.0
    %v6174 = vadd.f32 %v6172, %v6173
    %v6175 = vsel %vm6089, %v6152, 0.0
    %v6176 = vadd.f32 %v6174, %v6175
    %v6177 = vsel %vm6089, %v6153, 0.0
    %v6178 = vadd.f32 %v6176, %v6177
    %v6179 = vsel %vm6089, %v6154, 0.0
    %v6180 = vadd.f32 %v6178, %v6179
    %v6181 = vsel %vm6089, %v6155, 0.0
    %v6182 = vadd.f32 %v6180, %v6181
    %v6183 = vsel %vm6089, %v6156, 0.0
    %v6184 = vadd.f32 %v6182, %v6183
    %v6185 = vsel %vm6089, %v6157, 0.0
    %v6186 = vadd.f32 %v6184, %v6185
    %v6187 = vsel %vm6089, %v6158, 0.0
    %v6188 = vadd.f32 %v6186, %v6187
    %v6189 = vsel %vm6089, %v6159, 0.0
    %v6190 = vadd.f32 %v6188, %v6189
    %v6191 = vrot.slane %v6190, 4
    %v6192 = vadd.f32 %v6190, %v6191
    %v6193 = vrot.slane %v6192, 2
    %v6194 = vadd.f32 %v6192, %v6193
    %v6195 = vrot.slane %v6194, 1
    %v6196 = vadd.f32 %v6194, %v6195
    %v6197 = vmul.f32 %v6196, 0.0078125
    %v6198 = vld [vmem:[%s7] sm:$0x1]
    %v6199 = vadd.f32 %v6197, 1e-05
    %v6200 = vrsqrt.pop %v6199
    %v6201 = vmul.f32 %v6198, %v6200
    %v6203 = vlaneseq
    %v6204 = vshrl.u32 %v6203, 7
    %v6205 = vsub.s32 0, %v6204
    %v6206 = vrot.slane %v6201, %v6205
    %v6208 = vmul.f32 %v6128, %v6206
    %v6209 = vmul.f32 %v6129, %v6206
    %v6210 = vmul.f32 %v6130, %v6206
    %v6211 = vmul.f32 %v6131, %v6206
    %v6212 = vmul.f32 %v6132, %v6206
    %v6213 = vmul.f32 %v6133, %v6206
    %v6214 = vmul.f32 %v6134, %v6206
    %v6215 = vmul.f32 %v6135, %v6206
    %v6216 = vmul.f32 %v6136, %v6206
    %v6217 = vmul.f32 %v6137, %v6206
    %v6218 = vmul.f32 %v6138, %v6206
    %v6219 = vmul.f32 %v6139, %v6206
    %v6220 = vmul.f32 %v6140, %v6206
    %v6221 = vmul.f32 %v6141, %v6206
    %v6222 = vmul.f32 %v6142, %v6206
    %v6223 = vmul.f32 %v6143, %v6206
    %v6224 = vld [vmem:[%s8] sm:$0x1]
    %v6226 = vlaneseq
    %v6227 = vshrl.u32 %v6226, 7
    %v6228 = vsub.s32 0, %v6227
    %v6229 = vrot.slane %v6224, %v6228
    %v6231 = vadd.f32 %v6208, %v6229
    %v6232 = vadd.f32 %v6209, %v6229
    %v6233 = vadd.f32 %v6210, %v6229
    %v6234 = vadd.f32 %v6211, %v6229
    %v6235 = vadd.f32 %v6212, %v6229
    %v6236 = vadd.f32 %v6213, %v6229
    %v6237 = vadd.f32 %v6214, %v6229
    %v6238 = vadd.f32 %v6215, %v6229
    %v6239 = vadd.f32 %v6216, %v6229
    %v6240 = vadd.f32 %v6217, %v6229
    %v6241 = vadd.f32 %v6218, %v6229
    %v6242 = vadd.f32 %v6219, %v6229
    %v6243 = vadd.f32 %v6220, %v6229
    %v6244 = vadd.f32 %v6221, %v6229
    %v6245 = vadd.f32 %v6222, %v6229
    %v6246 = vadd.f32 %v6223, %v6229
    %v6247 = vmax.f32 %v6231, 0.0
    %v6248 = vmax.f32 %v6232, 0.0
    %v6249 = vmax.f32 %v6233, 0.0
    %v6250 = vmax.f32 %v6234, 0.0
    %v6251 = vmax.f32 %v6235, 0.0
    %v6252 = vmax.f32 %v6236, 0.0
    %v6253 = vmax.f32 %v6237, 0.0
    %v6254 = vmax.f32 %v6238, 0.0
    %v6255 = vmax.f32 %v6239, 0.0
    %v6256 = vmax.f32 %v6240, 0.0
    %v6257 = vmax.f32 %v6241, 0.0
    %v6258 = vmax.f32 %v6242, 0.0
    %v6259 = vmax.f32 %v6243, 0.0
    %v6260 = vmax.f32 %v6244, 0.0
    %v6261 = vmax.f32 %v6245, 0.0
    %v6262 = vmax.f32 %v6246, 0.0
    %6263 = vst.msk [vmem:[#allocation7] sm:$0xff] %vm6089, %v6247
    %6264 = vst.msk [vmem:[#allocation7 + $0x8] sm:$0xff] %vm6089, %v6248
    %6265 = vst.msk [vmem:[#allocation7 + $0x10] sm:$0xff] %vm6089, %v6249
    %6266 = vst.msk [vmem:[#allocation7 + $0x18] sm:$0xff] %vm6089, %v6250
    %6267 = vst.msk [vmem:[#allocation7 + $0x20] sm:$0xff] %vm6089, %v6251
    %6268 = vst.msk [vmem:[#allocation7 + $0x28] sm:$0xff] %vm6089, %v6252
    %6269 = vst.msk [vmem:[#allocation7 + $0x30] sm:$0xff] %vm6089, %v6253
    %6270 = vst.msk [vmem:[#allocation7 + $0x38] sm:$0xff] %vm6089, %v6254
    %6271 = vst.msk [vmem:[#allocation7 + $0x40] sm:$0xff] %vm6089, %v6255
    %6272 = vst.msk [vmem:[#allocation7 + $0x48] sm:$0xff] %vm6089, %v6256
    %6273 = vst.msk [vmem:[#allocation7 + $0x50] sm:$0xff] %vm6089, %v6257
    %6274 = vst.msk [vmem:[#allocation7 + $0x58] sm:$0xff] %vm6089, %v6258
    %6275 = vst.msk [vmem:[#allocation7 + $0x60] sm:$0xff] %vm6089, %v6259
    %6276 = vst.msk [vmem:[#allocation7 + $0x68] sm:$0xff] %vm6089, %v6260
    %6277 = vst.msk [vmem:[#allocation7 + $0x70] sm:$0xff] %vm6089, %v6261
    %6278 = vst.msk [vmem:[#allocation7 + $0x78] sm:$0xff] %vm6089, %v6262
    %v6279 = vld [vmem:[#allocation7] ss:$2 sm:$0xf]
    %s6280 = scalar_lea.vmem [#allocation7], 8
    %v6281 = vld [vmem:[%s6280] ss:$2 sm:$0xf]
    %s6282 = scalar_lea.vmem [#allocation7], 16
    %v6283 = vld [vmem:[%s6282] ss:$2 sm:$0xf]
    %s6284 = scalar_lea.vmem [#allocation7], 24
    %v6285 = vld [vmem:[%s6284] ss:$2 sm:$0xf]
    %s6286 = scalar_lea.vmem [#allocation7], 32
    %v6287 = vld [vmem:[%s6286] ss:$2 sm:$0xf]
    %s6288 = scalar_lea.vmem [#allocation7], 40
    %v6289 = vld [vmem:[%s6288] ss:$2 sm:$0xf]
    %s6290 = scalar_lea.vmem [#allocation7], 48
    %v6291 = vld [vmem:[%s6290] ss:$2 sm:$0xf]
    %s6292 = scalar_lea.vmem [#allocation7], 56
    %v6293 = vld [vmem:[%s6292] ss:$2 sm:$0xf]
    %s6294 = scalar_lea.vmem [#allocation7], 64
    %v6295 = vld [vmem:[%s6294] ss:$2 sm:$0xf]
    %s6296 = scalar_lea.vmem [#allocation7], 72
    %v6297 = vld [vmem:[%s6296] ss:$2 sm:$0xf]
    %s6298 = scalar_lea.vmem [#allocation7], 80
    %v6299 = vld [vmem:[%s6298] ss:$2 sm:$0xf]
    %s6300 = scalar_lea.vmem [#allocation7], 88
    %v6301 = vld [vmem:[%s6300] ss:$2 sm:$0xf]
    %s6302 = scalar_lea.vmem [#allocation7], 96
    %v6303 = vld [vmem:[%s6302] ss:$2 sm:$0xf]
    %s6304 = scalar_lea.vmem [#allocation7], 104
    %v6305 = vld [vmem:[%s6304] ss:$2 sm:$0xf]
    %s6306 = scalar_lea.vmem [#allocation7], 112
    %v6307 = vld [vmem:[%s6306] ss:$2 sm:$0xf]
    %s6308 = scalar_lea.vmem [#allocation7], 120
    %v6309 = vld [vmem:[%s6308] ss:$2 sm:$0xf]
    %s6310 = scalar_lea.vmem [#allocation7], 1
    %v6311 = vld [vmem:[%s6310] ss:$2 sm:$0xf]
    %s6312 = scalar_lea.vmem [#allocation7], 9
    %v6313 = vld [vmem:[%s6312] ss:$2 sm:$0xf]
    %s6314 = scalar_lea.vmem [#allocation7], 17
    %v6315 = vld [vmem:[%s6314] ss:$2 sm:$0xf]
    %s6316 = scalar_lea.vmem [#allocation7], 25
    %v6317 = vld [vmem:[%s6316] ss:$2 sm:$0xf]
    %s6318 = scalar_lea.vmem [#allocation7], 33
    %v6319 = vld [vmem:[%s6318] ss:$2 sm:$0xf]
    %s6320 = scalar_lea.vmem [#allocation7], 41
    %v6321 = vld [vmem:[%s6320] ss:$2 sm:$0xf]
    %s6322 = scalar_lea.vmem [#allocation7], 49
    %v6323 = vld [vmem:[%s6322] ss:$2 sm:$0xf]
    %s6324 = scalar_lea.vmem [#allocation7], 57
    %v6325 = vld [vmem:[%s6324] ss:$2 sm:$0xf]
    %s6326 = scalar_lea.vmem [#allocation7], 65
    %v6327 = vld [vmem:[%s6326] ss:$2 sm:$0xf]
    %s6328 = scalar_lea.vmem [#allocation7], 73
    %v6329 = vld [vmem:[%s6328] ss:$2 sm:$0xf]
    %s6330 = scalar_lea.vmem [#allocation7], 81
    %v6331 = vld [vmem:[%s6330] ss:$2 sm:$0xf]
    %s6332 = scalar_lea.vmem [#allocation7], 89
    %v6333 = vld [vmem:[%s6332] ss:$2 sm:$0xf]
    %s6334 = scalar_lea.vmem [#allocation7], 97
    %v6335 = vld [vmem:[%s6334] ss:$2 sm:$0xf]
    %s6336 = scalar_lea.vmem [#allocation7], 105
    %v6337 = vld [vmem:[%s6336] ss:$2 sm:$0xf]
    %s6338 = scalar_lea.vmem [#allocation7], 113
    %v6339 = vld [vmem:[%s6338] ss:$2 sm:$0xf]
    %s6340 = scalar_lea.vmem [#allocation7], 121
    %v6341 = vld [vmem:[%s6340] ss:$2 sm:$0xf]
    %v6342 = vmax.f32 %v6279, %v6311
    %v6343 = vmax.f32 %v6281, %v6313
    %v6344 = vmax.f32 %v6283, %v6315
    %v6345 = vmax.f32 %v6285, %v6317
    %v6346 = vmax.f32 %v6287, %v6319
    %v6347 = vmax.f32 %v6289, %v6321
    %v6348 = vmax.f32 %v6291, %v6323
    %v6349 = vmax.f32 %v6293, %v6325
    %v6350 = vmax.f32 %v6295, %v6327
    %v6351 = vmax.f32 %v6297, %v6329
    %v6352 = vmax.f32 %v6299, %v6331
    %v6353 = vmax.f32 %v6301, %v6333
    %v6354 = vmax.f32 %v6303, %v6335
    %v6355 = vmax.f32 %v6305, %v6337
    %v6356 = vmax.f32 %v6307, %v6339
    %v6357 = vmax.f32 %v6309, %v6341
    %v6358 = vmax.f32 %v6342, %v6343
    %v6359 = vmax.f32 %v6344, %v6345
    %v6360 = vmax.f32 %v6346, %v6347
    %v6361 = vmax.f32 %v6348, %v6349
    %v6362 = vmax.f32 %v6350, %v6351
    %v6363 = vmax.f32 %v6352, %v6353
    %v6364 = vmax.f32 %v6354, %v6355
    %v6365 = vmax.f32 %v6356, %v6357
    %v6369 = vunpack.c.l.s4 1983009808
    %v6370 = vunpack.c.0.s8 %v6369
    %v6371 = vlaneseq
    %v6372 = vshrl.u32 %v6371, 7
    %v6373 = vsub.s32 %v6370, %v6372
    %v6374 = vrot.slane %v6358, %v6373
    %v6376 = vunpack.c.l.s4 1983009808
    %v6377 = vunpack.c.0.s8 %v6376
    %v6378 = vlaneseq
    %v6379 = vshrl.u32 %v6378, 7
    %v6380 = vsub.s32 %v6377, %v6379
    %v6381 = vrot.slane %v6362, %v6380
    %vm6382 = vcmask 1044484
    %v6383 = vsel %vm6382, %v6374, %v6374
    %vm6384 = vcmask 1046534
    %v6385 = vsel %vm6384, %v6374, %v6383
    %v6386 = vrot.slane %v6381, 7
    %vm6387 = vcmask 1041409
    %v6388 = vsel %vm6387, %v6386, %v6385
    %vm6389 = vcmask 1043459
    %v6390 = vsel %vm6389, %v6386, %v6388
    %vm6391 = vcmask 1045509
    %v6392 = vsel %vm6391, %v6386, %v6390
    %vm6393 = vcmask 1047559
    %v6394 = vsel %vm6393, %v6386, %v6392
    %vm6396 = vcmask 123904
    %6397 = vst.msk [vmem:[#allocation8] sm:$0x3] %vm6396, %v6394
    %v6398 = vrot.slane %v6374, 1
    %v6399 = vsel %vm6382, %v6398, %v6398
    %v6400 = vsel %vm6384, %v6398, %v6399
    %v6401 = vsel %vm6387, %v6381, %v6400
    %v6402 = vsel %vm6389, %v6381, %v6401
    %v6403 = vsel %vm6391, %v6381, %v6402
    %v6404 = vsel %vm6393, %v6381, %v6403
    %6405 = vrot.lane.b32.xlu0 %v6404, 16
    %v6406 = vpop.permute.xlu0 %6405
    %vm6408 = vcmask 255104
    %6409 = vst.msk [vmem:[#allocation8] sm:$0x3] %vm6408, %v6406
    %v6410 = vcombine.high %v6374, %v6374
    %v6411 = vcombine.high %v6381, %v6381
    %v6412 = vsel %vm6382, %v6410, %v6410
    %v6413 = vsel %vm6384, %v6410, %v6412
    %v6414 = vrot.slane %v6411, 7
    %v6415 = vsel %vm6387, %v6414, %v6413
    %v6416 = vsel %vm6389, %v6414, %v6415
    %v6417 = vsel %vm6391, %v6414, %v6416
    %v6418 = vsel %vm6393, %v6414, %v6417
    %6419 = vrot.lane.b32.xlu0 %v6418, 32
    %v6420 = vpop.permute.xlu0 %6419
    %vm6422 = vcmask 386304
    %6423 = vst.msk [vmem:[#allocation8] sm:$0x3] %vm6422, %v6420
    %v6424 = vrot.slane %v6410, 1
    %v6425 = vsel %vm6382, %v6424, %v6424
    %v6426 = vsel %vm6384, %v6424, %v6425
    %v6427 = vsel %vm6387, %v6411, %v6426
    %v6428 = vsel %vm6389, %v6411, %v6427
    %v6429 = vsel %vm6391, %v6411, %v6428
    %v6430 = vsel %vm6393, %v6411, %v6429
    %6431 = vrot.lane.b32.xlu0 %v6430, 48
    %v6432 = vpop.permute.xlu0 %6431
    %vm6434 = vcmask 517504
    %6435 = vst.msk [vmem:[#allocation8] sm:$0x3] %vm6434, %v6432
    %v6439 = vunpack.c.l.s4 1983009808
    %v6440 = vunpack.c.0.s8 %v6439
    %v6441 = vlaneseq
    %v6442 = vshrl.u32 %v6441, 7
    %v6443 = vsub.s32 %v6440, %v6442
    %v6444 = vrot.slane %v6359, %v6443
    %v6446 = vunpack.c.l.s4 1983009808
    %v6447 = vunpack.c.0.s8 %v6446
    %v6448 = vlaneseq
    %v6449 = vshrl.u32 %v6448, 7
    %v6450 = vsub.s32 %v6447, %v6449
    %v6451 = vrot.slane %v6363, %v6450
    %v6452 = vsel %vm6382, %v6444, %v6444
    %v6453 = vsel %vm6384, %v6444, %v6452
    %v6454 = vrot.slane %v6451, 7
    %v6455 = vsel %vm6387, %v6454, %v6453
    %v6456 = vsel %vm6389, %v6454, %v6455
    %v6457 = vsel %vm6391, %v6454, %v6456
    %v6458 = vsel %vm6393, %v6454, %v6457
    %6459 = vrot.lane.b32.xlu0 %v6458, 64
    %v6460 = vpop.permute.xlu0 %6459
    %vm6462 = vcmask 648704
    %6463 = vst.msk [vmem:[#allocation8] sm:$0x3] %vm6462, %v6460
    %v6464 = vrot.slane %v6444, 1
    %v6465 = vsel %vm6382, %v6464, %v6464
    %v6466 = vsel %vm6384, %v6464, %v6465
    %v6467 = vsel %vm6387, %v6451, %v6466
    %v6468 = vsel %vm6389, %v6451, %v6467
    %v6469 = vsel %vm6391, %v6451, %v6468
    %v6470 = vsel %vm6393, %v6451, %v6469
    %6471 = vrot.lane.b32.xlu0 %v6470, 80
    %v6472 = vpop.permute.xlu0 %6471
    %vm6474 = vcmask 779904
    %6475 = vst.msk [vmem:[#allocation8] sm:$0x3] %vm6474, %v6472
    %v6476 = vcombine.high %v6444, %v6444
    %v6477 = vcombine.high %v6451, %v6451
    %v6478 = vsel %vm6382, %v6476, %v6476
    %v6479 = vsel %vm6384, %v6476, %v6478
    %v6480 = vrot.slane %v6477, 7
    %v6481 = vsel %vm6387, %v6480, %v6479
    %v6482 = vsel %vm6389, %v6480, %v6481
    %v6483 = vsel %vm6391, %v6480, %v6482
    %v6484 = vsel %vm6393, %v6480, %v6483
    %6485 = vrot.lane.b32.xlu0 %v6484, 96
    %v6486 = vpop.permute.xlu0 %6485
    %vm6488 = vcmask 911104
    %6489 = vst.msk [vmem:[#allocation8] sm:$0x3] %vm6488, %v6486
    %v6490 = vrot.slane %v6476, 1
    %v6491 = vsel %vm6382, %v6490, %v6490
    %v6492 = vsel %vm6384, %v6490, %v6491
    %v6493 = vsel %vm6387, %v6477, %v6492
    %v6494 = vsel %vm6389, %v6477, %v6493
    %v6495 = vsel %vm6391, %v6477, %v6494
    %v6496 = vsel %vm6393, %v6477, %v6495
    %6497 = vrot.lane.b32.xlu0 %v6496, 112
    %v6498 = vpop.permute.xlu0 %6497
    %vm6500 = vcmask 1042304
    %6501 = vst.msk [vmem:[#allocation8] sm:$0x3] %vm6500, %v6498
    %v6505 = vunpack.c.l.s4 1983009808
    %v6506 = vunpack.c.0.s8 %v6505
    %v6507 = vlaneseq
    %v6508 = vshrl.u32 %v6507, 7
    %v6509 = vsub.s32 %v6506, %v6508
    %v6510 = vrot.slane %v6360, %v6509
    %v6512 = vunpack.c.l.s4 1983009808
    %v6513 = vunpack.c.0.s8 %v6512
    %v6514 = vlaneseq
    %v6515 = vshrl.u32 %v6514, 7
    %v6516 = vsub.s32 %v6513, %v6515
    %v6517 = vrot.slane %v6364, %v6516
    %v6518 = vsel %vm6382, %v6510, %v6510
    %v6519 = vsel %vm6384, %v6510, %v6518
    %v6520 = vrot.slane %v6517, 7
    %v6521 = vsel %vm6387, %v6520, %v6519
    %v6522 = vsel %vm6389, %v6520, %v6521
    %v6523 = vsel %vm6391, %v6520, %v6522
    %v6524 = vsel %vm6393, %v6520, %v6523
    %6526 = vst.msk [vmem:[#allocation8 + $0x2] sm:$0x3] %vm6396, %v6524
    %v6527 = vrot.slane %v6510, 1
    %v6528 = vsel %vm6382, %v6527, %v6527
    %v6529 = vsel %vm6384, %v6527, %v6528
    %v6530 = vsel %vm6387, %v6517, %v6529
    %v6531 = vsel %vm6389, %v6517, %v6530
    %v6532 = vsel %vm6391, %v6517, %v6531
    %v6533 = vsel %vm6393, %v6517, %v6532
    %6534 = vrot.lane.b32.xlu0 %v6533, 16
    %v6535 = vpop.permute.xlu0 %6534
    %6537 = vst.msk [vmem:[#allocation8 + $0x2] sm:$0x3] %vm6408, %v6535
    %v6538 = vcombine.high %v6510, %v6510
    %v6539 = vcombine.high %v6517, %v6517
    %v6540 = vsel %vm6382, %v6538, %v6538
    %v6541 = vsel %vm6384, %v6538, %v6540
    %v6542 = vrot.slane %v6539, 7
    %v6543 = vsel %vm6387, %v6542, %v6541
    %v6544 = vsel %vm6389, %v6542, %v6543
    %v6545 = vsel %vm6391, %v6542, %v6544
    %v6546 = vsel %vm6393, %v6542, %v6545
    %6547 = vrot.lane.b32.xlu0 %v6546, 32
    %v6548 = vpop.permute.xlu0 %6547
    %6550 = vst.msk [vmem:[#allocation8 + $0x2] sm:$0x3] %vm6422, %v6548
    %v6551 = vrot.slane %v6538, 1
    %v6552 = vsel %vm6382, %v6551, %v6551
    %v6553 = vsel %vm6384, %v6551, %v6552
    %v6554 = vsel %vm6387, %v6539, %v6553
    %v6555 = vsel %vm6389, %v6539, %v6554
    %v6556 = vsel %vm6391, %v6539, %v6555
    %v6557 = vsel %vm6393, %v6539, %v6556
    %6558 = vrot.lane.b32.xlu0 %v6557, 48
    %v6559 = vpop.permute.xlu0 %6558
    %6561 = vst.msk [vmem:[#allocation8 + $0x2] sm:$0x3] %vm6434, %v6559
    %v6565 = vunpack.c.l.s4 1983009808
    %v6566 = vunpack.c.0.s8 %v6565
    %v6567 = vlaneseq
    %v6568 = vshrl.u32 %v6567, 7
    %v6569 = vsub.s32 %v6566, %v6568
    %v6570 = vrot.slane %v6361, %v6569
    %v6572 = vunpack.c.l.s4 1983009808
    %v6573 = vunpack.c.0.s8 %v6572
    %v6574 = vlaneseq
    %v6575 = vshrl.u32 %v6574, 7
    %v6576 = vsub.s32 %v6573, %v6575
    %v6577 = vrot.slane %v6365, %v6576
    %v6578 = vsel %vm6382, %v6570, %v6570
    %v6579 = vsel %vm6384, %v6570, %v6578
    %v6580 = vrot.slane %v6577, 7
    %v6581 = vsel %vm6387, %v6580, %v6579
    %v6582 = vsel %vm6389, %v6580, %v6581
    %v6583 = vsel %vm6391, %v6580, %v6582
    %v6584 = vsel %vm6393, %v6580, %v6583
    %6585 = vrot.lane.b32.xlu0 %v6584, 64
    %v6586 = vpop.permute.xlu0 %6585
    %6588 = vst.msk [vmem:[#allocation8 + $0x2] sm:$0x3] %vm6462, %v6586
    %v6589 = vrot.slane %v6570, 1
    %v6590 = vsel %vm6382, %v6589, %v6589
    %v6591 = vsel %vm6384, %v6589, %v6590
    %v6592 = vsel %vm6387, %v6577, %v6591
    %v6593 = vsel %vm6389, %v6577, %v6592
    %v6594 = vsel %vm6391, %v6577, %v6593
    %v6595 = vsel %vm6393, %v6577, %v6594
    %6596 = vrot.lane.b32.xlu0 %v6595, 80
    %v6597 = vpop.permute.xlu0 %6596
    %6599 = vst.msk [vmem:[#allocation8 + $0x2] sm:$0x3] %vm6474, %v6597
    %v6600 = vcombine.high %v6570, %v6570
    %v6601 = vcombine.high %v6577, %v6577
    %v6602 = vsel %vm6382, %v6600, %v6600
    %v6603 = vsel %vm6384, %v6600, %v6602
    %v6604 = vrot.slane %v6601, 7
    %v6605 = vsel %vm6387, %v6604, %v6603
    %v6606 = vsel %vm6389, %v6604, %v6605
    %v6607 = vsel %vm6391, %v6604, %v6606
    %v6608 = vsel %vm6393, %v6604, %v6607
    %6609 = vrot.lane.b32.xlu0 %v6608, 96
    %v6610 = vpop.permute.xlu0 %6609
    %6612 = vst.msk [vmem:[#allocation8 + $0x2] sm:$0x3] %vm6488, %v6610
    %v6613 = vrot.slane %v6600, 1
    %v6614 = vsel %vm6382, %v6613, %v6613
    %v6615 = vsel %vm6384, %v6613, %v6614
    %v6616 = vsel %vm6387, %v6601, %v6615
    %v6617 = vsel %vm6389, %v6601, %v6616
    %v6618 = vsel %vm6391, %v6601, %v6617
    %v6619 = vsel %vm6393, %v6601, %v6618
    %6620 = vrot.lane.b32.xlu0 %v6619, 112
    %v6621 = vpop.permute.xlu0 %6620
    %6623 = vst.msk [vmem:[#allocation8 + $0x2] sm:$0x3] %vm6500, %v6621
    %v6624 = vld [vmem:[#allocation8] sm:$0xf]
    %v6625 = vld [vmem:[%s9] sm:$0xff]
    %v6626 = vld [vmem:[%s9 + $0x8] sm:$0xff]
    %v6627 = vld [vmem:[%s9 + $0x10] sm:$0xff]
    %v6628 = vld [vmem:[%s9 + $0x18] sm:$0xff]
    %v6629 = vld [vmem:[%s9 + $0x20] sm:$0xff]
    %v6630 = vld [vmem:[%s9 + $0x28] sm:$0xff]
    %v6631 = vld [vmem:[%s9 + $0x30] sm:$0xff]
    %v6632 = vld [vmem:[%s9 + $0x38] sm:$0xff]
    %v6633 = vld [vmem:[%s9 + $0x40] sm:$0xff]
    %v6634 = vld [vmem:[%s9 + $0x48] sm:$0xff]
    %v6635 = vld [vmem:[%s9 + $0x50] sm:$0xff]
    %v6636 = vld [vmem:[%s9 + $0x58] sm:$0xff]
    %v6637 = vld [vmem:[%s9 + $0x60] sm:$0xff]
    %v6638 = vld [vmem:[%s9 + $0x68] sm:$0xff]
    %v6639 = vld [vmem:[%s9 + $0x70] sm:$0xff]
    %v6640 = vld [vmem:[%s9 + $0x78] sm:$0xff]
    %v6641 = vld [vmem:[%s9 + $0x80] sm:$0xff]
    %v6642 = vld [vmem:[%s9 + $0x88] sm:$0xff]
    %v6643 = vld [vmem:[%s9 + $0x90] sm:$0xff]
    %v6644 = vld [vmem:[%s9 + $0x98] sm:$0xff]
    %v6645 = vld [vmem:[%s9 + $0xa0] sm:$0xff]
    %v6646 = vld [vmem:[%s9 + $0xa8] sm:$0xff]
    %v6647 = vld [vmem:[%s9 + $0xb0] sm:$0xff]
    %v6648 = vld [vmem:[%s9 + $0xb8] sm:$0xff]
    %v6649 = vld [vmem:[%s9 + $0xc0] sm:$0xff]
    %v6650 = vld [vmem:[%s9 + $0xc8] sm:$0xff]
    %v6651 = vld [vmem:[%s9 + $0xd0] sm:$0xff]
    %v6652 = vld [vmem:[%s9 + $0xd8] sm:$0xff]
    %v6653 = vld [vmem:[%s9 + $0xe0] sm:$0xff]
    %v6654 = vld [vmem:[%s9 + $0xe8] sm:$0xff]
    %v6655 = vld [vmem:[%s9 + $0xf0] sm:$0xff]
    %v6656 = vld [vmem:[%s9 + $0xf8] sm:$0xff]
    %v6657 = vld [vmem:[%s10] sm:$0x1]
    %v6659 = vlaneseq
    %v6660 = vshrl.u32 %v6659, 7
    %v6661 = vsub.s32 0, %v6660
    %v6662 = vrot.slane %v6657, %v6661
    %v6666 = vunpack.c.l.s4 1983009808
    %v6667 = vunpack.c.0.s8 %v6666
    %v6668 = vlaneseq
    %v6669 = vshrl.u32 %v6668, 7
    %v6670 = vsub.s32 %v6667, %v6669
    %v6671 = vrot.slane %v6624, %v6670
    %v6672 = vcombine.high %v6671, %v6671
    %6675 = vmatprep.subr.mxu0 0.0
    %6676 = vmatpush1.msra.mxu0 %v6640
    %6677 = vmatprep.subr.mxu0 0.0
    %6678 = vmatpush1.msra.mxu0 %v6639
    %6679 = vmatprep.subr.mxu0 0.0
    %6680 = vmatpush1.msra.mxu0 %v6638
    %6681 = vmatprep.subr.mxu0 0.0
    %6682 = vmatpush1.msra.mxu0 %v6637
    %6683 = vmatprep.subr.mxu0 0.0
    %6684 = vmatpush1.msra.mxu0 %v6636
    %6685 = vmatprep.subr.mxu0 0.0
    %6686 = vmatpush1.msra.mxu0 %v6635
    %6687 = vmatprep.subr.mxu0 0.0
    %6688 = vmatpush1.msra.mxu0 %v6634
    %6689 = vmatprep.subr.mxu0 0.0
    %6690 = vmatpush1.msra.mxu0 %v6633
    %6691 = vmatprep.subr.mxu0 0.0
    %6692 = vmatpush1.msra.mxu0 %v6632
    %6693 = vmatprep.subr.mxu0 0.0
    %6694 = vmatpush1.msra.mxu0 %v6631
    %6695 = vmatprep.subr.mxu0 0.0
    %6696 = vmatpush1.msra.mxu0 %v6630
    %6697 = vmatprep.subr.mxu0 0.0
    %6698 = vmatpush1.msra.mxu0 %v6629
    %6699 = vmatprep.subr.mxu0 0.0
    %6700 = vmatpush1.msra.mxu0 %v6628
    %6701 = vmatprep.subr.mxu0 0.0
    %6702 = vmatpush1.msra.mxu0 %v6627
    %6703 = vmatprep.subr.mxu0 0.0
    %6704 = vmatpush1.msra.mxu0 %v6626
    %6705 = vmatprep.subr.mxu0 0.0
    %6706 = vmatpush1.msra.mxu0 %v6625
    %6707 = vmatprep.subr.mxu0 0.0
    %6708 = vmatpush2.msra.mxu0 %v6656
    %6709 = vmatprep.subr.mxu0 0.0
    %6710 = vmatpush2.msra.mxu0 %v6655
    %6711 = vmatprep.subr.mxu0 0.0
    %6712 = vmatpush2.msra.mxu0 %v6654
    %6713 = vmatprep.subr.mxu0 0.0
    %6714 = vmatpush2.msra.mxu0 %v6653
    %6715 = vmatprep.subr.mxu0 0.0
    %6716 = vmatpush2.msra.mxu0 %v6652
    %6717 = vmatprep.subr.mxu0 0.0
    %6718 = vmatpush2.msra.mxu0 %v6651
    %6719 = vmatprep.subr.mxu0 0.0
    %6720 = vmatpush2.msra.mxu0 %v6650
    %6721 = vmatprep.subr.mxu0 0.0
    %6722 = vmatpush2.msra.mxu0 %v6649
    %6723 = vmatprep.subr.mxu0 0.0
    %6724 = vmatpush2.msra.mxu0 %v6648
    %6725 = vmatprep.subr.mxu0 0.0
    %6726 = vmatpush2.msra.mxu0 %v6647
    %6727 = vmatprep.subr.mxu0 0.0
    %6728 = vmatpush2.msra.mxu0 %v6646
    %6729 = vmatprep.subr.mxu0 0.0
    %6730 = vmatpush2.msra.mxu0 %v6645
    %6731 = vmatprep.subr.mxu0 0.0
    %6732 = vmatpush2.msra.mxu0 %v6644
    %6733 = vmatprep.subr.mxu0 0.0
    %6734 = vmatpush2.msra.mxu0 %v6643
    %6735 = vmatprep.subr.mxu0 0.0
    %6736 = vmatpush2.msra.mxu0 %v6642
    %6737 = vmatprep.subr.mxu0 0.0
    %6738 = vmatpush2.msra.mxu0 %v6641
    %6739 = vmatprep.mubr.f32.mxu0 %v6672
    %6740 = vmatmul.mubr.f32.gmra.mxu0 %v6671
    %v6741 = vpop.f32.mrf.mxu0
    %v6742 = vadd.f32 %v6662, %v6741
    %v6743 = vpop.f32.mrf.mxu0
    %6744 = vdwg.mxu0
    %v6745 = vmax.f32 %v6742, 0.0
    %v6746 = vld [vmem:[%s11] sm:$0xff]
    %v6747 = vld [vmem:[%s11 + $0x8] sm:$0xff]
    %v6748 = vld [vmem:[%s11 + $0x10] sm:$0xff]
    %v6749 = vld [vmem:[%s11 + $0x18] sm:$0xff]
    %v6750 = vld [vmem:[%s12] sm:$0x1]
    %v6752 = vlaneseq
    %v6753 = vshrl.u32 %v6752, 7
    %v6754 = vsub.s32 0, %v6753
    %v6755 = vrot.slane %v6750, %v6754
    %vm6757 = vcmask 261120
    %v6759 = vsel %vm6757, %v6745, 0
    %6761 = vmatprep.subr.mxu0 0.0
    %6762 = vmatpush1.msra.mxu0 0.0
    %6763 = vmatprep.subr.mxu0 0.0
    %6764 = vmatpush1.msra.mxu0 0.0
    %6765 = vmatprep.subr.mxu0 0.0
    %6766 = vmatpush1.msra.mxu0 0.0
    %6767 = vmatprep.subr.mxu0 0.0
    %6768 = vmatpush1.msra.mxu0 0.0
    %6769 = vmatprep.subr.mxu0 0.0
    %6770 = vmatpush1.msra.mxu0 0.0
    %6771 = vmatprep.subr.mxu0 0.0
    %6772 = vmatpush1.msra.mxu0 0.0
    %6773 = vmatprep.subr.mxu0 0.0
    %6774 = vmatpush1.msra.mxu0 0.0
    %6775 = vmatprep.subr.mxu0 0.0
    %6776 = vmatpush1.msra.mxu0 0.0
    %6777 = vmatprep.subr.mxu0 0.0
    %6778 = vmatpush1.msra.mxu0 0.0
    %6779 = vmatprep.subr.mxu0 0.0
    %6780 = vmatpush1.msra.mxu0 0.0
    %6781 = vmatprep.subr.mxu0 0.0
    %6782 = vmatpush1.msra.mxu0 0.0
    %6783 = vmatprep.subr.mxu0 0.0
    %6784 = vmatpush1.msra.mxu0 0.0
    %6785 = vmatprep.subr.mxu0 0.0
    %6786 = vmatpush1.msra.mxu0 %v6749
    %6787 = vmatprep.subr.mxu0 0.0
    %6788 = vmatpush1.msra.mxu0 %v6748
    %6789 = vmatprep.subr.mxu0 0.0
    %6790 = vmatpush1.msra.mxu0 %v6747
    %6791 = vmatprep.subr.mxu0 0.0
    %6792 = vmatpush1.msra.mxu0 %v6746
    %6793 = vmatprep.subr.mxu0 0.0
    %6794 = vmatpush2.msra.mxu0 0.0
    %6795 = vmatprep.subr.mxu0 0.0
    %6796 = vmatpush2.msra.mxu0 0.0
    %6797 = vmatprep.subr.mxu0 0.0
    %6798 = vmatpush2.msra.mxu0 0.0
    %6799 = vmatprep.subr.mxu0 0.0
    %6800 = vmatpush2.msra.mxu0 0.0
    %6801 = vmatprep.subr.mxu0 0.0
    %6802 = vmatpush2.msra.mxu0 0.0
    %6803 = vmatprep.subr.mxu0 0.0
    %6804 = vmatpush2.msra.mxu0 0.0
    %6805 = vmatprep.subr.mxu0 0.0
    %6806 = vmatpush2.msra.mxu0 0.0
    %6807 = vmatprep.subr.mxu0 0.0
    %6808 = vmatpush2.msra.mxu0 0.0
    %6809 = vmatprep.subr.mxu0 0.0
    %6810 = vmatpush2.msra.mxu0 0.0
    %6811 = vmatprep.subr.mxu0 0.0
    %6812 = vmatpush2.msra.mxu0 0.0
    %6813 = vmatprep.subr.mxu0 0.0
    %6814 = vmatpush2.msra.mxu0 0.0
    %6815 = vmatprep.subr.mxu0 0.0
    %6816 = vmatpush2.msra.mxu0 0.0
    %6817 = vmatprep.subr.mxu0 0.0
    %6818 = vmatpush2.msra.mxu0 0.0
    %6819 = vmatprep.subr.mxu0 0.0
    %6820 = vmatpush2.msra.mxu0 0.0
    %6821 = vmatprep.subr.mxu0 0.0
    %6822 = vmatpush2.msra.mxu0 0.0
    %6823 = vmatprep.subr.mxu0 0.0
    %6824 = vmatpush2.msra.mxu0 0.0
    %6825 = vmatprep.mubr.f32.mxu0 0.0
    %6826 = vmatmul.mubr.f32.gmra.mxu0 %v6759
    %v6827 = vpop.f32.mrf.mxu0
    %v6828 = vadd.f32 %v6755, %v6827
    %v6829 = vpop.f32.mrf.mxu0
    %6830 = vdwg.mxu0
    %vm6831 = vcmask 74752
    %6832 = vst.msk [vmem:[#allocation9] sm:$0x3] %vm6831, %v6828
    // Predicated region
    $region54: #{shadow_net_forward.1} parent=1 // pred_check
      _
    $region55: #{shadow_net_forward.1} parent=1 // pred_check_branch
      %6834 = sbr.rel (0) target = $region57
    $region56: #{shadow_net_forward.1} parent=1 // pred_region
      %s6836 = ssub.s32 32, 32
      %6837 = vsyncadd [#allocation10], %s6836
      %s6839 = sshll.u32 [#allocation9], 4
      %s6840 = int_to_ptr.vmem [resolvable:$true] %s6839
      %6842 = dma.vmem_to_hbm [thread:$0]  %s6840, 32, %s13, [#allocation10]
    $region57: #{shadow_net_forward.1} parent=1 // pred_fallthru
      _
    // Predicated region
    $region58: #{shadow_net_forward.1} parent=1 // pred_check
      _
    $region59: #{shadow_net_forward.1} parent=1 // pred_check_branch
      %6844 = sbr.rel (0) target = $region61
    $region60: #{shadow_net_forward.1} parent=1 // pred_region
      %6845 = dma.done [#allocation10], 32
    $region61: #{shadow_net_forward.1} parent=1 // pred_fallthru
      _
    %6846 = vsyncpa [#allocation10], 1

</llo_original>
